<compile_context>
chip_gen: v6e
topology: v6e:2x2x1
jax: 0.10.0
libtpu: 0.0.40
codegen_flags: <defaults>
</compile_context>

<pallas_src>
import jax
import jax.numpy as jnp
import numpy as np
from jax.experimental import pallas as pl
from jax.experimental.pallas import tpu as pltpu

NEG_SLOPE = 0.01   # nn.LeakyReLU default
BN_EPS = 1e-5      # nn.BatchNorm2d default


def _leaky(v):
    return jnp.where(v >= 0, v, NEG_SLOPE * v)


def _round_up(v, m):
    return ((v + m - 1) // m) * m


def _cdiv(a, b):
    return -(-a // b)


def _block_vmem_bytes(block_shape, dtype, buffers=2):
    """Physical (lane/sublane padded, double-buffered) VMEM bytes of a block."""
    itemsize = jnp.dtype(dtype).itemsize
    packing = max(1, 4 // itemsize)
    dims = [int(d) for d in block_shape]
    if len(dims) == 1:
        dims = [1] + dims
    lanes = _round_up(dims[-1], 128)
    subl = _round_up(dims[-2], 8 * packing)
    lead = 1
    for d in dims[:-2]:
        lead *= d
    return lead * subl * lanes * itemsize * buffers


def _vmem_limit(blocks):
    total = sum(_block_vmem_bytes(s, d) for s, d in blocks)
    # 2x headroom for compiler scratch; keep the request v7x-safe (<= 64 MiB).
    return int(min(max(2 * total + (1 << 20), 16 << 20), 64 << 20))


# ---------------------------------------------------------------------------
# Stage 1 kernel: ConvTranspose2d(k=2, s=2) + folded BN + LeakyReLU.
#   x2d (M, Cin) bf16 x w (Cin, 4*C1) bf16 -> y (M, 4*C1) bf16
# Column block s*C1:(s+1)*C1 is sub-pixel s = 2*a + b of the 2x upsample.
# ---------------------------------------------------------------------------
def _upconv_kernel(x_ref, w_ref, shift_ref, o_ref):
    acc = jnp.dot(x_ref[...], w_ref[...], preferred_element_type=jnp.float32)
    o_ref[...] = _leaky(acc + shift_ref[...]).astype(o_ref.dtype)


def _pick_row_tile(m, target=512):
    # Memory-bound stage: big tiles amortize the ~0.35us/step grid overhead,
    # but keep >= 2 grid steps so both v7x TensorCores get parallel work.
    half = _round_up(max(_cdiv(m, 2), 8), 8)
    return max(8, min(target, half))


def upconv_bn_lrelu(x2d, w_fused, shift4, *, target_tm=512):
    M, Cin = x2d.shape
    Co4 = w_fused.shape[-1]
    tm = _pick_row_tile(M, target_tm)
    Mp = _round_up(M, tm)
    if Mp != M:
        x2d = jnp.pad(x2d, ((0, Mp - M), (0, 0)))

    flops = 2 * Mp * Cin * Co4
    bytes_accessed = (Mp * Cin + Cin * Co4 + Mp * Co4) * 2 + Co4 * 4
    vmem_limit = _vmem_limit([((tm, Cin), jnp.bfloat16),
                              ((Cin, Co4), jnp.bfloat16),
                              ((1, Co4), jnp.float32),
                              ((tm, Co4), jnp.bfloat16)])

    y = pl.pallas_call(
        _upconv_kernel,
        out_shape=jax.ShapeDtypeStruct((Mp, Co4), jnp.bfloat16),
        grid_spec=pltpu.PrefetchScalarGridSpec(
            num_scalar_prefetch=0,
            grid=(Mp // tm,),
            in_specs=[
                pl.BlockSpec((tm, Cin), lambda i: (i, 0)),    # X row tile
                pl.BlockSpec((Cin, Co4), lambda i: (0, 0)),   # fused folded W (resident)
                pl.BlockSpec((1, Co4), lambda i: (0, 0)),     # folded bias/BN shift
            ],
            out_specs=pl.BlockSpec((tm, Co4), lambda i: (i, 0)),
        ),
        compiler_params=pltpu.CompilerParams(
            dimension_semantics=("parallel",),
            vmem_limit_bytes=vmem_limit),
        cost_estimate=pl.CostEstimate(flops=flops, transcendentals=0,
                                      bytes_accessed=bytes_accessed),
    )(x2d, w_fused, shift4)
    return y[:M] if Mp != M else y


# ---------------------------------------------------------------------------
# Stage 2+3 fused kernel: per sub-grid 3x3 (pad=1) conv + folded BN + LeakyReLU
# followed by 1x1 conv + LeakyReLU, on the row-flattened padded image.
# The 9 taps are statically shifted row windows of the input ref (row stride
# Wpad), accumulated as a chained value (no VMEM scratch, no im2col).  The
# image is processed in static row chunks to bound vreg pressure.
# Output rows with column index >= W are junk and are sliced off outside.
# ---------------------------------------------------------------------------
def _make_conv_fused_kernel(Wpad, Mv, cr):
    def kernel(xp_ref, w2_ref, shift2_ref, w3_ref, b3_ref, o_ref):
        shift2 = shift2_ref[...]          # (1, Cout) f32  (hoisted loads)
        w3 = w3_ref[...]                  # (Cout, Cout) bf16
        b3 = b3_ref[...]                  # (1, Cout) f32
        for c0 in range(0, Mv, cr):       # static row chunks
            rows = min(cr, Mv - c0)
            acc = None
            for t in range(9):
                di, dj = divmod(t, 3)
                off = c0 + di * Wpad + dj                 # static tap offset
                window = xp_ref[0, off:off + rows, :]     # (rows, C1) bf16
                d = jnp.dot(window, w2_ref[t],
                            preferred_element_type=jnp.float32)
                acc = d if acc is None else acc + d
            z = _leaky(acc + shift2)                      # conv3x3 + BN + LReLU
            z = jnp.dot(z.astype(jnp.bfloat16), w3,       # fused 1x1 conv
                        preferred_element_type=jnp.float32) + b3
            o_ref[0, c0:c0 + rows, :] = _leaky(z).astype(o_ref.dtype)
    return kernel


def conv3x3_conv1x1_fused(yp_flat, w2, shift2, w3, b3, *, H, Wpad, row_chunk=256):
    G, M_in, C1 = yp_flat.shape
    Cout = w2.shape[-1]
    Mv = H * Wpad                              # multiple of 8 (Wpad % 8 == 0)
    cr = min(_round_up(row_chunk, 8), Mv)

    kernel = _make_conv_fused_kernel(Wpad, Mv, cr)

    flops = G * (9 * 2 * Mv * C1 * Cout + 2 * Mv * Cout * Cout)
    bytes_accessed = (G * (M_in * C1 * 2 + Mv * Cout * 4)
                      + (9 * C1 * Cout + Cout * Cout) * 2 + 2 * Cout * 4)
    vmem_limit = _vmem_limit([((1, M_in, C1), jnp.bfloat16),
                              ((9, C1, Cout), jnp.bfloat16),
                              ((1, Cout), jnp.float32),
                              ((Cout, Cout), jnp.bfloat16),
                              ((1, Cout), jnp.float32),
                              ((1, Mv, Cout), jnp.float32)])

    return pl.pallas_call(
        kernel,
        out_shape=jax.ShapeDtypeStruct((G, Mv, Cout), jnp.float32),
        grid_spec=pltpu.PrefetchScalarGridSpec(
            num_scalar_prefetch=0,
            grid=(G,),
            in_specs=[
                pl.BlockSpec((1, M_in, C1), lambda g: (g, 0, 0)),   # padded sub-grid image
                pl.BlockSpec((9, C1, Cout), lambda g: (0, 0, 0)),   # 9 folded tap weights
                pl.BlockSpec((1, Cout), lambda g: (0, 0)),          # folded bias/BN shift
                pl.BlockSpec((Cout, Cout), lambda g: (0, 0)),       # 1x1 weights
                pl.BlockSpec((1, Cout), lambda g: (0, 0)),          # 1x1 bias
            ],
            out_specs=pl.BlockSpec((1, Mv, Cout), lambda g: (g, 0, 0)),
        ),
        compiler_params=pltpu.CompilerParams(
            dimension_semantics=("parallel",),
            vmem_limit_bytes=vmem_limit),
        cost_estimate=pl.CostEstimate(flops=flops, transcendentals=0,
                                      bytes_accessed=bytes_accessed),
    )(yp_flat, w2, shift2, w3, b3)


# ---------------------------------------------------------------------------
# Parameter init (deterministic, mirrors __init_weights__) + BN folding
# ---------------------------------------------------------------------------
def init_scaleup_params(key, in_size, out_size):
    k1, k2, k3 = jax.random.split(key, 3)

    def kaiming(k, shape, fan_in):
        return jax.random.normal(k, shape, jnp.float32) * jnp.sqrt(2.0 / fan_in)

    p = {}
    # ConvTranspose2d weight: (in_channels, out_channels, kH, kW)
    p["w_up"] = kaiming(k1, (in_size, in_size, 2, 2), in_size * 4)
    p["b_up"] = jnp.zeros((in_size,), jnp.float32)
    # Conv2d(in,out,3) weight: (out, in, 3, 3)
    p["w_c0"] = kaiming(k2, (out_size, in_size, 3, 3), in_size * 9)
    p["b_c0"] = jnp.zeros((out_size,), jnp.float32)
    # Conv2d(out,out,1) weight: (out, out, 1, 1)
    p["w_c3"] = kaiming(k3, (out_size, out_size, 1, 1), out_size)
    p["b_c3"] = jnp.zeros((out_size,), jnp.float32)
    # BatchNorm2d defaults (eval mode, running stats)
    for name, c in (("up", in_size), ("c0", out_size)):
        p[f"bn_{name}_gamma"] = jnp.ones((c,), jnp.float32)
        p[f"bn_{name}_beta"] = jnp.zeros((c,), jnp.float32)
        p[f"bn_{name}_mean"] = jnp.zeros((c,), jnp.float32)
        p[f"bn_{name}_var"] = jnp.ones((c,), jnp.float32)
    return p


def _bn_fold(gamma, beta, mean, var):
    scale = gamma / jnp.sqrt(var + BN_EPS)
    shift = beta - scale * mean
    return scale, shift


# ---------------------------------------------------------------------------
# _ScaleUp forward (Pallas-backed), NCHW in / NCHW out like PyTorch.
# ---------------------------------------------------------------------------
@jax.jit
def scaleup_forward(params, x_nchw):
    N, Cin, H, W = x_nchw.shape
    C1 = params["w_up"].shape[1]          # == Cin
    Cout = params["w_c0"].shape[0]
    Wpad = _round_up(W + 2, 8)            # aligned row stride for the taps
    M = N * H * W

    x2d = (jnp.transpose(x_nchw, (0, 2, 3, 1))
              .reshape(M, Cin).astype(jnp.bfloat16))

    # ---- Stage 1: ConvTranspose2d(2,2) + BN + LeakyReLU, one fused matmul --
    sc1, sh1 = _bn_fold(params["bn_up_gamma"], params["bn_up_beta"],
                        params["bn_up_mean"], params["bn_up_var"])
    # (Cin, C1, 2, 2) -> (Cin, 4*C1); column block s = 2a+b, BN scale folded in.
    w_fused = jnp.transpose(params["w_up"], (0, 2, 3, 1)).reshape(Cin, 4 * C1)
    w_fused = (w_fused * jnp.tile(sc1, 4)[None, :]).astype(jnp.bfloat16)
    shift4 = (jnp.tile(params["b_up"] * sc1 + sh1, 4)
                 .reshape(1, 4 * C1).astype(jnp.float32))
    y = upconv_bn_lrelu(x2d, w_fused, shift4)           # (M, 4*C1) bf16

    # ---- sub-grid images, zero-padded for the per-sub-grid 3x3/pad1 conv ----
    # (n,i,j,a,b,c) -> (a,b,n,i,j,c); the transpose fuses into the pad copy.
    ysub = jnp.transpose(y.reshape(N, H, W, 2, 2, C1), (3, 4, 0, 1, 2, 5))
    yp = jnp.pad(ysub.reshape(4, N, H, W, C1),
                 ((0, 0), (0, 0), (1, 2), (1, Wpad - W - 1), (0, 0)))
    M_in = (H + 3) * Wpad
    yp_flat = yp.reshape(4 * N, M_in, C1)

    # ---- Stage 2+3: 3x3(pad=1) conv + BN + LReLU + 1x1 conv + LReLU --------
    sc2, sh2 = _bn_fold(params["bn_c0_gamma"], params["bn_c0_beta"],
                        params["bn_c0_mean"], params["bn_c0_var"])
    w2 = jnp.transpose(params["w_c0"], (2, 3, 1, 0)).reshape(9, Cin, Cout)
    w2 = (w2 * sc2[None, None, :]).astype(jnp.bfloat16)
    shift2 = (params["b_c0"] * sc2 + sh2).reshape(1, Cout).astype(jnp.float32)
    w3 = params["w_c3"][:, :, 0, 0].T.astype(jnp.bfloat16)
    b3 = params["b_c3"].reshape(1, Cout).astype(jnp.float32)

    out_flat = conv3x3_conv1x1_fused(yp_flat, w2, shift2, w3, b3, H=H, Wpad=Wpad)

    # Drop junk padded columns, interleave sub-pixels, back to NCHW.
    out6 = out_flat.reshape(2, 2, N, H, Wpad, Cout)[:, :, :, :, :W, :]
    out = jnp.transpose(out6, (2, 5, 3, 0, 4, 1)).reshape(N, Cout, 2 * H, 2 * W)
    return out


# ---------------------------------------------------------------------------
# Pure-JAX f32 reference (for validation)
# ---------------------------------------------------------------------------
def reference_forward(params, x_nchw):
    lrelu = lambda v: jnp.where(v >= 0, v, NEG_SLOPE * v)

    def bn(v, g, b, m, var):
        s = g / jnp.sqrt(var + BN_EPS)
        return v * s[None, :, None, None] + (b - s * m)[None, :, None, None]

    N, C, H, W = x_nchw.shape
    wt = params["w_up"]
    y = jnp.einsum("ncij,cdab->ndiajb", x_nchw, wt).reshape(
        N, wt.shape[1], 2 * H, 2 * W)
    y = y + params["b_up"][None, :, None, None]
    y = lrelu(bn(y, params["bn_up_gamma"], params["bn_up_beta"],
                 params["bn_up_mean"], params["bn_up_var"]))

    z = jax.lax.conv_general_dilated(
        y, params["w_c0"], window_strides=(1, 1),
        padding=((2, 2), (2, 2)), rhs_dilation=(2, 2),
        dimension_numbers=("NCHW", "OIHW", "NCHW"),
        precision=jax.lax.Precision.HIGHEST)
    z = z + params["b_c0"][None, :, None, None]
    z = lrelu(bn(z, params["bn_c0_gamma"], params["bn_c0_beta"],
                 params["bn_c0_mean"], params["bn_c0_var"]))

    z = jnp.einsum("nchw,dc->ndhw", z, params["w_c3"][:, :, 0, 0],
                   precision=jax.lax.Precision.HIGHEST)
    z = z + params["b_c3"][None, :, None, None]
    return lrelu(z)


# ---------------------------------------------------------------------------
if __name__ == "__main__":
    key = jax.random.PRNGKey(0)
    kx, kp = jax.random.split(key)

    N, in_size, out_size, H, W = 2, 4, 8, 16, 16
    x = jax.random.normal(kx, (N, in_size, H, W), jnp.float32)   # NCHW input
    params = init_scaleup_params(kp, in_size, out_size)

    out = jax.block_until_ready(scaleup_forward(params, x))
    assert out.shape == (N, out_size, 2 * H, 2 * W), out.shape

    ref = jax.block_until_ready(reference_forward(params, x))
    err = float(jnp.max(jnp.abs(out - ref)))
    # bf16 activations/weights through three chained matmul stages give ~1%
    # relative error at the extremes; an indexing bug produces O(|ref|) errors,
    # so this (tightened) bound still catches tap/offset mistakes.
    tol = 1e-2 + 3e-2 * float(jnp.max(jnp.abs(ref)))
    assert np.isfinite(err) and err < tol, f"max abs err {err} (tol {tol})"

    print("KERNEL_OK")
</pallas_src>

<mosaic_0001>
module attributes {stable_mosaic.version = 11 : i64} {
  func.func @_upconv_kernel(%arg0: i32, %arg1: memref<256x4xbf16, #tpu.memory_space<vmem>>, %arg2: memref<4x16xbf16, #tpu.memory_space<vmem>>, %arg3: memref<1x16xf32, #tpu.memory_space<vmem>>, %arg4: memref<256x16xbf16, #tpu.memory_space<vmem>>) attributes {dimension_semantics = [#tpu.dimension_semantics<parallel>], iteration_bounds = array<i64: 2>, scalar_prefetch = 0 : i64, scratch_operands = 0 : i64, tpu.core_type = #tpu.core_type<tc>, window_params = [{transform_indices = @transform_0, window_bounds = array<i64: 256, 4>}, {pipeline_mode = #tpu.pipeline_mode<synchronous>, transform_indices = @transform_1, window_bounds = array<i64: 4, 16>}, {pipeline_mode = #tpu.pipeline_mode<synchronous>, transform_indices = @transform_2, window_bounds = array<i64: 1, 16>}, {transform_indices = @transform_3, window_bounds = array<i64: 256, 16>}]} {
    %c0 = arith.constant 0 : index
    %c0_0 = arith.constant 0 : index
    %0 = vector.load %arg1[%c0, %c0_0] : memref<256x4xbf16, #tpu.memory_space<vmem>>, vector<256x4xbf16>
    %c0_1 = arith.constant 0 : index
    %c0_2 = arith.constant 0 : index
    %1 = vector.load %arg2[%c0_1, %c0_2] : memref<4x16xbf16, #tpu.memory_space<vmem>>, vector<4x16xbf16>
    %cst = arith.constant dense<0.000000e+00> : vector<256x16xf32>
    %2 = tpu.matmul %0, %1, %cst {dimension_numbers = #tpu.dot_dimension_numbers<[1], [0], [0], [1], [0, 0, 1, 1], [], []>} : vector<256x4xbf16>, vector<4x16xbf16>, vector<256x16xf32> -> vector<256x16xf32>
    %c0_3 = arith.constant 0 : index
    %c0_4 = arith.constant 0 : index
    %3 = vector.load %arg3[%c0_3, %c0_4] : memref<1x16xf32, #tpu.memory_space<vmem>>, vector<1x16xf32>
    %4 = vector.broadcast %3 : vector<1x16xf32> to vector<256x16xf32>
    %5 = arith.addf %2, %4 : vector<256x16xf32>
    %cst_5 = arith.constant 0.000000e+00 : f32
    %6 = vector.broadcast %cst_5 : f32 to vector<256x16xf32>
    %7 = arith.cmpf oge, %5, %6 : vector<256x16xf32>
    %cst_6 = arith.constant 0.00999999977 : f32
    %8 = vector.broadcast %cst_6 : f32 to vector<256x16xf32>
    %9 = arith.mulf %8, %5 : vector<256x16xf32>
    %10 = arith.select %7, %5, %9 : vector<256x16xi1>, vector<256x16xf32>
    %11 = arith.truncf %10 : vector<256x16xf32> to vector<256x16xbf16>
    %c0_7 = arith.constant 0 : index
    %c0_8 = arith.constant 0 : index
    %12 = vector.load %arg4[%c0_7, %c0_8] : memref<256x16xbf16, #tpu.memory_space<vmem>>, vector<256x16xbf16>
    tpu.vector_store %arg4[%c0_7, %c0_8], %11 {strides = array<i32>} : memref<256x16xbf16, #tpu.memory_space<vmem>>, vector<256x16xbf16>,
    return
  }
  func.func @transform_0(%arg0: i32) -> (i32, i32) {
    %c0_i32 = arith.constant 0 : i32
    %c0_i32_0 = arith.constant 0 : i32
    return %arg0, %c0_i32 : i32, i32
  }
  func.func @transform_1(%arg0: i32) -> (i32, i32) {
    %c0_i32 = arith.constant 0 : i32
    %c0_i32_0 = arith.constant 0 : i32
    %c0_i32_1 = arith.constant 0 : i32
    return %c0_i32, %c0_i32_0 : i32, i32
  }
  func.func @transform_2(%arg0: i32) -> (i32, i32) {
    %c0_i32 = arith.constant 0 : i32
    %c0_i32_0 = arith.constant 0 : i32
    %c0_i32_1 = arith.constant 0 : i32
    return %c0_i32, %c0_i32_0 : i32, i32
  }
  func.func @transform_3(%arg0: i32) -> (i32, i32) {
    %c0_i32 = arith.constant 0 : i32
    %c0_i32_0 = arith.constant 0 : i32
    return %arg0, %c0_i32 : i32, i32
  }
}

module attributes {stable_mosaic.version = 11 : i64} {
  func.func @kernel(%arg0: i32, %arg1: memref<1x456x4xbf16, #tpu.memory_space<vmem>>, %arg2: memref<9x4x8xbf16, #tpu.memory_space<vmem>>, %arg3: memref<1x8xf32, #tpu.memory_space<vmem>>, %arg4: memref<8x8xbf16, #tpu.memory_space<vmem>>, %arg5: memref<1x8xf32, #tpu.memory_space<vmem>>, %arg6: memref<1x384x8xf32, #tpu.memory_space<vmem>>) attributes {dimension_semantics = [#tpu.dimension_semantics<parallel>], iteration_bounds = array<i64: 8>, scalar_prefetch = 0 : i64, scratch_operands = 0 : i64, tpu.core_type = #tpu.core_type<tc>, window_params = [{transform_indices = @transform_0, window_bounds = array<i64: 1, 456, 4>}, {pipeline_mode = #tpu.pipeline_mode<synchronous>, transform_indices = @transform_1, window_bounds = array<i64: 9, 4, 8>}, {pipeline_mode = #tpu.pipeline_mode<synchronous>, transform_indices = @transform_2, window_bounds = array<i64: 1, 8>}, {pipeline_mode = #tpu.pipeline_mode<synchronous>, transform_indices = @transform_3, window_bounds = array<i64: 8, 8>}, {pipeline_mode = #tpu.pipeline_mode<synchronous>, transform_indices = @transform_4, window_bounds = array<i64: 1, 8>}, {transform_indices = @transform_5, window_bounds = array<i64: 1, 384, 8>}]} {
    %c0 = arith.constant 0 : index
    %c0_0 = arith.constant 0 : index
    %0 = vector.load %arg3[%c0, %c0_0] : memref<1x8xf32, #tpu.memory_space<vmem>>, vector<1x8xf32>
    %c0_1 = arith.constant 0 : index
    %c0_2 = arith.constant 0 : index
    %1 = vector.load %arg4[%c0_1, %c0_2] : memref<8x8xbf16, #tpu.memory_space<vmem>>, vector<8x8xbf16>
    %c0_3 = arith.constant 0 : index
    %c0_4 = arith.constant 0 : index
    %2 = vector.load %arg5[%c0_3, %c0_4] : memref<1x8xf32, #tpu.memory_space<vmem>>, vector<1x8xf32>
    %c0_5 = arith.constant 0 : index
    %c0_6 = arith.constant 0 : index
    %c0_7 = arith.constant 0 : index
    %3 = vector.load %arg1[%c0_5, %c0_6, %c0_7] : memref<1x456x4xbf16, #tpu.memory_space<vmem>>, vector<1x256x4xbf16>
    %4 = vector.shape_cast %3 : vector<1x256x4xbf16> to vector<256x4xbf16>
    %c0_8 = arith.constant 0 : index
    %c0_9 = arith.constant 0 : index
    %c0_10 = arith.constant 0 : index
    %5 = vector.load %arg2[%c0_8, %c0_9, %c0_10] : memref<9x4x8xbf16, #tpu.memory_space<vmem>>, vector<1x4x8xbf16>
    %6 = vector.shape_cast %5 : vector<1x4x8xbf16> to vector<4x8xbf16>
    %cst = arith.constant dense<0.000000e+00> : vector<256x8xf32>
    %7 = tpu.matmul %4, %6, %cst {dimension_numbers = #tpu.dot_dimension_numbers<[1], [0], [0], [1], [0, 0, 1, 1], [], []>} : vector<256x4xbf16>, vector<4x8xbf16>, vector<256x8xf32> -> vector<256x8xf32>
    %c0_11 = arith.constant 0 : index
    %c1 = arith.constant 1 : index
    %c0_12 = arith.constant 0 : index
    %8 = vector.load %arg1[%c0_11, %c1, %c0_12] : memref<1x456x4xbf16, #tpu.memory_space<vmem>>, vector<1x256x4xbf16>
    %9 = vector.shape_cast %8 : vector<1x256x4xbf16> to vector<256x4xbf16>
    %c1_13 = arith.constant 1 : index
    %c0_14 = arith.constant 0 : index
    %c0_15 = arith.constant 0 : index
    %10 = vector.load %arg2[%c1_13, %c0_14, %c0_15] : memref<9x4x8xbf16, #tpu.memory_space<vmem>>, vector<1x4x8xbf16>
    %11 = vector.shape_cast %10 : vector<1x4x8xbf16> to vector<4x8xbf16>
    %cst_16 = arith.constant dense<0.000000e+00> : vector<256x8xf32>
    %12 = tpu.matmul %9, %11, %cst_16 {dimension_numbers = #tpu.dot_dimension_numbers<[1], [0], [0], [1], [0, 0, 1, 1], [], []>} : vector<256x4xbf16>, vector<4x8xbf16>, vector<256x8xf32> -> vector<256x8xf32>
    %13 = arith.addf %7, %12 : vector<256x8xf32>
    %c0_17 = arith.constant 0 : index
    %c2 = arith.constant 2 : index
    %c0_18 = arith.constant 0 : index
    %14 = vector.load %arg1[%c0_17, %c2, %c0_18] : memref<1x456x4xbf16, #tpu.memory_space<vmem>>, vector<1x256x4xbf16>
    %15 = vector.shape_cast %14 : vector<1x256x4xbf16> to vector<256x4xbf16>
    %c2_19 = arith.constant 2 : index
    %c0_20 = arith.constant 0 : index
    %c0_21 = arith.constant 0 : index
    %16 = vector.load %arg2[%c2_19, %c0_20, %c0_21] : memref<9x4x8xbf16, #tpu.memory_space<vmem>>, vector<1x4x8xbf16>
    %17 = vector.shape_cast %16 : vector<1x4x8xbf16> to vector<4x8xbf16>
    %cst_22 = arith.constant dense<0.000000e+00> : vector<256x8xf32>
    %18 = tpu.matmul %15, %17, %cst_22 {dimension_numbers = #tpu.dot_dimension_numbers<[1], [0], [0], [1], [0, 0, 1, 1], [], []>} : vector<256x4xbf16>, vector<4x8xbf16>, vector<256x8xf32> -> vector<256x8xf32>
    %19 = arith.addf %13, %18 : vector<256x8xf32>
    %c0_23 = arith.constant 0 : index
    %c24 = arith.constant 24 : index
    %c0_24 = arith.constant 0 : index
    %20 = vector.load %arg1[%c0_23, %c24, %c0_24] : memref<1x456x4xbf16, #tpu.memory_space<vmem>>, vector<1x256x4xbf16>
    %21 = vector.shape_cast %20 : vector<1x256x4xbf16> to vector<256x4xbf16>
    %c3 = arith.constant 3 : index
    %c0_25 = arith.constant 0 : index
    %c0_26 = arith.constant 0 : index
    %22 = vector.load %arg2[%c3, %c0_25, %c0_26] : memref<9x4x8xbf16, #tpu.memory_space<vmem>>, vector<1x4x8xbf16>
    %23 = vector.shape_cast %22 : vector<1x4x8xbf16> to vector<4x8xbf16>
    %cst_27 = arith.constant dense<0.000000e+00> : vector<256x8xf32>
    %24 = tpu.matmul %21, %23, %cst_27 {dimension_numbers = #tpu.dot_dimension_numbers<[1], [0], [0], [1], [0, 0, 1, 1], [], []>} : vector<256x4xbf16>, vector<4x8xbf16>, vector<256x8xf32> -> vector<256x8xf32>
    %25 = arith.addf %19, %24 : vector<256x8xf32>
    %c0_28 = arith.constant 0 : index
    %c25 = arith.constant 25 : index
    %c0_29 = arith.constant 0 : index
    %26 = vector.load %arg1[%c0_28, %c25, %c0_29] : memref<1x456x4xbf16, #tpu.memory_space<vmem>>, vector<1x256x4xbf16>
    %27 = vector.shape_cast %26 : vector<1x256x4xbf16> to vector<256x4xbf16>
    %c4 = arith.constant 4 : index
    %c0_30 = arith.constant 0 : index
    %c0_31 = arith.constant 0 : index
    %28 = vector.load %arg2[%c4, %c0_30, %c0_31] : memref<9x4x8xbf16, #tpu.memory_space<vmem>>, vector<1x4x8xbf16>
    %29 = vector.shape_cast %28 : vector<1x4x8xbf16> to vector<4x8xbf16>
    %cst_32 = arith.constant dense<0.000000e+00> : vector<256x8xf32>
    %30 = tpu.matmul %27, %29, %cst_32 {dimension_numbers = #tpu.dot_dimension_numbers<[1], [0], [0], [1], [0, 0, 1, 1], [], []>} : vector<256x4xbf16>, vector<4x8xbf16>, vector<256x8xf32> -> vector<256x8xf32>
    %31 = arith.addf %25, %30 : vector<256x8xf32>
    %c0_33 = arith.constant 0 : index
    %c26 = arith.constant 26 : index
    %c0_34 = arith.constant 0 : index
    %32 = vector.load %arg1[%c0_33, %c26, %c0_34] : memref<1x456x4xbf16, #tpu.memory_space<vmem>>, vector<1x256x4xbf16>
    %33 = vector.shape_cast %32 : vector<1x256x4xbf16> to vector<256x4xbf16>
    %c5 = arith.constant 5 : index
    %c0_35 = arith.constant 0 : index
    %c0_36 = arith.constant 0 : index
    %34 = vector.load %arg2[%c5, %c0_35, %c0_36] : memref<9x4x8xbf16, #tpu.memory_space<vmem>>, vector<1x4x8xbf16>
    %35 = vector.shape_cast %34 : vector<1x4x8xbf16> to vector<4x8xbf16>
    %cst_37 = arith.constant dense<0.000000e+00> : vector<256x8xf32>
    %36 = tpu.matmul %33, %35, %cst_37 {dimension_numbers = #tpu.dot_dimension_numbers<[1], [0], [0], [1], [0, 0, 1, 1], [], []>} : vector<256x4xbf16>, vector<4x8xbf16>, vector<256x8xf32> -> vector<256x8xf32>
    %37 = arith.addf %31, %36 : vector<256x8xf32>
    %c0_38 = arith.constant 0 : index
    %c48 = arith.constant 48 : index
    %c0_39 = arith.constant 0 : index
    %38 = vector.load %arg1[%c0_38, %c48, %c0_39] : memref<1x456x4xbf16, #tpu.memory_space<vmem>>, vector<1x256x4xbf16>
    %39 = vector.shape_cast %38 : vector<1x256x4xbf16> to vector<256x4xbf16>
    %c6 = arith.constant 6 : index
    %c0_40 = arith.constant 0 : index
    %c0_41 = arith.constant 0 : index
    %40 = vector.load %arg2[%c6, %c0_40, %c0_41] : memref<9x4x8xbf16, #tpu.memory_space<vmem>>, vector<1x4x8xbf16>
    %41 = vector.shape_cast %40 : vector<1x4x8xbf16> to vector<4x8xbf16>
    %cst_42 = arith.constant dense<0.000000e+00> : vector<256x8xf32>
    %42 = tpu.matmul %39, %41, %cst_42 {dimension_numbers = #tpu.dot_dimension_numbers<[1], [0], [0], [1], [0, 0, 1, 1], [], []>} : vector<256x4xbf16>, vector<4x8xbf16>, vector<256x8xf32> -> vector<256x8xf32>
    %43 = arith.addf %37, %42 : vector<256x8xf32>
    %c0_43 = arith.constant 0 : index
    %c49 = arith.constant 49 : index
    %c0_44 = arith.constant 0 : index
    %44 = vector.load %arg1[%c0_43, %c49, %c0_44] : memref<1x456x4xbf16, #tpu.memory_space<vmem>>, vector<1x256x4xbf16>
    %45 = vector.shape_cast %44 : vector<1x256x4xbf16> to vector<256x4xbf16>
    %c7 = arith.constant 7 : index
    %c0_45 = arith.constant 0 : index
    %c0_46 = arith.constant 0 : index
    %46 = vector.load %arg2[%c7, %c0_45, %c0_46] : memref<9x4x8xbf16, #tpu.memory_space<vmem>>, vector<1x4x8xbf16>
    %47 = vector.shape_cast %46 : vector<1x4x8xbf16> to vector<4x8xbf16>
    %cst_47 = arith.constant dense<0.000000e+00> : vector<256x8xf32>
    %48 = tpu.matmul %45, %47, %cst_47 {dimension_numbers = #tpu.dot_dimension_numbers<[1], [0], [0], [1], [0, 0, 1, 1], [], []>} : vector<256x4xbf16>, vector<4x8xbf16>, vector<256x8xf32> -> vector<256x8xf32>
    %49 = arith.addf %43, %48 : vector<256x8xf32>
    %c0_48 = arith.constant 0 : index
    %c50 = arith.constant 50 : index
    %c0_49 = arith.constant 0 : index
    %50 = vector.load %arg1[%c0_48, %c50, %c0_49] : memref<1x456x4xbf16, #tpu.memory_space<vmem>>, vector<1x256x4xbf16>
    %51 = vector.shape_cast %50 : vector<1x256x4xbf16> to vector<256x4xbf16>
    %c8 = arith.constant 8 : index
    %c0_50 = arith.constant 0 : index
    %c0_51 = arith.constant 0 : index
    %52 = vector.load %arg2[%c8, %c0_50, %c0_51] : memref<9x4x8xbf16, #tpu.memory_space<vmem>>, vector<1x4x8xbf16>
    %53 = vector.shape_cast %52 : vector<1x4x8xbf16> to vector<4x8xbf16>
    %cst_52 = arith.constant dense<0.000000e+00> : vector<256x8xf32>
    %54 = tpu.matmul %51, %53, %cst_52 {dimension_numbers = #tpu.dot_dimension_numbers<[1], [0], [0], [1], [0, 0, 1, 1], [], []>} : vector<256x4xbf16>, vector<4x8xbf16>, vector<256x8xf32> -> vector<256x8xf32>
    %55 = arith.addf %49, %54 : vector<256x8xf32>
    %56 = vector.broadcast %0 : vector<1x8xf32> to vector<256x8xf32>
    %57 = arith.addf %55, %56 : vector<256x8xf32>
    %cst_53 = arith.constant 0.000000e+00 : f32
    %58 = vector.broadcast %cst_53 : f32 to vector<256x8xf32>
    %59 = arith.cmpf oge, %57, %58 : vector<256x8xf32>
    %cst_54 = arith.constant 0.00999999977 : f32
    %60 = vector.broadcast %cst_54 : f32 to vector<256x8xf32>
    %61 = arith.mulf %60, %57 : vector<256x8xf32>
    %62 = arith.select %59, %57, %61 : vector<256x8xi1>, vector<256x8xf32>
    %63 = arith.truncf %62 : vector<256x8xf32> to vector<256x8xbf16>
    %cst_55 = arith.constant dense<0.000000e+00> : vector<256x8xf32>
    %64 = tpu.matmul %63, %1, %cst_55 {dimension_numbers = #tpu.dot_dimension_numbers<[1], [0], [0], [1], [0, 0, 1, 1], [], []>} : vector<256x8xbf16>, vector<8x8xbf16>, vector<256x8xf32> -> vector<256x8xf32>
    %65 = vector.broadcast %2 : vector<1x8xf32> to vector<256x8xf32>
    %66 = arith.addf %64, %65 : vector<256x8xf32>
    %cst_56 = arith.constant 0.000000e+00 : f32
    %67 = vector.broadcast %cst_56 : f32 to vector<256x8xf32>
    %68 = arith.cmpf oge, %66, %67 : vector<256x8xf32>
    %cst_57 = arith.constant 0.00999999977 : f32
    %69 = vector.broadcast %cst_57 : f32 to vector<256x8xf32>
    %70 = arith.mulf %69, %66 : vector<256x8xf32>
    %71 = arith.select %68, %66, %70 : vector<256x8xi1>, vector<256x8xf32>
    %c0_58 = arith.constant 0 : index
    %c0_59 = arith.constant 0 : index
    %c0_60 = arith.constant 0 : index
    %72 = vector.load %arg6[%c0_58, %c0_59, %c0_60] : memref<1x384x8xf32, #tpu.memory_space<vmem>>, vector<1x256x8xf32>
    %73 = vector.shape_cast %72 : vector<1x256x8xf32> to vector<256x8xf32>
    %74 = vector.shape_cast %71 : vector<256x8xf32> to vector<1x256x8xf32>
    tpu.vector_store %arg6[%c0_58, %c0_59, %c0_60], %74 {strides = array<i32>} : memref<1x384x8xf32, #tpu.memory_space<vmem>>, vector<1x256x8xf32>,
    %c0_61 = arith.constant 0 : index
    %c256 = arith.constant 256 : index
    %c0_62 = arith.constant 0 : index
    %75 = vector.load %arg1[%c0_61, %c256, %c0_62] : memref<1x456x4xbf16, #tpu.memory_space<vmem>>, vector<1x128x4xbf16>
    %76 = vector.shape_cast %75 : vector<1x128x4xbf16> to vector<128x4xbf16>
    %c0_63 = arith.constant 0 : index
    %c0_64 = arith.constant 0 : index
    %c0_65 = arith.constant 0 : index
    %77 = vector.load %arg2[%c0_63, %c0_64, %c0_65] : memref<9x4x8xbf16, #tpu.memory_space<vmem>>, vector<1x4x8xbf16>
    %78 = vector.shape_cast %77 : vector<1x4x8xbf16> to vector<4x8xbf16>
    %cst_66 = arith.constant dense<0.000000e+00> : vector<128x8xf32>
    %79 = tpu.matmul %76, %78, %cst_66 {dimension_numbers = #tpu.dot_dimension_numbers<[1], [0], [0], [1], [0, 0, 1, 1], [], []>} : vector<128x4xbf16>, vector<4x8xbf16>, vector<128x8xf32> -> vector<128x8xf32>
    %c0_67 = arith.constant 0 : index
    %c257 = arith.constant 257 : index
    %c0_68 = arith.constant 0 : index
    %80 = vector.load %arg1[%c0_67, %c257, %c0_68] : memref<1x456x4xbf16, #tpu.memory_space<vmem>>, vector<1x128x4xbf16>
    %81 = vector.shape_cast %80 : vector<1x128x4xbf16> to vector<128x4xbf16>
    %c1_69 = arith.constant 1 : index
    %c0_70 = arith.constant 0 : index
    %c0_71 = arith.constant 0 : index
    %82 = vector.load %arg2[%c1_69, %c0_70, %c0_71] : memref<9x4x8xbf16, #tpu.memory_space<vmem>>, vector<1x4x8xbf16>
    %83 = vector.shape_cast %82 : vector<1x4x8xbf16> to vector<4x8xbf16>
    %cst_72 = arith.constant dense<0.000000e+00> : vector<128x8xf32>
    %84 = tpu.matmul %81, %83, %cst_72 {dimension_numbers = #tpu.dot_dimension_numbers<[1], [0], [0], [1], [0, 0, 1, 1], [], []>} : vector<128x4xbf16>, vector<4x8xbf16>, vector<128x8xf32> -> vector<128x8xf32>
    %85 = arith.addf %79, %84 : vector<128x8xf32>
    %c0_73 = arith.constant 0 : index
    %c258 = arith.constant 258 : index
    %c0_74 = arith.constant 0 : index
    %86 = vector.load %arg1[%c0_73, %c258, %c0_74] : memref<1x456x4xbf16, #tpu.memory_space<vmem>>, vector<1x128x4xbf16>
    %87 = vector.shape_cast %86 : vector<1x128x4xbf16> to vector<128x4xbf16>
    %c2_75 = arith.constant 2 : index
    %c0_76 = arith.constant 0 : index
    %c0_77 = arith.constant 0 : index
    %88 = vector.load %arg2[%c2_75, %c0_76, %c0_77] : memref<9x4x8xbf16, #tpu.memory_space<vmem>>, vector<1x4x8xbf16>
    %89 = vector.shape_cast %88 : vector<1x4x8xbf16> to vector<4x8xbf16>
    %cst_78 = arith.constant dense<0.000000e+00> : vector<128x8xf32>
    %90 = tpu.matmul %87, %89, %cst_78 {dimension_numbers = #tpu.dot_dimension_numbers<[1], [0], [0], [1], [0, 0, 1, 1], [], []>} : vector<128x4xbf16>, vector<4x8xbf16>, vector<128x8xf32> -> vector<128x8xf32>
    %91 = arith.addf %85, %90 : vector<128x8xf32>
    %c0_79 = arith.constant 0 : index
    %c280 = arith.constant 280 : index
    %c0_80 = arith.constant 0 : index
    %92 = vector.load %arg1[%c0_79, %c280, %c0_80] : memref<1x456x4xbf16, #tpu.memory_space<vmem>>, vector<1x128x4xbf16>
    %93 = vector.shape_cast %92 : vector<1x128x4xbf16> to vector<128x4xbf16>
    %c3_81 = arith.constant 3 : index
    %c0_82 = arith.constant 0 : index
    %c0_83 = arith.constant 0 : index
    %94 = vector.load %arg2[%c3_81, %c0_82, %c0_83] : memref<9x4x8xbf16, #tpu.memory_space<vmem>>, vector<1x4x8xbf16>
    %95 = vector.shape_cast %94 : vector<1x4x8xbf16> to vector<4x8xbf16>
    %cst_84 = arith.constant dense<0.000000e+00> : vector<128x8xf32>
    %96 = tpu.matmul %93, %95, %cst_84 {dimension_numbers = #tpu.dot_dimension_numbers<[1], [0], [0], [1], [0, 0, 1, 1], [], []>} : vector<128x4xbf16>, vector<4x8xbf16>, vector<128x8xf32> -> vector<128x8xf32>
    %97 = arith.addf %91, %96 : vector<128x8xf32>
    %c0_85 = arith.constant 0 : index
    %c281 = arith.constant 281 : index
    %c0_86 = arith.constant 0 : index
    %98 = vector.load %arg1[%c0_85, %c281, %c0_86] : memref<1x456x4xbf16, #tpu.memory_space<vmem>>, vector<1x128x4xbf16>
    %99 = vector.shape_cast %98 : vector<1x128x4xbf16> to vector<128x4xbf16>
    %c4_87 = arith.constant 4 : index
    %c0_88 = arith.constant 0 : index
    %c0_89 = arith.constant 0 : index
    %100 = vector.load %arg2[%c4_87, %c0_88, %c0_89] : memref<9x4x8xbf16, #tpu.memory_space<vmem>>, vector<1x4x8xbf16>
    %101 = vector.shape_cast %100 : vector<1x4x8xbf16> to vector<4x8xbf16>
    %cst_90 = arith.constant dense<0.000000e+00> : vector<128x8xf32>
    %102 = tpu.matmul %99, %101, %cst_90 {dimension_numbers = #tpu.dot_dimension_numbers<[1], [0], [0], [1], [0, 0, 1, 1], [], []>} : vector<128x4xbf16>, vector<4x8xbf16>, vector<128x8xf32> -> vector<128x8xf32>
    %103 = arith.addf %97, %102 : vector<128x8xf32>
    %c0_91 = arith.constant 0 : index
    %c282 = arith.constant 282 : index
    %c0_92 = arith.constant 0 : index
    %104 = vector.load %arg1[%c0_91, %c282, %c0_92] : memref<1x456x4xbf16, #tpu.memory_space<vmem>>, vector<1x128x4xbf16>
    %105 = vector.shape_cast %104 : vector<1x128x4xbf16> to vector<128x4xbf16>
    %c5_93 = arith.constant 5 : index
    %c0_94 = arith.constant 0 : index
    %c0_95 = arith.constant 0 : index
    %106 = vector.load %arg2[%c5_93, %c0_94, %c0_95] : memref<9x4x8xbf16, #tpu.memory_space<vmem>>, vector<1x4x8xbf16>
    %107 = vector.shape_cast %106 : vector<1x4x8xbf16> to vector<4x8xbf16>
    %cst_96 = arith.constant dense<0.000000e+00> : vector<128x8xf32>
    %108 = tpu.matmul %105, %107, %cst_96 {dimension_numbers = #tpu.dot_dimension_numbers<[1], [0], [0], [1], [0, 0, 1, 1], [], []>} : vector<128x4xbf16>, vector<4x8xbf16>, vector<128x8xf32> -> vector<128x8xf32>
    %109 = arith.addf %103, %108 : vector<128x8xf32>
    %c0_97 = arith.constant 0 : index
    %c304 = arith.constant 304 : index
    %c0_98 = arith.constant 0 : index
    %110 = vector.load %arg1[%c0_97, %c304, %c0_98] : memref<1x456x4xbf16, #tpu.memory_space<vmem>>, vector<1x128x4xbf16>
    %111 = vector.shape_cast %110 : vector<1x128x4xbf16> to vector<128x4xbf16>
    %c6_99 = arith.constant 6 : index
    %c0_100 = arith.constant 0 : index
    %c0_101 = arith.constant 0 : index
    %112 = vector.load %arg2[%c6_99, %c0_100, %c0_101] : memref<9x4x8xbf16, #tpu.memory_space<vmem>>, vector<1x4x8xbf16>
    %113 = vector.shape_cast %112 : vector<1x4x8xbf16> to vector<4x8xbf16>
    %cst_102 = arith.constant dense<0.000000e+00> : vector<128x8xf32>
    %114 = tpu.matmul %111, %113, %cst_102 {dimension_numbers = #tpu.dot_dimension_numbers<[1], [0], [0], [1], [0, 0, 1, 1], [], []>} : vector<128x4xbf16>, vector<4x8xbf16>, vector<128x8xf32> -> vector<128x8xf32>
    %115 = arith.addf %109, %114 : vector<128x8xf32>
    %c0_103 = arith.constant 0 : index
    %c305 = arith.constant 305 : index
    %c0_104 = arith.constant 0 : index
    %116 = vector.load %arg1[%c0_103, %c305, %c0_104] : memref<1x456x4xbf16, #tpu.memory_space<vmem>>, vector<1x128x4xbf16>
    %117 = vector.shape_cast %116 : vector<1x128x4xbf16> to vector<128x4xbf16>
    %c7_105 = arith.constant 7 : index
    %c0_106 = arith.constant 0 : index
    %c0_107 = arith.constant 0 : index
    %118 = vector.load %arg2[%c7_105, %c0_106, %c0_107] : memref<9x4x8xbf16, #tpu.memory_space<vmem>>, vector<1x4x8xbf16>
    %119 = vector.shape_cast %118 : vector<1x4x8xbf16> to vector<4x8xbf16>
    %cst_108 = arith.constant dense<0.000000e+00> : vector<128x8xf32>
    %120 = tpu.matmul %117, %119, %cst_108 {dimension_numbers = #tpu.dot_dimension_numbers<[1], [0], [0], [1], [0, 0, 1, 1], [], []>} : vector<128x4xbf16>, vector<4x8xbf16>, vector<128x8xf32> -> vector<128x8xf32>
    %121 = arith.addf %115, %120 : vector<128x8xf32>
    %c0_109 = arith.constant 0 : index
    %c306 = arith.constant 306 : index
    %c0_110 = arith.constant 0 : index
    %122 = vector.load %arg1[%c0_109, %c306, %c0_110] : memref<1x456x4xbf16, #tpu.memory_space<vmem>>, vector<1x128x4xbf16>
    %123 = vector.shape_cast %122 : vector<1x128x4xbf16> to vector<128x4xbf16>
    %c8_111 = arith.constant 8 : index
    %c0_112 = arith.constant 0 : index
    %c0_113 = arith.constant 0 : index
    %124 = vector.load %arg2[%c8_111, %c0_112, %c0_113] : memref<9x4x8xbf16, #tpu.memory_space<vmem>>, vector<1x4x8xbf16>
    %125 = vector.shape_cast %124 : vector<1x4x8xbf16> to vector<4x8xbf16>
    %cst_114 = arith.constant dense<0.000000e+00> : vector<128x8xf32>
    %126 = tpu.matmul %123, %125, %cst_114 {dimension_numbers = #tpu.dot_dimension_numbers<[1], [0], [0], [1], [0, 0, 1, 1], [], []>} : vector<128x4xbf16>, vector<4x8xbf16>, vector<128x8xf32> -> vector<128x8xf32>
    %127 = arith.addf %121, %126 : vector<128x8xf32>
    %128 = vector.broadcast %0 : vector<1x8xf32> to vector<128x8xf32>
    %129 = arith.addf %127, %128 : vector<128x8xf32>
    %cst_115 = arith.constant 0.000000e+00 : f32
    %130 = vector.broadcast %cst_115 : f32 to vector<128x8xf32>
    %131 = arith.cmpf oge, %129, %130 : vector<128x8xf32>
    %cst_116 = arith.constant 0.00999999977 : f32
    %132 = vector.broadcast %cst_116 : f32 to vector<128x8xf32>
    %133 = arith.mulf %132, %129 : vector<128x8xf32>
    %134 = arith.select %131, %129, %133 : vector<128x8xi1>, vector<128x8xf32>
    %135 = arith.truncf %134 : vector<128x8xf32> to vector<128x8xbf16>
    %cst_117 = arith.constant dense<0.000000e+00> : vector<128x8xf32>
    %136 = tpu.matmul %135, %1, %cst_117 {dimension_numbers = #tpu.dot_dimension_numbers<[1], [0], [0], [1], [0, 0, 1, 1], [], []>} : vector<128x8xbf16>, vector<8x8xbf16>, vector<128x8xf32> -> vector<128x8xf32>
    %137 = vector.broadcast %2 : vector<1x8xf32> to vector<128x8xf32>
    %138 = arith.addf %136, %137 : vector<128x8xf32>
    %cst_118 = arith.constant 0.000000e+00 : f32
    %139 = vector.broadcast %cst_118 : f32 to vector<128x8xf32>
    %140 = arith.cmpf oge, %138, %139 : vector<128x8xf32>
    %cst_119 = arith.constant 0.00999999977 : f32
    %141 = vector.broadcast %cst_119 : f32 to vector<128x8xf32>
    %142 = arith.mulf %141, %138 : vector<128x8xf32>
    %143 = arith.select %140, %138, %142 : vector<128x8xi1>, vector<128x8xf32>
    %c0_120 = arith.constant 0 : index
    %c256_121 = arith.constant 256 : index
    %c0_122 = arith.constant 0 : index
    %144 = vector.load %arg6[%c0_120, %c256_121, %c0_122] : memref<1x384x8xf32, #tpu.memory_space<vmem>>, vector<1x128x8xf32>
    %145 = vector.shape_cast %144 : vector<1x128x8xf32> to vector<128x8xf32>
    %146 = vector.shape_cast %143 : vector<128x8xf32> to vector<1x128x8xf32>
    tpu.vector_store %arg6[%c0_120, %c256_121, %c0_122], %146 {strides = array<i32>} : memref<1x384x8xf32, #tpu.memory_space<vmem>>, vector<1x128x8xf32>,
    return
  }
  func.func @transform_0(%arg0: i32) -> (i32, i32, i32) {
    %c0_i32 = arith.constant 0 : i32
    %c0_i32_0 = arith.constant 0 : i32
    %c0_i32_1 = arith.constant 0 : i32
    return %arg0, %c0_i32, %c0_i32_0 : i32, i32, i32
  }
  func.func @transform_1(%arg0: i32) -> (i32, i32, i32) {
    %c0_i32 = arith.constant 0 : i32
    %c0_i32_0 = arith.constant 0 : i32
    %c0_i32_1 = arith.constant 0 : i32
    %c0_i32_2 = arith.constant 0 : i32
    return %c0_i32, %c0_i32_0, %c0_i32_1 : i32, i32, i32
  }
  func.func @transform_2(%arg0: i32) -> (i32, i32) {
    %c0_i32 = arith.constant 0 : i32
    %c0_i32_0 = arith.constant 0 : i32
    %c0_i32_1 = arith.constant 0 : i32
    return %c0_i32, %c0_i32_0 : i32, i32
  }
  func.func @transform_3(%arg0: i32) -> (i32, i32) {
    %c0_i32 = arith.constant 0 : i32
    %c0_i32_0 = arith.constant 0 : i32
    %c0_i32_1 = arith.constant 0 : i32
    return %c0_i32, %c0_i32_0 : i32, i32
  }
  func.func @transform_4(%arg0: i32) -> (i32, i32) {
    %c0_i32 = arith.constant 0 : i32
    %c0_i32_0 = arith.constant 0 : i32
    %c0_i32_1 = arith.constant 0 : i32
    return %c0_i32, %c0_i32_0 : i32, i32
  }
  func.func @transform_5(%arg0: i32) -> (i32, i32, i32) {
    %c0_i32 = arith.constant 0 : i32
    %c0_i32_0 = arith.constant 0 : i32
    %c0_i32_1 = arith.constant 0 : i32
    return %arg0, %c0_i32, %c0_i32_0 : i32, i32, i32
  }
}

</mosaic_0001>

<llo_original>
// kernel: tile.18
$region0: #{tile.18}
  #allocation0 [shape = 's32[1]{0}', space=sflag, size = 0x4, scoped, tag = 'scoped memory for tile.18']
  %s0 = inlined_call_operand.vmem [shape: f32[4], index: 0, kind: input, shape index: {}]
  %s1 = inlined_call_operand.vmem [shape: f32[4,4], index: 1, kind: output, shape index: {}]
  // Predicated region
  $region2: #{tile.18} parent=0 // pred_check
    _
  $region3: #{tile.18} parent=0 // pred_check_branch
    %3 = sbr.rel (0) target = $region5
  $region4: #{tile.18} parent=0 // pred_region
    _
  $region5: #{tile.18} parent=0 // pred_fallthru
    _
  %v4 = vld [vmem:[%s0] ss:$0 sm:$0xff]
  %5 = vst [vmem:[%s1] sm:$0xf] %v4

// kernel: tile.19
$region0: #{tile.19}
  %s0 = inlined_call_operand.vmem [shape: f32[4,4], index: 0, kind: input, shape index: {}]
  %s1 = inlined_call_operand.vmem [shape: f32[1,16], index: 1, kind: output, shape index: {}]
  $region1: #{tile.19} parent=0
    #allocation0 [shape = 'u8[4096]{0}', space=vmem, size = 0x1000, scoped, tag = 'scoped mem for output reshape']
    #allocation1 [shape = 'u8[4096]{0}', space=vmem, size = 0x1000, scoped, tag = 'scoped mem for input reshape']
    %s3 = sshll.u32 1, 4
    %s4 = ssub.s32 %s3, 1
    %v5 = vld [vmem:[%s0] sm:%s4]
    %6 = vst [vmem:[#allocation1] sm:%s4] %v5
    %v7 = vld [vmem:[#allocation1] sm:$0x1]
    %vm8 = vcmask 31744
    %9 = vst.msk [vmem:[#allocation0] sm:$0x1] %vm8, %v7
    %s10 = scalar_lea.vmem [#allocation1], 3
    %v11 = vld [vmem:[%s10] sm:$0x1]
    %12 = vrot.lane.b32.xlu0 %v11, 12
    %v13 = vpop.permute.xlu0 %12
    %vm14 = vcmask 130144
    %15 = vst.msk [vmem:[#allocation0] sm:$0x1] %vm14, %v13
    %s16 = scalar_lea.vmem [#allocation1], 2
    %v17 = vld [vmem:[%s16] sm:$0x1]
    %18 = vrot.lane.b32.xlu0 %v17, 8
    %v19 = vpop.permute.xlu0 %18
    %vm20 = vcmask 97344
    %21 = vst.msk [vmem:[#allocation0] sm:$0x1] %vm20, %v19
    %s22 = scalar_lea.vmem [#allocation1], 1
    %v23 = vld [vmem:[%s22] sm:$0x1]
    %24 = vrot.lane.b32.xlu0 %v23, 4
    %v25 = vpop.permute.xlu0 %24
    %vm26 = vcmask 64544
    %27 = vst.msk [vmem:[#allocation0] sm:$0x1] %vm26, %v25
    %s29 = sshll.u32 1, 1
    %s30 = ssub.s32 %s29, 1
    %v32 = vld [vmem:[#allocation0] sm:%s30]
    %s33 = sshll.u32 1, 1
    %s34 = ssub.s32 %s33, 1
    %35 = vst [vmem:[%s1] sm:%s34] %v32

// kernel: mul.14
$region0: #{mul.14}
  %s0 = inlined_call_operand.vmem [shape: f32[4,4], index: 0, kind: input, shape index: {}]
  %s1 = inlined_call_operand.vmem [shape: f32[16], index: 1, kind: output, shape index: {}]
  $region1: #{mul.14} parent=0
    #allocation0 [shape = 'u8[4096]{0}', space=vmem, size = 0x1000, scoped, tag = 'scoped mem for output reshape']
    #allocation1 [shape = 'u8[4096]{0}', space=vmem, size = 0x1000, scoped, tag = 'scoped mem for input reshape']
    %s3 = sshll.u32 1, 4
    %s4 = ssub.s32 %s3, 1
    %v5 = vld [vmem:[%s0] sm:%s4]
    %6 = vst [vmem:[#allocation1] sm:%s4] %v5
    %v7 = vld [vmem:[#allocation1] sm:$0x1]
    %vm8 = vcmask 31744
    %9 = vst.msk [vmem:[#allocation0] sm:$0x1] %vm8, %v7
    %s10 = scalar_lea.vmem [#allocation1], 3
    %v11 = vld [vmem:[%s10] sm:$0x1]
    %12 = vrot.lane.b32.xlu0 %v11, 12
    %v13 = vpop.permute.xlu0 %12
    %vm14 = vcmask 130144
    %15 = vst.msk [vmem:[#allocation0] sm:$0x1] %vm14, %v13
    %s16 = scalar_lea.vmem [#allocation1], 2
    %v17 = vld [vmem:[%s16] sm:$0x1]
    %18 = vrot.lane.b32.xlu0 %v17, 8
    %v19 = vpop.permute.xlu0 %18
    %vm20 = vcmask 97344
    %21 = vst.msk [vmem:[#allocation0] sm:$0x1] %vm20, %v19
    %s22 = scalar_lea.vmem [#allocation1], 1
    %v23 = vld [vmem:[%s22] sm:$0x1]
    %24 = vrot.lane.b32.xlu0 %v23, 4
    %v25 = vpop.permute.xlu0 %24
    %vm26 = vcmask 64544
    %27 = vst.msk [vmem:[#allocation0] sm:$0x1] %vm26, %v25
    %s29 = sshll.u32 1, 1
    %s30 = ssub.s32 %s29, 1
    %v32 = vld [vmem:[#allocation0] sm:%s30]
    %s33 = sshll.u32 1, 1
    %s34 = ssub.s32 %s33, 1
    %35 = vst [vmem:[%s1] sm:%s34] %v32

// kernel: scaleup_forward.2
$region0: #{scaleup_forward.2}
  #allocation0 [shape = 'u32[]', space=smem, size = 0x4, offset = 0x4, fixed_abs, tag = 'smem constant byte address 0x4 - core index']
  #allocation1 [shape = 'u32[144,128]{1,0:T(1,128)}', space=vmem, size = 0x12000, scoped, tag = 'internal scratch']
  %s0 = inlined_call_operand.vmem [shape: bf16[512,4], index: 0, kind: input, shape index: {}]
  %s1 = inlined_call_operand.vmem [shape: bf16[4,16], index: 1, kind: input, shape index: {}]
  %s2 = inlined_call_operand.vmem [shape: f32[1,16], index: 2, kind: input, shape index: {}]
  %s3 = inlined_call_operand.vmem [shape: bf16[512,16], index: 3, kind: output, shape index: {}]
  %s4 = sld [smem:[#allocation0]]
  $region45: #{scaleup_forward.2} parent=0
    _
  %s6 = ssub.s32 1, %s4
  %s7 = scalar_select 0, %s6, %s4
  loop: start=0, step=1, limit=4
  $region2: #{scaleup_forward.2} parent=0 // loop_pre_header
    _
  $region3: #{scaleup_forward.2} parent=0 // loop_header
    %s9 = sphi 0, %s13
    %p10 = scmp.ge.s32.totalorder %s9, 4
    %s19 = sphi 0, %s21
    %s22 = sphi 0, %s19
    %s23 = sphi 0, %s22
    %s39 = sphi 0, %s23
    %s43 = sphi 0, %s43
    %s45 = sphi 0, %s43
    %s46 = sphi 0, %s45
    %s60 = sphi 0, %s46
    %s64 = sphi 0, %s64
    %s66 = sphi 0, %s64
    %s67 = sphi 0, %s66
    %s81 = sphi 0, %s67
    %s87 = sphi 0, %s89
    %s90 = sphi 0, %s87
    %s91 = sphi 0, %s90
    %s107 = sphi 0, %s91
  $region4: #{scaleup_forward.2} parent=0 // loop_header_branch
    %12 = sbr.rel (%p10) target = $region8
  $region5: #{scaleup_forward.2} parent=0 // loop_body
    %s14 = ssub.s32 %s9, 1
    %s15 = ssub.s32 %s9, 2
    %s16 = sadd.s32 %s9, 1
    %s17 = ssub.s32 %s9, %s16
    %p18 = scmp.eq.s32.totalorder %s17, 0
    %s20 = sadd.s32 %s19, 1
    %s21 = scalar_select %p18, %s19, %s20
    %p24 = pneg %p18
    %p25 = scmp.eq.s32.totalorder %s9, 1
    %p26 = por %p24, %p25
    %p27 = scmp.ne.s32.totalorder %s19, %s22
    %p28 = scmp.eq.s32.totalorder %s9, 0
    %p29 = por %p27, %p28
    %p30 = scmp.ne.s32.totalorder %s19, %s22
    %p31 = scmp.eq.s32.totalorder %s14, 1
    %p32 = por %p30, %p31
    %p33 = scmp.ne.s32.totalorder %s22, %s23
    %p34 = scmp.eq.s32.totalorder %s14, 0
    %p35 = por %p33, %p34
    %p36 = scmp.ne.s32.totalorder %s22, %s23
    %p37 = scmp.eq.s32.totalorder %s15, 1
    %p38 = por %p36, %p37
    %p40 = scmp.ne.s32.totalorder %s23, %s39
    %p41 = scmp.eq.s32.totalorder %s15, 0
    %p42 = por %p40, %p41
    %s44 = sadd.s32 %s43, 1
    %p47 = scmp.eq.s32.totalorder %s9, 1
    %p48 = scmp.ne.s32.totalorder %s43, %s45
    %p49 = scmp.eq.s32.totalorder %s9, 0
    %p50 = por %p48, %p49
    %p51 = scmp.ne.s32.totalorder %s43, %s45
    %p52 = scmp.eq.s32.totalorder %s14, 1
    %p53 = por %p51, %p52
    %p54 = scmp.ne.s32.totalorder %s45, %s46
    %p55 = scmp.eq.s32.totalorder %s14, 0
    %p56 = por %p54, %p55
    %p57 = scmp.ne.s32.totalorder %s45, %s46
    %p58 = scmp.eq.s32.totalorder %s15, 1
    %p59 = por %p57, %p58
    %p61 = scmp.ne.s32.totalorder %s46, %s60
    %p62 = scmp.eq.s32.totalorder %s15, 0
    %p63 = por %p61, %p62
    %s65 = sadd.s32 %s64, 1
    %p68 = scmp.eq.s32.totalorder %s9, 1
    %p69 = scmp.ne.s32.totalorder %s64, %s66
    %p70 = scmp.eq.s32.totalorder %s9, 0
    %p71 = por %p69, %p70
    %p72 = scmp.ne.s32.totalorder %s64, %s66
    %p73 = scmp.eq.s32.totalorder %s14, 1
    %p74 = por %p72, %p73
    %p75 = scmp.ne.s32.totalorder %s66, %s67
    %p76 = scmp.eq.s32.totalorder %s14, 0
    %p77 = por %p75, %p76
    %p78 = scmp.ne.s32.totalorder %s66, %s67
    %p79 = scmp.eq.s32.totalorder %s15, 1
    %p80 = por %p78, %p79
    %p82 = scmp.ne.s32.totalorder %s67, %s81
    %p83 = scmp.eq.s32.totalorder %s15, 0
    %p84 = por %p82, %p83
    %s85 = ssub.s32 %s9, %s16
    %p86 = scmp.eq.s32.totalorder %s85, 0
    %s88 = sadd.s32 %s87, 1
    %s89 = scalar_select %p86, %s87, %s88
    %p92 = pneg %p86
    %p93 = scmp.eq.s32.totalorder %s9, 1
    %p94 = por %p92, %p93
    %p95 = scmp.ne.s32.totalorder %s87, %s90
    %p96 = scmp.eq.s32.totalorder %s9, 0
    %p97 = por %p95, %p96
    %p98 = scmp.ne.s32.totalorder %s87, %s90
    %p99 = scmp.eq.s32.totalorder %s14, 1
    %p100 = por %p98, %p99
    %p101 = scmp.ne.s32.totalorder %s90, %s91
    %p102 = scmp.eq.s32.totalorder %s14, 0
    %p103 = por %p101, %p102
    %p104 = scmp.ne.s32.totalorder %s90, %s91
    %p105 = scmp.eq.s32.totalorder %s15, 1
    %p106 = por %p104, %p105
    %p108 = scmp.ne.s32.totalorder %s91, %s107
    %p109 = scmp.eq.s32.totalorder %s15, 0
    %p110 = por %p108, %p109
    %p111 = scmp.le.s32.totalorder 1, %s9
    %p112 = scmp.lt.s32.totalorder %s9, 3
    %p113 = pnand %p111, %p112
    %p114 = pneg %p113
    // Predicated region
    $region9: #{scaleup_forward.2} parent=5 // pred_check
      _
    $region10: #{scaleup_forward.2} parent=5 // pred_check_branch
      %116 = sbr.rel (%p113) target = $region12
    $region11: #{scaleup_forward.2} parent=5 // pred_region
      %s117 = ssub.s32 %s9, 1
      // Predicated region
      $region13: #{scaleup_forward.2} parent=11 // pred_check
        %p118 = pneg %p56
      $region14: #{scaleup_forward.2} parent=11 // pred_check_branch
        %120 = sbr.rel (%p118) target = $region16
      $region15: #{scaleup_forward.2} parent=11 // pred_region
        _
      $region16: #{scaleup_forward.2} parent=11 // pred_fallthru
        _
      // Predicated region
      $region17: #{scaleup_forward.2} parent=11 // pred_check
        %p121 = pneg %p77
      $region18: #{scaleup_forward.2} parent=11 // pred_check_branch
        %123 = sbr.rel (%p121) target = $region20
      $region19: #{scaleup_forward.2} parent=11 // pred_region
        _
      $region20: #{scaleup_forward.2} parent=11 // pred_fallthru
        _
    $region12: #{scaleup_forward.2} parent=5 // pred_fallthru
      _
    %p124 = scmp.lt.s32.totalorder %s9, 2
    // Predicated region
    $region21: #{scaleup_forward.2} parent=5 // pred_check
      %p125 = pneg %p124
    $region22: #{scaleup_forward.2} parent=5 // pred_check_branch
      %127 = sbr.rel (%p125) target = $region24
    $region23: #{scaleup_forward.2} parent=5 // pred_region
      // Predicated region
      $region25: #{scaleup_forward.2} parent=23 // pred_check
        %p128 = pneg %p29
      $region26: #{scaleup_forward.2} parent=23 // pred_check_branch
        %130 = sbr.rel (%p128) target = $region28
      $region27: #{scaleup_forward.2} parent=23 // pred_region
        %s131 = smul.u32 32, %s9
        %p132 = scmp.lt.s32.totalorder %s131, 63
        %s133 = scalar_select %p132, %s131, 63
        %s134 = smul.addr %s133, 4
        %s135 = scalar_lea.vmem %s0, %s134
        %s136 = smul.u32 32, %s9
      $region28: #{scaleup_forward.2} parent=23 // pred_fallthru
        _
    $region24: #{scaleup_forward.2} parent=5 // pred_fallthru
      _
    %p137 = scmp.le.s32.totalorder 1, %s9
    %p138 = scmp.lt.s32.totalorder %s9, 3
    %p139 = pnand %p137, %p138
    %p140 = pneg %p139
    // Predicated region
    $region29: #{scaleup_forward.2} parent=5 // pred_check
      _
    $region30: #{scaleup_forward.2} parent=5 // pred_check_branch
      %142 = sbr.rel (%p139) target = $region32
    $region31: #{scaleup_forward.2} parent=5 // pred_region
      %s143 = ssub.s32 %s9, 1
      %s144 = smul.u32 32, %s14
      %p145 = scmp.lt.s32.totalorder %s144, 63
      %s146 = scalar_select %p145, %s144, 63
      %s147 = smul.addr %s146, 4
      %s148 = scalar_lea.vmem %s0, %s147
      %p149 = pneg %p35
      %p150 = pneg %p32
      %p151 = pneg %p56
      %p152 = pneg %p53
      %p153 = pneg %p77
      %p154 = pneg %p74
      %p155 = pneg %p103
      %p156 = pneg %p100
      %s157 = smul.u32 32, %s14
      %p158 = scmp.lt.s32.totalorder %s157, 63
      %s159 = scalar_select %p158, %s157, 63
      %s160 = smul.addr %s159, 4
      %s161 = scalar_lea.vmem %s3, %s160
      %s162 = smul.u32 32, %s14
      %p163 = scmp.lt.s32.totalorder %s162, 63
      %s164 = scalar_select %p163, %s162, 63
      %s165 = smul.addr %s164, 4
      %s166 = scalar_lea.vmem %s0, %s165
      %s167 = smul.u32 32, %s14
      %s168 = smul.u32 32, %s14
      %p169 = scmp.lt.s32.totalorder %s168, 63
      %s170 = scalar_select %p169, %s168, 63
      %s171 = smul.addr %s170, 4
      %s172 = scalar_lea.vmem %s3, %s171
      %s173 = smul.u32 32, %s14
      %v175 = vld [vmem:[%s166] sm:$0xf]
      %v176 = vld [vmem:[%s166 + $0x4] sm:$0xf]
      %v177 = vld [vmem:[%s166 + $0x8] sm:$0xf]
      %v178 = vld [vmem:[%s166 + $0xc] sm:$0xf]
      %v179 = vld [vmem:[%s166 + $0x10] sm:$0xf]
      %v180 = vld [vmem:[%s166 + $0x14] sm:$0xf]
      %v181 = vld [vmem:[%s166 + $0x18] sm:$0xf]
      %v182 = vld [vmem:[%s166 + $0x1c] sm:$0xf]
      %v183 = vld [vmem:[%s166 + $0x20] sm:$0xf]
      %v184 = vld [vmem:[%s166 + $0x24] sm:$0xf]
      %v185 = vld [vmem:[%s166 + $0x28] sm:$0xf]
      %v186 = vld [vmem:[%s166 + $0x2c] sm:$0xf]
      %v187 = vld [vmem:[%s166 + $0x30] sm:$0xf]
      %v188 = vld [vmem:[%s166 + $0x34] sm:$0xf]
      %v189 = vld [vmem:[%s166 + $0x38] sm:$0xf]
      %v190 = vld [vmem:[%s166 + $0x3c] sm:$0xf]
      %v191 = vld [vmem:[%s166 + $0x40] sm:$0xf]
      %v192 = vld [vmem:[%s166 + $0x44] sm:$0xf]
      %v193 = vld [vmem:[%s166 + $0x48] sm:$0xf]
      %v194 = vld [vmem:[%s166 + $0x4c] sm:$0xf]
      %v195 = vld [vmem:[%s166 + $0x50] sm:$0xf]
      %v196 = vld [vmem:[%s166 + $0x54] sm:$0xf]
      %v197 = vld [vmem:[%s166 + $0x58] sm:$0xf]
      %v198 = vld [vmem:[%s166 + $0x5c] sm:$0xf]
      %v199 = vld [vmem:[%s166 + $0x60] sm:$0xf]
      %v200 = vld [vmem:[%s166 + $0x64] sm:$0xf]
      %v201 = vld [vmem:[%s166 + $0x68] sm:$0xf]
      %v202 = vld [vmem:[%s166 + $0x6c] sm:$0xf]
      %v203 = vld [vmem:[%s166 + $0x70] sm:$0xf]
      %v204 = vld [vmem:[%s166 + $0x74] sm:$0xf]
      %v205 = vld [vmem:[%s166 + $0x78] sm:$0xf]
      %v206 = vld [vmem:[%s166 + $0x7c] sm:$0xf]
      %v207 = vld [vmem:[%s1] sm:$0x3]
      %v208 = vld [vmem:[%s2] sm:$0x1]
      %v210 = vlaneseq
      %v211 = vshrl.u32 %v210, 7
      %v212 = vsub.s32 0, %v211
      %v213 = vrot.slane %v208, %v212
      %v247 = vunpack.c.l.b16 %v175
      %v248 = vunpack.c.l.b16 %v176
      %v249 = vunpack.c.l.b16 %v177
      %v250 = vunpack.c.l.b16 %v178
      %v251 = vunpack.c.l.b16 %v179
      %v252 = vunpack.c.l.b16 %v180
      %v253 = vunpack.c.l.b16 %v181
      %v254 = vunpack.c.l.b16 %v182
      %v255 = vunpack.c.l.b16 %v183
      %v256 = vunpack.c.l.b16 %v184
      %v257 = vunpack.c.l.b16 %v185
      %v258 = vunpack.c.l.b16 %v186
      %v259 = vunpack.c.l.b16 %v187
      %v260 = vunpack.c.l.b16 %v188
      %v261 = vunpack.c.l.b16 %v189
      %v262 = vunpack.c.l.b16 %v190
      %v263 = vunpack.c.l.b16 %v191
      %v264 = vunpack.c.l.b16 %v192
      %v265 = vunpack.c.l.b16 %v193
      %v266 = vunpack.c.l.b16 %v194
      %v267 = vunpack.c.l.b16 %v195
      %v268 = vunpack.c.l.b16 %v196
      %v269 = vunpack.c.l.b16 %v197
      %v270 = vunpack.c.l.b16 %v198
      %v271 = vunpack.c.l.b16 %v199
      %v272 = vunpack.c.l.b16 %v200
      %v273 = vunpack.c.l.b16 %v201
      %v274 = vunpack.c.l.b16 %v202
      %v275 = vunpack.c.l.b16 %v203
      %v276 = vunpack.c.l.b16 %v204
      %v277 = vunpack.c.l.b16 %v205
      %v278 = vunpack.c.l.b16 %v206
      %v279 = vpack.c.b16 %v248, %v247
      %v280 = vpack.c.b16 %v250, %v249
      %v281 = vpack.c.b16 %v252, %v251
      %v282 = vpack.c.b16 %v254, %v253
      %v283 = vpack.c.b16 %v256, %v255
      %v284 = vpack.c.b16 %v258, %v257
      %v285 = vpack.c.b16 %v260, %v259
      %v286 = vpack.c.b16 %v262, %v261
      %v287 = vpack.c.b16 %v264, %v263
      %v288 = vpack.c.b16 %v266, %v265
      %v289 = vpack.c.b16 %v268, %v267
      %v290 = vpack.c.b16 %v270, %v269
      %v291 = vpack.c.b16 %v272, %v271
      %v292 = vpack.c.b16 %v274, %v273
      %v293 = vpack.c.b16 %v276, %v275
      %v294 = vpack.c.b16 %v278, %v277
      %vm295 = vcmask 31744
      %v297 = vsel %vm295, %v279, 0
      %v300 = vsel %vm295, %v280, 0
      %v303 = vsel %vm295, %v281, 0
      %v306 = vsel %vm295, %v282, 0
      %v309 = vsel %vm295, %v283, 0
      %v312 = vsel %vm295, %v284, 0
      %v315 = vsel %vm295, %v285, 0
      %v318 = vsel %vm295, %v286, 0
      %v321 = vsel %vm295, %v287, 0
      %v324 = vsel %vm295, %v288, 0
      %v327 = vsel %vm295, %v289, 0
      %v330 = vsel %vm295, %v290, 0
      %v333 = vsel %vm295, %v291, 0
      %v336 = vsel %vm295, %v292, 0
      %v339 = vsel %vm295, %v293, 0
      %v342 = vsel %vm295, %v294, 0
      %vm344 = vcmask 1041408
      %v346 = vsel %vm344, %v207, 0
      %348 = vmatprep.subr.bf16.mxu0 0
      %349 = vmatpush1.bf16.msra.mxu0 0
      %350 = vmatprep.subr.bf16.mxu0 0
      %351 = vmatpush1.bf16.msra.mxu0 0
      %352 = vmatprep.subr.bf16.mxu0 0
      %353 = vmatpush1.bf16.msra.mxu0 0
      %354 = vmatprep.subr.bf16.mxu0 0
      %355 = vmatpush1.bf16.msra.mxu0 0
      %356 = vmatprep.subr.bf16.mxu0 0
      %357 = vmatpush1.bf16.msra.mxu0 0
      %358 = vmatprep.subr.bf16.mxu0 0
      %359 = vmatpush1.bf16.msra.mxu0 0
      %360 = vmatprep.subr.bf16.mxu0 0
      %361 = vmatpush1.bf16.msra.mxu0 0
      %362 = vmatprep.subr.bf16.mxu0 0
      %363 = vmatpush1.bf16.msra.mxu0 %v346
      %364 = vmatprep.subr.bf16.mxu0 0
      %365 = vmatpush2.bf16.msra.mxu0 0
      %366 = vmatprep.subr.bf16.mxu0 0
      %367 = vmatpush2.bf16.msra.mxu0 0
      %368 = vmatprep.subr.bf16.mxu0 0
      %369 = vmatpush2.bf16.msra.mxu0 0
      %370 = vmatprep.subr.bf16.mxu0 0
      %371 = vmatpush2.bf16.msra.mxu0 0
      %372 = vmatprep.subr.bf16.mxu0 0
      %373 = vmatpush2.bf16.msra.mxu0 0
      %374 = vmatprep.subr.bf16.mxu0 0
      %375 = vmatpush2.bf16.msra.mxu0 0
      %376 = vmatprep.subr.bf16.mxu0 0
      %377 = vmatpush2.bf16.msra.mxu0 0
      %378 = vmatprep.subr.bf16.mxu0 0
      %379 = vmatpush2.bf16.msra.mxu0 0
      %380 = vmatprep.mubr.bf16.mxu0 0
      %381 = vmatmul.mubr.bf16.gmra.mxu0 %v297
      %v382 = vpop.f32.mrf.mxu0
      %v383 = vadd.f32 %v213, %v382
      %v384 = vpop.f32.mrf.mxu0
      %v385 = vpop.f32.mrf.mxu0
      %v386 = vadd.f32 %v213, %v385
      %v387 = vpop.f32.mrf.mxu0
      %388 = vmatprep.mubr.bf16.mxu0 0
      %389 = vmatmul.mubr.bf16.gmra.mxu0 %v300
      %v390 = vpop.f32.mrf.mxu0
      %v391 = vadd.f32 %v213, %v390
      %v392 = vpop.f32.mrf.mxu0
      %v393 = vpop.f32.mrf.mxu0
      %v394 = vadd.f32 %v213, %v393
      %v395 = vpop.f32.mrf.mxu0
      %396 = vmatprep.mubr.bf16.mxu0 0
      %397 = vmatmul.mubr.bf16.gmra.mxu0 %v303
      %v398 = vpop.f32.mrf.mxu0
      %v399 = vadd.f32 %v213, %v398
      %v400 = vpop.f32.mrf.mxu0
      %v401 = vpop.f32.mrf.mxu0
      %v402 = vadd.f32 %v213, %v401
      %v403 = vpop.f32.mrf.mxu0
      %404 = vmatprep.mubr.bf16.mxu0 0
      %405 = vmatmul.mubr.bf16.gmra.mxu0 %v306
      %v406 = vpop.f32.mrf.mxu0
      %v407 = vadd.f32 %v213, %v406
      %v408 = vpop.f32.mrf.mxu0
      %v409 = vpop.f32.mrf.mxu0
      %v410 = vadd.f32 %v213, %v409
      %v411 = vpop.f32.mrf.mxu0
      %412 = vmatprep.mubr.bf16.mxu0 0
      %413 = vmatmul.mubr.bf16.gmra.mxu0 %v309
      %v414 = vpop.f32.mrf.mxu0
      %v415 = vadd.f32 %v213, %v414
      %v416 = vpop.f32.mrf.mxu0
      %v417 = vpop.f32.mrf.mxu0
      %v418 = vadd.f32 %v213, %v417
      %v419 = vpop.f32.mrf.mxu0
      %420 = vmatprep.mubr.bf16.mxu0 0
      %421 = vmatmul.mubr.bf16.gmra.mxu0 %v312
      %v422 = vpop.f32.mrf.mxu0
      %v423 = vadd.f32 %v213, %v422
      %v424 = vpop.f32.mrf.mxu0
      %v425 = vpop.f32.mrf.mxu0
      %v426 = vadd.f32 %v213, %v425
      %v427 = vpop.f32.mrf.mxu0
      %428 = vmatprep.mubr.bf16.mxu0 0
      %429 = vmatmul.mubr.bf16.gmra.mxu0 %v315
      %v430 = vpop.f32.mrf.mxu0
      %v431 = vadd.f32 %v213, %v430
      %v432 = vpop.f32.mrf.mxu0
      %v433 = vpop.f32.mrf.mxu0
      %v434 = vadd.f32 %v213, %v433
      %v435 = vpop.f32.mrf.mxu0
      %436 = vmatprep.mubr.bf16.mxu0 0
      %437 = vmatmul.mubr.bf16.gmra.mxu0 %v318
      %v438 = vpop.f32.mrf.mxu0
      %v439 = vadd.f32 %v213, %v438
      %v440 = vpop.f32.mrf.mxu0
      %v441 = vpop.f32.mrf.mxu0
      %v442 = vadd.f32 %v213, %v441
      %v443 = vpop.f32.mrf.mxu0
      %444 = vmatprep.mubr.bf16.mxu0 0
      %445 = vmatmul.mubr.bf16.gmra.mxu0 %v321
      %v446 = vpop.f32.mrf.mxu0
      %v447 = vadd.f32 %v213, %v446
      %v448 = vpop.f32.mrf.mxu0
      %v449 = vpop.f32.mrf.mxu0
      %v450 = vadd.f32 %v213, %v449
      %v451 = vpop.f32.mrf.mxu0
      %452 = vmatprep.mubr.bf16.mxu0 0
      %453 = vmatmul.mubr.bf16.gmra.mxu0 %v324
      %v454 = vpop.f32.mrf.mxu0
      %v455 = vadd.f32 %v213, %v454
      %v456 = vpop.f32.mrf.mxu0
      %v457 = vpop.f32.mrf.mxu0
      %v458 = vadd.f32 %v213, %v457
      %v459 = vpop.f32.mrf.mxu0
      %460 = vmatprep.mubr.bf16.mxu0 0
      %461 = vmatmul.mubr.bf16.gmra.mxu0 %v327
      %v462 = vpop.f32.mrf.mxu0
      %v463 = vadd.f32 %v213, %v462
      %v464 = vpop.f32.mrf.mxu0
      %v465 = vpop.f32.mrf.mxu0
      %v466 = vadd.f32 %v213, %v465
      %v467 = vpop.f32.mrf.mxu0
      %468 = vmatprep.mubr.bf16.mxu0 0
      %469 = vmatmul.mubr.bf16.gmra.mxu0 %v330
      %v470 = vpop.f32.mrf.mxu0
      %v471 = vadd.f32 %v213, %v470
      %v472 = vpop.f32.mrf.mxu0
      %v473 = vpop.f32.mrf.mxu0
      %v474 = vadd.f32 %v213, %v473
      %v475 = vpop.f32.mrf.mxu0
      %476 = vmatprep.mubr.bf16.mxu0 0
      %477 = vmatmul.mubr.bf16.gmra.mxu0 %v333
      %v478 = vpop.f32.mrf.mxu0
      %v479 = vadd.f32 %v213, %v478
      %v480 = vpop.f32.mrf.mxu0
      %v481 = vpop.f32.mrf.mxu0
      %v482 = vadd.f32 %v213, %v481
      %v483 = vpop.f32.mrf.mxu0
      %484 = vmatprep.mubr.bf16.mxu0 0
      %485 = vmatmul.mubr.bf16.gmra.mxu0 %v336
      %v486 = vpop.f32.mrf.mxu0
      %v487 = vadd.f32 %v213, %v486
      %v488 = vpop.f32.mrf.mxu0
      %v489 = vpop.f32.mrf.mxu0
      %v490 = vadd.f32 %v213, %v489
      %v491 = vpop.f32.mrf.mxu0
      %492 = vmatprep.mubr.bf16.mxu0 0
      %493 = vmatmul.mubr.bf16.gmra.mxu0 %v339
      %v494 = vpop.f32.mrf.mxu0
      %v495 = vadd.f32 %v213, %v494
      %v496 = vpop.f32.mrf.mxu0
      %v497 = vpop.f32.mrf.mxu0
      %v498 = vadd.f32 %v213, %v497
      %v499 = vpop.f32.mrf.mxu0
      %500 = vmatprep.mubr.bf16.mxu0 0
      %501 = vmatmul.mubr.bf16.gmra.mxu0 %v342
      %v502 = vpop.f32.mrf.mxu0
      %v503 = vadd.f32 %v213, %v502
      %v504 = vpop.f32.mrf.mxu0
      %v505 = vpop.f32.mrf.mxu0
      %v506 = vadd.f32 %v213, %v505
      %v507 = vpop.f32.mrf.mxu0
      %508 = vdwg.mxu0
      %vm509 = vcmp.ge.f32.partialorder %v383, 0.0
      %vm510 = vcmp.ge.f32.partialorder %v386, 0.0
      %vm511 = vcmp.ge.f32.partialorder %v391, 0.0
      %vm512 = vcmp.ge.f32.partialorder %v394, 0.0
      %vm513 = vcmp.ge.f32.partialorder %v399, 0.0
      %vm514 = vcmp.ge.f32.partialorder %v402, 0.0
      %vm515 = vcmp.ge.f32.partialorder %v407, 0.0
      %vm516 = vcmp.ge.f32.partialorder %v410, 0.0
      %vm517 = vcmp.ge.f32.partialorder %v415, 0.0
      %vm518 = vcmp.ge.f32.partialorder %v418, 0.0
      %vm519 = vcmp.ge.f32.partialorder %v423, 0.0
      %vm520 = vcmp.ge.f32.partialorder %v426, 0.0
      %vm521 = vcmp.ge.f32.partialorder %v431, 0.0
      %vm522 = vcmp.ge.f32.partialorder %v434, 0.0
      %vm523 = vcmp.ge.f32.partialorder %v439, 0.0
      %vm524 = vcmp.ge.f32.partialorder %v442, 0.0
      %vm525 = vcmp.ge.f32.partialorder %v447, 0.0
      %vm526 = vcmp.ge.f32.partialorder %v450, 0.0
      %vm527 = vcmp.ge.f32.partialorder %v455, 0.0
      %vm528 = vcmp.ge.f32.partialorder %v458, 0.0
      %vm529 = vcmp.ge.f32.partialorder %v463, 0.0
      %vm530 = vcmp.ge.f32.partialorder %v466, 0.0
      %vm531 = vcmp.ge.f32.partialorder %v471, 0.0
      %vm532 = vcmp.ge.f32.partialorder %v474, 0.0
      %vm533 = vcmp.ge.f32.partialorder %v479, 0.0
      %vm534 = vcmp.ge.f32.partialorder %v482, 0.0
      %vm535 = vcmp.ge.f32.partialorder %v487, 0.0
      %vm536 = vcmp.ge.f32.partialorder %v490, 0.0
      %vm537 = vcmp.ge.f32.partialorder %v495, 0.0
      %vm538 = vcmp.ge.f32.partialorder %v498, 0.0
      %vm539 = vcmp.ge.f32.partialorder %v503, 0.0
      %vm540 = vcmp.ge.f32.partialorder %v506, 0.0
      %v541 = vmul.f32 %v383, 0.01
      %v542 = vmul.f32 %v386, 0.01
      %v543 = vmul.f32 %v391, 0.01
      %v544 = vmul.f32 %v394, 0.01
      %v545 = vmul.f32 %v399, 0.01
      %v546 = vmul.f32 %v402, 0.01
      %v547 = vmul.f32 %v407, 0.01
      %v548 = vmul.f32 %v410, 0.01
      %v549 = vmul.f32 %v415, 0.01
      %v550 = vmul.f32 %v418, 0.01
      %v551 = vmul.f32 %v423, 0.01
      %v552 = vmul.f32 %v426, 0.01
      %v553 = vmul.f32 %v431, 0.01
      %v554 = vmul.f32 %v434, 0.01
      %v555 = vmul.f32 %v439, 0.01
      %v556 = vmul.f32 %v442, 0.01
      %v557 = vmul.f32 %v447, 0.01
      %v558 = vmul.f32 %v450, 0.01
      %v559 = vmul.f32 %v455, 0.01
      %v560 = vmul.f32 %v458, 0.01
      %v561 = vmul.f32 %v463, 0.01
      %v562 = vmul.f32 %v466, 0.01
      %v563 = vmul.f32 %v471, 0.01
      %v564 = vmul.f32 %v474, 0.01
      %v565 = vmul.f32 %v479, 0.01
      %v566 = vmul.f32 %v482, 0.01
      %v567 = vmul.f32 %v487, 0.01
      %v568 = vmul.f32 %v490, 0.01
      %v569 = vmul.f32 %v495, 0.01
      %v570 = vmul.f32 %v498, 0.01
      %v571 = vmul.f32 %v503, 0.01
      %v572 = vmul.f32 %v506, 0.01
      %v573 = vsel %vm509, %v383, %v541
      %v574 = vsel %vm510, %v386, %v542
      %v575 = vsel %vm511, %v391, %v543
      %v576 = vsel %vm512, %v394, %v544
      %v577 = vsel %vm513, %v399, %v545
      %v578 = vsel %vm514, %v402, %v546
      %v579 = vsel %vm515, %v407, %v547
      %v580 = vsel %vm516, %v410, %v548
      %v581 = vsel %vm517, %v415, %v549
      %v582 = vsel %vm518, %v418, %v550
      %v583 = vsel %vm519, %v423, %v551
      %v584 = vsel %vm520, %v426, %v552
      %v585 = vsel %vm521, %v431, %v553
      %v586 = vsel %vm522, %v434, %v554
      %v587 = vsel %vm523, %v439, %v555
      %v588 = vsel %vm524, %v442, %v556
      %v589 = vsel %vm525, %v447, %v557
      %v590 = vsel %vm526, %v450, %v558
      %v591 = vsel %vm527, %v455, %v559
      %v592 = vsel %vm528, %v458, %v560
      %v593 = vsel %vm529, %v463, %v561
      %v594 = vsel %vm530, %v466, %v562
      %v595 = vsel %vm531, %v471, %v563
      %v596 = vsel %vm532, %v474, %v564
      %v597 = vsel %vm533, %v479, %v565
      %v598 = vsel %vm534, %v482, %v566
      %v599 = vsel %vm535, %v487, %v567
      %v600 = vsel %vm536, %v490, %v568
      %v601 = vsel %vm537, %v495, %v569
      %v602 = vsel %vm538, %v498, %v570
      %v603 = vsel %vm539, %v503, %v571
      %v604 = vsel %vm540, %v506, %v572
      %v605 = vpack.c.bf16 %v574, %v573
      %v606 = vpack.c.bf16 %v576, %v575
      %v607 = vpack.c.bf16 %v578, %v577
      %v608 = vpack.c.bf16 %v580, %v579
      %v609 = vpack.c.bf16 %v582, %v581
      %v610 = vpack.c.bf16 %v584, %v583
      %v611 = vpack.c.bf16 %v586, %v585
      %v612 = vpack.c.bf16 %v588, %v587
      %v613 = vpack.c.bf16 %v590, %v589
      %v614 = vpack.c.bf16 %v592, %v591
      %v615 = vpack.c.bf16 %v594, %v593
      %v616 = vpack.c.bf16 %v596, %v595
      %v617 = vpack.c.bf16 %v598, %v597
      %v618 = vpack.c.bf16 %v600, %v599
      %v619 = vpack.c.bf16 %v602, %v601
      %v620 = vpack.c.bf16 %v604, %v603
      %v637 = vunpack.c.l.b16 %v605
      %v638 = vunpack.c.h.b16 %v605
      %v639 = vunpack.c.l.b16 %v606
      %v640 = vunpack.c.h.b16 %v606
      %v641 = vunpack.c.l.b16 %v607
      %v642 = vunpack.c.h.b16 %v607
      %v643 = vunpack.c.l.b16 %v608
      %v644 = vunpack.c.h.b16 %v608
      %v645 = vunpack.c.l.b16 %v609
      %v646 = vunpack.c.h.b16 %v609
      %v647 = vunpack.c.l.b16 %v610
      %v648 = vunpack.c.h.b16 %v610
      %v649 = vunpack.c.l.b16 %v611
      %v650 = vunpack.c.h.b16 %v611
      %v651 = vunpack.c.l.b16 %v612
      %v652 = vunpack.c.h.b16 %v612
      %v653 = vunpack.c.l.b16 %v613
      %v654 = vunpack.c.h.b16 %v613
      %v655 = vunpack.c.l.b16 %v614
      %v656 = vunpack.c.h.b16 %v614
      %v657 = vunpack.c.l.b16 %v615
      %v658 = vunpack.c.h.b16 %v615
      %v659 = vunpack.c.l.b16 %v616
      %v660 = vunpack.c.h.b16 %v616
      %v661 = vunpack.c.l.b16 %v617
      %v662 = vunpack.c.h.b16 %v617
      %v663 = vunpack.c.l.b16 %v618
      %v664 = vunpack.c.h.b16 %v618
      %v665 = vunpack.c.l.b16 %v619
      %v666 = vunpack.c.h.b16 %v619
      %v667 = vunpack.c.l.b16 %v620
      %v668 = vunpack.c.h.b16 %v620
      %v669 = vpack.c.b16 %v637, %v637
      %v670 = vpack.c.b16 %v638, %v638
      %v671 = vpack.c.b16 %v639, %v639
      %v672 = vpack.c.b16 %v640, %v640
      %v673 = vpack.c.b16 %v641, %v641
      %v674 = vpack.c.b16 %v642, %v642
      %v675 = vpack.c.b16 %v643, %v643
      %v676 = vpack.c.b16 %v644, %v644
      %v677 = vpack.c.b16 %v645, %v645
      %v678 = vpack.c.b16 %v646, %v646
      %v679 = vpack.c.b16 %v647, %v647
      %v680 = vpack.c.b16 %v648, %v648
      %v681 = vpack.c.b16 %v649, %v649
      %v682 = vpack.c.b16 %v650, %v650
      %v683 = vpack.c.b16 %v651, %v651
      %v684 = vpack.c.b16 %v652, %v652
      %v685 = vpack.c.b16 %v653, %v653
      %v686 = vpack.c.b16 %v654, %v654
      %v687 = vpack.c.b16 %v655, %v655
      %v688 = vpack.c.b16 %v656, %v656
      %v689 = vpack.c.b16 %v657, %v657
      %v690 = vpack.c.b16 %v658, %v658
      %v691 = vpack.c.b16 %v659, %v659
      %v692 = vpack.c.b16 %v660, %v660
      %v693 = vpack.c.b16 %v661, %v661
      %v694 = vpack.c.b16 %v662, %v662
      %v695 = vpack.c.b16 %v663, %v663
      %v696 = vpack.c.b16 %v664, %v664
      %v697 = vpack.c.b16 %v665, %v665
      %v698 = vpack.c.b16 %v666, %v666
      %v699 = vpack.c.b16 %v667, %v667
      %v700 = vpack.c.b16 %v668, %v668
      %vm733 = vcmask 125952
      %734 = vst.msk [vmem:[%s172] sm:$0xf] %vm733, %v669
      %735 = vst.msk [vmem:[%s172 + $0x4] sm:$0xf] %vm733, %v670
      %736 = vst.msk [vmem:[%s172 + $0x8] sm:$0xf] %vm733, %v671
      %737 = vst.msk [vmem:[%s172 + $0xc] sm:$0xf] %vm733, %v672
      %738 = vst.msk [vmem:[%s172 + $0x10] sm:$0xf] %vm733, %v673
      %739 = vst.msk [vmem:[%s172 + $0x14] sm:$0xf] %vm733, %v674
      %740 = vst.msk [vmem:[%s172 + $0x18] sm:$0xf] %vm733, %v675
      %741 = vst.msk [vmem:[%s172 + $0x1c] sm:$0xf] %vm733, %v676
      %742 = vst.msk [vmem:[%s172 + $0x20] sm:$0xf] %vm733, %v677
      %743 = vst.msk [vmem:[%s172 + $0x24] sm:$0xf] %vm733, %v678
      %744 = vst.msk [vmem:[%s172 + $0x28] sm:$0xf] %vm733, %v679
      %745 = vst.msk [vmem:[%s172 + $0x2c] sm:$0xf] %vm733, %v680
      %746 = vst.msk [vmem:[%s172 + $0x30] sm:$0xf] %vm733, %v681
      %747 = vst.msk [vmem:[%s172 + $0x34] sm:$0xf] %vm733, %v682
      %748 = vst.msk [vmem:[%s172 + $0x38] sm:$0xf] %vm733, %v683
      %749 = vst.msk [vmem:[%s172 + $0x3c] sm:$0xf] %vm733, %v684
      %750 = vst.msk [vmem:[%s172 + $0x40] sm:$0xf] %vm733, %v685
      %751 = vst.msk [vmem:[%s172 + $0x44] sm:$0xf] %vm733, %v686
      %752 = vst.msk [vmem:[%s172 + $0x48] sm:$0xf] %vm733, %v687
      %753 = vst.msk [vmem:[%s172 + $0x4c] sm:$0xf] %vm733, %v688
      %754 = vst.msk [vmem:[%s172 + $0x50] sm:$0xf] %vm733, %v689
      %755 = vst.msk [vmem:[%s172 + $0x54] sm:$0xf] %vm733, %v690
      %756 = vst.msk [vmem:[%s172 + $0x58] sm:$0xf] %vm733, %v691
      %757 = vst.msk [vmem:[%s172 + $0x5c] sm:$0xf] %vm733, %v692
      %758 = vst.msk [vmem:[%s172 + $0x60] sm:$0xf] %vm733, %v693
      %759 = vst.msk [vmem:[%s172 + $0x64] sm:$0xf] %vm733, %v694
      %760 = vst.msk [vmem:[%s172 + $0x68] sm:$0xf] %vm733, %v695
      %761 = vst.msk [vmem:[%s172 + $0x6c] sm:$0xf] %vm733, %v696
      %762 = vst.msk [vmem:[%s172 + $0x70] sm:$0xf] %vm733, %v697
      %763 = vst.msk [vmem:[%s172 + $0x74] sm:$0xf] %vm733, %v698
      %764 = vst.msk [vmem:[%s172 + $0x78] sm:$0xf] %vm733, %v699
      %765 = vst.msk [vmem:[%s172 + $0x7c] sm:$0xf] %vm733, %v700
      %s766 = smul.u32 32, %s14
      %p767 = scmp.lt.s32.totalorder %s766, 63
      %s768 = scalar_select %p767, %s766, 63
      %s769 = smul.addr %s768, 4
      %s770 = scalar_lea.vmem %s3, %s769
      // Predicated region
      $region33: #{scaleup_forward.2} parent=31 // pred_check
        %p771 = pneg %p100
      $region34: #{scaleup_forward.2} parent=31 // pred_check_branch
        %773 = sbr.rel (%p771) target = $region36
      $region35: #{scaleup_forward.2} parent=31 // pred_region
        %s774 = smul.u32 32, %s14
      $region36: #{scaleup_forward.2} parent=31 // pred_fallthru
        _
    $region32: #{scaleup_forward.2} parent=5 // pred_fallthru
      _
    %p775 = scmp.le.s32.totalorder 2, %s9
    // Predicated region
    $region37: #{scaleup_forward.2} parent=5 // pred_check
      %p776 = pneg %p775
    $region38: #{scaleup_forward.2} parent=5 // pred_check_branch
      %778 = sbr.rel (%p776) target = $region40
    $region39: #{scaleup_forward.2} parent=5 // pred_region
      %s779 = ssub.s32 %s9, 2
      // Predicated region
      $region41: #{scaleup_forward.2} parent=39 // pred_check
        %p780 = pneg %p106
      $region42: #{scaleup_forward.2} parent=39 // pred_check_branch
        %782 = sbr.rel (%p780) target = $region44
      $region43: #{scaleup_forward.2} parent=39 // pred_region
        %s783 = smul.u32 32, %s15
        %p784 = scmp.lt.s32.totalorder %s783, 63
        %s785 = scalar_select %p784, %s783, 63
        %s786 = smul.addr %s785, 4
        %s787 = scalar_lea.vmem %s3, %s786
      $region44: #{scaleup_forward.2} parent=39 // pred_fallthru
        _
    $region40: #{scaleup_forward.2} parent=5 // pred_fallthru
      _
  $region6: #{scaleup_forward.2} parent=0 // loop_footer
    %s13 = sadd.s32 1, %s9
  $region7: #{scaleup_forward.2} parent=0 // loop_footer_branch
    %8 = sbr.rel target = $region3
  $region8: #{scaleup_forward.2} parent=0 // loop_exit
    _

// kernel: scaleup_forward.3
$region0: #{scaleup_forward.3}
  #allocation0 [shape = 'u32[]', space=smem, size = 0x4, offset = 0x4, fixed_abs, tag = 'smem constant byte address 0x4 - core index']
  #allocation1 [shape = 'u32[144,128]{1,0:T(1,128)}', space=vmem, size = 0x12000, scoped, tag = 'internal scratch']
  %s0 = inlined_call_operand.vmem [shape: bf16[8,456,4], index: 0, kind: input, shape index: {}]
  %s1 = inlined_call_operand.vmem [shape: bf16[9,4,8], index: 1, kind: input, shape index: {}]
  %s2 = inlined_call_operand.vmem [shape: f32[1,8], index: 2, kind: input, shape index: {}]
  %s3 = inlined_call_operand.vmem [shape: bf16[8,8], index: 3, kind: input, shape index: {}]
  %s4 = inlined_call_operand.vmem [shape: f32[1,8], index: 4, kind: input, shape index: {}]
  %s5 = inlined_call_operand.vmem [shape: f32[8,384,8], index: 5, kind: output, shape index: {}]
  %s6 = sld [smem:[#allocation0]]
  $region53: #{scaleup_forward.3} parent=0
    _
  %s8 = ssub.s32 1, %s6
  %s9 = scalar_select 0, %s8, %s6
  loop: start=0, step=1, limit=10
  $region2: #{scaleup_forward.3} parent=0 // loop_pre_header
    _
  $region3: #{scaleup_forward.3} parent=0 // loop_header
    %s11 = sphi 0, %s15
    %p12 = scmp.ge.s32.totalorder %s11, 10
    %s21 = sphi 0, %s23
    %s24 = sphi 0, %s21
    %s25 = sphi 0, %s24
    %s41 = sphi 0, %s25
    %s45 = sphi 0, %s45
    %s47 = sphi 0, %s45
    %s48 = sphi 0, %s47
    %s62 = sphi 0, %s48
    %s66 = sphi 0, %s66
    %s68 = sphi 0, %s66
    %s69 = sphi 0, %s68
    %s83 = sphi 0, %s69
    %s87 = sphi 0, %s87
    %s89 = sphi 0, %s87
    %s90 = sphi 0, %s89
    %s104 = sphi 0, %s90
    %s108 = sphi 0, %s108
    %s110 = sphi 0, %s108
    %s111 = sphi 0, %s110
    %s125 = sphi 0, %s111
    %s131 = sphi 0, %s133
    %s134 = sphi 0, %s131
    %s135 = sphi 0, %s134
    %s151 = sphi 0, %s135
  $region4: #{scaleup_forward.3} parent=0 // loop_header_branch
    %14 = sbr.rel (%p12) target = $region8
  $region5: #{scaleup_forward.3} parent=0 // loop_body
    %s16 = ssub.s32 %s11, 1
    %s17 = ssub.s32 %s11, 2
    %s18 = sadd.s32 %s11, 1
    %s19 = ssub.s32 %s11, %s18
    %p20 = scmp.eq.s32.totalorder %s19, 0
    %s22 = sadd.s32 %s21, 1
    %s23 = scalar_select %p20, %s21, %s22
    %p26 = pneg %p20
    %p27 = scmp.eq.s32.totalorder %s11, 7
    %p28 = por %p26, %p27
    %p29 = scmp.ne.s32.totalorder %s21, %s24
    %p30 = scmp.eq.s32.totalorder %s11, 0
    %p31 = por %p29, %p30
    %p32 = scmp.ne.s32.totalorder %s21, %s24
    %p33 = scmp.eq.s32.totalorder %s16, 7
    %p34 = por %p32, %p33
    %p35 = scmp.ne.s32.totalorder %s24, %s25
    %p36 = scmp.eq.s32.totalorder %s16, 0
    %p37 = por %p35, %p36
    %p38 = scmp.ne.s32.totalorder %s24, %s25
    %p39 = scmp.eq.s32.totalorder %s17, 7
    %p40 = por %p38, %p39
    %p42 = scmp.ne.s32.totalorder %s25, %s41
    %p43 = scmp.eq.s32.totalorder %s17, 0
    %p44 = por %p42, %p43
    %s46 = sadd.s32 %s45, 1
    %p49 = scmp.eq.s32.totalorder %s11, 7
    %p50 = scmp.ne.s32.totalorder %s45, %s47
    %p51 = scmp.eq.s32.totalorder %s11, 0
    %p52 = por %p50, %p51
    %p53 = scmp.ne.s32.totalorder %s45, %s47
    %p54 = scmp.eq.s32.totalorder %s16, 7
    %p55 = por %p53, %p54
    %p56 = scmp.ne.s32.totalorder %s47, %s48
    %p57 = scmp.eq.s32.totalorder %s16, 0
    %p58 = por %p56, %p57
    %p59 = scmp.ne.s32.totalorder %s47, %s48
    %p60 = scmp.eq.s32.totalorder %s17, 7
    %p61 = por %p59, %p60
    %p63 = scmp.ne.s32.totalorder %s48, %s62
    %p64 = scmp.eq.s32.totalorder %s17, 0
    %p65 = por %p63, %p64
    %s67 = sadd.s32 %s66, 1
    %p70 = scmp.eq.s32.totalorder %s11, 7
    %p71 = scmp.ne.s32.totalorder %s66, %s68
    %p72 = scmp.eq.s32.totalorder %s11, 0
    %p73 = por %p71, %p72
    %p74 = scmp.ne.s32.totalorder %s66, %s68
    %p75 = scmp.eq.s32.totalorder %s16, 7
    %p76 = por %p74, %p75
    %p77 = scmp.ne.s32.totalorder %s68, %s69
    %p78 = scmp.eq.s32.totalorder %s16, 0
    %p79 = por %p77, %p78
    %p80 = scmp.ne.s32.totalorder %s68, %s69
    %p81 = scmp.eq.s32.totalorder %s17, 7
    %p82 = por %p80, %p81
    %p84 = scmp.ne.s32.totalorder %s69, %s83
    %p85 = scmp.eq.s32.totalorder %s17, 0
    %p86 = por %p84, %p85
    %s88 = sadd.s32 %s87, 1
    %p91 = scmp.eq.s32.totalorder %s11, 7
    %p92 = scmp.ne.s32.totalorder %s87, %s89
    %p93 = scmp.eq.s32.totalorder %s11, 0
    %p94 = por %p92, %p93
    %p95 = scmp.ne.s32.totalorder %s87, %s89
    %p96 = scmp.eq.s32.totalorder %s16, 7
    %p97 = por %p95, %p96
    %p98 = scmp.ne.s32.totalorder %s89, %s90
    %p99 = scmp.eq.s32.totalorder %s16, 0
    %p100 = por %p98, %p99
    %p101 = scmp.ne.s32.totalorder %s89, %s90
    %p102 = scmp.eq.s32.totalorder %s17, 7
    %p103 = por %p101, %p102
    %p105 = scmp.ne.s32.totalorder %s90, %s104
    %p106 = scmp.eq.s32.totalorder %s17, 0
    %p107 = por %p105, %p106
    %s109 = sadd.s32 %s108, 1
    %p112 = scmp.eq.s32.totalorder %s11, 7
    %p113 = scmp.ne.s32.totalorder %s108, %s110
    %p114 = scmp.eq.s32.totalorder %s11, 0
    %p115 = por %p113, %p114
    %p116 = scmp.ne.s32.totalorder %s108, %s110
    %p117 = scmp.eq.s32.totalorder %s16, 7
    %p118 = por %p116, %p117
    %p119 = scmp.ne.s32.totalorder %s110, %s111
    %p120 = scmp.eq.s32.totalorder %s16, 0
    %p121 = por %p119, %p120
    %p122 = scmp.ne.s32.totalorder %s110, %s111
    %p123 = scmp.eq.s32.totalorder %s17, 7
    %p124 = por %p122, %p123
    %p126 = scmp.ne.s32.totalorder %s111, %s125
    %p127 = scmp.eq.s32.totalorder %s17, 0
    %p128 = por %p126, %p127
    %s129 = ssub.s32 %s11, %s18
    %p130 = scmp.eq.s32.totalorder %s129, 0
    %s132 = sadd.s32 %s131, 1
    %s133 = scalar_select %p130, %s131, %s132
    %p136 = pneg %p130
    %p137 = scmp.eq.s32.totalorder %s11, 7
    %p138 = por %p136, %p137
    %p139 = scmp.ne.s32.totalorder %s131, %s134
    %p140 = scmp.eq.s32.totalorder %s11, 0
    %p141 = por %p139, %p140
    %p142 = scmp.ne.s32.totalorder %s131, %s134
    %p143 = scmp.eq.s32.totalorder %s16, 7
    %p144 = por %p142, %p143
    %p145 = scmp.ne.s32.totalorder %s134, %s135
    %p146 = scmp.eq.s32.totalorder %s16, 0
    %p147 = por %p145, %p146
    %p148 = scmp.ne.s32.totalorder %s134, %s135
    %p149 = scmp.eq.s32.totalorder %s17, 7
    %p150 = por %p148, %p149
    %p152 = scmp.ne.s32.totalorder %s135, %s151
    %p153 = scmp.eq.s32.totalorder %s17, 0
    %p154 = por %p152, %p153
    %p155 = scmp.le.s32.totalorder 1, %s11
    %p156 = scmp.lt.s32.totalorder %s11, 9
    %p157 = pnand %p155, %p156
    %p158 = pneg %p157
    // Predicated region
    $region9: #{scaleup_forward.3} parent=5 // pred_check
      _
    $region10: #{scaleup_forward.3} parent=5 // pred_check_branch
      %160 = sbr.rel (%p157) target = $region12
    $region11: #{scaleup_forward.3} parent=5 // pred_region
      %s161 = ssub.s32 %s11, 1
      // Predicated region
      $region13: #{scaleup_forward.3} parent=11 // pred_check
        %p162 = pneg %p58
      $region14: #{scaleup_forward.3} parent=11 // pred_check_branch
        %164 = sbr.rel (%p162) target = $region16
      $region15: #{scaleup_forward.3} parent=11 // pred_region
        _
      $region16: #{scaleup_forward.3} parent=11 // pred_fallthru
        _
      // Predicated region
      $region17: #{scaleup_forward.3} parent=11 // pred_check
        %p165 = pneg %p79
      $region18: #{scaleup_forward.3} parent=11 // pred_check_branch
        %167 = sbr.rel (%p165) target = $region20
      $region19: #{scaleup_forward.3} parent=11 // pred_region
        _
      $region20: #{scaleup_forward.3} parent=11 // pred_fallthru
        _
      // Predicated region
      $region21: #{scaleup_forward.3} parent=11 // pred_check
        %p168 = pneg %p100
      $region22: #{scaleup_forward.3} parent=11 // pred_check_branch
        %170 = sbr.rel (%p168) target = $region24
      $region23: #{scaleup_forward.3} parent=11 // pred_region
        _
      $region24: #{scaleup_forward.3} parent=11 // pred_fallthru
        _
      // Predicated region
      $region25: #{scaleup_forward.3} parent=11 // pred_check
        %p171 = pneg %p121
      $region26: #{scaleup_forward.3} parent=11 // pred_check_branch
        %173 = sbr.rel (%p171) target = $region28
      $region27: #{scaleup_forward.3} parent=11 // pred_region
        _
      $region28: #{scaleup_forward.3} parent=11 // pred_fallthru
        _
    $region12: #{scaleup_forward.3} parent=5 // pred_fallthru
      _
    %p174 = scmp.lt.s32.totalorder %s11, 8
    // Predicated region
    $region29: #{scaleup_forward.3} parent=5 // pred_check
      %p175 = pneg %p174
    $region30: #{scaleup_forward.3} parent=5 // pred_check_branch
      %177 = sbr.rel (%p175) target = $region32
    $region31: #{scaleup_forward.3} parent=5 // pred_region
      // Predicated region
      $region33: #{scaleup_forward.3} parent=31 // pred_check
        %p178 = pneg %p31
      $region34: #{scaleup_forward.3} parent=31 // pred_check_branch
        %180 = sbr.rel (%p178) target = $region36
      $region35: #{scaleup_forward.3} parent=31 // pred_region
        %p181 = scmp.lt.s32.totalorder %s11, 7
        %s182 = scalar_select %p181, %s11, 7
        %s183 = smul.addr %s182, 57
        %s184 = smul.addr %s183, 4
        %s185 = scalar_lea.vmem %s0, %s184
      $region36: #{scaleup_forward.3} parent=31 // pred_fallthru
        _
    $region32: #{scaleup_forward.3} parent=5 // pred_fallthru
      _
    %p186 = scmp.le.s32.totalorder 1, %s11
    %p187 = scmp.lt.s32.totalorder %s11, 9
    %p188 = pnand %p186, %p187
    %p189 = pneg %p188
    // Predicated region
    $region37: #{scaleup_forward.3} parent=5 // pred_check
      _
    $region38: #{scaleup_forward.3} parent=5 // pred_check_branch
      %191 = sbr.rel (%p188) target = $region40
    $region39: #{scaleup_forward.3} parent=5 // pred_region
      %s192 = ssub.s32 %s11, 1
      %p193 = scmp.lt.s32.totalorder %s16, 7
      %s194 = scalar_select %p193, %s16, 7
      %s195 = smul.addr %s194, 57
      %s196 = smul.addr %s195, 4
      %s197 = scalar_lea.vmem %s0, %s196
      %p198 = pneg %p37
      %p199 = pneg %p34
      %p200 = pneg %p58
      %p201 = pneg %p55
      %p202 = pneg %p79
      %p203 = pneg %p76
      %p204 = pneg %p100
      %p205 = pneg %p97
      %p206 = pneg %p121
      %p207 = pneg %p118
      %p208 = pneg %p147
      %p209 = pneg %p144
      %p210 = scmp.lt.s32.totalorder %s16, 7
      %s211 = scalar_select %p210, %s16, 7
      %s212 = smul.addr %s211, 48
      %s213 = smul.addr %s212, 8
      %s214 = scalar_lea.vmem %s5, %s213
      %p215 = scmp.lt.s32.totalorder %s16, 7
      %s216 = scalar_select %p215, %s16, 7
      %s217 = smul.addr %s216, 57
      %s218 = smul.addr %s217, 4
      %s219 = scalar_lea.vmem %s0, %s218
      %p220 = scmp.lt.s32.totalorder %s16, 7
      %s221 = scalar_select %p220, %s16, 7
      %s222 = smul.addr %s221, 48
      %s223 = smul.addr %s222, 8
      %s224 = scalar_lea.vmem %s5, %s223
      %v226 = vld [vmem:[%s2] sm:$0x1]
      %v227 = vld [vmem:[%s3] sm:$0xf]
      %v228 = vld [vmem:[%s4] sm:$0x1]
      %v229 = vld [vmem:[%s219] sm:$0xf]
      %v230 = vld [vmem:[%s219 + $0x4] sm:$0xf]
      %v231 = vld [vmem:[%s219 + $0x8] sm:$0xf]
      %v232 = vld [vmem:[%s219 + $0xc] sm:$0xf]
      %v233 = vld [vmem:[%s219 + $0x10] sm:$0xf]
      %v234 = vld [vmem:[%s219 + $0x14] sm:$0xf]
      %v235 = vld [vmem:[%s219 + $0x18] sm:$0xf]
      %v236 = vld [vmem:[%s219 + $0x1c] sm:$0xf]
      %v237 = vld [vmem:[%s219 + $0x20] sm:$0xf]
      %v238 = vld [vmem:[%s219 + $0x24] sm:$0xf]
      %v239 = vld [vmem:[%s219 + $0x28] sm:$0xf]
      %v240 = vld [vmem:[%s219 + $0x2c] sm:$0xf]
      %v241 = vld [vmem:[%s219 + $0x30] sm:$0xf]
      %v242 = vld [vmem:[%s219 + $0x34] sm:$0xf]
      %v243 = vld [vmem:[%s219 + $0x38] sm:$0xf]
      %v244 = vld [vmem:[%s219 + $0x3c] sm:$0xf]
      %v245 = vld [vmem:[%s219 + $0x40] sm:$0xf]
      %v246 = vld [vmem:[%s219 + $0x44] sm:$0xf]
      %v247 = vld [vmem:[%s219 + $0x48] sm:$0xf]
      %v248 = vld [vmem:[%s219 + $0x4c] sm:$0xf]
      %v249 = vld [vmem:[%s219 + $0x50] sm:$0xf]
      %v250 = vld [vmem:[%s219 + $0x54] sm:$0xf]
      %v251 = vld [vmem:[%s219 + $0x58] sm:$0xf]
      %v252 = vld [vmem:[%s219 + $0x5c] sm:$0xf]
      %v253 = vld [vmem:[%s219 + $0x60] sm:$0xf]
      %v254 = vld [vmem:[%s219 + $0x64] sm:$0xf]
      %v255 = vld [vmem:[%s219 + $0x68] sm:$0xf]
      %v256 = vld [vmem:[%s219 + $0x6c] sm:$0xf]
      %v257 = vld [vmem:[%s219 + $0x70] sm:$0xf]
      %v258 = vld [vmem:[%s219 + $0x74] sm:$0xf]
      %v259 = vld [vmem:[%s219 + $0x78] sm:$0xf]
      %v260 = vld [vmem:[%s219 + $0x7c] sm:$0xf]
      %v261 = vld [vmem:[%s1] sm:$0x3]
      %v262 = vld [vmem:[%s219 + $0x80] sm:$0x1]
      %s263 = scalar_lea.vmem %s1, 2
      %v264 = vld [vmem:[%s263] sm:$0x3]
      %v298 = vunpack.c.l.b16 %v229
      %v299 = vunpack.c.l.b16 %v230
      %v300 = vunpack.c.l.b16 %v231
      %v301 = vunpack.c.l.b16 %v232
      %v302 = vunpack.c.l.b16 %v233
      %v303 = vunpack.c.l.b16 %v234
      %v304 = vunpack.c.l.b16 %v235
      %v305 = vunpack.c.l.b16 %v236
      %v306 = vunpack.c.l.b16 %v237
      %v307 = vunpack.c.l.b16 %v238
      %v308 = vunpack.c.l.b16 %v239
      %v309 = vunpack.c.l.b16 %v240
      %v310 = vunpack.c.l.b16 %v241
      %v311 = vunpack.c.l.b16 %v242
      %v312 = vunpack.c.l.b16 %v243
      %v313 = vunpack.c.l.b16 %v244
      %v314 = vunpack.c.l.b16 %v245
      %v315 = vunpack.c.l.b16 %v246
      %v316 = vunpack.c.l.b16 %v247
      %v317 = vunpack.c.l.b16 %v248
      %v318 = vunpack.c.l.b16 %v249
      %v319 = vunpack.c.l.b16 %v250
      %v320 = vunpack.c.l.b16 %v251
      %v321 = vunpack.c.l.b16 %v252
      %v322 = vunpack.c.l.b16 %v253
      %v323 = vunpack.c.l.b16 %v254
      %v324 = vunpack.c.l.b16 %v255
      %v325 = vunpack.c.l.b16 %v256
      %v326 = vunpack.c.l.b16 %v257
      %v327 = vunpack.c.l.b16 %v258
      %v328 = vunpack.c.l.b16 %v259
      %v329 = vunpack.c.l.b16 %v260
      %v330 = vunpack.c.l.b16 %v262
      %v331 = vpack.c.b16 %v299, %v298
      %v332 = vpack.c.b16 %v301, %v300
      %v333 = vpack.c.b16 %v303, %v302
      %v334 = vpack.c.b16 %v305, %v304
      %v335 = vpack.c.b16 %v307, %v306
      %v336 = vpack.c.b16 %v309, %v308
      %v337 = vpack.c.b16 %v311, %v310
      %v338 = vpack.c.b16 %v313, %v312
      %v339 = vpack.c.b16 %v315, %v314
      %v340 = vpack.c.b16 %v317, %v316
      %v341 = vpack.c.b16 %v319, %v318
      %v342 = vpack.c.b16 %v321, %v320
      %v343 = vpack.c.b16 %v323, %v322
      %v344 = vpack.c.b16 %v325, %v324
      %v345 = vpack.c.b16 %v327, %v326
      %v346 = vpack.c.b16 %v329, %v328
      %v347 = vpack.c.b16 %v330, %v330
      %vm348 = vsmask.f32 7424
      %v350 = vshrl.u32 %v331, 16
      %v352 = vshll.u32 %v331, 16
      %v354 = vrot.slane %v352, 1
      %v355 = vor.u32 %v350, %v354
      %v357 = vshll.u32 %v332, 16
      %v359 = vrot.slane %v357, 1
      %v360 = vsel %vm348, %v355, %v359
      %v361 = vshrl.u32 %v332, 16
      %v363 = vor.u32 %v361, %v359
      %v365 = vshll.u32 %v333, 16
      %v367 = vrot.slane %v365, 1
      %v368 = vsel %vm348, %v363, %v367
      %v369 = vshrl.u32 %v333, 16
      %v371 = vor.u32 %v369, %v367
      %v373 = vshll.u32 %v334, 16
      %v375 = vrot.slane %v373, 1
      %v376 = vsel %vm348, %v371, %v375
      %v377 = vshrl.u32 %v334, 16
      %v379 = vor.u32 %v377, %v375
      %v381 = vshll.u32 %v335, 16
      %v383 = vrot.slane %v381, 1
      %v384 = vsel %vm348, %v379, %v383
      %v385 = vshrl.u32 %v335, 16
      %v387 = vor.u32 %v385, %v383
      %v389 = vshll.u32 %v336, 16
      %v391 = vrot.slane %v389, 1
      %v392 = vsel %vm348, %v387, %v391
      %v393 = vshrl.u32 %v336, 16
      %v395 = vor.u32 %v393, %v391
      %v397 = vshll.u32 %v337, 16
      %v399 = vrot.slane %v397, 1
      %v400 = vsel %vm348, %v395, %v399
      %v401 = vshrl.u32 %v337, 16
      %v403 = vor.u32 %v401, %v399
      %v405 = vshll.u32 %v338, 16
      %v407 = vrot.slane %v405, 1
      %v408 = vsel %vm348, %v403, %v407
      %v409 = vshrl.u32 %v338, 16
      %v411 = vor.u32 %v409, %v407
      %v413 = vshll.u32 %v339, 16
      %v415 = vrot.slane %v413, 1
      %v416 = vsel %vm348, %v411, %v415
      %v417 = vshrl.u32 %v339, 16
      %v419 = vor.u32 %v417, %v415
      %v421 = vshll.u32 %v340, 16
      %v423 = vrot.slane %v421, 1
      %v424 = vsel %vm348, %v419, %v423
      %v425 = vshrl.u32 %v340, 16
      %v427 = vor.u32 %v425, %v423
      %v429 = vshll.u32 %v341, 16
      %v431 = vrot.slane %v429, 1
      %v432 = vsel %vm348, %v427, %v431
      %v433 = vshrl.u32 %v341, 16
      %v435 = vor.u32 %v433, %v431
      %v437 = vshll.u32 %v342, 16
      %v439 = vrot.slane %v437, 1
      %v440 = vsel %vm348, %v435, %v439
      %v441 = vshrl.u32 %v342, 16
      %v443 = vor.u32 %v441, %v439
      %v445 = vshll.u32 %v343, 16
      %v447 = vrot.slane %v445, 1
      %v448 = vsel %vm348, %v443, %v447
      %v449 = vshrl.u32 %v343, 16
      %v451 = vor.u32 %v449, %v447
      %v453 = vshll.u32 %v344, 16
      %v455 = vrot.slane %v453, 1
      %v456 = vsel %vm348, %v451, %v455
      %v457 = vshrl.u32 %v344, 16
      %v459 = vor.u32 %v457, %v455
      %v461 = vshll.u32 %v345, 16
      %v463 = vrot.slane %v461, 1
      %v464 = vsel %vm348, %v459, %v463
      %v465 = vshrl.u32 %v345, 16
      %v467 = vor.u32 %v465, %v463
      %v469 = vshll.u32 %v346, 16
      %v471 = vrot.slane %v469, 1
      %v472 = vsel %vm348, %v467, %v471
      %v473 = vshrl.u32 %v346, 16
      %v475 = vor.u32 %v473, %v471
      %v477 = vshll.u32 %v347, 16
      %v479 = vrot.slane %v477, 1
      %v480 = vsel %vm348, %v475, %v479
      %vm481 = vcmask 31744
      %v483 = vsel %vm481, %v360, 0
      %v486 = vsel %vm481, %v368, 0
      %v489 = vsel %vm481, %v376, 0
      %v492 = vsel %vm481, %v384, 0
      %v495 = vsel %vm481, %v392, 0
      %v498 = vsel %vm481, %v400, 0
      %v501 = vsel %vm481, %v408, 0
      %v504 = vsel %vm481, %v416, 0
      %v507 = vsel %vm481, %v424, 0
      %v510 = vsel %vm481, %v432, 0
      %v513 = vsel %vm481, %v440, 0
      %v516 = vsel %vm481, %v448, 0
      %v519 = vsel %vm481, %v456, 0
      %v522 = vsel %vm481, %v464, 0
      %v525 = vsel %vm481, %v472, 0
      %v528 = vsel %vm481, %v480, 0
      %vm530 = vcmask 1041408
      %v532 = vsel %vm530, %v264, 0
      %534 = vmatprep.subr.bf16.mxu0 0
      %535 = vmatpush1.bf16.msra.mxu0 0
      %536 = vmatprep.subr.bf16.mxu0 0
      %537 = vmatpush1.bf16.msra.mxu0 0
      %538 = vmatprep.subr.bf16.mxu0 0
      %539 = vmatpush1.bf16.msra.mxu0 0
      %540 = vmatprep.subr.bf16.mxu0 0
      %541 = vmatpush1.bf16.msra.mxu0 0
      %542 = vmatprep.subr.bf16.mxu0 0
      %543 = vmatpush1.bf16.msra.mxu0 0
      %544 = vmatprep.subr.bf16.mxu0 0
      %545 = vmatpush1.bf16.msra.mxu0 0
      %546 = vmatprep.subr.bf16.mxu0 0
      %547 = vmatpush1.bf16.msra.mxu0 0
      %548 = vmatprep.subr.bf16.mxu0 0
      %549 = vmatpush1.bf16.msra.mxu0 %v532
      %550 = vmatprep.subr.bf16.mxu0 0
      %551 = vmatpush2.bf16.msra.mxu0 0
      %552 = vmatprep.subr.bf16.mxu0 0
      %553 = vmatpush2.bf16.msra.mxu0 0
      %554 = vmatprep.subr.bf16.mxu0 0
      %555 = vmatpush2.bf16.msra.mxu0 0
      %556 = vmatprep.subr.bf16.mxu0 0
      %557 = vmatpush2.bf16.msra.mxu0 0
      %558 = vmatprep.subr.bf16.mxu0 0
      %559 = vmatpush2.bf16.msra.mxu0 0
      %560 = vmatprep.subr.bf16.mxu0 0
      %561 = vmatpush2.bf16.msra.mxu0 0
      %562 = vmatprep.subr.bf16.mxu0 0
      %563 = vmatpush2.bf16.msra.mxu0 0
      %564 = vmatprep.subr.bf16.mxu0 0
      %565 = vmatpush2.bf16.msra.mxu0 0
      %566 = vmatprep.mubr.bf16.mxu0 0
      %567 = vmatmul.mubr.bf16.gmra.mxu0 %v483
      %v568 = vpop.f32.mrf.mxu0
      %v569 = vadd.f32 0.0, %v568
      %v570 = vpop.f32.mrf.mxu0
      %v571 = vpop.f32.mrf.mxu0
      %v572 = vadd.f32 0.0, %v571
      %v573 = vpop.f32.mrf.mxu0
      %574 = vmatprep.mubr.bf16.mxu0 0
      %575 = vmatmul.mubr.bf16.gmra.mxu0 %v486
      %v576 = vpop.f32.mrf.mxu0
      %v577 = vadd.f32 0.0, %v576
      %v578 = vpop.f32.mrf.mxu0
      %v579 = vpop.f32.mrf.mxu0
      %v580 = vadd.f32 0.0, %v579
      %v581 = vpop.f32.mrf.mxu0
      %582 = vmatprep.mubr.bf16.mxu0 0
      %583 = vmatmul.mubr.bf16.gmra.mxu0 %v489
      %v584 = vpop.f32.mrf.mxu0
      %v585 = vadd.f32 0.0, %v584
      %v586 = vpop.f32.mrf.mxu0
      %v587 = vpop.f32.mrf.mxu0
      %v588 = vadd.f32 0.0, %v587
      %v589 = vpop.f32.mrf.mxu0
      %590 = vmatprep.mubr.bf16.mxu0 0
      %591 = vmatmul.mubr.bf16.gmra.mxu0 %v492
      %v592 = vpop.f32.mrf.mxu0
      %v593 = vadd.f32 0.0, %v592
      %v594 = vpop.f32.mrf.mxu0
      %v595 = vpop.f32.mrf.mxu0
      %v596 = vadd.f32 0.0, %v595
      %v597 = vpop.f32.mrf.mxu0
      %598 = vmatprep.mubr.bf16.mxu0 0
      %599 = vmatmul.mubr.bf16.gmra.mxu0 %v495
      %v600 = vpop.f32.mrf.mxu0
      %v601 = vadd.f32 0.0, %v600
      %v602 = vpop.f32.mrf.mxu0
      %v603 = vpop.f32.mrf.mxu0
      %v604 = vadd.f32 0.0, %v603
      %v605 = vpop.f32.mrf.mxu0
      %606 = vmatprep.mubr.bf16.mxu0 0
      %607 = vmatmul.mubr.bf16.gmra.mxu0 %v498
      %v608 = vpop.f32.mrf.mxu0
      %v609 = vadd.f32 0.0, %v608
      %v610 = vpop.f32.mrf.mxu0
      %v611 = vpop.f32.mrf.mxu0
      %v612 = vadd.f32 0.0, %v611
      %v613 = vpop.f32.mrf.mxu0
      %614 = vmatprep.mubr.bf16.mxu0 0
      %615 = vmatmul.mubr.bf16.gmra.mxu0 %v501
      %v616 = vpop.f32.mrf.mxu0
      %v617 = vadd.f32 0.0, %v616
      %v618 = vpop.f32.mrf.mxu0
      %v619 = vpop.f32.mrf.mxu0
      %v620 = vadd.f32 0.0, %v619
      %v621 = vpop.f32.mrf.mxu0
      %622 = vmatprep.mubr.bf16.mxu0 0
      %623 = vmatmul.mubr.bf16.gmra.mxu0 %v504
      %v624 = vpop.f32.mrf.mxu0
      %v625 = vadd.f32 0.0, %v624
      %v626 = vpop.f32.mrf.mxu0
      %v627 = vpop.f32.mrf.mxu0
      %v628 = vadd.f32 0.0, %v627
      %v629 = vpop.f32.mrf.mxu0
      %630 = vmatprep.mubr.bf16.mxu0 0
      %631 = vmatmul.mubr.bf16.gmra.mxu0 %v507
      %v632 = vpop.f32.mrf.mxu0
      %v633 = vadd.f32 0.0, %v632
      %v634 = vpop.f32.mrf.mxu0
      %v635 = vpop.f32.mrf.mxu0
      %v636 = vadd.f32 0.0, %v635
      %v637 = vpop.f32.mrf.mxu0
      %638 = vmatprep.mubr.bf16.mxu0 0
      %639 = vmatmul.mubr.bf16.gmra.mxu0 %v510
      %v640 = vpop.f32.mrf.mxu0
      %v641 = vadd.f32 0.0, %v640
      %v642 = vpop.f32.mrf.mxu0
      %v643 = vpop.f32.mrf.mxu0
      %v644 = vadd.f32 0.0, %v643
      %v645 = vpop.f32.mrf.mxu0
      %646 = vmatprep.mubr.bf16.mxu0 0
      %647 = vmatmul.mubr.bf16.gmra.mxu0 %v513
      %v648 = vpop.f32.mrf.mxu0
      %v649 = vadd.f32 0.0, %v648
      %v650 = vpop.f32.mrf.mxu0
      %v651 = vpop.f32.mrf.mxu0
      %v652 = vadd.f32 0.0, %v651
      %v653 = vpop.f32.mrf.mxu0
      %654 = vmatprep.mubr.bf16.mxu0 0
      %655 = vmatmul.mubr.bf16.gmra.mxu0 %v516
      %v656 = vpop.f32.mrf.mxu0
      %v657 = vadd.f32 0.0, %v656
      %v658 = vpop.f32.mrf.mxu0
      %v659 = vpop.f32.mrf.mxu0
      %v660 = vadd.f32 0.0, %v659
      %v661 = vpop.f32.mrf.mxu0
      %662 = vmatprep.mubr.bf16.mxu0 0
      %663 = vmatmul.mubr.bf16.gmra.mxu0 %v519
      %v664 = vpop.f32.mrf.mxu0
      %v665 = vadd.f32 0.0, %v664
      %v666 = vpop.f32.mrf.mxu0
      %v667 = vpop.f32.mrf.mxu0
      %v668 = vadd.f32 0.0, %v667
      %v669 = vpop.f32.mrf.mxu0
      %670 = vmatprep.mubr.bf16.mxu0 0
      %671 = vmatmul.mubr.bf16.gmra.mxu0 %v522
      %v672 = vpop.f32.mrf.mxu0
      %v673 = vadd.f32 0.0, %v672
      %v674 = vpop.f32.mrf.mxu0
      %v675 = vpop.f32.mrf.mxu0
      %v676 = vadd.f32 0.0, %v675
      %v677 = vpop.f32.mrf.mxu0
      %678 = vmatprep.mubr.bf16.mxu0 0
      %679 = vmatmul.mubr.bf16.gmra.mxu0 %v525
      %v680 = vpop.f32.mrf.mxu0
      %v681 = vadd.f32 0.0, %v680
      %v682 = vpop.f32.mrf.mxu0
      %v683 = vpop.f32.mrf.mxu0
      %v684 = vadd.f32 0.0, %v683
      %v685 = vpop.f32.mrf.mxu0
      %686 = vmatprep.mubr.bf16.mxu0 0
      %687 = vmatmul.mubr.bf16.gmra.mxu0 %v528
      %v688 = vpop.f32.mrf.mxu0
      %v689 = vadd.f32 0.0, %v688
      %v690 = vpop.f32.mrf.mxu0
      %v691 = vpop.f32.mrf.mxu0
      %v692 = vadd.f32 0.0, %v691
      %v693 = vpop.f32.mrf.mxu0
      %694 = vdwg.mxu0
      %v695 = vsel %vm481, %v331, 0
      %v697 = vsel %vm481, %v332, 0
      %v699 = vsel %vm481, %v333, 0
      %v701 = vsel %vm481, %v334, 0
      %v703 = vsel %vm481, %v335, 0
      %v705 = vsel %vm481, %v336, 0
      %v707 = vsel %vm481, %v337, 0
      %v709 = vsel %vm481, %v338, 0
      %v711 = vsel %vm481, %v339, 0
      %v713 = vsel %vm481, %v340, 0
      %v715 = vsel %vm481, %v341, 0
      %v717 = vsel %vm481, %v342, 0
      %v719 = vsel %vm481, %v343, 0
      %v721 = vsel %vm481, %v344, 0
      %v723 = vsel %vm481, %v345, 0
      %v725 = vsel %vm481, %v346, 0
      %v728 = vsel %vm530, %v261, 0
      %730 = vmatprep.subr.bf16.mxu0 0
      %731 = vmatpush1.bf16.msra.mxu0 0
      %732 = vmatprep.subr.bf16.mxu0 0
      %733 = vmatpush1.bf16.msra.mxu0 0
      %734 = vmatprep.subr.bf16.mxu0 0
      %735 = vmatpush1.bf16.msra.mxu0 0
      %736 = vmatprep.subr.bf16.mxu0 0
      %737 = vmatpush1.bf16.msra.mxu0 0
      %738 = vmatprep.subr.bf16.mxu0 0
      %739 = vmatpush1.bf16.msra.mxu0 0
      %740 = vmatprep.subr.bf16.mxu0 0
      %741 = vmatpush1.bf16.msra.mxu0 0
      %742 = vmatprep.subr.bf16.mxu0 0
      %743 = vmatpush1.bf16.msra.mxu0 0
      %744 = vmatprep.subr.bf16.mxu0 0
      %745 = vmatpush1.bf16.msra.mxu0 %v728
      %746 = vmatprep.subr.bf16.mxu0 0
      %747 = vmatpush2.bf16.msra.mxu0 0
      %748 = vmatprep.subr.bf16.mxu0 0
      %749 = vmatpush2.bf16.msra.mxu0 0
      %750 = vmatprep.subr.bf16.mxu0 0
      %751 = vmatpush2.bf16.msra.mxu0 0
      %752 = vmatprep.subr.bf16.mxu0 0
      %753 = vmatpush2.bf16.msra.mxu0 0
      %754 = vmatprep.subr.bf16.mxu0 0
      %755 = vmatpush2.bf16.msra.mxu0 0
      %756 = vmatprep.subr.bf16.mxu0 0
      %757 = vmatpush2.bf16.msra.mxu0 0
      %758 = vmatprep.subr.bf16.mxu0 0
      %759 = vmatpush2.bf16.msra.mxu0 0
      %760 = vmatprep.subr.bf16.mxu0 0
      %761 = vmatpush2.bf16.msra.mxu0 0
      %762 = vmatprep.mubr.bf16.mxu0 0
      %763 = vmatmul.mubr.bf16.gmra.mxu0 %v695
      %v764 = vpop.f32.mrf.mxu0
      %v765 = vadd.f32 %v569, %v764
      %v766 = vpop.f32.mrf.mxu0
      %v767 = vpop.f32.mrf.mxu0
      %v768 = vadd.f32 %v572, %v767
      %v769 = vpop.f32.mrf.mxu0
      %770 = vmatprep.mubr.bf16.mxu0 0
      %771 = vmatmul.mubr.bf16.gmra.mxu0 %v697
      %v772 = vpop.f32.mrf.mxu0
      %v773 = vadd.f32 %v577, %v772
      %v774 = vpop.f32.mrf.mxu0
      %v775 = vpop.f32.mrf.mxu0
      %v776 = vadd.f32 %v580, %v775
      %v777 = vpop.f32.mrf.mxu0
      %778 = vmatprep.mubr.bf16.mxu0 0
      %779 = vmatmul.mubr.bf16.gmra.mxu0 %v699
      %v780 = vpop.f32.mrf.mxu0
      %v781 = vadd.f32 %v585, %v780
      %v782 = vpop.f32.mrf.mxu0
      %v783 = vpop.f32.mrf.mxu0
      %v784 = vadd.f32 %v588, %v783
      %v785 = vpop.f32.mrf.mxu0
      %786 = vmatprep.mubr.bf16.mxu0 0
      %787 = vmatmul.mubr.bf16.gmra.mxu0 %v701
      %v788 = vpop.f32.mrf.mxu0
      %v789 = vadd.f32 %v593, %v788
      %v790 = vpop.f32.mrf.mxu0
      %v791 = vpop.f32.mrf.mxu0
      %v792 = vadd.f32 %v596, %v791
      %v793 = vpop.f32.mrf.mxu0
      %794 = vmatprep.mubr.bf16.mxu0 0
      %795 = vmatmul.mubr.bf16.gmra.mxu0 %v703
      %v796 = vpop.f32.mrf.mxu0
      %v797 = vadd.f32 %v601, %v796
      %v798 = vpop.f32.mrf.mxu0
      %v799 = vpop.f32.mrf.mxu0
      %v800 = vadd.f32 %v604, %v799
      %v801 = vpop.f32.mrf.mxu0
      %802 = vmatprep.mubr.bf16.mxu0 0
      %803 = vmatmul.mubr.bf16.gmra.mxu0 %v705
      %v804 = vpop.f32.mrf.mxu0
      %v805 = vadd.f32 %v609, %v804
      %v806 = vpop.f32.mrf.mxu0
      %v807 = vpop.f32.mrf.mxu0
      %v808 = vadd.f32 %v612, %v807
      %v809 = vpop.f32.mrf.mxu0
      %810 = vmatprep.mubr.bf16.mxu0 0
      %811 = vmatmul.mubr.bf16.gmra.mxu0 %v707
      %v812 = vpop.f32.mrf.mxu0
      %v813 = vadd.f32 %v617, %v812
      %v814 = vpop.f32.mrf.mxu0
      %v815 = vpop.f32.mrf.mxu0
      %v816 = vadd.f32 %v620, %v815
      %v817 = vpop.f32.mrf.mxu0
      %818 = vmatprep.mubr.bf16.mxu0 0
      %819 = vmatmul.mubr.bf16.gmra.mxu0 %v709
      %v820 = vpop.f32.mrf.mxu0
      %v821 = vadd.f32 %v625, %v820
      %v822 = vpop.f32.mrf.mxu0
      %v823 = vpop.f32.mrf.mxu0
      %v824 = vadd.f32 %v628, %v823
      %v825 = vpop.f32.mrf.mxu0
      %826 = vmatprep.mubr.bf16.mxu0 0
      %827 = vmatmul.mubr.bf16.gmra.mxu0 %v711
      %v828 = vpop.f32.mrf.mxu0
      %v829 = vadd.f32 %v633, %v828
      %v830 = vpop.f32.mrf.mxu0
      %v831 = vpop.f32.mrf.mxu0
      %v832 = vadd.f32 %v636, %v831
      %v833 = vpop.f32.mrf.mxu0
      %834 = vmatprep.mubr.bf16.mxu0 0
      %835 = vmatmul.mubr.bf16.gmra.mxu0 %v713
      %v836 = vpop.f32.mrf.mxu0
      %v837 = vadd.f32 %v641, %v836
      %v838 = vpop.f32.mrf.mxu0
      %v839 = vpop.f32.mrf.mxu0
      %v840 = vadd.f32 %v644, %v839
      %v841 = vpop.f32.mrf.mxu0
      %842 = vmatprep.mubr.bf16.mxu0 0
      %843 = vmatmul.mubr.bf16.gmra.mxu0 %v715
      %v844 = vpop.f32.mrf.mxu0
      %v845 = vadd.f32 %v649, %v844
      %v846 = vpop.f32.mrf.mxu0
      %v847 = vpop.f32.mrf.mxu0
      %v848 = vadd.f32 %v652, %v847
      %v849 = vpop.f32.mrf.mxu0
      %850 = vmatprep.mubr.bf16.mxu0 0
      %851 = vmatmul.mubr.bf16.gmra.mxu0 %v717
      %v852 = vpop.f32.mrf.mxu0
      %v853 = vadd.f32 %v657, %v852
      %v854 = vpop.f32.mrf.mxu0
      %v855 = vpop.f32.mrf.mxu0
      %v856 = vadd.f32 %v660, %v855
      %v857 = vpop.f32.mrf.mxu0
      %858 = vmatprep.mubr.bf16.mxu0 0
      %859 = vmatmul.mubr.bf16.gmra.mxu0 %v719
      %v860 = vpop.f32.mrf.mxu0
      %v861 = vadd.f32 %v665, %v860
      %v862 = vpop.f32.mrf.mxu0
      %v863 = vpop.f32.mrf.mxu0
      %v864 = vadd.f32 %v668, %v863
      %v865 = vpop.f32.mrf.mxu0
      %866 = vmatprep.mubr.bf16.mxu0 0
      %867 = vmatmul.mubr.bf16.gmra.mxu0 %v721
      %v868 = vpop.f32.mrf.mxu0
      %v869 = vadd.f32 %v673, %v868
      %v870 = vpop.f32.mrf.mxu0
      %v871 = vpop.f32.mrf.mxu0
      %v872 = vadd.f32 %v676, %v871
      %v873 = vpop.f32.mrf.mxu0
      %874 = vmatprep.mubr.bf16.mxu0 0
      %875 = vmatmul.mubr.bf16.gmra.mxu0 %v723
      %v876 = vpop.f32.mrf.mxu0
      %v877 = vadd.f32 %v681, %v876
      %v878 = vpop.f32.mrf.mxu0
      %v879 = vpop.f32.mrf.mxu0
      %v880 = vadd.f32 %v684, %v879
      %v881 = vpop.f32.mrf.mxu0
      %882 = vmatprep.mubr.bf16.mxu0 0
      %883 = vmatmul.mubr.bf16.gmra.mxu0 %v725
      %v884 = vpop.f32.mrf.mxu0
      %v885 = vadd.f32 %v689, %v884
      %v886 = vpop.f32.mrf.mxu0
      %v887 = vpop.f32.mrf.mxu0
      %v888 = vadd.f32 %v692, %v887
      %v889 = vpop.f32.mrf.mxu0
      %890 = vdwg.mxu0
      %v891 = vld [vmem:[%s219] sm:$0xe]
      %s892 = scalar_lea.vmem %s1, 4
      %v893 = vld [vmem:[%s892] sm:$0x3]
      %v895 = vunpack.c.l.b16 %v891
      %v896 = vpack.c.b16 %v299, %v895
      %vm897 = vcmask 1046528
      %v898 = vrot.slane %v896, 1
      %v899 = vrot.slane %v332, 1
      %v900 = vsel %vm897, %v898, %v899
      %v901 = vrot.slane %v333, 1
      %v902 = vsel %vm897, %v899, %v901
      %v903 = vrot.slane %v334, 1
      %v904 = vsel %vm897, %v901, %v903
      %v905 = vrot.slane %v335, 1
      %v906 = vsel %vm897, %v903, %v905
      %v907 = vrot.slane %v336, 1
      %v908 = vsel %vm897, %v905, %v907
      %v909 = vrot.slane %v337, 1
      %v910 = vsel %vm897, %v907, %v909
      %v911 = vrot.slane %v338, 1
      %v912 = vsel %vm897, %v909, %v911
      %v913 = vrot.slane %v339, 1
      %v914 = vsel %vm897, %v911, %v913
      %v915 = vrot.slane %v340, 1
      %v916 = vsel %vm897, %v913, %v915
      %v917 = vrot.slane %v341, 1
      %v918 = vsel %vm897, %v915, %v917
      %v919 = vrot.slane %v342, 1
      %v920 = vsel %vm897, %v917, %v919
      %v921 = vrot.slane %v343, 1
      %v922 = vsel %vm897, %v919, %v921
      %v923 = vrot.slane %v344, 1
      %v924 = vsel %vm897, %v921, %v923
      %v925 = vrot.slane %v345, 1
      %v926 = vsel %vm897, %v923, %v925
      %v927 = vrot.slane %v346, 1
      %v928 = vsel %vm897, %v925, %v927
      %v929 = vrot.slane %v347, 1
      %v930 = vsel %vm897, %v927, %v929
      %v932 = vsel %vm481, %v900, 0
      %v935 = vsel %vm481, %v902, 0
      %v938 = vsel %vm481, %v904, 0
      %v941 = vsel %vm481, %v906, 0
      %v944 = vsel %vm481, %v908, 0
      %v947 = vsel %vm481, %v910, 0
      %v950 = vsel %vm481, %v912, 0
      %v953 = vsel %vm481, %v914, 0
      %v956 = vsel %vm481, %v916, 0
      %v959 = vsel %vm481, %v918, 0
      %v962 = vsel %vm481, %v920, 0
      %v965 = vsel %vm481, %v922, 0
      %v968 = vsel %vm481, %v924, 0
      %v971 = vsel %vm481, %v926, 0
      %v974 = vsel %vm481, %v928, 0
      %v977 = vsel %vm481, %v930, 0
      %v980 = vsel %vm530, %v893, 0
      %982 = vmatprep.subr.bf16.mxu0 0
      %983 = vmatpush1.bf16.msra.mxu0 0
      %984 = vmatprep.subr.bf16.mxu0 0
      %985 = vmatpush1.bf16.msra.mxu0 0
      %986 = vmatprep.subr.bf16.mxu0 0
      %987 = vmatpush1.bf16.msra.mxu0 0
      %988 = vmatprep.subr.bf16.mxu0 0
      %989 = vmatpush1.bf16.msra.mxu0 0
      %990 = vmatprep.subr.bf16.mxu0 0
      %991 = vmatpush1.bf16.msra.mxu0 0
      %992 = vmatprep.subr.bf16.mxu0 0
      %993 = vmatpush1.bf16.msra.mxu0 0
      %994 = vmatprep.subr.bf16.mxu0 0
      %995 = vmatpush1.bf16.msra.mxu0 0
      %996 = vmatprep.subr.bf16.mxu0 0
      %997 = vmatpush1.bf16.msra.mxu0 %v980
      %998 = vmatprep.subr.bf16.mxu0 0
      %999 = vmatpush2.bf16.msra.mxu0 0
      %1000 = vmatprep.subr.bf16.mxu0 0
      %1001 = vmatpush2.bf16.msra.mxu0 0
      %1002 = vmatprep.subr.bf16.mxu0 0
      %1003 = vmatpush2.bf16.msra.mxu0 0
      %1004 = vmatprep.subr.bf16.mxu0 0
      %1005 = vmatpush2.bf16.msra.mxu0 0
      %1006 = vmatprep.subr.bf16.mxu0 0
      %1007 = vmatpush2.bf16.msra.mxu0 0
      %1008 = vmatprep.subr.bf16.mxu0 0
      %1009 = vmatpush2.bf16.msra.mxu0 0
      %1010 = vmatprep.subr.bf16.mxu0 0
      %1011 = vmatpush2.bf16.msra.mxu0 0
      %1012 = vmatprep.subr.bf16.mxu0 0
      %1013 = vmatpush2.bf16.msra.mxu0 0
      %1014 = vmatprep.mubr.bf16.mxu0 0
      %1015 = vmatmul.mubr.bf16.gmra.mxu0 %v932
      %v1016 = vpop.f32.mrf.mxu0
      %v1017 = vadd.f32 0.0, %v1016
      %v1018 = vpop.f32.mrf.mxu0
      %v1019 = vpop.f32.mrf.mxu0
      %v1020 = vadd.f32 0.0, %v1019
      %v1021 = vpop.f32.mrf.mxu0
      %1022 = vmatprep.mubr.bf16.mxu0 0
      %1023 = vmatmul.mubr.bf16.gmra.mxu0 %v935
      %v1024 = vpop.f32.mrf.mxu0
      %v1025 = vadd.f32 0.0, %v1024
      %v1026 = vpop.f32.mrf.mxu0
      %v1027 = vpop.f32.mrf.mxu0
      %v1028 = vadd.f32 0.0, %v1027
      %v1029 = vpop.f32.mrf.mxu0
      %1030 = vmatprep.mubr.bf16.mxu0 0
      %1031 = vmatmul.mubr.bf16.gmra.mxu0 %v938
      %v1032 = vpop.f32.mrf.mxu0
      %v1033 = vadd.f32 0.0, %v1032
      %v1034 = vpop.f32.mrf.mxu0
      %v1035 = vpop.f32.mrf.mxu0
      %v1036 = vadd.f32 0.0, %v1035
      %v1037 = vpop.f32.mrf.mxu0
      %1038 = vmatprep.mubr.bf16.mxu0 0
      %1039 = vmatmul.mubr.bf16.gmra.mxu0 %v941
      %v1040 = vpop.f32.mrf.mxu0
      %v1041 = vadd.f32 0.0, %v1040
      %v1042 = vpop.f32.mrf.mxu0
      %v1043 = vpop.f32.mrf.mxu0
      %v1044 = vadd.f32 0.0, %v1043
      %v1045 = vpop.f32.mrf.mxu0
      %1046 = vmatprep.mubr.bf16.mxu0 0
      %1047 = vmatmul.mubr.bf16.gmra.mxu0 %v944
      %v1048 = vpop.f32.mrf.mxu0
      %v1049 = vadd.f32 0.0, %v1048
      %v1050 = vpop.f32.mrf.mxu0
      %v1051 = vpop.f32.mrf.mxu0
      %v1052 = vadd.f32 0.0, %v1051
      %v1053 = vpop.f32.mrf.mxu0
      %1054 = vmatprep.mubr.bf16.mxu0 0
      %1055 = vmatmul.mubr.bf16.gmra.mxu0 %v947
      %v1056 = vpop.f32.mrf.mxu0
      %v1057 = vadd.f32 0.0, %v1056
      %v1058 = vpop.f32.mrf.mxu0
      %v1059 = vpop.f32.mrf.mxu0
      %v1060 = vadd.f32 0.0, %v1059
      %v1061 = vpop.f32.mrf.mxu0
      %1062 = vmatprep.mubr.bf16.mxu0 0
      %1063 = vmatmul.mubr.bf16.gmra.mxu0 %v950
      %v1064 = vpop.f32.mrf.mxu0
      %v1065 = vadd.f32 0.0, %v1064
      %v1066 = vpop.f32.mrf.mxu0
      %v1067 = vpop.f32.mrf.mxu0
      %v1068 = vadd.f32 0.0, %v1067
      %v1069 = vpop.f32.mrf.mxu0
      %1070 = vmatprep.mubr.bf16.mxu0 0
      %1071 = vmatmul.mubr.bf16.gmra.mxu0 %v953
      %v1072 = vpop.f32.mrf.mxu0
      %v1073 = vadd.f32 0.0, %v1072
      %v1074 = vpop.f32.mrf.mxu0
      %v1075 = vpop.f32.mrf.mxu0
      %v1076 = vadd.f32 0.0, %v1075
      %v1077 = vpop.f32.mrf.mxu0
      %1078 = vmatprep.mubr.bf16.mxu0 0
      %1079 = vmatmul.mubr.bf16.gmra.mxu0 %v956
      %v1080 = vpop.f32.mrf.mxu0
      %v1081 = vadd.f32 0.0, %v1080
      %v1082 = vpop.f32.mrf.mxu0
      %v1083 = vpop.f32.mrf.mxu0
      %v1084 = vadd.f32 0.0, %v1083
      %v1085 = vpop.f32.mrf.mxu0
      %1086 = vmatprep.mubr.bf16.mxu0 0
      %1087 = vmatmul.mubr.bf16.gmra.mxu0 %v959
      %v1088 = vpop.f32.mrf.mxu0
      %v1089 = vadd.f32 0.0, %v1088
      %v1090 = vpop.f32.mrf.mxu0
      %v1091 = vpop.f32.mrf.mxu0
      %v1092 = vadd.f32 0.0, %v1091
      %v1093 = vpop.f32.mrf.mxu0
      %1094 = vmatprep.mubr.bf16.mxu0 0
      %1095 = vmatmul.mubr.bf16.gmra.mxu0 %v962
      %v1096 = vpop.f32.mrf.mxu0
      %v1097 = vadd.f32 0.0, %v1096
      %v1098 = vpop.f32.mrf.mxu0
      %v1099 = vpop.f32.mrf.mxu0
      %v1100 = vadd.f32 0.0, %v1099
      %v1101 = vpop.f32.mrf.mxu0
      %1102 = vmatprep.mubr.bf16.mxu0 0
      %1103 = vmatmul.mubr.bf16.gmra.mxu0 %v965
      %v1104 = vpop.f32.mrf.mxu0
      %v1105 = vadd.f32 0.0, %v1104
      %v1106 = vpop.f32.mrf.mxu0
      %v1107 = vpop.f32.mrf.mxu0
      %v1108 = vadd.f32 0.0, %v1107
      %v1109 = vpop.f32.mrf.mxu0
      %1110 = vmatprep.mubr.bf16.mxu0 0
      %1111 = vmatmul.mubr.bf16.gmra.mxu0 %v968
      %v1112 = vpop.f32.mrf.mxu0
      %v1113 = vadd.f32 0.0, %v1112
      %v1114 = vpop.f32.mrf.mxu0
      %v1115 = vpop.f32.mrf.mxu0
      %v1116 = vadd.f32 0.0, %v1115
      %v1117 = vpop.f32.mrf.mxu0
      %1118 = vmatprep.mubr.bf16.mxu0 0
      %1119 = vmatmul.mubr.bf16.gmra.mxu0 %v971
      %v1120 = vpop.f32.mrf.mxu0
      %v1121 = vadd.f32 0.0, %v1120
      %v1122 = vpop.f32.mrf.mxu0
      %v1123 = vpop.f32.mrf.mxu0
      %v1124 = vadd.f32 0.0, %v1123
      %v1125 = vpop.f32.mrf.mxu0
      %1126 = vmatprep.mubr.bf16.mxu0 0
      %1127 = vmatmul.mubr.bf16.gmra.mxu0 %v974
      %v1128 = vpop.f32.mrf.mxu0
      %v1129 = vadd.f32 0.0, %v1128
      %v1130 = vpop.f32.mrf.mxu0
      %v1131 = vpop.f32.mrf.mxu0
      %v1132 = vadd.f32 0.0, %v1131
      %v1133 = vpop.f32.mrf.mxu0
      %1134 = vmatprep.mubr.bf16.mxu0 0
      %1135 = vmatmul.mubr.bf16.gmra.mxu0 %v977
      %v1136 = vpop.f32.mrf.mxu0
      %v1137 = vadd.f32 0.0, %v1136
      %v1138 = vpop.f32.mrf.mxu0
      %v1139 = vpop.f32.mrf.mxu0
      %v1140 = vadd.f32 0.0, %v1139
      %v1141 = vpop.f32.mrf.mxu0
      %1142 = vdwg.mxu0
      %v1143 = vadd.f32 %v765, %v1017
      %v1144 = vadd.f32 %v768, %v1020
      %v1145 = vadd.f32 %v773, %v1025
      %v1146 = vadd.f32 %v776, %v1028
      %v1147 = vadd.f32 %v781, %v1033
      %v1148 = vadd.f32 %v784, %v1036
      %v1149 = vadd.f32 %v789, %v1041
      %v1150 = vadd.f32 %v792, %v1044
      %v1151 = vadd.f32 %v797, %v1049
      %v1152 = vadd.f32 %v800, %v1052
      %v1153 = vadd.f32 %v805, %v1057
      %v1154 = vadd.f32 %v808, %v1060
      %v1155 = vadd.f32 %v813, %v1065
      %v1156 = vadd.f32 %v816, %v1068
      %v1157 = vadd.f32 %v821, %v1073
      %v1158 = vadd.f32 %v824, %v1076
      %v1159 = vadd.f32 %v829, %v1081
      %v1160 = vadd.f32 %v832, %v1084
      %v1161 = vadd.f32 %v837, %v1089
      %v1162 = vadd.f32 %v840, %v1092
      %v1163 = vadd.f32 %v845, %v1097
      %v1164 = vadd.f32 %v848, %v1100
      %v1165 = vadd.f32 %v853, %v1105
      %v1166 = vadd.f32 %v856, %v1108
      %v1167 = vadd.f32 %v861, %v1113
      %v1168 = vadd.f32 %v864, %v1116
      %v1169 = vadd.f32 %v869, %v1121
      %v1170 = vadd.f32 %v872, %v1124
      %v1171 = vadd.f32 %v877, %v1129
      %v1172 = vadd.f32 %v880, %v1132
      %v1173 = vadd.f32 %v885, %v1137
      %v1174 = vadd.f32 %v888, %v1140
      %v1175 = vld [vmem:[%s219 + $0xc] sm:$0xf]
      %v1176 = vld [vmem:[%s219 + $0x10] sm:$0xf]
      %v1177 = vld [vmem:[%s219 + $0x14] sm:$0xf]
      %v1178 = vld [vmem:[%s219 + $0x18] sm:$0xf]
      %v1179 = vld [vmem:[%s219 + $0x1c] sm:$0xf]
      %v1180 = vld [vmem:[%s219 + $0x20] sm:$0xf]
      %v1181 = vld [vmem:[%s219 + $0x24] sm:$0xf]
      %v1182 = vld [vmem:[%s219 + $0x28] sm:$0xf]
      %v1183 = vld [vmem:[%s219 + $0x2c] sm:$0xf]
      %v1184 = vld [vmem:[%s219 + $0x30] sm:$0xf]
      %v1185 = vld [vmem:[%s219 + $0x34] sm:$0xf]
      %v1186 = vld [vmem:[%s219 + $0x38] sm:$0xf]
      %v1187 = vld [vmem:[%s219 + $0x3c] sm:$0xf]
      %v1188 = vld [vmem:[%s219 + $0x40] sm:$0xf]
      %v1189 = vld [vmem:[%s219 + $0x44] sm:$0xf]
      %v1190 = vld [vmem:[%s219 + $0x48] sm:$0xf]
      %v1191 = vld [vmem:[%s219 + $0x4c] sm:$0xf]
      %v1192 = vld [vmem:[%s219 + $0x50] sm:$0xf]
      %v1193 = vld [vmem:[%s219 + $0x54] sm:$0xf]
      %v1194 = vld [vmem:[%s219 + $0x58] sm:$0xf]
      %v1195 = vld [vmem:[%s219 + $0x5c] sm:$0xf]
      %v1196 = vld [vmem:[%s219 + $0x60] sm:$0xf]
      %v1197 = vld [vmem:[%s219 + $0x64] sm:$0xf]
      %v1198 = vld [vmem:[%s219 + $0x68] sm:$0xf]
      %v1199 = vld [vmem:[%s219 + $0x6c] sm:$0xf]
      %v1200 = vld [vmem:[%s219 + $0x70] sm:$0xf]
      %v1201 = vld [vmem:[%s219 + $0x74] sm:$0xf]
      %v1202 = vld [vmem:[%s219 + $0x78] sm:$0xf]
      %v1203 = vld [vmem:[%s219 + $0x7c] sm:$0xf]
      %v1204 = vld [vmem:[%s219 + $0x80] sm:$0xf]
      %v1205 = vld [vmem:[%s219 + $0x84] sm:$0xf]
      %v1206 = vld [vmem:[%s219 + $0x88] sm:$0xf]
      %s1207 = scalar_lea.vmem %s1, 6
      %v1208 = vld [vmem:[%s1207] sm:$0x3]
      %v1241 = vunpack.c.l.b16 %v1175
      %v1242 = vunpack.c.l.b16 %v1176
      %v1243 = vunpack.c.l.b16 %v1177
      %v1244 = vunpack.c.l.b16 %v1178
      %v1245 = vunpack.c.l.b16 %v1179
      %v1246 = vunpack.c.l.b16 %v1180
      %v1247 = vunpack.c.l.b16 %v1181
      %v1248 = vunpack.c.l.b16 %v1182
      %v1249 = vunpack.c.l.b16 %v1183
      %v1250 = vunpack.c.l.b16 %v1184
      %v1251 = vunpack.c.l.b16 %v1185
      %v1252 = vunpack.c.l.b16 %v1186
      %v1253 = vunpack.c.l.b16 %v1187
      %v1254 = vunpack.c.l.b16 %v1188
      %v1255 = vunpack.c.l.b16 %v1189
      %v1256 = vunpack.c.l.b16 %v1190
      %v1257 = vunpack.c.l.b16 %v1191
      %v1258 = vunpack.c.l.b16 %v1192
      %v1259 = vunpack.c.l.b16 %v1193
      %v1260 = vunpack.c.l.b16 %v1194
      %v1261 = vunpack.c.l.b16 %v1195
      %v1262 = vunpack.c.l.b16 %v1196
      %v1263 = vunpack.c.l.b16 %v1197
      %v1264 = vunpack.c.l.b16 %v1198
      %v1265 = vunpack.c.l.b16 %v1199
      %v1266 = vunpack.c.l.b16 %v1200
      %v1267 = vunpack.c.l.b16 %v1201
      %v1268 = vunpack.c.l.b16 %v1202
      %v1269 = vunpack.c.l.b16 %v1203
      %v1270 = vunpack.c.l.b16 %v1204
      %v1271 = vunpack.c.l.b16 %v1205
      %v1272 = vunpack.c.l.b16 %v1206
      %v1273 = vpack.c.b16 %v1242, %v1241
      %v1274 = vpack.c.b16 %v1244, %v1243
      %v1275 = vpack.c.b16 %v1246, %v1245
      %v1276 = vpack.c.b16 %v1248, %v1247
      %v1277 = vpack.c.b16 %v1250, %v1249
      %v1278 = vpack.c.b16 %v1252, %v1251
      %v1279 = vpack.c.b16 %v1254, %v1253
      %v1280 = vpack.c.b16 %v1256, %v1255
      %v1281 = vpack.c.b16 %v1258, %v1257
      %v1282 = vpack.c.b16 %v1260, %v1259
      %v1283 = vpack.c.b16 %v1262, %v1261
      %v1284 = vpack.c.b16 %v1264, %v1263
      %v1285 = vpack.c.b16 %v1266, %v1265
      %v1286 = vpack.c.b16 %v1268, %v1267
      %v1287 = vpack.c.b16 %v1270, %v1269
      %v1288 = vpack.c.b16 %v1272, %v1271
      %v1290 = vsel %vm481, %v1273, 0
      %v1293 = vsel %vm481, %v1274, 0
      %v1296 = vsel %vm481, %v1275, 0
      %v1299 = vsel %vm481, %v1276, 0
      %v1302 = vsel %vm481, %v1277, 0
      %v1305 = vsel %vm481, %v1278, 0
      %v1308 = vsel %vm481, %v1279, 0
      %v1311 = vsel %vm481, %v1280, 0
      %v1314 = vsel %vm481, %v1281, 0
      %v1317 = vsel %vm481, %v1282, 0
      %v1320 = vsel %vm481, %v1283, 0
      %v1323 = vsel %vm481, %v1284, 0
      %v1326 = vsel %vm481, %v1285, 0
      %v1329 = vsel %vm481, %v1286, 0
      %v1332 = vsel %vm481, %v1287, 0
      %v1335 = vsel %vm481, %v1288, 0
      %v1338 = vsel %vm530, %v1208, 0
      %1340 = vmatprep.subr.bf16.mxu0 0
      %1341 = vmatpush1.bf16.msra.mxu0 0
      %1342 = vmatprep.subr.bf16.mxu0 0
      %1343 = vmatpush1.bf16.msra.mxu0 0
      %1344 = vmatprep.subr.bf16.mxu0 0
      %1345 = vmatpush1.bf16.msra.mxu0 0
      %1346 = vmatprep.subr.bf16.mxu0 0
      %1347 = vmatpush1.bf16.msra.mxu0 0
      %1348 = vmatprep.subr.bf16.mxu0 0
      %1349 = vmatpush1.bf16.msra.mxu0 0
      %1350 = vmatprep.subr.bf16.mxu0 0
      %1351 = vmatpush1.bf16.msra.mxu0 0
      %1352 = vmatprep.subr.bf16.mxu0 0
      %1353 = vmatpush1.bf16.msra.mxu0 0
      %1354 = vmatprep.subr.bf16.mxu0 0
      %1355 = vmatpush1.bf16.msra.mxu0 %v1338
      %1356 = vmatprep.subr.bf16.mxu0 0
      %1357 = vmatpush2.bf16.msra.mxu0 0
      %1358 = vmatprep.subr.bf16.mxu0 0
      %1359 = vmatpush2.bf16.msra.mxu0 0
      %1360 = vmatprep.subr.bf16.mxu0 0
      %1361 = vmatpush2.bf16.msra.mxu0 0
      %1362 = vmatprep.subr.bf16.mxu0 0
      %1363 = vmatpush2.bf16.msra.mxu0 0
      %1364 = vmatprep.subr.bf16.mxu0 0
      %1365 = vmatpush2.bf16.msra.mxu0 0
      %1366 = vmatprep.subr.bf16.mxu0 0
      %1367 = vmatpush2.bf16.msra.mxu0 0
      %1368 = vmatprep.subr.bf16.mxu0 0
      %1369 = vmatpush2.bf16.msra.mxu0 0
      %1370 = vmatprep.subr.bf16.mxu0 0
      %1371 = vmatpush2.bf16.msra.mxu0 0
      %1372 = vmatprep.mubr.bf16.mxu0 0
      %1373 = vmatmul.mubr.bf16.gmra.mxu0 %v1290
      %v1374 = vpop.f32.mrf.mxu0
      %v1375 = vadd.f32 0.0, %v1374
      %v1376 = vpop.f32.mrf.mxu0
      %v1377 = vpop.f32.mrf.mxu0
      %v1378 = vadd.f32 0.0, %v1377
      %v1379 = vpop.f32.mrf.mxu0
      %1380 = vmatprep.mubr.bf16.mxu0 0
      %1381 = vmatmul.mubr.bf16.gmra.mxu0 %v1293
      %v1382 = vpop.f32.mrf.mxu0
      %v1383 = vadd.f32 0.0, %v1382
      %v1384 = vpop.f32.mrf.mxu0
      %v1385 = vpop.f32.mrf.mxu0
      %v1386 = vadd.f32 0.0, %v1385
      %v1387 = vpop.f32.mrf.mxu0
      %1388 = vmatprep.mubr.bf16.mxu0 0
      %1389 = vmatmul.mubr.bf16.gmra.mxu0 %v1296
      %v1390 = vpop.f32.mrf.mxu0
      %v1391 = vadd.f32 0.0, %v1390
      %v1392 = vpop.f32.mrf.mxu0
      %v1393 = vpop.f32.mrf.mxu0
      %v1394 = vadd.f32 0.0, %v1393
      %v1395 = vpop.f32.mrf.mxu0
      %1396 = vmatprep.mubr.bf16.mxu0 0
      %1397 = vmatmul.mubr.bf16.gmra.mxu0 %v1299
      %v1398 = vpop.f32.mrf.mxu0
      %v1399 = vadd.f32 0.0, %v1398
      %v1400 = vpop.f32.mrf.mxu0
      %v1401 = vpop.f32.mrf.mxu0
      %v1402 = vadd.f32 0.0, %v1401
      %v1403 = vpop.f32.mrf.mxu0
      %1404 = vmatprep.mubr.bf16.mxu0 0
      %1405 = vmatmul.mubr.bf16.gmra.mxu0 %v1302
      %v1406 = vpop.f32.mrf.mxu0
      %v1407 = vadd.f32 0.0, %v1406
      %v1408 = vpop.f32.mrf.mxu0
      %v1409 = vpop.f32.mrf.mxu0
      %v1410 = vadd.f32 0.0, %v1409
      %v1411 = vpop.f32.mrf.mxu0
      %1412 = vmatprep.mubr.bf16.mxu0 0
      %1413 = vmatmul.mubr.bf16.gmra.mxu0 %v1305
      %v1414 = vpop.f32.mrf.mxu0
      %v1415 = vadd.f32 0.0, %v1414
      %v1416 = vpop.f32.mrf.mxu0
      %v1417 = vpop.f32.mrf.mxu0
      %v1418 = vadd.f32 0.0, %v1417
      %v1419 = vpop.f32.mrf.mxu0
      %1420 = vmatprep.mubr.bf16.mxu0 0
      %1421 = vmatmul.mubr.bf16.gmra.mxu0 %v1308
      %v1422 = vpop.f32.mrf.mxu0
      %v1423 = vadd.f32 0.0, %v1422
      %v1424 = vpop.f32.mrf.mxu0
      %v1425 = vpop.f32.mrf.mxu0
      %v1426 = vadd.f32 0.0, %v1425
      %v1427 = vpop.f32.mrf.mxu0
      %1428 = vmatprep.mubr.bf16.mxu0 0
      %1429 = vmatmul.mubr.bf16.gmra.mxu0 %v1311
      %v1430 = vpop.f32.mrf.mxu0
      %v1431 = vadd.f32 0.0, %v1430
      %v1432 = vpop.f32.mrf.mxu0
      %v1433 = vpop.f32.mrf.mxu0
      %v1434 = vadd.f32 0.0, %v1433
      %v1435 = vpop.f32.mrf.mxu0
      %1436 = vmatprep.mubr.bf16.mxu0 0
      %1437 = vmatmul.mubr.bf16.gmra.mxu0 %v1314
      %v1438 = vpop.f32.mrf.mxu0
      %v1439 = vadd.f32 0.0, %v1438
      %v1440 = vpop.f32.mrf.mxu0
      %v1441 = vpop.f32.mrf.mxu0
      %v1442 = vadd.f32 0.0, %v1441
      %v1443 = vpop.f32.mrf.mxu0
      %1444 = vmatprep.mubr.bf16.mxu0 0
      %1445 = vmatmul.mubr.bf16.gmra.mxu0 %v1317
      %v1446 = vpop.f32.mrf.mxu0
      %v1447 = vadd.f32 0.0, %v1446
      %v1448 = vpop.f32.mrf.mxu0
      %v1449 = vpop.f32.mrf.mxu0
      %v1450 = vadd.f32 0.0, %v1449
      %v1451 = vpop.f32.mrf.mxu0
      %1452 = vmatprep.mubr.bf16.mxu0 0
      %1453 = vmatmul.mubr.bf16.gmra.mxu0 %v1320
      %v1454 = vpop.f32.mrf.mxu0
      %v1455 = vadd.f32 0.0, %v1454
      %v1456 = vpop.f32.mrf.mxu0
      %v1457 = vpop.f32.mrf.mxu0
      %v1458 = vadd.f32 0.0, %v1457
      %v1459 = vpop.f32.mrf.mxu0
      %1460 = vmatprep.mubr.bf16.mxu0 0
      %1461 = vmatmul.mubr.bf16.gmra.mxu0 %v1323
      %v1462 = vpop.f32.mrf.mxu0
      %v1463 = vadd.f32 0.0, %v1462
      %v1464 = vpop.f32.mrf.mxu0
      %v1465 = vpop.f32.mrf.mxu0
      %v1466 = vadd.f32 0.0, %v1465
      %v1467 = vpop.f32.mrf.mxu0
      %1468 = vmatprep.mubr.bf16.mxu0 0
      %1469 = vmatmul.mubr.bf16.gmra.mxu0 %v1326
      %v1470 = vpop.f32.mrf.mxu0
      %v1471 = vadd.f32 0.0, %v1470
      %v1472 = vpop.f32.mrf.mxu0
      %v1473 = vpop.f32.mrf.mxu0
      %v1474 = vadd.f32 0.0, %v1473
      %v1475 = vpop.f32.mrf.mxu0
      %1476 = vmatprep.mubr.bf16.mxu0 0
      %1477 = vmatmul.mubr.bf16.gmra.mxu0 %v1329
      %v1478 = vpop.f32.mrf.mxu0
      %v1479 = vadd.f32 0.0, %v1478
      %v1480 = vpop.f32.mrf.mxu0
      %v1481 = vpop.f32.mrf.mxu0
      %v1482 = vadd.f32 0.0, %v1481
      %v1483 = vpop.f32.mrf.mxu0
      %1484 = vmatprep.mubr.bf16.mxu0 0
      %1485 = vmatmul.mubr.bf16.gmra.mxu0 %v1332
      %v1486 = vpop.f32.mrf.mxu0
      %v1487 = vadd.f32 0.0, %v1486
      %v1488 = vpop.f32.mrf.mxu0
      %v1489 = vpop.f32.mrf.mxu0
      %v1490 = vadd.f32 0.0, %v1489
      %v1491 = vpop.f32.mrf.mxu0
      %1492 = vmatprep.mubr.bf16.mxu0 0
      %1493 = vmatmul.mubr.bf16.gmra.mxu0 %v1335
      %v1494 = vpop.f32.mrf.mxu0
      %v1495 = vadd.f32 0.0, %v1494
      %v1496 = vpop.f32.mrf.mxu0
      %v1497 = vpop.f32.mrf.mxu0
      %v1498 = vadd.f32 0.0, %v1497
      %v1499 = vpop.f32.mrf.mxu0
      %1500 = vdwg.mxu0
      %v1501 = vadd.f32 %v1143, %v1375
      %v1502 = vadd.f32 %v1144, %v1378
      %v1503 = vadd.f32 %v1145, %v1383
      %v1504 = vadd.f32 %v1146, %v1386
      %v1505 = vadd.f32 %v1147, %v1391
      %v1506 = vadd.f32 %v1148, %v1394
      %v1507 = vadd.f32 %v1149, %v1399
      %v1508 = vadd.f32 %v1150, %v1402
      %v1509 = vadd.f32 %v1151, %v1407
      %v1510 = vadd.f32 %v1152, %v1410
      %v1511 = vadd.f32 %v1153, %v1415
      %v1512 = vadd.f32 %v1154, %v1418
      %v1513 = vadd.f32 %v1155, %v1423
      %v1514 = vadd.f32 %v1156, %v1426
      %v1515 = vadd.f32 %v1157, %v1431
      %v1516 = vadd.f32 %v1158, %v1434
      %v1517 = vadd.f32 %v1159, %v1439
      %v1518 = vadd.f32 %v1160, %v1442
      %v1519 = vadd.f32 %v1161, %v1447
      %v1520 = vadd.f32 %v1162, %v1450
      %v1521 = vadd.f32 %v1163, %v1455
      %v1522 = vadd.f32 %v1164, %v1458
      %v1523 = vadd.f32 %v1165, %v1463
      %v1524 = vadd.f32 %v1166, %v1466
      %v1525 = vadd.f32 %v1167, %v1471
      %v1526 = vadd.f32 %v1168, %v1474
      %v1527 = vadd.f32 %v1169, %v1479
      %v1528 = vadd.f32 %v1170, %v1482
      %v1529 = vadd.f32 %v1171, %v1487
      %v1530 = vadd.f32 %v1172, %v1490
      %v1531 = vadd.f32 %v1173, %v1495
      %v1532 = vadd.f32 %v1174, %v1498
      %v1533 = vld [vmem:[%s219 + $0xc] sm:$0xf]
      %v1534 = vld [vmem:[%s219 + $0x10] sm:$0xf]
      %v1535 = vld [vmem:[%s219 + $0x14] sm:$0xf]
      %v1536 = vld [vmem:[%s219 + $0x18] sm:$0xf]
      %v1537 = vld [vmem:[%s219 + $0x1c] sm:$0xf]
      %v1538 = vld [vmem:[%s219 + $0x20] sm:$0xf]
      %v1539 = vld [vmem:[%s219 + $0x24] sm:$0xf]
      %v1540 = vld [vmem:[%s219 + $0x28] sm:$0xf]
      %v1541 = vld [vmem:[%s219 + $0x2c] sm:$0xf]
      %v1542 = vld [vmem:[%s219 + $0x30] sm:$0xf]
      %v1543 = vld [vmem:[%s219 + $0x34] sm:$0xf]
      %v1544 = vld [vmem:[%s219 + $0x38] sm:$0xf]
      %v1545 = vld [vmem:[%s219 + $0x3c] sm:$0xf]
      %v1546 = vld [vmem:[%s219 + $0x40] sm:$0xf]
      %v1547 = vld [vmem:[%s219 + $0x44] sm:$0xf]
      %v1548 = vld [vmem:[%s219 + $0x48] sm:$0xf]
      %v1549 = vld [vmem:[%s219 + $0x4c] sm:$0xf]
      %v1550 = vld [vmem:[%s219 + $0x50] sm:$0xf]
      %v1551 = vld [vmem:[%s219 + $0x54] sm:$0xf]
      %v1552 = vld [vmem:[%s219 + $0x58] sm:$0xf]
      %v1553 = vld [vmem:[%s219 + $0x5c] sm:$0xf]
      %v1554 = vld [vmem:[%s219 + $0x60] sm:$0xf]
      %v1555 = vld [vmem:[%s219 + $0x64] sm:$0xf]
      %v1556 = vld [vmem:[%s219 + $0x68] sm:$0xf]
      %v1557 = vld [vmem:[%s219 + $0x6c] sm:$0xf]
      %v1558 = vld [vmem:[%s219 + $0x70] sm:$0xf]
      %v1559 = vld [vmem:[%s219 + $0x74] sm:$0xf]
      %v1560 = vld [vmem:[%s219 + $0x78] sm:$0xf]
      %v1561 = vld [vmem:[%s219 + $0x7c] sm:$0xf]
      %v1562 = vld [vmem:[%s219 + $0x80] sm:$0xf]
      %v1563 = vld [vmem:[%s219 + $0x84] sm:$0xf]
      %v1564 = vld [vmem:[%s219 + $0x88] sm:$0xf]
      %v1565 = vld [vmem:[%s219 + $0x8c] sm:$0x1]
      %s1566 = scalar_lea.vmem %s1, 8
      %v1567 = vld [vmem:[%s1566] sm:$0x3]
      %v1601 = vunpack.c.l.b16 %v1533
      %v1602 = vunpack.c.l.b16 %v1534
      %v1603 = vunpack.c.l.b16 %v1535
      %v1604 = vunpack.c.l.b16 %v1536
      %v1605 = vunpack.c.l.b16 %v1537
      %v1606 = vunpack.c.l.b16 %v1538
      %v1607 = vunpack.c.l.b16 %v1539
      %v1608 = vunpack.c.l.b16 %v1540
      %v1609 = vunpack.c.l.b16 %v1541
      %v1610 = vunpack.c.l.b16 %v1542
      %v1611 = vunpack.c.l.b16 %v1543
      %v1612 = vunpack.c.l.b16 %v1544
      %v1613 = vunpack.c.l.b16 %v1545
      %v1614 = vunpack.c.l.b16 %v1546
      %v1615 = vunpack.c.l.b16 %v1547
      %v1616 = vunpack.c.l.b16 %v1548
      %v1617 = vunpack.c.l.b16 %v1549
      %v1618 = vunpack.c.l.b16 %v1550
      %v1619 = vunpack.c.l.b16 %v1551
      %v1620 = vunpack.c.l.b16 %v1552
      %v1621 = vunpack.c.l.b16 %v1553
      %v1622 = vunpack.c.l.b16 %v1554
      %v1623 = vunpack.c.l.b16 %v1555
      %v1624 = vunpack.c.l.b16 %v1556
      %v1625 = vunpack.c.l.b16 %v1557
      %v1626 = vunpack.c.l.b16 %v1558
      %v1627 = vunpack.c.l.b16 %v1559
      %v1628 = vunpack.c.l.b16 %v1560
      %v1629 = vunpack.c.l.b16 %v1561
      %v1630 = vunpack.c.l.b16 %v1562
      %v1631 = vunpack.c.l.b16 %v1563
      %v1632 = vunpack.c.l.b16 %v1564
      %v1633 = vunpack.c.l.b16 %v1565
      %v1634 = vpack.c.b16 %v1602, %v1601
      %v1635 = vpack.c.b16 %v1604, %v1603
      %v1636 = vpack.c.b16 %v1606, %v1605
      %v1637 = vpack.c.b16 %v1608, %v1607
      %v1638 = vpack.c.b16 %v1610, %v1609
      %v1639 = vpack.c.b16 %v1612, %v1611
      %v1640 = vpack.c.b16 %v1614, %v1613
      %v1641 = vpack.c.b16 %v1616, %v1615
      %v1642 = vpack.c.b16 %v1618, %v1617
      %v1643 = vpack.c.b16 %v1620, %v1619
      %v1644 = vpack.c.b16 %v1622, %v1621
      %v1645 = vpack.c.b16 %v1624, %v1623
      %v1646 = vpack.c.b16 %v1626, %v1625
      %v1647 = vpack.c.b16 %v1628, %v1627
      %v1648 = vpack.c.b16 %v1630, %v1629
      %v1649 = vpack.c.b16 %v1632, %v1631
      %v1650 = vpack.c.b16 %v1633, %v1633
      %v1652 = vshrl.u32 %v1634, 16
      %v1654 = vshll.u32 %v1634, 16
      %v1656 = vrot.slane %v1654, 1
      %v1657 = vor.u32 %v1652, %v1656
      %v1659 = vshll.u32 %v1635, 16
      %v1661 = vrot.slane %v1659, 1
      %v1662 = vsel %vm348, %v1657, %v1661
      %v1663 = vshrl.u32 %v1635, 16
      %v1665 = vor.u32 %v1663, %v1661
      %v1667 = vshll.u32 %v1636, 16
      %v1669 = vrot.slane %v1667, 1
      %v1670 = vsel %vm348, %v1665, %v1669
      %v1671 = vshrl.u32 %v1636, 16
      %v1673 = vor.u32 %v1671, %v1669
      %v1675 = vshll.u32 %v1637, 16
      %v1677 = vrot.slane %v1675, 1
      %v1678 = vsel %vm348, %v1673, %v1677
      %v1679 = vshrl.u32 %v1637, 16
      %v1681 = vor.u32 %v1679, %v1677
      %v1683 = vshll.u32 %v1638, 16
      %v1685 = vrot.slane %v1683, 1
      %v1686 = vsel %vm348, %v1681, %v1685
      %v1687 = vshrl.u32 %v1638, 16
      %v1689 = vor.u32 %v1687, %v1685
      %v1691 = vshll.u32 %v1639, 16
      %v1693 = vrot.slane %v1691, 1
      %v1694 = vsel %vm348, %v1689, %v1693
      %v1695 = vshrl.u32 %v1639, 16
      %v1697 = vor.u32 %v1695, %v1693
      %v1699 = vshll.u32 %v1640, 16
      %v1701 = vrot.slane %v1699, 1
      %v1702 = vsel %vm348, %v1697, %v1701
      %v1703 = vshrl.u32 %v1640, 16
      %v1705 = vor.u32 %v1703, %v1701
      %v1707 = vshll.u32 %v1641, 16
      %v1709 = vrot.slane %v1707, 1
      %v1710 = vsel %vm348, %v1705, %v1709
      %v1711 = vshrl.u32 %v1641, 16
      %v1713 = vor.u32 %v1711, %v1709
      %v1715 = vshll.u32 %v1642, 16
      %v1717 = vrot.slane %v1715, 1
      %v1718 = vsel %vm348, %v1713, %v1717
      %v1719 = vshrl.u32 %v1642, 16
      %v1721 = vor.u32 %v1719, %v1717
      %v1723 = vshll.u32 %v1643, 16
      %v1725 = vrot.slane %v1723, 1
      %v1726 = vsel %vm348, %v1721, %v1725
      %v1727 = vshrl.u32 %v1643, 16
      %v1729 = vor.u32 %v1727, %v1725
      %v1731 = vshll.u32 %v1644, 16
      %v1733 = vrot.slane %v1731, 1
      %v1734 = vsel %vm348, %v1729, %v1733
      %v1735 = vshrl.u32 %v1644, 16
      %v1737 = vor.u32 %v1735, %v1733
      %v1739 = vshll.u32 %v1645, 16
      %v1741 = vrot.slane %v1739, 1
      %v1742 = vsel %vm348, %v1737, %v1741
      %v1743 = vshrl.u32 %v1645, 16
      %v1745 = vor.u32 %v1743, %v1741
      %v1747 = vshll.u32 %v1646, 16
      %v1749 = vrot.slane %v1747, 1
      %v1750 = vsel %vm348, %v1745, %v1749
      %v1751 = vshrl.u32 %v1646, 16
      %v1753 = vor.u32 %v1751, %v1749
      %v1755 = vshll.u32 %v1647, 16
      %v1757 = vrot.slane %v1755, 1
      %v1758 = vsel %vm348, %v1753, %v1757
      %v1759 = vshrl.u32 %v1647, 16
      %v1761 = vor.u32 %v1759, %v1757
      %v1763 = vshll.u32 %v1648, 16
      %v1765 = vrot.slane %v1763, 1
      %v1766 = vsel %vm348, %v1761, %v1765
      %v1767 = vshrl.u32 %v1648, 16
      %v1769 = vor.u32 %v1767, %v1765
      %v1771 = vshll.u32 %v1649, 16
      %v1773 = vrot.slane %v1771, 1
      %v1774 = vsel %vm348, %v1769, %v1773
      %v1775 = vshrl.u32 %v1649, 16
      %v1777 = vor.u32 %v1775, %v1773
      %v1779 = vshll.u32 %v1650, 16
      %v1781 = vrot.slane %v1779, 1
      %v1782 = vsel %vm348, %v1777, %v1781
      %v1784 = vsel %vm481, %v1662, 0
      %v1787 = vsel %vm481, %v1670, 0
      %v1790 = vsel %vm481, %v1678, 0
      %v1793 = vsel %vm481, %v1686, 0
      %v1796 = vsel %vm481, %v1694, 0
      %v1799 = vsel %vm481, %v1702, 0
      %v1802 = vsel %vm481, %v1710, 0
      %v1805 = vsel %vm481, %v1718, 0
      %v1808 = vsel %vm481, %v1726, 0
      %v1811 = vsel %vm481, %v1734, 0
      %v1814 = vsel %vm481, %v1742, 0
      %v1817 = vsel %vm481, %v1750, 0
      %v1820 = vsel %vm481, %v1758, 0
      %v1823 = vsel %vm481, %v1766, 0
      %v1826 = vsel %vm481, %v1774, 0
      %v1829 = vsel %vm481, %v1782, 0
      %v1832 = vsel %vm530, %v1567, 0
      %1834 = vmatprep.subr.bf16.mxu0 0
      %1835 = vmatpush1.bf16.msra.mxu0 0
      %1836 = vmatprep.subr.bf16.mxu0 0
      %1837 = vmatpush1.bf16.msra.mxu0 0
      %1838 = vmatprep.subr.bf16.mxu0 0
      %1839 = vmatpush1.bf16.msra.mxu0 0
      %1840 = vmatprep.subr.bf16.mxu0 0
      %1841 = vmatpush1.bf16.msra.mxu0 0
      %1842 = vmatprep.subr.bf16.mxu0 0
      %1843 = vmatpush1.bf16.msra.mxu0 0
      %1844 = vmatprep.subr.bf16.mxu0 0
      %1845 = vmatpush1.bf16.msra.mxu0 0
      %1846 = vmatprep.subr.bf16.mxu0 0
      %1847 = vmatpush1.bf16.msra.mxu0 0
      %1848 = vmatprep.subr.bf16.mxu0 0
      %1849 = vmatpush1.bf16.msra.mxu0 %v1832
      %1850 = vmatprep.subr.bf16.mxu0 0
      %1851 = vmatpush2.bf16.msra.mxu0 0
      %1852 = vmatprep.subr.bf16.mxu0 0
      %1853 = vmatpush2.bf16.msra.mxu0 0
      %1854 = vmatprep.subr.bf16.mxu0 0
      %1855 = vmatpush2.bf16.msra.mxu0 0
      %1856 = vmatprep.subr.bf16.mxu0 0
      %1857 = vmatpush2.bf16.msra.mxu0 0
      %1858 = vmatprep.subr.bf16.mxu0 0
      %1859 = vmatpush2.bf16.msra.mxu0 0
      %1860 = vmatprep.subr.bf16.mxu0 0
      %1861 = vmatpush2.bf16.msra.mxu0 0
      %1862 = vmatprep.subr.bf16.mxu0 0
      %1863 = vmatpush2.bf16.msra.mxu0 0
      %1864 = vmatprep.subr.bf16.mxu0 0
      %1865 = vmatpush2.bf16.msra.mxu0 0
      %1866 = vmatprep.mubr.bf16.mxu0 0
      %1867 = vmatmul.mubr.bf16.gmra.mxu0 %v1784
      %v1868 = vpop.f32.mrf.mxu0
      %v1869 = vadd.f32 0.0, %v1868
      %v1870 = vpop.f32.mrf.mxu0
      %v1871 = vpop.f32.mrf.mxu0
      %v1872 = vadd.f32 0.0, %v1871
      %v1873 = vpop.f32.mrf.mxu0
      %1874 = vmatprep.mubr.bf16.mxu0 0
      %1875 = vmatmul.mubr.bf16.gmra.mxu0 %v1787
      %v1876 = vpop.f32.mrf.mxu0
      %v1877 = vadd.f32 0.0, %v1876
      %v1878 = vpop.f32.mrf.mxu0
      %v1879 = vpop.f32.mrf.mxu0
      %v1880 = vadd.f32 0.0, %v1879
      %v1881 = vpop.f32.mrf.mxu0
      %1882 = vmatprep.mubr.bf16.mxu0 0
      %1883 = vmatmul.mubr.bf16.gmra.mxu0 %v1790
      %v1884 = vpop.f32.mrf.mxu0
      %v1885 = vadd.f32 0.0, %v1884
      %v1886 = vpop.f32.mrf.mxu0
      %v1887 = vpop.f32.mrf.mxu0
      %v1888 = vadd.f32 0.0, %v1887
      %v1889 = vpop.f32.mrf.mxu0
      %1890 = vmatprep.mubr.bf16.mxu0 0
      %1891 = vmatmul.mubr.bf16.gmra.mxu0 %v1793
      %v1892 = vpop.f32.mrf.mxu0
      %v1893 = vadd.f32 0.0, %v1892
      %v1894 = vpop.f32.mrf.mxu0
      %v1895 = vpop.f32.mrf.mxu0
      %v1896 = vadd.f32 0.0, %v1895
      %v1897 = vpop.f32.mrf.mxu0
      %1898 = vmatprep.mubr.bf16.mxu0 0
      %1899 = vmatmul.mubr.bf16.gmra.mxu0 %v1796
      %v1900 = vpop.f32.mrf.mxu0
      %v1901 = vadd.f32 0.0, %v1900
      %v1902 = vpop.f32.mrf.mxu0
      %v1903 = vpop.f32.mrf.mxu0
      %v1904 = vadd.f32 0.0, %v1903
      %v1905 = vpop.f32.mrf.mxu0
      %1906 = vmatprep.mubr.bf16.mxu0 0
      %1907 = vmatmul.mubr.bf16.gmra.mxu0 %v1799
      %v1908 = vpop.f32.mrf.mxu0
      %v1909 = vadd.f32 0.0, %v1908
      %v1910 = vpop.f32.mrf.mxu0
      %v1911 = vpop.f32.mrf.mxu0
      %v1912 = vadd.f32 0.0, %v1911
      %v1913 = vpop.f32.mrf.mxu0
      %1914 = vmatprep.mubr.bf16.mxu0 0
      %1915 = vmatmul.mubr.bf16.gmra.mxu0 %v1802
      %v1916 = vpop.f32.mrf.mxu0
      %v1917 = vadd.f32 0.0, %v1916
      %v1918 = vpop.f32.mrf.mxu0
      %v1919 = vpop.f32.mrf.mxu0
      %v1920 = vadd.f32 0.0, %v1919
      %v1921 = vpop.f32.mrf.mxu0
      %1922 = vmatprep.mubr.bf16.mxu0 0
      %1923 = vmatmul.mubr.bf16.gmra.mxu0 %v1805
      %v1924 = vpop.f32.mrf.mxu0
      %v1925 = vadd.f32 0.0, %v1924
      %v1926 = vpop.f32.mrf.mxu0
      %v1927 = vpop.f32.mrf.mxu0
      %v1928 = vadd.f32 0.0, %v1927
      %v1929 = vpop.f32.mrf.mxu0
      %1930 = vmatprep.mubr.bf16.mxu0 0
      %1931 = vmatmul.mubr.bf16.gmra.mxu0 %v1808
      %v1932 = vpop.f32.mrf.mxu0
      %v1933 = vadd.f32 0.0, %v1932
      %v1934 = vpop.f32.mrf.mxu0
      %v1935 = vpop.f32.mrf.mxu0
      %v1936 = vadd.f32 0.0, %v1935
      %v1937 = vpop.f32.mrf.mxu0
      %1938 = vmatprep.mubr.bf16.mxu0 0
      %1939 = vmatmul.mubr.bf16.gmra.mxu0 %v1811
      %v1940 = vpop.f32.mrf.mxu0
      %v1941 = vadd.f32 0.0, %v1940
      %v1942 = vpop.f32.mrf.mxu0
      %v1943 = vpop.f32.mrf.mxu0
      %v1944 = vadd.f32 0.0, %v1943
      %v1945 = vpop.f32.mrf.mxu0
      %1946 = vmatprep.mubr.bf16.mxu0 0
      %1947 = vmatmul.mubr.bf16.gmra.mxu0 %v1814
      %v1948 = vpop.f32.mrf.mxu0
      %v1949 = vadd.f32 0.0, %v1948
      %v1950 = vpop.f32.mrf.mxu0
      %v1951 = vpop.f32.mrf.mxu0
      %v1952 = vadd.f32 0.0, %v1951
      %v1953 = vpop.f32.mrf.mxu0
      %1954 = vmatprep.mubr.bf16.mxu0 0
      %1955 = vmatmul.mubr.bf16.gmra.mxu0 %v1817
      %v1956 = vpop.f32.mrf.mxu0
      %v1957 = vadd.f32 0.0, %v1956
      %v1958 = vpop.f32.mrf.mxu0
      %v1959 = vpop.f32.mrf.mxu0
      %v1960 = vadd.f32 0.0, %v1959
      %v1961 = vpop.f32.mrf.mxu0
      %1962 = vmatprep.mubr.bf16.mxu0 0
      %1963 = vmatmul.mubr.bf16.gmra.mxu0 %v1820
      %v1964 = vpop.f32.mrf.mxu0
      %v1965 = vadd.f32 0.0, %v1964
      %v1966 = vpop.f32.mrf.mxu0
      %v1967 = vpop.f32.mrf.mxu0
      %v1968 = vadd.f32 0.0, %v1967
      %v1969 = vpop.f32.mrf.mxu0
      %1970 = vmatprep.mubr.bf16.mxu0 0
      %1971 = vmatmul.mubr.bf16.gmra.mxu0 %v1823
      %v1972 = vpop.f32.mrf.mxu0
      %v1973 = vadd.f32 0.0, %v1972
      %v1974 = vpop.f32.mrf.mxu0
      %v1975 = vpop.f32.mrf.mxu0
      %v1976 = vadd.f32 0.0, %v1975
      %v1977 = vpop.f32.mrf.mxu0
      %1978 = vmatprep.mubr.bf16.mxu0 0
      %1979 = vmatmul.mubr.bf16.gmra.mxu0 %v1826
      %v1980 = vpop.f32.mrf.mxu0
      %v1981 = vadd.f32 0.0, %v1980
      %v1982 = vpop.f32.mrf.mxu0
      %v1983 = vpop.f32.mrf.mxu0
      %v1984 = vadd.f32 0.0, %v1983
      %v1985 = vpop.f32.mrf.mxu0
      %1986 = vmatprep.mubr.bf16.mxu0 0
      %1987 = vmatmul.mubr.bf16.gmra.mxu0 %v1829
      %v1988 = vpop.f32.mrf.mxu0
      %v1989 = vadd.f32 0.0, %v1988
      %v1990 = vpop.f32.mrf.mxu0
      %v1991 = vpop.f32.mrf.mxu0
      %v1992 = vadd.f32 0.0, %v1991
      %v1993 = vpop.f32.mrf.mxu0
      %1994 = vdwg.mxu0
      %v1995 = vadd.f32 %v1501, %v1869
      %v1996 = vadd.f32 %v1502, %v1872
      %v1997 = vadd.f32 %v1503, %v1877
      %v1998 = vadd.f32 %v1504, %v1880
      %v1999 = vadd.f32 %v1505, %v1885
      %v2000 = vadd.f32 %v1506, %v1888
      %v2001 = vadd.f32 %v1507, %v1893
      %v2002 = vadd.f32 %v1508, %v1896
      %v2003 = vadd.f32 %v1509, %v1901
      %v2004 = vadd.f32 %v1510, %v1904
      %v2005 = vadd.f32 %v1511, %v1909
      %v2006 = vadd.f32 %v1512, %v1912
      %v2007 = vadd.f32 %v1513, %v1917
      %v2008 = vadd.f32 %v1514, %v1920
      %v2009 = vadd.f32 %v1515, %v1925
      %v2010 = vadd.f32 %v1516, %v1928
      %v2011 = vadd.f32 %v1517, %v1933
      %v2012 = vadd.f32 %v1518, %v1936
      %v2013 = vadd.f32 %v1519, %v1941
      %v2014 = vadd.f32 %v1520, %v1944
      %v2015 = vadd.f32 %v1521, %v1949
      %v2016 = vadd.f32 %v1522, %v1952
      %v2017 = vadd.f32 %v1523, %v1957
      %v2018 = vadd.f32 %v1524, %v1960
      %v2019 = vadd.f32 %v1525, %v1965
      %v2020 = vadd.f32 %v1526, %v1968
      %v2021 = vadd.f32 %v1527, %v1973
      %v2022 = vadd.f32 %v1528, %v1976
      %v2023 = vadd.f32 %v1529, %v1981
      %v2024 = vadd.f32 %v1530, %v1984
      %v2025 = vadd.f32 %v1531, %v1989
      %v2026 = vadd.f32 %v1532, %v1992
      %v2027 = vld [vmem:[%s219 + $0xc] sm:$0xe]
      %s2028 = scalar_lea.vmem %s1, 10
      %v2029 = vld [vmem:[%s2028] sm:$0x3]
      %v2031 = vunpack.c.l.b16 %v2027
      %v2032 = vpack.c.b16 %v1602, %v2031
      %v2033 = vrot.slane %v2032, 1
      %v2034 = vrot.slane %v1635, 1
      %v2035 = vsel %vm897, %v2033, %v2034
      %v2036 = vrot.slane %v1636, 1
      %v2037 = vsel %vm897, %v2034, %v2036
      %v2038 = vrot.slane %v1637, 1
      %v2039 = vsel %vm897, %v2036, %v2038
      %v2040 = vrot.slane %v1638, 1
      %v2041 = vsel %vm897, %v2038, %v2040
      %v2042 = vrot.slane %v1639, 1
      %v2043 = vsel %vm897, %v2040, %v2042
      %v2044 = vrot.slane %v1640, 1
      %v2045 = vsel %vm897, %v2042, %v2044
      %v2046 = vrot.slane %v1641, 1
      %v2047 = vsel %vm897, %v2044, %v2046
      %v2048 = vrot.slane %v1642, 1
      %v2049 = vsel %vm897, %v2046, %v2048
      %v2050 = vrot.slane %v1643, 1
      %v2051 = vsel %vm897, %v2048, %v2050
      %v2052 = vrot.slane %v1644, 1
      %v2053 = vsel %vm897, %v2050, %v2052
      %v2054 = vrot.slane %v1645, 1
      %v2055 = vsel %vm897, %v2052, %v2054
      %v2056 = vrot.slane %v1646, 1
      %v2057 = vsel %vm897, %v2054, %v2056
      %v2058 = vrot.slane %v1647, 1
      %v2059 = vsel %vm897, %v2056, %v2058
      %v2060 = vrot.slane %v1648, 1
      %v2061 = vsel %vm897, %v2058, %v2060
      %v2062 = vrot.slane %v1649, 1
      %v2063 = vsel %vm897, %v2060, %v2062
      %v2064 = vrot.slane %v1650, 1
      %v2065 = vsel %vm897, %v2062, %v2064
      %v2067 = vsel %vm481, %v2035, 0
      %v2070 = vsel %vm481, %v2037, 0
      %v2073 = vsel %vm481, %v2039, 0
      %v2076 = vsel %vm481, %v2041, 0
      %v2079 = vsel %vm481, %v2043, 0
      %v2082 = vsel %vm481, %v2045, 0
      %v2085 = vsel %vm481, %v2047, 0
      %v2088 = vsel %vm481, %v2049, 0
      %v2091 = vsel %vm481, %v2051, 0
      %v2094 = vsel %vm481, %v2053, 0
      %v2097 = vsel %vm481, %v2055, 0
      %v2100 = vsel %vm481, %v2057, 0
      %v2103 = vsel %vm481, %v2059, 0
      %v2106 = vsel %vm481, %v2061, 0
      %v2109 = vsel %vm481, %v2063, 0
      %v2112 = vsel %vm481, %v2065, 0
      %v2115 = vsel %vm530, %v2029, 0
      %2117 = vmatprep.subr.bf16.mxu0 0
      %2118 = vmatpush1.bf16.msra.mxu0 0
      %2119 = vmatprep.subr.bf16.mxu0 0
      %2120 = vmatpush1.bf16.msra.mxu0 0
      %2121 = vmatprep.subr.bf16.mxu0 0
      %2122 = vmatpush1.bf16.msra.mxu0 0
      %2123 = vmatprep.subr.bf16.mxu0 0
      %2124 = vmatpush1.bf16.msra.mxu0 0
      %2125 = vmatprep.subr.bf16.mxu0 0
      %2126 = vmatpush1.bf16.msra.mxu0 0
      %2127 = vmatprep.subr.bf16.mxu0 0
      %2128 = vmatpush1.bf16.msra.mxu0 0
      %2129 = vmatprep.subr.bf16.mxu0 0
      %2130 = vmatpush1.bf16.msra.mxu0 0
      %2131 = vmatprep.subr.bf16.mxu0 0
      %2132 = vmatpush1.bf16.msra.mxu0 %v2115
      %2133 = vmatprep.subr.bf16.mxu0 0
      %2134 = vmatpush2.bf16.msra.mxu0 0
      %2135 = vmatprep.subr.bf16.mxu0 0
      %2136 = vmatpush2.bf16.msra.mxu0 0
      %2137 = vmatprep.subr.bf16.mxu0 0
      %2138 = vmatpush2.bf16.msra.mxu0 0
      %2139 = vmatprep.subr.bf16.mxu0 0
      %2140 = vmatpush2.bf16.msra.mxu0 0
      %2141 = vmatprep.subr.bf16.mxu0 0
      %2142 = vmatpush2.bf16.msra.mxu0 0
      %2143 = vmatprep.subr.bf16.mxu0 0
      %2144 = vmatpush2.bf16.msra.mxu0 0
      %2145 = vmatprep.subr.bf16.mxu0 0
      %2146 = vmatpush2.bf16.msra.mxu0 0
      %2147 = vmatprep.subr.bf16.mxu0 0
      %2148 = vmatpush2.bf16.msra.mxu0 0
      %2149 = vmatprep.mubr.bf16.mxu0 0
      %2150 = vmatmul.mubr.bf16.gmra.mxu0 %v2067
      %v2151 = vpop.f32.mrf.mxu0
      %v2152 = vadd.f32 0.0, %v2151
      %v2153 = vpop.f32.mrf.mxu0
      %v2154 = vpop.f32.mrf.mxu0
      %v2155 = vadd.f32 0.0, %v2154
      %v2156 = vpop.f32.mrf.mxu0
      %2157 = vmatprep.mubr.bf16.mxu0 0
      %2158 = vmatmul.mubr.bf16.gmra.mxu0 %v2070
      %v2159 = vpop.f32.mrf.mxu0
      %v2160 = vadd.f32 0.0, %v2159
      %v2161 = vpop.f32.mrf.mxu0
      %v2162 = vpop.f32.mrf.mxu0
      %v2163 = vadd.f32 0.0, %v2162
      %v2164 = vpop.f32.mrf.mxu0
      %2165 = vmatprep.mubr.bf16.mxu0 0
      %2166 = vmatmul.mubr.bf16.gmra.mxu0 %v2073
      %v2167 = vpop.f32.mrf.mxu0
      %v2168 = vadd.f32 0.0, %v2167
      %v2169 = vpop.f32.mrf.mxu0
      %v2170 = vpop.f32.mrf.mxu0
      %v2171 = vadd.f32 0.0, %v2170
      %v2172 = vpop.f32.mrf.mxu0
      %2173 = vmatprep.mubr.bf16.mxu0 0
      %2174 = vmatmul.mubr.bf16.gmra.mxu0 %v2076
      %v2175 = vpop.f32.mrf.mxu0
      %v2176 = vadd.f32 0.0, %v2175
      %v2177 = vpop.f32.mrf.mxu0
      %v2178 = vpop.f32.mrf.mxu0
      %v2179 = vadd.f32 0.0, %v2178
      %v2180 = vpop.f32.mrf.mxu0
      %2181 = vmatprep.mubr.bf16.mxu0 0
      %2182 = vmatmul.mubr.bf16.gmra.mxu0 %v2079
      %v2183 = vpop.f32.mrf.mxu0
      %v2184 = vadd.f32 0.0, %v2183
      %v2185 = vpop.f32.mrf.mxu0
      %v2186 = vpop.f32.mrf.mxu0
      %v2187 = vadd.f32 0.0, %v2186
      %v2188 = vpop.f32.mrf.mxu0
      %2189 = vmatprep.mubr.bf16.mxu0 0
      %2190 = vmatmul.mubr.bf16.gmra.mxu0 %v2082
      %v2191 = vpop.f32.mrf.mxu0
      %v2192 = vadd.f32 0.0, %v2191
      %v2193 = vpop.f32.mrf.mxu0
      %v2194 = vpop.f32.mrf.mxu0
      %v2195 = vadd.f32 0.0, %v2194
      %v2196 = vpop.f32.mrf.mxu0
      %2197 = vmatprep.mubr.bf16.mxu0 0
      %2198 = vmatmul.mubr.bf16.gmra.mxu0 %v2085
      %v2199 = vpop.f32.mrf.mxu0
      %v2200 = vadd.f32 0.0, %v2199
      %v2201 = vpop.f32.mrf.mxu0
      %v2202 = vpop.f32.mrf.mxu0
      %v2203 = vadd.f32 0.0, %v2202
      %v2204 = vpop.f32.mrf.mxu0
      %2205 = vmatprep.mubr.bf16.mxu0 0
      %2206 = vmatmul.mubr.bf16.gmra.mxu0 %v2088
      %v2207 = vpop.f32.mrf.mxu0
      %v2208 = vadd.f32 0.0, %v2207
      %v2209 = vpop.f32.mrf.mxu0
      %v2210 = vpop.f32.mrf.mxu0
      %v2211 = vadd.f32 0.0, %v2210
      %v2212 = vpop.f32.mrf.mxu0
      %2213 = vmatprep.mubr.bf16.mxu0 0
      %2214 = vmatmul.mubr.bf16.gmra.mxu0 %v2091
      %v2215 = vpop.f32.mrf.mxu0
      %v2216 = vadd.f32 0.0, %v2215
      %v2217 = vpop.f32.mrf.mxu0
      %v2218 = vpop.f32.mrf.mxu0
      %v2219 = vadd.f32 0.0, %v2218
      %v2220 = vpop.f32.mrf.mxu0
      %2221 = vmatprep.mubr.bf16.mxu0 0
      %2222 = vmatmul.mubr.bf16.gmra.mxu0 %v2094
      %v2223 = vpop.f32.mrf.mxu0
      %v2224 = vadd.f32 0.0, %v2223
      %v2225 = vpop.f32.mrf.mxu0
      %v2226 = vpop.f32.mrf.mxu0
      %v2227 = vadd.f32 0.0, %v2226
      %v2228 = vpop.f32.mrf.mxu0
      %2229 = vmatprep.mubr.bf16.mxu0 0
      %2230 = vmatmul.mubr.bf16.gmra.mxu0 %v2097
      %v2231 = vpop.f32.mrf.mxu0
      %v2232 = vadd.f32 0.0, %v2231
      %v2233 = vpop.f32.mrf.mxu0
      %v2234 = vpop.f32.mrf.mxu0
      %v2235 = vadd.f32 0.0, %v2234
      %v2236 = vpop.f32.mrf.mxu0
      %2237 = vmatprep.mubr.bf16.mxu0 0
      %2238 = vmatmul.mubr.bf16.gmra.mxu0 %v2100
      %v2239 = vpop.f32.mrf.mxu0
      %v2240 = vadd.f32 0.0, %v2239
      %v2241 = vpop.f32.mrf.mxu0
      %v2242 = vpop.f32.mrf.mxu0
      %v2243 = vadd.f32 0.0, %v2242
      %v2244 = vpop.f32.mrf.mxu0
      %2245 = vmatprep.mubr.bf16.mxu0 0
      %2246 = vmatmul.mubr.bf16.gmra.mxu0 %v2103
      %v2247 = vpop.f32.mrf.mxu0
      %v2248 = vadd.f32 0.0, %v2247
      %v2249 = vpop.f32.mrf.mxu0
      %v2250 = vpop.f32.mrf.mxu0
      %v2251 = vadd.f32 0.0, %v2250
      %v2252 = vpop.f32.mrf.mxu0
      %2253 = vmatprep.mubr.bf16.mxu0 0
      %2254 = vmatmul.mubr.bf16.gmra.mxu0 %v2106
      %v2255 = vpop.f32.mrf.mxu0
      %v2256 = vadd.f32 0.0, %v2255
      %v2257 = vpop.f32.mrf.mxu0
      %v2258 = vpop.f32.mrf.mxu0
      %v2259 = vadd.f32 0.0, %v2258
      %v2260 = vpop.f32.mrf.mxu0
      %2261 = vmatprep.mubr.bf16.mxu0 0
      %2262 = vmatmul.mubr.bf16.gmra.mxu0 %v2109
      %v2263 = vpop.f32.mrf.mxu0
      %v2264 = vadd.f32 0.0, %v2263
      %v2265 = vpop.f32.mrf.mxu0
      %v2266 = vpop.f32.mrf.mxu0
      %v2267 = vadd.f32 0.0, %v2266
      %v2268 = vpop.f32.mrf.mxu0
      %2269 = vmatprep.mubr.bf16.mxu0 0
      %2270 = vmatmul.mubr.bf16.gmra.mxu0 %v2112
      %v2271 = vpop.f32.mrf.mxu0
      %v2272 = vadd.f32 0.0, %v2271
      %v2273 = vpop.f32.mrf.mxu0
      %v2274 = vpop.f32.mrf.mxu0
      %v2275 = vadd.f32 0.0, %v2274
      %v2276 = vpop.f32.mrf.mxu0
      %2277 = vdwg.mxu0
      %v2278 = vadd.f32 %v1995, %v2152
      %v2279 = vadd.f32 %v1996, %v2155
      %v2280 = vadd.f32 %v1997, %v2160
      %v2281 = vadd.f32 %v1998, %v2163
      %v2282 = vadd.f32 %v1999, %v2168
      %v2283 = vadd.f32 %v2000, %v2171
      %v2284 = vadd.f32 %v2001, %v2176
      %v2285 = vadd.f32 %v2002, %v2179
      %v2286 = vadd.f32 %v2003, %v2184
      %v2287 = vadd.f32 %v2004, %v2187
      %v2288 = vadd.f32 %v2005, %v2192
      %v2289 = vadd.f32 %v2006, %v2195
      %v2290 = vadd.f32 %v2007, %v2200
      %v2291 = vadd.f32 %v2008, %v2203
      %v2292 = vadd.f32 %v2009, %v2208
      %v2293 = vadd.f32 %v2010, %v2211
      %v2294 = vadd.f32 %v2011, %v2216
      %v2295 = vadd.f32 %v2012, %v2219
      %v2296 = vadd.f32 %v2013, %v2224
      %v2297 = vadd.f32 %v2014, %v2227
      %v2298 = vadd.f32 %v2015, %v2232
      %v2299 = vadd.f32 %v2016, %v2235
      %v2300 = vadd.f32 %v2017, %v2240
      %v2301 = vadd.f32 %v2018, %v2243
      %v2302 = vadd.f32 %v2019, %v2248
      %v2303 = vadd.f32 %v2020, %v2251
      %v2304 = vadd.f32 %v2021, %v2256
      %v2305 = vadd.f32 %v2022, %v2259
      %v2306 = vadd.f32 %v2023, %v2264
      %v2307 = vadd.f32 %v2024, %v2267
      %v2308 = vadd.f32 %v2025, %v2272
      %v2309 = vadd.f32 %v2026, %v2275
      %v2310 = vld [vmem:[%s219 + $0x18] sm:$0xf]
      %v2311 = vld [vmem:[%s219 + $0x1c] sm:$0xf]
      %v2312 = vld [vmem:[%s219 + $0x20] sm:$0xf]
      %v2313 = vld [vmem:[%s219 + $0x24] sm:$0xf]
      %v2314 = vld [vmem:[%s219 + $0x28] sm:$0xf]
      %v2315 = vld [vmem:[%s219 + $0x2c] sm:$0xf]
      %v2316 = vld [vmem:[%s219 + $0x30] sm:$0xf]
      %v2317 = vld [vmem:[%s219 + $0x34] sm:$0xf]
      %v2318 = vld [vmem:[%s219 + $0x38] sm:$0xf]
      %v2319 = vld [vmem:[%s219 + $0x3c] sm:$0xf]
      %v2320 = vld [vmem:[%s219 + $0x40] sm:$0xf]
      %v2321 = vld [vmem:[%s219 + $0x44] sm:$0xf]
      %v2322 = vld [vmem:[%s219 + $0x48] sm:$0xf]
      %v2323 = vld [vmem:[%s219 + $0x4c] sm:$0xf]
      %v2324 = vld [vmem:[%s219 + $0x50] sm:$0xf]
      %v2325 = vld [vmem:[%s219 + $0x54] sm:$0xf]
      %v2326 = vld [vmem:[%s219 + $0x58] sm:$0xf]
      %v2327 = vld [vmem:[%s219 + $0x5c] sm:$0xf]
      %v2328 = vld [vmem:[%s219 + $0x60] sm:$0xf]
      %v2329 = vld [vmem:[%s219 + $0x64] sm:$0xf]
      %v2330 = vld [vmem:[%s219 + $0x68] sm:$0xf]
      %v2331 = vld [vmem:[%s219 + $0x6c] sm:$0xf]
      %v2332 = vld [vmem:[%s219 + $0x70] sm:$0xf]
      %v2333 = vld [vmem:[%s219 + $0x74] sm:$0xf]
      %v2334 = vld [vmem:[%s219 + $0x78] sm:$0xf]
      %v2335 = vld [vmem:[%s219 + $0x7c] sm:$0xf]
      %v2336 = vld [vmem:[%s219 + $0x80] sm:$0xf]
      %v2337 = vld [vmem:[%s219 + $0x84] sm:$0xf]
      %v2338 = vld [vmem:[%s219 + $0x88] sm:$0xf]
      %v2339 = vld [vmem:[%s219 + $0x8c] sm:$0xf]
      %v2340 = vld [vmem:[%s219 + $0x90] sm:$0xf]
      %v2341 = vld [vmem:[%s219 + $0x94] sm:$0xf]
      %s2342 = scalar_lea.vmem %s1, 12
      %v2343 = vld [vmem:[%s2342] sm:$0x3]
      %v2376 = vunpack.c.l.b16 %v2310
      %v2377 = vunpack.c.l.b16 %v2311
      %v2378 = vunpack.c.l.b16 %v2312
      %v2379 = vunpack.c.l.b16 %v2313
      %v2380 = vunpack.c.l.b16 %v2314
      %v2381 = vunpack.c.l.b16 %v2315
      %v2382 = vunpack.c.l.b16 %v2316
      %v2383 = vunpack.c.l.b16 %v2317
      %v2384 = vunpack.c.l.b16 %v2318
      %v2385 = vunpack.c.l.b16 %v2319
      %v2386 = vunpack.c.l.b16 %v2320
      %v2387 = vunpack.c.l.b16 %v2321
      %v2388 = vunpack.c.l.b16 %v2322
      %v2389 = vunpack.c.l.b16 %v2323
      %v2390 = vunpack.c.l.b16 %v2324
      %v2391 = vunpack.c.l.b16 %v2325
      %v2392 = vunpack.c.l.b16 %v2326
      %v2393 = vunpack.c.l.b16 %v2327
      %v2394 = vunpack.c.l.b16 %v2328
      %v2395 = vunpack.c.l.b16 %v2329
      %v2396 = vunpack.c.l.b16 %v2330
      %v2397 = vunpack.c.l.b16 %v2331
      %v2398 = vunpack.c.l.b16 %v2332
      %v2399 = vunpack.c.l.b16 %v2333
      %v2400 = vunpack.c.l.b16 %v2334
      %v2401 = vunpack.c.l.b16 %v2335
      %v2402 = vunpack.c.l.b16 %v2336
      %v2403 = vunpack.c.l.b16 %v2337
      %v2404 = vunpack.c.l.b16 %v2338
      %v2405 = vunpack.c.l.b16 %v2339
      %v2406 = vunpack.c.l.b16 %v2340
      %v2407 = vunpack.c.l.b16 %v2341
      %v2408 = vpack.c.b16 %v2377, %v2376
      %v2409 = vpack.c.b16 %v2379, %v2378
      %v2410 = vpack.c.b16 %v2381, %v2380
      %v2411 = vpack.c.b16 %v2383, %v2382
      %v2412 = vpack.c.b16 %v2385, %v2384
      %v2413 = vpack.c.b16 %v2387, %v2386
      %v2414 = vpack.c.b16 %v2389, %v2388
      %v2415 = vpack.c.b16 %v2391, %v2390
      %v2416 = vpack.c.b16 %v2393, %v2392
      %v2417 = vpack.c.b16 %v2395, %v2394
      %v2418 = vpack.c.b16 %v2397, %v2396
      %v2419 = vpack.c.b16 %v2399, %v2398
      %v2420 = vpack.c.b16 %v2401, %v2400
      %v2421 = vpack.c.b16 %v2403, %v2402
      %v2422 = vpack.c.b16 %v2405, %v2404
      %v2423 = vpack.c.b16 %v2407, %v2406
      %v2425 = vsel %vm481, %v2408, 0
      %v2428 = vsel %vm481, %v2409, 0
      %v2431 = vsel %vm481, %v2410, 0
      %v2434 = vsel %vm481, %v2411, 0
      %v2437 = vsel %vm481, %v2412, 0
      %v2440 = vsel %vm481, %v2413, 0
      %v2443 = vsel %vm481, %v2414, 0
      %v2446 = vsel %vm481, %v2415, 0
      %v2449 = vsel %vm481, %v2416, 0
      %v2452 = vsel %vm481, %v2417, 0
      %v2455 = vsel %vm481, %v2418, 0
      %v2458 = vsel %vm481, %v2419, 0
      %v2461 = vsel %vm481, %v2420, 0
      %v2464 = vsel %vm481, %v2421, 0
      %v2467 = vsel %vm481, %v2422, 0
      %v2470 = vsel %vm481, %v2423, 0
      %v2473 = vsel %vm530, %v2343, 0
      %2475 = vmatprep.subr.bf16.mxu0 0
      %2476 = vmatpush1.bf16.msra.mxu0 0
      %2477 = vmatprep.subr.bf16.mxu0 0
      %2478 = vmatpush1.bf16.msra.mxu0 0
      %2479 = vmatprep.subr.bf16.mxu0 0
      %2480 = vmatpush1.bf16.msra.mxu0 0
      %2481 = vmatprep.subr.bf16.mxu0 0
      %2482 = vmatpush1.bf16.msra.mxu0 0
      %2483 = vmatprep.subr.bf16.mxu0 0
      %2484 = vmatpush1.bf16.msra.mxu0 0
      %2485 = vmatprep.subr.bf16.mxu0 0
      %2486 = vmatpush1.bf16.msra.mxu0 0
      %2487 = vmatprep.subr.bf16.mxu0 0
      %2488 = vmatpush1.bf16.msra.mxu0 0
      %2489 = vmatprep.subr.bf16.mxu0 0
      %2490 = vmatpush1.bf16.msra.mxu0 %v2473
      %2491 = vmatprep.subr.bf16.mxu0 0
      %2492 = vmatpush2.bf16.msra.mxu0 0
      %2493 = vmatprep.subr.bf16.mxu0 0
      %2494 = vmatpush2.bf16.msra.mxu0 0
      %2495 = vmatprep.subr.bf16.mxu0 0
      %2496 = vmatpush2.bf16.msra.mxu0 0
      %2497 = vmatprep.subr.bf16.mxu0 0
      %2498 = vmatpush2.bf16.msra.mxu0 0
      %2499 = vmatprep.subr.bf16.mxu0 0
      %2500 = vmatpush2.bf16.msra.mxu0 0
      %2501 = vmatprep.subr.bf16.mxu0 0
      %2502 = vmatpush2.bf16.msra.mxu0 0
      %2503 = vmatprep.subr.bf16.mxu0 0
      %2504 = vmatpush2.bf16.msra.mxu0 0
      %2505 = vmatprep.subr.bf16.mxu0 0
      %2506 = vmatpush2.bf16.msra.mxu0 0
      %2507 = vmatprep.mubr.bf16.mxu0 0
      %2508 = vmatmul.mubr.bf16.gmra.mxu0 %v2425
      %v2509 = vpop.f32.mrf.mxu0
      %v2510 = vadd.f32 0.0, %v2509
      %v2511 = vpop.f32.mrf.mxu0
      %v2512 = vpop.f32.mrf.mxu0
      %v2513 = vadd.f32 0.0, %v2512
      %v2514 = vpop.f32.mrf.mxu0
      %2515 = vmatprep.mubr.bf16.mxu0 0
      %2516 = vmatmul.mubr.bf16.gmra.mxu0 %v2428
      %v2517 = vpop.f32.mrf.mxu0
      %v2518 = vadd.f32 0.0, %v2517
      %v2519 = vpop.f32.mrf.mxu0
      %v2520 = vpop.f32.mrf.mxu0
      %v2521 = vadd.f32 0.0, %v2520
      %v2522 = vpop.f32.mrf.mxu0
      %2523 = vmatprep.mubr.bf16.mxu0 0
      %2524 = vmatmul.mubr.bf16.gmra.mxu0 %v2431
      %v2525 = vpop.f32.mrf.mxu0
      %v2526 = vadd.f32 0.0, %v2525
      %v2527 = vpop.f32.mrf.mxu0
      %v2528 = vpop.f32.mrf.mxu0
      %v2529 = vadd.f32 0.0, %v2528
      %v2530 = vpop.f32.mrf.mxu0
      %2531 = vmatprep.mubr.bf16.mxu0 0
      %2532 = vmatmul.mubr.bf16.gmra.mxu0 %v2434
      %v2533 = vpop.f32.mrf.mxu0
      %v2534 = vadd.f32 0.0, %v2533
      %v2535 = vpop.f32.mrf.mxu0
      %v2536 = vpop.f32.mrf.mxu0
      %v2537 = vadd.f32 0.0, %v2536
      %v2538 = vpop.f32.mrf.mxu0
      %2539 = vmatprep.mubr.bf16.mxu0 0
      %2540 = vmatmul.mubr.bf16.gmra.mxu0 %v2437
      %v2541 = vpop.f32.mrf.mxu0
      %v2542 = vadd.f32 0.0, %v2541
      %v2543 = vpop.f32.mrf.mxu0
      %v2544 = vpop.f32.mrf.mxu0
      %v2545 = vadd.f32 0.0, %v2544
      %v2546 = vpop.f32.mrf.mxu0
      %2547 = vmatprep.mubr.bf16.mxu0 0
      %2548 = vmatmul.mubr.bf16.gmra.mxu0 %v2440
      %v2549 = vpop.f32.mrf.mxu0
      %v2550 = vadd.f32 0.0, %v2549
      %v2551 = vpop.f32.mrf.mxu0
      %v2552 = vpop.f32.mrf.mxu0
      %v2553 = vadd.f32 0.0, %v2552
      %v2554 = vpop.f32.mrf.mxu0
      %2555 = vmatprep.mubr.bf16.mxu0 0
      %2556 = vmatmul.mubr.bf16.gmra.mxu0 %v2443
      %v2557 = vpop.f32.mrf.mxu0
      %v2558 = vadd.f32 0.0, %v2557
      %v2559 = vpop.f32.mrf.mxu0
      %v2560 = vpop.f32.mrf.mxu0
      %v2561 = vadd.f32 0.0, %v2560
      %v2562 = vpop.f32.mrf.mxu0
      %2563 = vmatprep.mubr.bf16.mxu0 0
      %2564 = vmatmul.mubr.bf16.gmra.mxu0 %v2446
      %v2565 = vpop.f32.mrf.mxu0
      %v2566 = vadd.f32 0.0, %v2565
      %v2567 = vpop.f32.mrf.mxu0
      %v2568 = vpop.f32.mrf.mxu0
      %v2569 = vadd.f32 0.0, %v2568
      %v2570 = vpop.f32.mrf.mxu0
      %2571 = vmatprep.mubr.bf16.mxu0 0
      %2572 = vmatmul.mubr.bf16.gmra.mxu0 %v2449
      %v2573 = vpop.f32.mrf.mxu0
      %v2574 = vadd.f32 0.0, %v2573
      %v2575 = vpop.f32.mrf.mxu0
      %v2576 = vpop.f32.mrf.mxu0
      %v2577 = vadd.f32 0.0, %v2576
      %v2578 = vpop.f32.mrf.mxu0
      %2579 = vmatprep.mubr.bf16.mxu0 0
      %2580 = vmatmul.mubr.bf16.gmra.mxu0 %v2452
      %v2581 = vpop.f32.mrf.mxu0
      %v2582 = vadd.f32 0.0, %v2581
      %v2583 = vpop.f32.mrf.mxu0
      %v2584 = vpop.f32.mrf.mxu0
      %v2585 = vadd.f32 0.0, %v2584
      %v2586 = vpop.f32.mrf.mxu0
      %2587 = vmatprep.mubr.bf16.mxu0 0
      %2588 = vmatmul.mubr.bf16.gmra.mxu0 %v2455
      %v2589 = vpop.f32.mrf.mxu0
      %v2590 = vadd.f32 0.0, %v2589
      %v2591 = vpop.f32.mrf.mxu0
      %v2592 = vpop.f32.mrf.mxu0
      %v2593 = vadd.f32 0.0, %v2592
      %v2594 = vpop.f32.mrf.mxu0
      %2595 = vmatprep.mubr.bf16.mxu0 0
      %2596 = vmatmul.mubr.bf16.gmra.mxu0 %v2458
      %v2597 = vpop.f32.mrf.mxu0
      %v2598 = vadd.f32 0.0, %v2597
      %v2599 = vpop.f32.mrf.mxu0
      %v2600 = vpop.f32.mrf.mxu0
      %v2601 = vadd.f32 0.0, %v2600
      %v2602 = vpop.f32.mrf.mxu0
      %2603 = vmatprep.mubr.bf16.mxu0 0
      %2604 = vmatmul.mubr.bf16.gmra.mxu0 %v2461
      %v2605 = vpop.f32.mrf.mxu0
      %v2606 = vadd.f32 0.0, %v2605
      %v2607 = vpop.f32.mrf.mxu0
      %v2608 = vpop.f32.mrf.mxu0
      %v2609 = vadd.f32 0.0, %v2608
      %v2610 = vpop.f32.mrf.mxu0
      %2611 = vmatprep.mubr.bf16.mxu0 0
      %2612 = vmatmul.mubr.bf16.gmra.mxu0 %v2464
      %v2613 = vpop.f32.mrf.mxu0
      %v2614 = vadd.f32 0.0, %v2613
      %v2615 = vpop.f32.mrf.mxu0
      %v2616 = vpop.f32.mrf.mxu0
      %v2617 = vadd.f32 0.0, %v2616
      %v2618 = vpop.f32.mrf.mxu0
      %2619 = vmatprep.mubr.bf16.mxu0 0
      %2620 = vmatmul.mubr.bf16.gmra.mxu0 %v2467
      %v2621 = vpop.f32.mrf.mxu0
      %v2622 = vadd.f32 0.0, %v2621
      %v2623 = vpop.f32.mrf.mxu0
      %v2624 = vpop.f32.mrf.mxu0
      %v2625 = vadd.f32 0.0, %v2624
      %v2626 = vpop.f32.mrf.mxu0
      %2627 = vmatprep.mubr.bf16.mxu0 0
      %2628 = vmatmul.mubr.bf16.gmra.mxu0 %v2470
      %v2629 = vpop.f32.mrf.mxu0
      %v2630 = vadd.f32 0.0, %v2629
      %v2631 = vpop.f32.mrf.mxu0
      %v2632 = vpop.f32.mrf.mxu0
      %v2633 = vadd.f32 0.0, %v2632
      %v2634 = vpop.f32.mrf.mxu0
      %2635 = vdwg.mxu0
      %v2636 = vadd.f32 %v2278, %v2510
      %v2637 = vadd.f32 %v2279, %v2513
      %v2638 = vadd.f32 %v2280, %v2518
      %v2639 = vadd.f32 %v2281, %v2521
      %v2640 = vadd.f32 %v2282, %v2526
      %v2641 = vadd.f32 %v2283, %v2529
      %v2642 = vadd.f32 %v2284, %v2534
      %v2643 = vadd.f32 %v2285, %v2537
      %v2644 = vadd.f32 %v2286, %v2542
      %v2645 = vadd.f32 %v2287, %v2545
      %v2646 = vadd.f32 %v2288, %v2550
      %v2647 = vadd.f32 %v2289, %v2553
      %v2648 = vadd.f32 %v2290, %v2558
      %v2649 = vadd.f32 %v2291, %v2561
      %v2650 = vadd.f32 %v2292, %v2566
      %v2651 = vadd.f32 %v2293, %v2569
      %v2652 = vadd.f32 %v2294, %v2574
      %v2653 = vadd.f32 %v2295, %v2577
      %v2654 = vadd.f32 %v2296, %v2582
      %v2655 = vadd.f32 %v2297, %v2585
      %v2656 = vadd.f32 %v2298, %v2590
      %v2657 = vadd.f32 %v2299, %v2593
      %v2658 = vadd.f32 %v2300, %v2598
      %v2659 = vadd.f32 %v2301, %v2601
      %v2660 = vadd.f32 %v2302, %v2606
      %v2661 = vadd.f32 %v2303, %v2609
      %v2662 = vadd.f32 %v2304, %v2614
      %v2663 = vadd.f32 %v2305, %v2617
      %v2664 = vadd.f32 %v2306, %v2622
      %v2665 = vadd.f32 %v2307, %v2625
      %v2666 = vadd.f32 %v2308, %v2630
      %v2667 = vadd.f32 %v2309, %v2633
      %v2668 = vld [vmem:[%s219 + $0x18] sm:$0xf]
      %v2669 = vld [vmem:[%s219 + $0x1c] sm:$0xf]
      %v2670 = vld [vmem:[%s219 + $0x20] sm:$0xf]
      %v2671 = vld [vmem:[%s219 + $0x24] sm:$0xf]
      %v2672 = vld [vmem:[%s219 + $0x28] sm:$0xf]
      %v2673 = vld [vmem:[%s219 + $0x2c] sm:$0xf]
      %v2674 = vld [vmem:[%s219 + $0x30] sm:$0xf]
      %v2675 = vld [vmem:[%s219 + $0x34] sm:$0xf]
      %v2676 = vld [vmem:[%s219 + $0x38] sm:$0xf]
      %v2677 = vld [vmem:[%s219 + $0x3c] sm:$0xf]
      %v2678 = vld [vmem:[%s219 + $0x40] sm:$0xf]
      %v2679 = vld [vmem:[%s219 + $0x44] sm:$0xf]
      %v2680 = vld [vmem:[%s219 + $0x48] sm:$0xf]
      %v2681 = vld [vmem:[%s219 + $0x4c] sm:$0xf]
      %v2682 = vld [vmem:[%s219 + $0x50] sm:$0xf]
      %v2683 = vld [vmem:[%s219 + $0x54] sm:$0xf]
      %v2684 = vld [vmem:[%s219 + $0x58] sm:$0xf]
      %v2685 = vld [vmem:[%s219 + $0x5c] sm:$0xf]
      %v2686 = vld [vmem:[%s219 + $0x60] sm:$0xf]
      %v2687 = vld [vmem:[%s219 + $0x64] sm:$0xf]
      %v2688 = vld [vmem:[%s219 + $0x68] sm:$0xf]
      %v2689 = vld [vmem:[%s219 + $0x6c] sm:$0xf]
      %v2690 = vld [vmem:[%s219 + $0x70] sm:$0xf]
      %v2691 = vld [vmem:[%s219 + $0x74] sm:$0xf]
      %v2692 = vld [vmem:[%s219 + $0x78] sm:$0xf]
      %v2693 = vld [vmem:[%s219 + $0x7c] sm:$0xf]
      %v2694 = vld [vmem:[%s219 + $0x80] sm:$0xf]
      %v2695 = vld [vmem:[%s219 + $0x84] sm:$0xf]
      %v2696 = vld [vmem:[%s219 + $0x88] sm:$0xf]
      %v2697 = vld [vmem:[%s219 + $0x8c] sm:$0xf]
      %v2698 = vld [vmem:[%s219 + $0x90] sm:$0xf]
      %v2699 = vld [vmem:[%s219 + $0x94] sm:$0xf]
      %v2700 = vld [vmem:[%s219 + $0x98] sm:$0x1]
      %s2701 = scalar_lea.vmem %s1, 14
      %v2702 = vld [vmem:[%s2701] sm:$0x3]
      %v2736 = vunpack.c.l.b16 %v2668
      %v2737 = vunpack.c.l.b16 %v2669
      %v2738 = vunpack.c.l.b16 %v2670
      %v2739 = vunpack.c.l.b16 %v2671
      %v2740 = vunpack.c.l.b16 %v2672
      %v2741 = vunpack.c.l.b16 %v2673
      %v2742 = vunpack.c.l.b16 %v2674
      %v2743 = vunpack.c.l.b16 %v2675
      %v2744 = vunpack.c.l.b16 %v2676
      %v2745 = vunpack.c.l.b16 %v2677
      %v2746 = vunpack.c.l.b16 %v2678
      %v2747 = vunpack.c.l.b16 %v2679
      %v2748 = vunpack.c.l.b16 %v2680
      %v2749 = vunpack.c.l.b16 %v2681
      %v2750 = vunpack.c.l.b16 %v2682
      %v2751 = vunpack.c.l.b16 %v2683
      %v2752 = vunpack.c.l.b16 %v2684
      %v2753 = vunpack.c.l.b16 %v2685
      %v2754 = vunpack.c.l.b16 %v2686
      %v2755 = vunpack.c.l.b16 %v2687
      %v2756 = vunpack.c.l.b16 %v2688
      %v2757 = vunpack.c.l.b16 %v2689
      %v2758 = vunpack.c.l.b16 %v2690
      %v2759 = vunpack.c.l.b16 %v2691
      %v2760 = vunpack.c.l.b16 %v2692
      %v2761 = vunpack.c.l.b16 %v2693
      %v2762 = vunpack.c.l.b16 %v2694
      %v2763 = vunpack.c.l.b16 %v2695
      %v2764 = vunpack.c.l.b16 %v2696
      %v2765 = vunpack.c.l.b16 %v2697
      %v2766 = vunpack.c.l.b16 %v2698
      %v2767 = vunpack.c.l.b16 %v2699
      %v2768 = vunpack.c.l.b16 %v2700
      %v2769 = vpack.c.b16 %v2737, %v2736
      %v2770 = vpack.c.b16 %v2739, %v2738
      %v2771 = vpack.c.b16 %v2741, %v2740
      %v2772 = vpack.c.b16 %v2743, %v2742
      %v2773 = vpack.c.b16 %v2745, %v2744
      %v2774 = vpack.c.b16 %v2747, %v2746
      %v2775 = vpack.c.b16 %v2749, %v2748
      %v2776 = vpack.c.b16 %v2751, %v2750
      %v2777 = vpack.c.b16 %v2753, %v2752
      %v2778 = vpack.c.b16 %v2755, %v2754
      %v2779 = vpack.c.b16 %v2757, %v2756
      %v2780 = vpack.c.b16 %v2759, %v2758
      %v2781 = vpack.c.b16 %v2761, %v2760
      %v2782 = vpack.c.b16 %v2763, %v2762
      %v2783 = vpack.c.b16 %v2765, %v2764
      %v2784 = vpack.c.b16 %v2767, %v2766
      %v2785 = vpack.c.b16 %v2768, %v2768
      %v2787 = vshrl.u32 %v2769, 16
      %v2789 = vshll.u32 %v2769, 16
      %v2791 = vrot.slane %v2789, 1
      %v2792 = vor.u32 %v2787, %v2791
      %v2794 = vshll.u32 %v2770, 16
      %v2796 = vrot.slane %v2794, 1
      %v2797 = vsel %vm348, %v2792, %v2796
      %v2798 = vshrl.u32 %v2770, 16
      %v2800 = vor.u32 %v2798, %v2796
      %v2802 = vshll.u32 %v2771, 16
      %v2804 = vrot.slane %v2802, 1
      %v2805 = vsel %vm348, %v2800, %v2804
      %v2806 = vshrl.u32 %v2771, 16
      %v2808 = vor.u32 %v2806, %v2804
      %v2810 = vshll.u32 %v2772, 16
      %v2812 = vrot.slane %v2810, 1
      %v2813 = vsel %vm348, %v2808, %v2812
      %v2814 = vshrl.u32 %v2772, 16
      %v2816 = vor.u32 %v2814, %v2812
      %v2818 = vshll.u32 %v2773, 16
      %v2820 = vrot.slane %v2818, 1
      %v2821 = vsel %vm348, %v2816, %v2820
      %v2822 = vshrl.u32 %v2773, 16
      %v2824 = vor.u32 %v2822, %v2820
      %v2826 = vshll.u32 %v2774, 16
      %v2828 = vrot.slane %v2826, 1
      %v2829 = vsel %vm348, %v2824, %v2828
      %v2830 = vshrl.u32 %v2774, 16
      %v2832 = vor.u32 %v2830, %v2828
      %v2834 = vshll.u32 %v2775, 16
      %v2836 = vrot.slane %v2834, 1
      %v2837 = vsel %vm348, %v2832, %v2836
      %v2838 = vshrl.u32 %v2775, 16
      %v2840 = vor.u32 %v2838, %v2836
      %v2842 = vshll.u32 %v2776, 16
      %v2844 = vrot.slane %v2842, 1
      %v2845 = vsel %vm348, %v2840, %v2844
      %v2846 = vshrl.u32 %v2776, 16
      %v2848 = vor.u32 %v2846, %v2844
      %v2850 = vshll.u32 %v2777, 16
      %v2852 = vrot.slane %v2850, 1
      %v2853 = vsel %vm348, %v2848, %v2852
      %v2854 = vshrl.u32 %v2777, 16
      %v2856 = vor.u32 %v2854, %v2852
      %v2858 = vshll.u32 %v2778, 16
      %v2860 = vrot.slane %v2858, 1
      %v2861 = vsel %vm348, %v2856, %v2860
      %v2862 = vshrl.u32 %v2778, 16
      %v2864 = vor.u32 %v2862, %v2860
      %v2866 = vshll.u32 %v2779, 16
      %v2868 = vrot.slane %v2866, 1
      %v2869 = vsel %vm348, %v2864, %v2868
      %v2870 = vshrl.u32 %v2779, 16
      %v2872 = vor.u32 %v2870, %v2868
      %v2874 = vshll.u32 %v2780, 16
      %v2876 = vrot.slane %v2874, 1
      %v2877 = vsel %vm348, %v2872, %v2876
      %v2878 = vshrl.u32 %v2780, 16
      %v2880 = vor.u32 %v2878, %v2876
      %v2882 = vshll.u32 %v2781, 16
      %v2884 = vrot.slane %v2882, 1
      %v2885 = vsel %vm348, %v2880, %v2884
      %v2886 = vshrl.u32 %v2781, 16
      %v2888 = vor.u32 %v2886, %v2884
      %v2890 = vshll.u32 %v2782, 16
      %v2892 = vrot.slane %v2890, 1
      %v2893 = vsel %vm348, %v2888, %v2892
      %v2894 = vshrl.u32 %v2782, 16
      %v2896 = vor.u32 %v2894, %v2892
      %v2898 = vshll.u32 %v2783, 16
      %v2900 = vrot.slane %v2898, 1
      %v2901 = vsel %vm348, %v2896, %v2900
      %v2902 = vshrl.u32 %v2783, 16
      %v2904 = vor.u32 %v2902, %v2900
      %v2906 = vshll.u32 %v2784, 16
      %v2908 = vrot.slane %v2906, 1
      %v2909 = vsel %vm348, %v2904, %v2908
      %v2910 = vshrl.u32 %v2784, 16
      %v2912 = vor.u32 %v2910, %v2908
      %v2914 = vshll.u32 %v2785, 16
      %v2916 = vrot.slane %v2914, 1
      %v2917 = vsel %vm348, %v2912, %v2916
      %v2919 = vsel %vm481, %v2797, 0
      %v2922 = vsel %vm481, %v2805, 0
      %v2925 = vsel %vm481, %v2813, 0
      %v2928 = vsel %vm481, %v2821, 0
      %v2931 = vsel %vm481, %v2829, 0
      %v2934 = vsel %vm481, %v2837, 0
      %v2937 = vsel %vm481, %v2845, 0
      %v2940 = vsel %vm481, %v2853, 0
      %v2943 = vsel %vm481, %v2861, 0
      %v2946 = vsel %vm481, %v2869, 0
      %v2949 = vsel %vm481, %v2877, 0
      %v2952 = vsel %vm481, %v2885, 0
      %v2955 = vsel %vm481, %v2893, 0
      %v2958 = vsel %vm481, %v2901, 0
      %v2961 = vsel %vm481, %v2909, 0
      %v2964 = vsel %vm481, %v2917, 0
      %v2967 = vsel %vm530, %v2702, 0
      %2969 = vmatprep.subr.bf16.mxu0 0
      %2970 = vmatpush1.bf16.msra.mxu0 0
      %2971 = vmatprep.subr.bf16.mxu0 0
      %2972 = vmatpush1.bf16.msra.mxu0 0
      %2973 = vmatprep.subr.bf16.mxu0 0
      %2974 = vmatpush1.bf16.msra.mxu0 0
      %2975 = vmatprep.subr.bf16.mxu0 0
      %2976 = vmatpush1.bf16.msra.mxu0 0
      %2977 = vmatprep.subr.bf16.mxu0 0
      %2978 = vmatpush1.bf16.msra.mxu0 0
      %2979 = vmatprep.subr.bf16.mxu0 0
      %2980 = vmatpush1.bf16.msra.mxu0 0
      %2981 = vmatprep.subr.bf16.mxu0 0
      %2982 = vmatpush1.bf16.msra.mxu0 0
      %2983 = vmatprep.subr.bf16.mxu0 0
      %2984 = vmatpush1.bf16.msra.mxu0 %v2967
      %2985 = vmatprep.subr.bf16.mxu0 0
      %2986 = vmatpush2.bf16.msra.mxu0 0
      %2987 = vmatprep.subr.bf16.mxu0 0
      %2988 = vmatpush2.bf16.msra.mxu0 0
      %2989 = vmatprep.subr.bf16.mxu0 0
      %2990 = vmatpush2.bf16.msra.mxu0 0
      %2991 = vmatprep.subr.bf16.mxu0 0
      %2992 = vmatpush2.bf16.msra.mxu0 0
      %2993 = vmatprep.subr.bf16.mxu0 0
      %2994 = vmatpush2.bf16.msra.mxu0 0
      %2995 = vmatprep.subr.bf16.mxu0 0
      %2996 = vmatpush2.bf16.msra.mxu0 0
      %2997 = vmatprep.subr.bf16.mxu0 0
      %2998 = vmatpush2.bf16.msra.mxu0 0
      %2999 = vmatprep.subr.bf16.mxu0 0
      %3000 = vmatpush2.bf16.msra.mxu0 0
      %3001 = vmatprep.mubr.bf16.mxu0 0
      %3002 = vmatmul.mubr.bf16.gmra.mxu0 %v2919
      %v3003 = vpop.f32.mrf.mxu0
      %v3004 = vadd.f32 0.0, %v3003
      %v3005 = vpop.f32.mrf.mxu0
      %v3006 = vpop.f32.mrf.mxu0
      %v3007 = vadd.f32 0.0, %v3006
      %v3008 = vpop.f32.mrf.mxu0
      %3009 = vmatprep.mubr.bf16.mxu0 0
      %3010 = vmatmul.mubr.bf16.gmra.mxu0 %v2922
      %v3011 = vpop.f32.mrf.mxu0
      %v3012 = vadd.f32 0.0, %v3011
      %v3013 = vpop.f32.mrf.mxu0
      %v3014 = vpop.f32.mrf.mxu0
      %v3015 = vadd.f32 0.0, %v3014
      %v3016 = vpop.f32.mrf.mxu0
      %3017 = vmatprep.mubr.bf16.mxu0 0
      %3018 = vmatmul.mubr.bf16.gmra.mxu0 %v2925
      %v3019 = vpop.f32.mrf.mxu0
      %v3020 = vadd.f32 0.0, %v3019
      %v3021 = vpop.f32.mrf.mxu0
      %v3022 = vpop.f32.mrf.mxu0
      %v3023 = vadd.f32 0.0, %v3022
      %v3024 = vpop.f32.mrf.mxu0
      %3025 = vmatprep.mubr.bf16.mxu0 0
      %3026 = vmatmul.mubr.bf16.gmra.mxu0 %v2928
      %v3027 = vpop.f32.mrf.mxu0
      %v3028 = vadd.f32 0.0, %v3027
      %v3029 = vpop.f32.mrf.mxu0
      %v3030 = vpop.f32.mrf.mxu0
      %v3031 = vadd.f32 0.0, %v3030
      %v3032 = vpop.f32.mrf.mxu0
      %3033 = vmatprep.mubr.bf16.mxu0 0
      %3034 = vmatmul.mubr.bf16.gmra.mxu0 %v2931
      %v3035 = vpop.f32.mrf.mxu0
      %v3036 = vadd.f32 0.0, %v3035
      %v3037 = vpop.f32.mrf.mxu0
      %v3038 = vpop.f32.mrf.mxu0
      %v3039 = vadd.f32 0.0, %v3038
      %v3040 = vpop.f32.mrf.mxu0
      %3041 = vmatprep.mubr.bf16.mxu0 0
      %3042 = vmatmul.mubr.bf16.gmra.mxu0 %v2934
      %v3043 = vpop.f32.mrf.mxu0
      %v3044 = vadd.f32 0.0, %v3043
      %v3045 = vpop.f32.mrf.mxu0
      %v3046 = vpop.f32.mrf.mxu0
      %v3047 = vadd.f32 0.0, %v3046
      %v3048 = vpop.f32.mrf.mxu0
      %3049 = vmatprep.mubr.bf16.mxu0 0
      %3050 = vmatmul.mubr.bf16.gmra.mxu0 %v2937
      %v3051 = vpop.f32.mrf.mxu0
      %v3052 = vadd.f32 0.0, %v3051
      %v3053 = vpop.f32.mrf.mxu0
      %v3054 = vpop.f32.mrf.mxu0
      %v3055 = vadd.f32 0.0, %v3054
      %v3056 = vpop.f32.mrf.mxu0
      %3057 = vmatprep.mubr.bf16.mxu0 0
      %3058 = vmatmul.mubr.bf16.gmra.mxu0 %v2940
      %v3059 = vpop.f32.mrf.mxu0
      %v3060 = vadd.f32 0.0, %v3059
      %v3061 = vpop.f32.mrf.mxu0
      %v3062 = vpop.f32.mrf.mxu0
      %v3063 = vadd.f32 0.0, %v3062
      %v3064 = vpop.f32.mrf.mxu0
      %3065 = vmatprep.mubr.bf16.mxu0 0
      %3066 = vmatmul.mubr.bf16.gmra.mxu0 %v2943
      %v3067 = vpop.f32.mrf.mxu0
      %v3068 = vadd.f32 0.0, %v3067
      %v3069 = vpop.f32.mrf.mxu0
      %v3070 = vpop.f32.mrf.mxu0
      %v3071 = vadd.f32 0.0, %v3070
      %v3072 = vpop.f32.mrf.mxu0
      %3073 = vmatprep.mubr.bf16.mxu0 0
      %3074 = vmatmul.mubr.bf16.gmra.mxu0 %v2946
      %v3075 = vpop.f32.mrf.mxu0
      %v3076 = vadd.f32 0.0, %v3075
      %v3077 = vpop.f32.mrf.mxu0
      %v3078 = vpop.f32.mrf.mxu0
      %v3079 = vadd.f32 0.0, %v3078
      %v3080 = vpop.f32.mrf.mxu0
      %3081 = vmatprep.mubr.bf16.mxu0 0
      %3082 = vmatmul.mubr.bf16.gmra.mxu0 %v2949
      %v3083 = vpop.f32.mrf.mxu0
      %v3084 = vadd.f32 0.0, %v3083
      %v3085 = vpop.f32.mrf.mxu0
      %v3086 = vpop.f32.mrf.mxu0
      %v3087 = vadd.f32 0.0, %v3086
      %v3088 = vpop.f32.mrf.mxu0
      %3089 = vmatprep.mubr.bf16.mxu0 0
      %3090 = vmatmul.mubr.bf16.gmra.mxu0 %v2952
      %v3091 = vpop.f32.mrf.mxu0
      %v3092 = vadd.f32 0.0, %v3091
      %v3093 = vpop.f32.mrf.mxu0
      %v3094 = vpop.f32.mrf.mxu0
      %v3095 = vadd.f32 0.0, %v3094
      %v3096 = vpop.f32.mrf.mxu0
      %3097 = vmatprep.mubr.bf16.mxu0 0
      %3098 = vmatmul.mubr.bf16.gmra.mxu0 %v2955
      %v3099 = vpop.f32.mrf.mxu0
      %v3100 = vadd.f32 0.0, %v3099
      %v3101 = vpop.f32.mrf.mxu0
      %v3102 = vpop.f32.mrf.mxu0
      %v3103 = vadd.f32 0.0, %v3102
      %v3104 = vpop.f32.mrf.mxu0
      %3105 = vmatprep.mubr.bf16.mxu0 0
      %3106 = vmatmul.mubr.bf16.gmra.mxu0 %v2958
      %v3107 = vpop.f32.mrf.mxu0
      %v3108 = vadd.f32 0.0, %v3107
      %v3109 = vpop.f32.mrf.mxu0
      %v3110 = vpop.f32.mrf.mxu0
      %v3111 = vadd.f32 0.0, %v3110
      %v3112 = vpop.f32.mrf.mxu0
      %3113 = vmatprep.mubr.bf16.mxu0 0
      %3114 = vmatmul.mubr.bf16.gmra.mxu0 %v2961
      %v3115 = vpop.f32.mrf.mxu0
      %v3116 = vadd.f32 0.0, %v3115
      %v3117 = vpop.f32.mrf.mxu0
      %v3118 = vpop.f32.mrf.mxu0
      %v3119 = vadd.f32 0.0, %v3118
      %v3120 = vpop.f32.mrf.mxu0
      %3121 = vmatprep.mubr.bf16.mxu0 0
      %3122 = vmatmul.mubr.bf16.gmra.mxu0 %v2964
      %v3123 = vpop.f32.mrf.mxu0
      %v3124 = vadd.f32 0.0, %v3123
      %v3125 = vpop.f32.mrf.mxu0
      %v3126 = vpop.f32.mrf.mxu0
      %v3127 = vadd.f32 0.0, %v3126
      %v3128 = vpop.f32.mrf.mxu0
      %3129 = vdwg.mxu0
      %v3130 = vadd.f32 %v2636, %v3004
      %v3131 = vadd.f32 %v2637, %v3007
      %v3132 = vadd.f32 %v2638, %v3012
      %v3133 = vadd.f32 %v2639, %v3015
      %v3134 = vadd.f32 %v2640, %v3020
      %v3135 = vadd.f32 %v2641, %v3023
      %v3136 = vadd.f32 %v2642, %v3028
      %v3137 = vadd.f32 %v2643, %v3031
      %v3138 = vadd.f32 %v2644, %v3036
      %v3139 = vadd.f32 %v2645, %v3039
      %v3140 = vadd.f32 %v2646, %v3044
      %v3141 = vadd.f32 %v2647, %v3047
      %v3142 = vadd.f32 %v2648, %v3052
      %v3143 = vadd.f32 %v2649, %v3055
      %v3144 = vadd.f32 %v2650, %v3060
      %v3145 = vadd.f32 %v2651, %v3063
      %v3146 = vadd.f32 %v2652, %v3068
      %v3147 = vadd.f32 %v2653, %v3071
      %v3148 = vadd.f32 %v2654, %v3076
      %v3149 = vadd.f32 %v2655, %v3079
      %v3150 = vadd.f32 %v2656, %v3084
      %v3151 = vadd.f32 %v2657, %v3087
      %v3152 = vadd.f32 %v2658, %v3092
      %v3153 = vadd.f32 %v2659, %v3095
      %v3154 = vadd.f32 %v2660, %v3100
      %v3155 = vadd.f32 %v2661, %v3103
      %v3156 = vadd.f32 %v2662, %v3108
      %v3157 = vadd.f32 %v2663, %v3111
      %v3158 = vadd.f32 %v2664, %v3116
      %v3159 = vadd.f32 %v2665, %v3119
      %v3160 = vadd.f32 %v2666, %v3124
      %v3161 = vadd.f32 %v2667, %v3127
      %v3162 = vld [vmem:[%s219 + $0x18] sm:$0xe]
      %s3163 = scalar_lea.vmem %s1, 16
      %v3164 = vld [vmem:[%s3163] sm:$0x3]
      %v3166 = vunpack.c.l.b16 %v3162
      %v3167 = vpack.c.b16 %v2737, %v3166
      %v3168 = vrot.slane %v3167, 1
      %v3169 = vrot.slane %v2770, 1
      %v3170 = vsel %vm897, %v3168, %v3169
      %v3171 = vrot.slane %v2771, 1
      %v3172 = vsel %vm897, %v3169, %v3171
      %v3173 = vrot.slane %v2772, 1
      %v3174 = vsel %vm897, %v3171, %v3173
      %v3175 = vrot.slane %v2773, 1
      %v3176 = vsel %vm897, %v3173, %v3175
      %v3177 = vrot.slane %v2774, 1
      %v3178 = vsel %vm897, %v3175, %v3177
      %v3179 = vrot.slane %v2775, 1
      %v3180 = vsel %vm897, %v3177, %v3179
      %v3181 = vrot.slane %v2776, 1
      %v3182 = vsel %vm897, %v3179, %v3181
      %v3183 = vrot.slane %v2777, 1
      %v3184 = vsel %vm897, %v3181, %v3183
      %v3185 = vrot.slane %v2778, 1
      %v3186 = vsel %vm897, %v3183, %v3185
      %v3187 = vrot.slane %v2779, 1
      %v3188 = vsel %vm897, %v3185, %v3187
      %v3189 = vrot.slane %v2780, 1
      %v3190 = vsel %vm897, %v3187, %v3189
      %v3191 = vrot.slane %v2781, 1
      %v3192 = vsel %vm897, %v3189, %v3191
      %v3193 = vrot.slane %v2782, 1
      %v3194 = vsel %vm897, %v3191, %v3193
      %v3195 = vrot.slane %v2783, 1
      %v3196 = vsel %vm897, %v3193, %v3195
      %v3197 = vrot.slane %v2784, 1
      %v3198 = vsel %vm897, %v3195, %v3197
      %v3199 = vrot.slane %v2785, 1
      %v3200 = vsel %vm897, %v3197, %v3199
      %v3202 = vsel %vm481, %v3170, 0
      %v3205 = vsel %vm481, %v3172, 0
      %v3208 = vsel %vm481, %v3174, 0
      %v3211 = vsel %vm481, %v3176, 0
      %v3214 = vsel %vm481, %v3178, 0
      %v3217 = vsel %vm481, %v3180, 0
      %v3220 = vsel %vm481, %v3182, 0
      %v3223 = vsel %vm481, %v3184, 0
      %v3226 = vsel %vm481, %v3186, 0
      %v3229 = vsel %vm481, %v3188, 0
      %v3232 = vsel %vm481, %v3190, 0
      %v3235 = vsel %vm481, %v3192, 0
      %v3238 = vsel %vm481, %v3194, 0
      %v3241 = vsel %vm481, %v3196, 0
      %v3244 = vsel %vm481, %v3198, 0
      %v3247 = vsel %vm481, %v3200, 0
      %v3250 = vsel %vm530, %v3164, 0
      %3252 = vmatprep.subr.bf16.mxu0 0
      %3253 = vmatpush1.bf16.msra.mxu0 0
      %3254 = vmatprep.subr.bf16.mxu0 0
      %3255 = vmatpush1.bf16.msra.mxu0 0
      %3256 = vmatprep.subr.bf16.mxu0 0
      %3257 = vmatpush1.bf16.msra.mxu0 0
      %3258 = vmatprep.subr.bf16.mxu0 0
      %3259 = vmatpush1.bf16.msra.mxu0 0
      %3260 = vmatprep.subr.bf16.mxu0 0
      %3261 = vmatpush1.bf16.msra.mxu0 0
      %3262 = vmatprep.subr.bf16.mxu0 0
      %3263 = vmatpush1.bf16.msra.mxu0 0
      %3264 = vmatprep.subr.bf16.mxu0 0
      %3265 = vmatpush1.bf16.msra.mxu0 0
      %3266 = vmatprep.subr.bf16.mxu0 0
      %3267 = vmatpush1.bf16.msra.mxu0 %v3250
      %3268 = vmatprep.subr.bf16.mxu0 0
      %3269 = vmatpush2.bf16.msra.mxu0 0
      %3270 = vmatprep.subr.bf16.mxu0 0
      %3271 = vmatpush2.bf16.msra.mxu0 0
      %3272 = vmatprep.subr.bf16.mxu0 0
      %3273 = vmatpush2.bf16.msra.mxu0 0
      %3274 = vmatprep.subr.bf16.mxu0 0
      %3275 = vmatpush2.bf16.msra.mxu0 0
      %3276 = vmatprep.subr.bf16.mxu0 0
      %3277 = vmatpush2.bf16.msra.mxu0 0
      %3278 = vmatprep.subr.bf16.mxu0 0
      %3279 = vmatpush2.bf16.msra.mxu0 0
      %3280 = vmatprep.subr.bf16.mxu0 0
      %3281 = vmatpush2.bf16.msra.mxu0 0
      %3282 = vmatprep.subr.bf16.mxu0 0
      %3283 = vmatpush2.bf16.msra.mxu0 0
      %3284 = vmatprep.mubr.bf16.mxu0 0
      %3285 = vmatmul.mubr.bf16.gmra.mxu0 %v3202
      %v3286 = vpop.f32.mrf.mxu0
      %v3287 = vadd.f32 0.0, %v3286
      %v3288 = vpop.f32.mrf.mxu0
      %v3289 = vpop.f32.mrf.mxu0
      %v3290 = vadd.f32 0.0, %v3289
      %v3291 = vpop.f32.mrf.mxu0
      %3292 = vmatprep.mubr.bf16.mxu0 0
      %3293 = vmatmul.mubr.bf16.gmra.mxu0 %v3205
      %v3294 = vpop.f32.mrf.mxu0
      %v3295 = vadd.f32 0.0, %v3294
      %v3296 = vpop.f32.mrf.mxu0
      %v3297 = vpop.f32.mrf.mxu0
      %v3298 = vadd.f32 0.0, %v3297
      %v3299 = vpop.f32.mrf.mxu0
      %3300 = vmatprep.mubr.bf16.mxu0 0
      %3301 = vmatmul.mubr.bf16.gmra.mxu0 %v3208
      %v3302 = vpop.f32.mrf.mxu0
      %v3303 = vadd.f32 0.0, %v3302
      %v3304 = vpop.f32.mrf.mxu0
      %v3305 = vpop.f32.mrf.mxu0
      %v3306 = vadd.f32 0.0, %v3305
      %v3307 = vpop.f32.mrf.mxu0
      %3308 = vmatprep.mubr.bf16.mxu0 0
      %3309 = vmatmul.mubr.bf16.gmra.mxu0 %v3211
      %v3310 = vpop.f32.mrf.mxu0
      %v3311 = vadd.f32 0.0, %v3310
      %v3312 = vpop.f32.mrf.mxu0
      %v3313 = vpop.f32.mrf.mxu0
      %v3314 = vadd.f32 0.0, %v3313
      %v3315 = vpop.f32.mrf.mxu0
      %3316 = vmatprep.mubr.bf16.mxu0 0
      %3317 = vmatmul.mubr.bf16.gmra.mxu0 %v3214
      %v3318 = vpop.f32.mrf.mxu0
      %v3319 = vadd.f32 0.0, %v3318
      %v3320 = vpop.f32.mrf.mxu0
      %v3321 = vpop.f32.mrf.mxu0
      %v3322 = vadd.f32 0.0, %v3321
      %v3323 = vpop.f32.mrf.mxu0
      %3324 = vmatprep.mubr.bf16.mxu0 0
      %3325 = vmatmul.mubr.bf16.gmra.mxu0 %v3217
      %v3326 = vpop.f32.mrf.mxu0
      %v3327 = vadd.f32 0.0, %v3326
      %v3328 = vpop.f32.mrf.mxu0
      %v3329 = vpop.f32.mrf.mxu0
      %v3330 = vadd.f32 0.0, %v3329
      %v3331 = vpop.f32.mrf.mxu0
      %3332 = vmatprep.mubr.bf16.mxu0 0
      %3333 = vmatmul.mubr.bf16.gmra.mxu0 %v3220
      %v3334 = vpop.f32.mrf.mxu0
      %v3335 = vadd.f32 0.0, %v3334
      %v3336 = vpop.f32.mrf.mxu0
      %v3337 = vpop.f32.mrf.mxu0
      %v3338 = vadd.f32 0.0, %v3337
      %v3339 = vpop.f32.mrf.mxu0
      %3340 = vmatprep.mubr.bf16.mxu0 0
      %3341 = vmatmul.mubr.bf16.gmra.mxu0 %v3223
      %v3342 = vpop.f32.mrf.mxu0
      %v3343 = vadd.f32 0.0, %v3342
      %v3344 = vpop.f32.mrf.mxu0
      %v3345 = vpop.f32.mrf.mxu0
      %v3346 = vadd.f32 0.0, %v3345
      %v3347 = vpop.f32.mrf.mxu0
      %3348 = vmatprep.mubr.bf16.mxu0 0
      %3349 = vmatmul.mubr.bf16.gmra.mxu0 %v3226
      %v3350 = vpop.f32.mrf.mxu0
      %v3351 = vadd.f32 0.0, %v3350
      %v3352 = vpop.f32.mrf.mxu0
      %v3353 = vpop.f32.mrf.mxu0
      %v3354 = vadd.f32 0.0, %v3353
      %v3355 = vpop.f32.mrf.mxu0
      %3356 = vmatprep.mubr.bf16.mxu0 0
      %3357 = vmatmul.mubr.bf16.gmra.mxu0 %v3229
      %v3358 = vpop.f32.mrf.mxu0
      %v3359 = vadd.f32 0.0, %v3358
      %v3360 = vpop.f32.mrf.mxu0
      %v3361 = vpop.f32.mrf.mxu0
      %v3362 = vadd.f32 0.0, %v3361
      %v3363 = vpop.f32.mrf.mxu0
      %3364 = vmatprep.mubr.bf16.mxu0 0
      %3365 = vmatmul.mubr.bf16.gmra.mxu0 %v3232
      %v3366 = vpop.f32.mrf.mxu0
      %v3367 = vadd.f32 0.0, %v3366
      %v3368 = vpop.f32.mrf.mxu0
      %v3369 = vpop.f32.mrf.mxu0
      %v3370 = vadd.f32 0.0, %v3369
      %v3371 = vpop.f32.mrf.mxu0
      %3372 = vmatprep.mubr.bf16.mxu0 0
      %3373 = vmatmul.mubr.bf16.gmra.mxu0 %v3235
      %v3374 = vpop.f32.mrf.mxu0
      %v3375 = vadd.f32 0.0, %v3374
      %v3376 = vpop.f32.mrf.mxu0
      %v3377 = vpop.f32.mrf.mxu0
      %v3378 = vadd.f32 0.0, %v3377
      %v3379 = vpop.f32.mrf.mxu0
      %3380 = vmatprep.mubr.bf16.mxu0 0
      %3381 = vmatmul.mubr.bf16.gmra.mxu0 %v3238
      %v3382 = vpop.f32.mrf.mxu0
      %v3383 = vadd.f32 0.0, %v3382
      %v3384 = vpop.f32.mrf.mxu0
      %v3385 = vpop.f32.mrf.mxu0
      %v3386 = vadd.f32 0.0, %v3385
      %v3387 = vpop.f32.mrf.mxu0
      %3388 = vmatprep.mubr.bf16.mxu0 0
      %3389 = vmatmul.mubr.bf16.gmra.mxu0 %v3241
      %v3390 = vpop.f32.mrf.mxu0
      %v3391 = vadd.f32 0.0, %v3390
      %v3392 = vpop.f32.mrf.mxu0
      %v3393 = vpop.f32.mrf.mxu0
      %v3394 = vadd.f32 0.0, %v3393
      %v3395 = vpop.f32.mrf.mxu0
      %3396 = vmatprep.mubr.bf16.mxu0 0
      %3397 = vmatmul.mubr.bf16.gmra.mxu0 %v3244
      %v3398 = vpop.f32.mrf.mxu0
      %v3399 = vadd.f32 0.0, %v3398
      %v3400 = vpop.f32.mrf.mxu0
      %v3401 = vpop.f32.mrf.mxu0
      %v3402 = vadd.f32 0.0, %v3401
      %v3403 = vpop.f32.mrf.mxu0
      %3404 = vmatprep.mubr.bf16.mxu0 0
      %3405 = vmatmul.mubr.bf16.gmra.mxu0 %v3247
      %v3406 = vpop.f32.mrf.mxu0
      %v3407 = vadd.f32 0.0, %v3406
      %v3408 = vpop.f32.mrf.mxu0
      %v3409 = vpop.f32.mrf.mxu0
      %v3410 = vadd.f32 0.0, %v3409
      %v3411 = vpop.f32.mrf.mxu0
      %3412 = vdwg.mxu0
      %v3413 = vadd.f32 %v3130, %v3287
      %v3414 = vadd.f32 %v3131, %v3290
      %v3415 = vadd.f32 %v3132, %v3295
      %v3416 = vadd.f32 %v3133, %v3298
      %v3417 = vadd.f32 %v3134, %v3303
      %v3418 = vadd.f32 %v3135, %v3306
      %v3419 = vadd.f32 %v3136, %v3311
      %v3420 = vadd.f32 %v3137, %v3314
      %v3421 = vadd.f32 %v3138, %v3319
      %v3422 = vadd.f32 %v3139, %v3322
      %v3423 = vadd.f32 %v3140, %v3327
      %v3424 = vadd.f32 %v3141, %v3330
      %v3425 = vadd.f32 %v3142, %v3335
      %v3426 = vadd.f32 %v3143, %v3338
      %v3427 = vadd.f32 %v3144, %v3343
      %v3428 = vadd.f32 %v3145, %v3346
      %v3429 = vadd.f32 %v3146, %v3351
      %v3430 = vadd.f32 %v3147, %v3354
      %v3431 = vadd.f32 %v3148, %v3359
      %v3432 = vadd.f32 %v3149, %v3362
      %v3433 = vadd.f32 %v3150, %v3367
      %v3434 = vadd.f32 %v3151, %v3370
      %v3435 = vadd.f32 %v3152, %v3375
      %v3436 = vadd.f32 %v3153, %v3378
      %v3437 = vadd.f32 %v3154, %v3383
      %v3438 = vadd.f32 %v3155, %v3386
      %v3439 = vadd.f32 %v3156, %v3391
      %v3440 = vadd.f32 %v3157, %v3394
      %v3441 = vadd.f32 %v3158, %v3399
      %v3442 = vadd.f32 %v3159, %v3402
      %v3443 = vadd.f32 %v3160, %v3407
      %v3444 = vadd.f32 %v3161, %v3410
      %v3446 = vlaneseq
      %v3447 = vshrl.u32 %v3446, 7
      %v3448 = vsub.s32 0, %v3447
      %v3449 = vrot.slane %v226, %v3448
      %v3451 = vadd.f32 %v3413, %v3449
      %v3452 = vadd.f32 %v3414, %v3449
      %v3453 = vadd.f32 %v3415, %v3449
      %v3454 = vadd.f32 %v3416, %v3449
      %v3455 = vadd.f32 %v3417, %v3449
      %v3456 = vadd.f32 %v3418, %v3449
      %v3457 = vadd.f32 %v3419, %v3449
      %v3458 = vadd.f32 %v3420, %v3449
      %v3459 = vadd.f32 %v3421, %v3449
      %v3460 = vadd.f32 %v3422, %v3449
      %v3461 = vadd.f32 %v3423, %v3449
      %v3462 = vadd.f32 %v3424, %v3449
      %v3463 = vadd.f32 %v3425, %v3449
      %v3464 = vadd.f32 %v3426, %v3449
      %v3465 = vadd.f32 %v3427, %v3449
      %v3466 = vadd.f32 %v3428, %v3449
      %v3467 = vadd.f32 %v3429, %v3449
      %v3468 = vadd.f32 %v3430, %v3449
      %v3469 = vadd.f32 %v3431, %v3449
      %v3470 = vadd.f32 %v3432, %v3449
      %v3471 = vadd.f32 %v3433, %v3449
      %v3472 = vadd.f32 %v3434, %v3449
      %v3473 = vadd.f32 %v3435, %v3449
      %v3474 = vadd.f32 %v3436, %v3449
      %v3475 = vadd.f32 %v3437, %v3449
      %v3476 = vadd.f32 %v3438, %v3449
      %v3477 = vadd.f32 %v3439, %v3449
      %v3478 = vadd.f32 %v3440, %v3449
      %v3479 = vadd.f32 %v3441, %v3449
      %v3480 = vadd.f32 %v3442, %v3449
      %v3481 = vadd.f32 %v3443, %v3449
      %v3482 = vadd.f32 %v3444, %v3449
      %vm3483 = vcmp.ge.f32.partialorder %v3451, 0.0
      %vm3484 = vcmp.ge.f32.partialorder %v3452, 0.0
      %vm3485 = vcmp.ge.f32.partialorder %v3453, 0.0
      %vm3486 = vcmp.ge.f32.partialorder %v3454, 0.0
      %vm3487 = vcmp.ge.f32.partialorder %v3455, 0.0
      %vm3488 = vcmp.ge.f32.partialorder %v3456, 0.0
      %vm3489 = vcmp.ge.f32.partialorder %v3457, 0.0
      %vm3490 = vcmp.ge.f32.partialorder %v3458, 0.0
      %vm3491 = vcmp.ge.f32.partialorder %v3459, 0.0
      %vm3492 = vcmp.ge.f32.partialorder %v3460, 0.0
      %vm3493 = vcmp.ge.f32.partialorder %v3461, 0.0
      %vm3494 = vcmp.ge.f32.partialorder %v3462, 0.0
      %vm3495 = vcmp.ge.f32.partialorder %v3463, 0.0
      %vm3496 = vcmp.ge.f32.partialorder %v3464, 0.0
      %vm3497 = vcmp.ge.f32.partialorder %v3465, 0.0
      %vm3498 = vcmp.ge.f32.partialorder %v3466, 0.0
      %vm3499 = vcmp.ge.f32.partialorder %v3467, 0.0
      %vm3500 = vcmp.ge.f32.partialorder %v3468, 0.0
      %vm3501 = vcmp.ge.f32.partialorder %v3469, 0.0
      %vm3502 = vcmp.ge.f32.partialorder %v3470, 0.0
      %vm3503 = vcmp.ge.f32.partialorder %v3471, 0.0
      %vm3504 = vcmp.ge.f32.partialorder %v3472, 0.0
      %vm3505 = vcmp.ge.f32.partialorder %v3473, 0.0
      %vm3506 = vcmp.ge.f32.partialorder %v3474, 0.0
      %vm3507 = vcmp.ge.f32.partialorder %v3475, 0.0
      %vm3508 = vcmp.ge.f32.partialorder %v3476, 0.0
      %vm3509 = vcmp.ge.f32.partialorder %v3477, 0.0
      %vm3510 = vcmp.ge.f32.partialorder %v3478, 0.0
      %vm3511 = vcmp.ge.f32.partialorder %v3479, 0.0
      %vm3512 = vcmp.ge.f32.partialorder %v3480, 0.0
      %vm3513 = vcmp.ge.f32.partialorder %v3481, 0.0
      %vm3514 = vcmp.ge.f32.partialorder %v3482, 0.0
      %v3515 = vmul.f32 %v3451, 0.01
      %v3516 = vmul.f32 %v3452, 0.01
      %v3517 = vmul.f32 %v3453, 0.01
      %v3518 = vmul.f32 %v3454, 0.01
      %v3519 = vmul.f32 %v3455, 0.01
      %v3520 = vmul.f32 %v3456, 0.01
      %v3521 = vmul.f32 %v3457, 0.01
      %v3522 = vmul.f32 %v3458, 0.01
      %v3523 = vmul.f32 %v3459, 0.01
      %v3524 = vmul.f32 %v3460, 0.01
      %v3525 = vmul.f32 %v3461, 0.01
      %v3526 = vmul.f32 %v3462, 0.01
      %v3527 = vmul.f32 %v3463, 0.01
      %v3528 = vmul.f32 %v3464, 0.01
      %v3529 = vmul.f32 %v3465, 0.01
      %v3530 = vmul.f32 %v3466, 0.01
      %v3531 = vmul.f32 %v3467, 0.01
      %v3532 = vmul.f32 %v3468, 0.01
      %v3533 = vmul.f32 %v3469, 0.01
      %v3534 = vmul.f32 %v3470, 0.01
      %v3535 = vmul.f32 %v3471, 0.01
      %v3536 = vmul.f32 %v3472, 0.01
      %v3537 = vmul.f32 %v3473, 0.01
      %v3538 = vmul.f32 %v3474, 0.01
      %v3539 = vmul.f32 %v3475, 0.01
      %v3540 = vmul.f32 %v3476, 0.01
      %v3541 = vmul.f32 %v3477, 0.01
      %v3542 = vmul.f32 %v3478, 0.01
      %v3543 = vmul.f32 %v3479, 0.01
      %v3544 = vmul.f32 %v3480, 0.01
      %v3545 = vmul.f32 %v3481, 0.01
      %v3546 = vmul.f32 %v3482, 0.01
      %v3547 = vsel %vm3483, %v3451, %v3515
      %v3548 = vsel %vm3484, %v3452, %v3516
      %v3549 = vsel %vm3485, %v3453, %v3517
      %v3550 = vsel %vm3486, %v3454, %v3518
      %v3551 = vsel %vm3487, %v3455, %v3519
      %v3552 = vsel %vm3488, %v3456, %v3520
      %v3553 = vsel %vm3489, %v3457, %v3521
      %v3554 = vsel %vm3490, %v3458, %v3522
      %v3555 = vsel %vm3491, %v3459, %v3523
      %v3556 = vsel %vm3492, %v3460, %v3524
      %v3557 = vsel %vm3493, %v3461, %v3525
      %v3558 = vsel %vm3494, %v3462, %v3526
      %v3559 = vsel %vm3495, %v3463, %v3527
      %v3560 = vsel %vm3496, %v3464, %v3528
      %v3561 = vsel %vm3497, %v3465, %v3529
      %v3562 = vsel %vm3498, %v3466, %v3530
      %v3563 = vsel %vm3499, %v3467, %v3531
      %v3564 = vsel %vm3500, %v3468, %v3532
      %v3565 = vsel %vm3501, %v3469, %v3533
      %v3566 = vsel %vm3502, %v3470, %v3534
      %v3567 = vsel %vm3503, %v3471, %v3535
      %v3568 = vsel %vm3504, %v3472, %v3536
      %v3569 = vsel %vm3505, %v3473, %v3537
      %v3570 = vsel %vm3506, %v3474, %v3538
      %v3571 = vsel %vm3507, %v3475, %v3539
      %v3572 = vsel %vm3508, %v3476, %v3540
      %v3573 = vsel %vm3509, %v3477, %v3541
      %v3574 = vsel %vm3510, %v3478, %v3542
      %v3575 = vsel %vm3511, %v3479, %v3543
      %v3576 = vsel %vm3512, %v3480, %v3544
      %v3577 = vsel %vm3513, %v3481, %v3545
      %v3578 = vsel %vm3514, %v3482, %v3546
      %v3579 = vpack.c.bf16 %v3548, %v3547
      %v3580 = vpack.c.bf16 %v3550, %v3549
      %v3581 = vpack.c.bf16 %v3552, %v3551
      %v3582 = vpack.c.bf16 %v3554, %v3553
      %v3583 = vpack.c.bf16 %v3556, %v3555
      %v3584 = vpack.c.bf16 %v3558, %v3557
      %v3585 = vpack.c.bf16 %v3560, %v3559
      %v3586 = vpack.c.bf16 %v3562, %v3561
      %v3587 = vpack.c.bf16 %v3564, %v3563
      %v3588 = vpack.c.bf16 %v3566, %v3565
      %v3589 = vpack.c.bf16 %v3568, %v3567
      %v3590 = vpack.c.bf16 %v3570, %v3569
      %v3591 = vpack.c.bf16 %v3572, %v3571
      %v3592 = vpack.c.bf16 %v3574, %v3573
      %v3593 = vpack.c.bf16 %v3576, %v3575
      %v3594 = vpack.c.bf16 %v3578, %v3577
      %v3596 = vlaneseq
      %v3597 = vshrl.u32 %v3596, 7
      %v3598 = vsub.s32 0, %v3597
      %v3599 = vrot.slane %v228, %v3598
      %vm3601 = vcmask 64512
      %v3603 = vsel %vm3601, %v3579, 0
      %v3606 = vsel %vm3601, %v3580, 0
      %v3609 = vsel %vm3601, %v3581, 0
      %v3612 = vsel %vm3601, %v3582, 0
      %v3615 = vsel %vm3601, %v3583, 0
      %v3618 = vsel %vm3601, %v3584, 0
      %v3621 = vsel %vm3601, %v3585, 0
      %v3624 = vsel %vm3601, %v3586, 0
      %v3627 = vsel %vm3601, %v3587, 0
      %v3630 = vsel %vm3601, %v3588, 0
      %v3633 = vsel %vm3601, %v3589, 0
      %v3636 = vsel %vm3601, %v3590, 0
      %v3639 = vsel %vm3601, %v3591, 0
      %v3642 = vsel %vm3601, %v3592, 0
      %v3645 = vsel %vm3601, %v3593, 0
      %v3648 = vsel %vm3601, %v3594, 0
      %vm3650 = vcmask 1043456
      %v3652 = vsel %vm3650, %v227, 0
      %3654 = vmatprep.subr.bf16.mxu0 0
      %3655 = vmatpush1.bf16.msra.mxu0 0
      %3656 = vmatprep.subr.bf16.mxu0 0
      %3657 = vmatpush1.bf16.msra.mxu0 0
      %3658 = vmatprep.subr.bf16.mxu0 0
      %3659 = vmatpush1.bf16.msra.mxu0 0
      %3660 = vmatprep.subr.bf16.mxu0 0
      %3661 = vmatpush1.bf16.msra.mxu0 0
      %3662 = vmatprep.subr.bf16.mxu0 0
      %3663 = vmatpush1.bf16.msra.mxu0 0
      %3664 = vmatprep.subr.bf16.mxu0 0
      %3665 = vmatpush1.bf16.msra.mxu0 0
      %3666 = vmatprep.subr.bf16.mxu0 0
      %3667 = vmatpush1.bf16.msra.mxu0 0
      %3668 = vmatprep.subr.bf16.mxu0 0
      %3669 = vmatpush1.bf16.msra.mxu0 %v3652
      %3670 = vmatprep.subr.bf16.mxu0 0
      %3671 = vmatpush2.bf16.msra.mxu0 0
      %3672 = vmatprep.subr.bf16.mxu0 0
      %3673 = vmatpush2.bf16.msra.mxu0 0
      %3674 = vmatprep.subr.bf16.mxu0 0
      %3675 = vmatpush2.bf16.msra.mxu0 0
      %3676 = vmatprep.subr.bf16.mxu0 0
      %3677 = vmatpush2.bf16.msra.mxu0 0
      %3678 = vmatprep.subr.bf16.mxu0 0
      %3679 = vmatpush2.bf16.msra.mxu0 0
      %3680 = vmatprep.subr.bf16.mxu0 0
      %3681 = vmatpush2.bf16.msra.mxu0 0
      %3682 = vmatprep.subr.bf16.mxu0 0
      %3683 = vmatpush2.bf16.msra.mxu0 0
      %3684 = vmatprep.subr.bf16.mxu0 0
      %3685 = vmatpush2.bf16.msra.mxu0 0
      %3686 = vmatprep.mubr.bf16.mxu0 0
      %3687 = vmatmul.mubr.bf16.gmra.mxu0 %v3603
      %v3688 = vpop.f32.mrf.mxu0
      %v3689 = vadd.f32 %v3599, %v3688
      %v3690 = vpop.f32.mrf.mxu0
      %v3691 = vpop.f32.mrf.mxu0
      %v3692 = vadd.f32 %v3599, %v3691
      %v3693 = vpop.f32.mrf.mxu0
      %3694 = vmatprep.mubr.bf16.mxu0 0
      %3695 = vmatmul.mubr.bf16.gmra.mxu0 %v3606
      %v3696 = vpop.f32.mrf.mxu0
      %v3697 = vadd.f32 %v3599, %v3696
      %v3698 = vpop.f32.mrf.mxu0
      %v3699 = vpop.f32.mrf.mxu0
      %v3700 = vadd.f32 %v3599, %v3699
      %v3701 = vpop.f32.mrf.mxu0
      %3702 = vmatprep.mubr.bf16.mxu0 0
      %3703 = vmatmul.mubr.bf16.gmra.mxu0 %v3609
      %v3704 = vpop.f32.mrf.mxu0
      %v3705 = vadd.f32 %v3599, %v3704
      %v3706 = vpop.f32.mrf.mxu0
      %v3707 = vpop.f32.mrf.mxu0
      %v3708 = vadd.f32 %v3599, %v3707
      %v3709 = vpop.f32.mrf.mxu0
      %3710 = vmatprep.mubr.bf16.mxu0 0
      %3711 = vmatmul.mubr.bf16.gmra.mxu0 %v3612
      %v3712 = vpop.f32.mrf.mxu0
      %v3713 = vadd.f32 %v3599, %v3712
      %v3714 = vpop.f32.mrf.mxu0
      %v3715 = vpop.f32.mrf.mxu0
      %v3716 = vadd.f32 %v3599, %v3715
      %v3717 = vpop.f32.mrf.mxu0
      %3718 = vmatprep.mubr.bf16.mxu0 0
      %3719 = vmatmul.mubr.bf16.gmra.mxu0 %v3615
      %v3720 = vpop.f32.mrf.mxu0
      %v3721 = vadd.f32 %v3599, %v3720
      %v3722 = vpop.f32.mrf.mxu0
      %v3723 = vpop.f32.mrf.mxu0
      %v3724 = vadd.f32 %v3599, %v3723
      %v3725 = vpop.f32.mrf.mxu0
      %3726 = vmatprep.mubr.bf16.mxu0 0
      %3727 = vmatmul.mubr.bf16.gmra.mxu0 %v3618
      %v3728 = vpop.f32.mrf.mxu0
      %v3729 = vadd.f32 %v3599, %v3728
      %v3730 = vpop.f32.mrf.mxu0
      %v3731 = vpop.f32.mrf.mxu0
      %v3732 = vadd.f32 %v3599, %v3731
      %v3733 = vpop.f32.mrf.mxu0
      %3734 = vmatprep.mubr.bf16.mxu0 0
      %3735 = vmatmul.mubr.bf16.gmra.mxu0 %v3621
      %v3736 = vpop.f32.mrf.mxu0
      %v3737 = vadd.f32 %v3599, %v3736
      %v3738 = vpop.f32.mrf.mxu0
      %v3739 = vpop.f32.mrf.mxu0
      %v3740 = vadd.f32 %v3599, %v3739
      %v3741 = vpop.f32.mrf.mxu0
      %3742 = vmatprep.mubr.bf16.mxu0 0
      %3743 = vmatmul.mubr.bf16.gmra.mxu0 %v3624
      %v3744 = vpop.f32.mrf.mxu0
      %v3745 = vadd.f32 %v3599, %v3744
      %v3746 = vpop.f32.mrf.mxu0
      %v3747 = vpop.f32.mrf.mxu0
      %v3748 = vadd.f32 %v3599, %v3747
      %v3749 = vpop.f32.mrf.mxu0
      %3750 = vmatprep.mubr.bf16.mxu0 0
      %3751 = vmatmul.mubr.bf16.gmra.mxu0 %v3627
      %v3752 = vpop.f32.mrf.mxu0
      %v3753 = vadd.f32 %v3599, %v3752
      %v3754 = vpop.f32.mrf.mxu0
      %v3755 = vpop.f32.mrf.mxu0
      %v3756 = vadd.f32 %v3599, %v3755
      %v3757 = vpop.f32.mrf.mxu0
      %3758 = vmatprep.mubr.bf16.mxu0 0
      %3759 = vmatmul.mubr.bf16.gmra.mxu0 %v3630
      %v3760 = vpop.f32.mrf.mxu0
      %v3761 = vadd.f32 %v3599, %v3760
      %v3762 = vpop.f32.mrf.mxu0
      %v3763 = vpop.f32.mrf.mxu0
      %v3764 = vadd.f32 %v3599, %v3763
      %v3765 = vpop.f32.mrf.mxu0
      %3766 = vmatprep.mubr.bf16.mxu0 0
      %3767 = vmatmul.mubr.bf16.gmra.mxu0 %v3633
      %v3768 = vpop.f32.mrf.mxu0
      %v3769 = vadd.f32 %v3599, %v3768
      %v3770 = vpop.f32.mrf.mxu0
      %v3771 = vpop.f32.mrf.mxu0
      %v3772 = vadd.f32 %v3599, %v3771
      %v3773 = vpop.f32.mrf.mxu0
      %3774 = vmatprep.mubr.bf16.mxu0 0
      %3775 = vmatmul.mubr.bf16.gmra.mxu0 %v3636
      %v3776 = vpop.f32.mrf.mxu0
      %v3777 = vadd.f32 %v3599, %v3776
      %v3778 = vpop.f32.mrf.mxu0
      %v3779 = vpop.f32.mrf.mxu0
      %v3780 = vadd.f32 %v3599, %v3779
      %v3781 = vpop.f32.mrf.mxu0
      %3782 = vmatprep.mubr.bf16.mxu0 0
      %3783 = vmatmul.mubr.bf16.gmra.mxu0 %v3639
      %v3784 = vpop.f32.mrf.mxu0
      %v3785 = vadd.f32 %v3599, %v3784
      %v3786 = vpop.f32.mrf.mxu0
      %v3787 = vpop.f32.mrf.mxu0
      %v3788 = vadd.f32 %v3599, %v3787
      %v3789 = vpop.f32.mrf.mxu0
      %3790 = vmatprep.mubr.bf16.mxu0 0
      %3791 = vmatmul.mubr.bf16.gmra.mxu0 %v3642
      %v3792 = vpop.f32.mrf.mxu0
      %v3793 = vadd.f32 %v3599, %v3792
      %v3794 = vpop.f32.mrf.mxu0
      %v3795 = vpop.f32.mrf.mxu0
      %v3796 = vadd.f32 %v3599, %v3795
      %v3797 = vpop.f32.mrf.mxu0
      %3798 = vmatprep.mubr.bf16.mxu0 0
      %3799 = vmatmul.mubr.bf16.gmra.mxu0 %v3645
      %v3800 = vpop.f32.mrf.mxu0
      %v3801 = vadd.f32 %v3599, %v3800
      %v3802 = vpop.f32.mrf.mxu0
      %v3803 = vpop.f32.mrf.mxu0
      %v3804 = vadd.f32 %v3599, %v3803
      %v3805 = vpop.f32.mrf.mxu0
      %3806 = vmatprep.mubr.bf16.mxu0 0
      %3807 = vmatmul.mubr.bf16.gmra.mxu0 %v3648
      %v3808 = vpop.f32.mrf.mxu0
      %v3809 = vadd.f32 %v3599, %v3808
      %v3810 = vpop.f32.mrf.mxu0
      %v3811 = vpop.f32.mrf.mxu0
      %v3812 = vadd.f32 %v3599, %v3811
      %v3813 = vpop.f32.mrf.mxu0
      %3814 = vdwg.mxu0
      %vm3815 = vcmp.ge.f32.partialorder %v3689, 0.0
      %vm3816 = vcmp.ge.f32.partialorder %v3692, 0.0
      %vm3817 = vcmp.ge.f32.partialorder %v3697, 0.0
      %vm3818 = vcmp.ge.f32.partialorder %v3700, 0.0
      %vm3819 = vcmp.ge.f32.partialorder %v3705, 0.0
      %vm3820 = vcmp.ge.f32.partialorder %v3708, 0.0
      %vm3821 = vcmp.ge.f32.partialorder %v3713, 0.0
      %vm3822 = vcmp.ge.f32.partialorder %v3716, 0.0
      %vm3823 = vcmp.ge.f32.partialorder %v3721, 0.0
      %vm3824 = vcmp.ge.f32.partialorder %v3724, 0.0
      %vm3825 = vcmp.ge.f32.partialorder %v3729, 0.0
      %vm3826 = vcmp.ge.f32.partialorder %v3732, 0.0
      %vm3827 = vcmp.ge.f32.partialorder %v3737, 0.0
      %vm3828 = vcmp.ge.f32.partialorder %v3740, 0.0
      %vm3829 = vcmp.ge.f32.partialorder %v3745, 0.0
      %vm3830 = vcmp.ge.f32.partialorder %v3748, 0.0
      %vm3831 = vcmp.ge.f32.partialorder %v3753, 0.0
      %vm3832 = vcmp.ge.f32.partialorder %v3756, 0.0
      %vm3833 = vcmp.ge.f32.partialorder %v3761, 0.0
      %vm3834 = vcmp.ge.f32.partialorder %v3764, 0.0
      %vm3835 = vcmp.ge.f32.partialorder %v3769, 0.0
      %vm3836 = vcmp.ge.f32.partialorder %v3772, 0.0
      %vm3837 = vcmp.ge.f32.partialorder %v3777, 0.0
      %vm3838 = vcmp.ge.f32.partialorder %v3780, 0.0
      %vm3839 = vcmp.ge.f32.partialorder %v3785, 0.0
      %vm3840 = vcmp.ge.f32.partialorder %v3788, 0.0
      %vm3841 = vcmp.ge.f32.partialorder %v3793, 0.0
      %vm3842 = vcmp.ge.f32.partialorder %v3796, 0.0
      %vm3843 = vcmp.ge.f32.partialorder %v3801, 0.0
      %vm3844 = vcmp.ge.f32.partialorder %v3804, 0.0
      %vm3845 = vcmp.ge.f32.partialorder %v3809, 0.0
      %vm3846 = vcmp.ge.f32.partialorder %v3812, 0.0
      %v3847 = vmul.f32 %v3689, 0.01
      %v3848 = vmul.f32 %v3692, 0.01
      %v3849 = vmul.f32 %v3697, 0.01
      %v3850 = vmul.f32 %v3700, 0.01
      %v3851 = vmul.f32 %v3705, 0.01
      %v3852 = vmul.f32 %v3708, 0.01
      %v3853 = vmul.f32 %v3713, 0.01
      %v3854 = vmul.f32 %v3716, 0.01
      %v3855 = vmul.f32 %v3721, 0.01
      %v3856 = vmul.f32 %v3724, 0.01
      %v3857 = vmul.f32 %v3729, 0.01
      %v3858 = vmul.f32 %v3732, 0.01
      %v3859 = vmul.f32 %v3737, 0.01
      %v3860 = vmul.f32 %v3740, 0.01
      %v3861 = vmul.f32 %v3745, 0.01
      %v3862 = vmul.f32 %v3748, 0.01
      %v3863 = vmul.f32 %v3753, 0.01
      %v3864 = vmul.f32 %v3756, 0.01
      %v3865 = vmul.f32 %v3761, 0.01
      %v3866 = vmul.f32 %v3764, 0.01
      %v3867 = vmul.f32 %v3769, 0.01
      %v3868 = vmul.f32 %v3772, 0.01
      %v3869 = vmul.f32 %v3777, 0.01
      %v3870 = vmul.f32 %v3780, 0.01
      %v3871 = vmul.f32 %v3785, 0.01
      %v3872 = vmul.f32 %v3788, 0.01
      %v3873 = vmul.f32 %v3793, 0.01
      %v3874 = vmul.f32 %v3796, 0.01
      %v3875 = vmul.f32 %v3801, 0.01
      %v3876 = vmul.f32 %v3804, 0.01
      %v3877 = vmul.f32 %v3809, 0.01
      %v3878 = vmul.f32 %v3812, 0.01
      %v3879 = vsel %vm3815, %v3689, %v3847
      %v3880 = vsel %vm3816, %v3692, %v3848
      %v3881 = vsel %vm3817, %v3697, %v3849
      %v3882 = vsel %vm3818, %v3700, %v3850
      %v3883 = vsel %vm3819, %v3705, %v3851
      %v3884 = vsel %vm3820, %v3708, %v3852
      %v3885 = vsel %vm3821, %v3713, %v3853
      %v3886 = vsel %vm3822, %v3716, %v3854
      %v3887 = vsel %vm3823, %v3721, %v3855
      %v3888 = vsel %vm3824, %v3724, %v3856
      %v3889 = vsel %vm3825, %v3729, %v3857
      %v3890 = vsel %vm3826, %v3732, %v3858
      %v3891 = vsel %vm3827, %v3737, %v3859
      %v3892 = vsel %vm3828, %v3740, %v3860
      %v3893 = vsel %vm3829, %v3745, %v3861
      %v3894 = vsel %vm3830, %v3748, %v3862
      %v3895 = vsel %vm3831, %v3753, %v3863
      %v3896 = vsel %vm3832, %v3756, %v3864
      %v3897 = vsel %vm3833, %v3761, %v3865
      %v3898 = vsel %vm3834, %v3764, %v3866
      %v3899 = vsel %vm3835, %v3769, %v3867
      %v3900 = vsel %vm3836, %v3772, %v3868
      %v3901 = vsel %vm3837, %v3777, %v3869
      %v3902 = vsel %vm3838, %v3780, %v3870
      %v3903 = vsel %vm3839, %v3785, %v3871
      %v3904 = vsel %vm3840, %v3788, %v3872
      %v3905 = vsel %vm3841, %v3793, %v3873
      %v3906 = vsel %vm3842, %v3796, %v3874
      %v3907 = vsel %vm3843, %v3801, %v3875
      %v3908 = vsel %vm3844, %v3804, %v3876
      %v3909 = vsel %vm3845, %v3809, %v3877
      %v3910 = vsel %vm3846, %v3812, %v3878
      %3911 = vst.msk [vmem:[%s224] sm:$0xff] %vm3601, %v3879
      %3912 = vst.msk [vmem:[%s224 + $0x8] sm:$0xff] %vm3601, %v3880
      %3913 = vst.msk [vmem:[%s224 + $0x10] sm:$0xff] %vm3601, %v3881
      %3914 = vst.msk [vmem:[%s224 + $0x18] sm:$0xff] %vm3601, %v3882
      %3915 = vst.msk [vmem:[%s224 + $0x20] sm:$0xff] %vm3601, %v3883
      %3916 = vst.msk [vmem:[%s224 + $0x28] sm:$0xff] %vm3601, %v3884
      %3917 = vst.msk [vmem:[%s224 + $0x30] sm:$0xff] %vm3601, %v3885
      %3918 = vst.msk [vmem:[%s224 + $0x38] sm:$0xff] %vm3601, %v3886
      %3919 = vst.msk [vmem:[%s224 + $0x40] sm:$0xff] %vm3601, %v3887
      %3920 = vst.msk [vmem:[%s224 + $0x48] sm:$0xff] %vm3601, %v3888
      %3921 = vst.msk [vmem:[%s224 + $0x50] sm:$0xff] %vm3601, %v3889
      %3922 = vst.msk [vmem:[%s224 + $0x58] sm:$0xff] %vm3601, %v3890
      %3923 = vst.msk [vmem:[%s224 + $0x60] sm:$0xff] %vm3601, %v3891
      %3924 = vst.msk [vmem:[%s224 + $0x68] sm:$0xff] %vm3601, %v3892
      %3925 = vst.msk [vmem:[%s224 + $0x70] sm:$0xff] %vm3601, %v3893
      %3926 = vst.msk [vmem:[%s224 + $0x78] sm:$0xff] %vm3601, %v3894
      %3927 = vst.msk [vmem:[%s224 + $0x80] sm:$0xff] %vm3601, %v3895
      %3928 = vst.msk [vmem:[%s224 + $0x88] sm:$0xff] %vm3601, %v3896
      %3929 = vst.msk [vmem:[%s224 + $0x90] sm:$0xff] %vm3601, %v3897
      %3930 = vst.msk [vmem:[%s224 + $0x98] sm:$0xff] %vm3601, %v3898
      %3931 = vst.msk [vmem:[%s224 + $0xa0] sm:$0xff] %vm3601, %v3899
      %3932 = vst.msk [vmem:[%s224 + $0xa8] sm:$0xff] %vm3601, %v3900
      %3933 = vst.msk [vmem:[%s224 + $0xb0] sm:$0xff] %vm3601, %v3901
      %3934 = vst.msk [vmem:[%s224 + $0xb8] sm:$0xff] %vm3601, %v3902
      %3935 = vst.msk [vmem:[%s224 + $0xc0] sm:$0xff] %vm3601, %v3903
      %3936 = vst.msk [vmem:[%s224 + $0xc8] sm:$0xff] %vm3601, %v3904
      %3937 = vst.msk [vmem:[%s224 + $0xd0] sm:$0xff] %vm3601, %v3905
      %3938 = vst.msk [vmem:[%s224 + $0xd8] sm:$0xff] %vm3601, %v3906
      %3939 = vst.msk [vmem:[%s224 + $0xe0] sm:$0xff] %vm3601, %v3907
      %3940 = vst.msk [vmem:[%s224 + $0xe8] sm:$0xff] %vm3601, %v3908
      %3941 = vst.msk [vmem:[%s224 + $0xf0] sm:$0xff] %vm3601, %v3909
      %3942 = vst.msk [vmem:[%s224 + $0xf8] sm:$0xff] %vm3601, %v3910
      %v3943 = vld [vmem:[%s219 + $0x80] sm:$0xf]
      %v3944 = vld [vmem:[%s219 + $0x84] sm:$0xf]
      %v3945 = vld [vmem:[%s219 + $0x88] sm:$0xf]
      %v3946 = vld [vmem:[%s219 + $0x8c] sm:$0xf]
      %v3947 = vld [vmem:[%s219 + $0x90] sm:$0xf]
      %v3948 = vld [vmem:[%s219 + $0x94] sm:$0xf]
      %v3949 = vld [vmem:[%s219 + $0x98] sm:$0xf]
      %v3950 = vld [vmem:[%s219 + $0x9c] sm:$0xf]
      %v3951 = vld [vmem:[%s219 + $0xa0] sm:$0xf]
      %v3952 = vld [vmem:[%s219 + $0xa4] sm:$0xf]
      %v3953 = vld [vmem:[%s219 + $0xa8] sm:$0xf]
      %v3954 = vld [vmem:[%s219 + $0xac] sm:$0xf]
      %v3955 = vld [vmem:[%s219 + $0xb0] sm:$0xf]
      %v3956 = vld [vmem:[%s219 + $0xb4] sm:$0xf]
      %v3957 = vld [vmem:[%s219 + $0xb8] sm:$0xf]
      %v3958 = vld [vmem:[%s219 + $0xbc] sm:$0xf]
      %v3959 = vld [vmem:[%s1] sm:$0x3]
      %v3960 = vld [vmem:[%s219 + $0xc0] sm:$0x1]
      %v3961 = vld [vmem:[%s263] sm:$0x3]
      %v3979 = vunpack.c.l.b16 %v3943
      %v3980 = vunpack.c.l.b16 %v3944
      %v3981 = vunpack.c.l.b16 %v3945
      %v3982 = vunpack.c.l.b16 %v3946
      %v3983 = vunpack.c.l.b16 %v3947
      %v3984 = vunpack.c.l.b16 %v3948
      %v3985 = vunpack.c.l.b16 %v3949
      %v3986 = vunpack.c.l.b16 %v3950
      %v3987 = vunpack.c.l.b16 %v3951
      %v3988 = vunpack.c.l.b16 %v3952
      %v3989 = vunpack.c.l.b16 %v3953
      %v3990 = vunpack.c.l.b16 %v3954
      %v3991 = vunpack.c.l.b16 %v3955
      %v3992 = vunpack.c.l.b16 %v3956
      %v3993 = vunpack.c.l.b16 %v3957
      %v3994 = vunpack.c.l.b16 %v3958
      %v3995 = vunpack.c.l.b16 %v3960
      %v3996 = vpack.c.b16 %v3980, %v3979
      %v3997 = vpack.c.b16 %v3982, %v3981
      %v3998 = vpack.c.b16 %v3984, %v3983
      %v3999 = vpack.c.b16 %v3986, %v3985
      %v4000 = vpack.c.b16 %v3988, %v3987
      %v4001 = vpack.c.b16 %v3990, %v3989
      %v4002 = vpack.c.b16 %v3992, %v3991
      %v4003 = vpack.c.b16 %v3994, %v3993
      %v4004 = vpack.c.b16 %v3995, %v3995
      %v4006 = vshrl.u32 %v3996, 16
      %v4008 = vshll.u32 %v3996, 16
      %v4010 = vrot.slane %v4008, 1
      %v4011 = vor.u32 %v4006, %v4010
      %v4013 = vshll.u32 %v3997, 16
      %v4015 = vrot.slane %v4013, 1
      %v4016 = vsel %vm348, %v4011, %v4015
      %v4017 = vshrl.u32 %v3997, 16
      %v4019 = vor.u32 %v4017, %v4015
      %v4021 = vshll.u32 %v3998, 16
      %v4023 = vrot.slane %v4021, 1
      %v4024 = vsel %vm348, %v4019, %v4023
      %v4025 = vshrl.u32 %v3998, 16
      %v4027 = vor.u32 %v4025, %v4023
      %v4029 = vshll.u32 %v3999, 16
      %v4031 = vrot.slane %v4029, 1
      %v4032 = vsel %vm348, %v4027, %v4031
      %v4033 = vshrl.u32 %v3999, 16
      %v4035 = vor.u32 %v4033, %v4031
      %v4037 = vshll.u32 %v4000, 16
      %v4039 = vrot.slane %v4037, 1
      %v4040 = vsel %vm348, %v4035, %v4039
      %v4041 = vshrl.u32 %v4000, 16
      %v4043 = vor.u32 %v4041, %v4039
      %v4045 = vshll.u32 %v4001, 16
      %v4047 = vrot.slane %v4045, 1
      %v4048 = vsel %vm348, %v4043, %v4047
      %v4049 = vshrl.u32 %v4001, 16
      %v4051 = vor.u32 %v4049, %v4047
      %v4053 = vshll.u32 %v4002, 16
      %v4055 = vrot.slane %v4053, 1
      %v4056 = vsel %vm348, %v4051, %v4055
      %v4057 = vshrl.u32 %v4002, 16
      %v4059 = vor.u32 %v4057, %v4055
      %v4061 = vshll.u32 %v4003, 16
      %v4063 = vrot.slane %v4061, 1
      %v4064 = vsel %vm348, %v4059, %v4063
      %v4065 = vshrl.u32 %v4003, 16
      %v4067 = vor.u32 %v4065, %v4063
      %v4069 = vshll.u32 %v4004, 16
      %v4071 = vrot.slane %v4069, 1
      %v4072 = vsel %vm348, %v4067, %v4071
      %v4074 = vsel %vm481, %v4016, 0
      %v4077 = vsel %vm481, %v4024, 0
      %v4080 = vsel %vm481, %v4032, 0
      %v4083 = vsel %vm481, %v4040, 0
      %v4086 = vsel %vm481, %v4048, 0
      %v4089 = vsel %vm481, %v4056, 0
      %v4092 = vsel %vm481, %v4064, 0
      %v4095 = vsel %vm481, %v4072, 0
      %v4098 = vsel %vm530, %v3961, 0
      %4100 = vmatprep.subr.bf16.mxu0 0
      %4101 = vmatpush1.bf16.msra.mxu0 0
      %4102 = vmatprep.subr.bf16.mxu0 0
      %4103 = vmatpush1.bf16.msra.mxu0 0
      %4104 = vmatprep.subr.bf16.mxu0 0
      %4105 = vmatpush1.bf16.msra.mxu0 0
      %4106 = vmatprep.subr.bf16.mxu0 0
      %4107 = vmatpush1.bf16.msra.mxu0 0
      %4108 = vmatprep.subr.bf16.mxu0 0
      %4109 = vmatpush1.bf16.msra.mxu0 0
      %4110 = vmatprep.subr.bf16.mxu0 0
      %4111 = vmatpush1.bf16.msra.mxu0 0
      %4112 = vmatprep.subr.bf16.mxu0 0
      %4113 = vmatpush1.bf16.msra.mxu0 0
      %4114 = vmatprep.subr.bf16.mxu0 0
      %4115 = vmatpush1.bf16.msra.mxu0 %v4098
      %4116 = vmatprep.subr.bf16.mxu0 0
      %4117 = vmatpush2.bf16.msra.mxu0 0
      %4118 = vmatprep.subr.bf16.mxu0 0
      %4119 = vmatpush2.bf16.msra.mxu0 0
      %4120 = vmatprep.subr.bf16.mxu0 0
      %4121 = vmatpush2.bf16.msra.mxu0 0
      %4122 = vmatprep.subr.bf16.mxu0 0
      %4123 = vmatpush2.bf16.msra.mxu0 0
      %4124 = vmatprep.subr.bf16.mxu0 0
      %4125 = vmatpush2.bf16.msra.mxu0 0
      %4126 = vmatprep.subr.bf16.mxu0 0
      %4127 = vmatpush2.bf16.msra.mxu0 0
      %4128 = vmatprep.subr.bf16.mxu0 0
      %4129 = vmatpush2.bf16.msra.mxu0 0
      %4130 = vmatprep.subr.bf16.mxu0 0
      %4131 = vmatpush2.bf16.msra.mxu0 0
      %4132 = vmatprep.mubr.bf16.mxu0 0
      %4133 = vmatmul.mubr.bf16.gmra.mxu0 %v4074
      %v4134 = vpop.f32.mrf.mxu0
      %v4135 = vadd.f32 0.0, %v4134
      %v4136 = vpop.f32.mrf.mxu0
      %v4137 = vpop.f32.mrf.mxu0
      %v4138 = vadd.f32 0.0, %v4137
      %v4139 = vpop.f32.mrf.mxu0
      %4140 = vmatprep.mubr.bf16.mxu0 0
      %4141 = vmatmul.mubr.bf16.gmra.mxu0 %v4077
      %v4142 = vpop.f32.mrf.mxu0
      %v4143 = vadd.f32 0.0, %v4142
      %v4144 = vpop.f32.mrf.mxu0
      %v4145 = vpop.f32.mrf.mxu0
      %v4146 = vadd.f32 0.0, %v4145
      %v4147 = vpop.f32.mrf.mxu0
      %4148 = vmatprep.mubr.bf16.mxu0 0
      %4149 = vmatmul.mubr.bf16.gmra.mxu0 %v4080
      %v4150 = vpop.f32.mrf.mxu0
      %v4151 = vadd.f32 0.0, %v4150
      %v4152 = vpop.f32.mrf.mxu0
      %v4153 = vpop.f32.mrf.mxu0
      %v4154 = vadd.f32 0.0, %v4153
      %v4155 = vpop.f32.mrf.mxu0
      %4156 = vmatprep.mubr.bf16.mxu0 0
      %4157 = vmatmul.mubr.bf16.gmra.mxu0 %v4083
      %v4158 = vpop.f32.mrf.mxu0
      %v4159 = vadd.f32 0.0, %v4158
      %v4160 = vpop.f32.mrf.mxu0
      %v4161 = vpop.f32.mrf.mxu0
      %v4162 = vadd.f32 0.0, %v4161
      %v4163 = vpop.f32.mrf.mxu0
      %4164 = vmatprep.mubr.bf16.mxu0 0
      %4165 = vmatmul.mubr.bf16.gmra.mxu0 %v4086
      %v4166 = vpop.f32.mrf.mxu0
      %v4167 = vadd.f32 0.0, %v4166
      %v4168 = vpop.f32.mrf.mxu0
      %v4169 = vpop.f32.mrf.mxu0
      %v4170 = vadd.f32 0.0, %v4169
      %v4171 = vpop.f32.mrf.mxu0
      %4172 = vmatprep.mubr.bf16.mxu0 0
      %4173 = vmatmul.mubr.bf16.gmra.mxu0 %v4089
      %v4174 = vpop.f32.mrf.mxu0
      %v4175 = vadd.f32 0.0, %v4174
      %v4176 = vpop.f32.mrf.mxu0
      %v4177 = vpop.f32.mrf.mxu0
      %v4178 = vadd.f32 0.0, %v4177
      %v4179 = vpop.f32.mrf.mxu0
      %4180 = vmatprep.mubr.bf16.mxu0 0
      %4181 = vmatmul.mubr.bf16.gmra.mxu0 %v4092
      %v4182 = vpop.f32.mrf.mxu0
      %v4183 = vadd.f32 0.0, %v4182
      %v4184 = vpop.f32.mrf.mxu0
      %v4185 = vpop.f32.mrf.mxu0
      %v4186 = vadd.f32 0.0, %v4185
      %v4187 = vpop.f32.mrf.mxu0
      %4188 = vmatprep.mubr.bf16.mxu0 0
      %4189 = vmatmul.mubr.bf16.gmra.mxu0 %v4095
      %v4190 = vpop.f32.mrf.mxu0
      %v4191 = vadd.f32 0.0, %v4190
      %v4192 = vpop.f32.mrf.mxu0
      %v4193 = vpop.f32.mrf.mxu0
      %v4194 = vadd.f32 0.0, %v4193
      %v4195 = vpop.f32.mrf.mxu0
      %4196 = vdwg.mxu0
      %v4197 = vsel %vm481, %v3996, 0
      %v4199 = vsel %vm481, %v3997, 0
      %v4201 = vsel %vm481, %v3998, 0
      %v4203 = vsel %vm481, %v3999, 0
      %v4205 = vsel %vm481, %v4000, 0
      %v4207 = vsel %vm481, %v4001, 0
      %v4209 = vsel %vm481, %v4002, 0
      %v4211 = vsel %vm481, %v4003, 0
      %v4214 = vsel %vm530, %v3959, 0
      %4216 = vmatprep.subr.bf16.mxu0 0
      %4217 = vmatpush1.bf16.msra.mxu0 0
      %4218 = vmatprep.subr.bf16.mxu0 0
      %4219 = vmatpush1.bf16.msra.mxu0 0
      %4220 = vmatprep.subr.bf16.mxu0 0
      %4221 = vmatpush1.bf16.msra.mxu0 0
      %4222 = vmatprep.subr.bf16.mxu0 0
      %4223 = vmatpush1.bf16.msra.mxu0 0
      %4224 = vmatprep.subr.bf16.mxu0 0
      %4225 = vmatpush1.bf16.msra.mxu0 0
      %4226 = vmatprep.subr.bf16.mxu0 0
      %4227 = vmatpush1.bf16.msra.mxu0 0
      %4228 = vmatprep.subr.bf16.mxu0 0
      %4229 = vmatpush1.bf16.msra.mxu0 0
      %4230 = vmatprep.subr.bf16.mxu0 0
      %4231 = vmatpush1.bf16.msra.mxu0 %v4214
      %4232 = vmatprep.subr.bf16.mxu0 0
      %4233 = vmatpush2.bf16.msra.mxu0 0
      %4234 = vmatprep.subr.bf16.mxu0 0
      %4235 = vmatpush2.bf16.msra.mxu0 0
      %4236 = vmatprep.subr.bf16.mxu0 0
      %4237 = vmatpush2.bf16.msra.mxu0 0
      %4238 = vmatprep.subr.bf16.mxu0 0
      %4239 = vmatpush2.bf16.msra.mxu0 0
      %4240 = vmatprep.subr.bf16.mxu0 0
      %4241 = vmatpush2.bf16.msra.mxu0 0
      %4242 = vmatprep.subr.bf16.mxu0 0
      %4243 = vmatpush2.bf16.msra.mxu0 0
      %4244 = vmatprep.subr.bf16.mxu0 0
      %4245 = vmatpush2.bf16.msra.mxu0 0
      %4246 = vmatprep.subr.bf16.mxu0 0
      %4247 = vmatpush2.bf16.msra.mxu0 0
      %4248 = vmatprep.mubr.bf16.mxu0 0
      %4249 = vmatmul.mubr.bf16.gmra.mxu0 %v4197
      %v4250 = vpop.f32.mrf.mxu0
      %v4251 = vadd.f32 %v4135, %v4250
      %v4252 = vpop.f32.mrf.mxu0
      %v4253 = vpop.f32.mrf.mxu0
      %v4254 = vadd.f32 %v4138, %v4253
      %v4255 = vpop.f32.mrf.mxu0
      %4256 = vmatprep.mubr.bf16.mxu0 0
      %4257 = vmatmul.mubr.bf16.gmra.mxu0 %v4199
      %v4258 = vpop.f32.mrf.mxu0
      %v4259 = vadd.f32 %v4143, %v4258
      %v4260 = vpop.f32.mrf.mxu0
      %v4261 = vpop.f32.mrf.mxu0
      %v4262 = vadd.f32 %v4146, %v4261
      %v4263 = vpop.f32.mrf.mxu0
      %4264 = vmatprep.mubr.bf16.mxu0 0
      %4265 = vmatmul.mubr.bf16.gmra.mxu0 %v4201
      %v4266 = vpop.f32.mrf.mxu0
      %v4267 = vadd.f32 %v4151, %v4266
      %v4268 = vpop.f32.mrf.mxu0
      %v4269 = vpop.f32.mrf.mxu0
      %v4270 = vadd.f32 %v4154, %v4269
      %v4271 = vpop.f32.mrf.mxu0
      %4272 = vmatprep.mubr.bf16.mxu0 0
      %4273 = vmatmul.mubr.bf16.gmra.mxu0 %v4203
      %v4274 = vpop.f32.mrf.mxu0
      %v4275 = vadd.f32 %v4159, %v4274
      %v4276 = vpop.f32.mrf.mxu0
      %v4277 = vpop.f32.mrf.mxu0
      %v4278 = vadd.f32 %v4162, %v4277
      %v4279 = vpop.f32.mrf.mxu0
      %4280 = vmatprep.mubr.bf16.mxu0 0
      %4281 = vmatmul.mubr.bf16.gmra.mxu0 %v4205
      %v4282 = vpop.f32.mrf.mxu0
      %v4283 = vadd.f32 %v4167, %v4282
      %v4284 = vpop.f32.mrf.mxu0
      %v4285 = vpop.f32.mrf.mxu0
      %v4286 = vadd.f32 %v4170, %v4285
      %v4287 = vpop.f32.mrf.mxu0
      %4288 = vmatprep.mubr.bf16.mxu0 0
      %4289 = vmatmul.mubr.bf16.gmra.mxu0 %v4207
      %v4290 = vpop.f32.mrf.mxu0
      %v4291 = vadd.f32 %v4175, %v4290
      %v4292 = vpop.f32.mrf.mxu0
      %v4293 = vpop.f32.mrf.mxu0
      %v4294 = vadd.f32 %v4178, %v4293
      %v4295 = vpop.f32.mrf.mxu0
      %4296 = vmatprep.mubr.bf16.mxu0 0
      %4297 = vmatmul.mubr.bf16.gmra.mxu0 %v4209
      %v4298 = vpop.f32.mrf.mxu0
      %v4299 = vadd.f32 %v4183, %v4298
      %v4300 = vpop.f32.mrf.mxu0
      %v4301 = vpop.f32.mrf.mxu0
      %v4302 = vadd.f32 %v4186, %v4301
      %v4303 = vpop.f32.mrf.mxu0
      %4304 = vmatprep.mubr.bf16.mxu0 0
      %4305 = vmatmul.mubr.bf16.gmra.mxu0 %v4211
      %v4306 = vpop.f32.mrf.mxu0
      %v4307 = vadd.f32 %v4191, %v4306
      %v4308 = vpop.f32.mrf.mxu0
      %v4309 = vpop.f32.mrf.mxu0
      %v4310 = vadd.f32 %v4194, %v4309
      %v4311 = vpop.f32.mrf.mxu0
      %4312 = vdwg.mxu0
      %v4313 = vld [vmem:[%s219 + $0x80] sm:$0xe]
      %v4314 = vld [vmem:[%s892] sm:$0x3]
      %v4316 = vunpack.c.l.b16 %v4313
      %v4317 = vpack.c.b16 %v3980, %v4316
      %v4318 = vrot.slane %v4317, 1
      %v4319 = vrot.slane %v3997, 1
      %v4320 = vsel %vm897, %v4318, %v4319
      %v4321 = vrot.slane %v3998, 1
      %v4322 = vsel %vm897, %v4319, %v4321
      %v4323 = vrot.slane %v3999, 1
      %v4324 = vsel %vm897, %v4321, %v4323
      %v4325 = vrot.slane %v4000, 1
      %v4326 = vsel %vm897, %v4323, %v4325
      %v4327 = vrot.slane %v4001, 1
      %v4328 = vsel %vm897, %v4325, %v4327
      %v4329 = vrot.slane %v4002, 1
      %v4330 = vsel %vm897, %v4327, %v4329
      %v4331 = vrot.slane %v4003, 1
      %v4332 = vsel %vm897, %v4329, %v4331
      %v4333 = vrot.slane %v4004, 1
      %v4334 = vsel %vm897, %v4331, %v4333
      %v4336 = vsel %vm481, %v4320, 0
      %v4339 = vsel %vm481, %v4322, 0
      %v4342 = vsel %vm481, %v4324, 0
      %v4345 = vsel %vm481, %v4326, 0
      %v4348 = vsel %vm481, %v4328, 0
      %v4351 = vsel %vm481, %v4330, 0
      %v4354 = vsel %vm481, %v4332, 0
      %v4357 = vsel %vm481, %v4334, 0
      %v4360 = vsel %vm530, %v4314, 0
      %4362 = vmatprep.subr.bf16.mxu0 0
      %4363 = vmatpush1.bf16.msra.mxu0 0
      %4364 = vmatprep.subr.bf16.mxu0 0
      %4365 = vmatpush1.bf16.msra.mxu0 0
      %4366 = vmatprep.subr.bf16.mxu0 0
      %4367 = vmatpush1.bf16.msra.mxu0 0
      %4368 = vmatprep.subr.bf16.mxu0 0
      %4369 = vmatpush1.bf16.msra.mxu0 0
      %4370 = vmatprep.subr.bf16.mxu0 0
      %4371 = vmatpush1.bf16.msra.mxu0 0
      %4372 = vmatprep.subr.bf16.mxu0 0
      %4373 = vmatpush1.bf16.msra.mxu0 0
      %4374 = vmatprep.subr.bf16.mxu0 0
      %4375 = vmatpush1.bf16.msra.mxu0 0
      %4376 = vmatprep.subr.bf16.mxu0 0
      %4377 = vmatpush1.bf16.msra.mxu0 %v4360
      %4378 = vmatprep.subr.bf16.mxu0 0
      %4379 = vmatpush2.bf16.msra.mxu0 0
      %4380 = vmatprep.subr.bf16.mxu0 0
      %4381 = vmatpush2.bf16.msra.mxu0 0
      %4382 = vmatprep.subr.bf16.mxu0 0
      %4383 = vmatpush2.bf16.msra.mxu0 0
      %4384 = vmatprep.subr.bf16.mxu0 0
      %4385 = vmatpush2.bf16.msra.mxu0 0
      %4386 = vmatprep.subr.bf16.mxu0 0
      %4387 = vmatpush2.bf16.msra.mxu0 0
      %4388 = vmatprep.subr.bf16.mxu0 0
      %4389 = vmatpush2.bf16.msra.mxu0 0
      %4390 = vmatprep.subr.bf16.mxu0 0
      %4391 = vmatpush2.bf16.msra.mxu0 0
      %4392 = vmatprep.subr.bf16.mxu0 0
      %4393 = vmatpush2.bf16.msra.mxu0 0
      %4394 = vmatprep.mubr.bf16.mxu0 0
      %4395 = vmatmul.mubr.bf16.gmra.mxu0 %v4336
      %v4396 = vpop.f32.mrf.mxu0
      %v4397 = vadd.f32 0.0, %v4396
      %v4398 = vpop.f32.mrf.mxu0
      %v4399 = vpop.f32.mrf.mxu0
      %v4400 = vadd.f32 0.0, %v4399
      %v4401 = vpop.f32.mrf.mxu0
      %4402 = vmatprep.mubr.bf16.mxu0 0
      %4403 = vmatmul.mubr.bf16.gmra.mxu0 %v4339
      %v4404 = vpop.f32.mrf.mxu0
      %v4405 = vadd.f32 0.0, %v4404
      %v4406 = vpop.f32.mrf.mxu0
      %v4407 = vpop.f32.mrf.mxu0
      %v4408 = vadd.f32 0.0, %v4407
      %v4409 = vpop.f32.mrf.mxu0
      %4410 = vmatprep.mubr.bf16.mxu0 0
      %4411 = vmatmul.mubr.bf16.gmra.mxu0 %v4342
      %v4412 = vpop.f32.mrf.mxu0
      %v4413 = vadd.f32 0.0, %v4412
      %v4414 = vpop.f32.mrf.mxu0
      %v4415 = vpop.f32.mrf.mxu0
      %v4416 = vadd.f32 0.0, %v4415
      %v4417 = vpop.f32.mrf.mxu0
      %4418 = vmatprep.mubr.bf16.mxu0 0
      %4419 = vmatmul.mubr.bf16.gmra.mxu0 %v4345
      %v4420 = vpop.f32.mrf.mxu0
      %v4421 = vadd.f32 0.0, %v4420
      %v4422 = vpop.f32.mrf.mxu0
      %v4423 = vpop.f32.mrf.mxu0
      %v4424 = vadd.f32 0.0, %v4423
      %v4425 = vpop.f32.mrf.mxu0
      %4426 = vmatprep.mubr.bf16.mxu0 0
      %4427 = vmatmul.mubr.bf16.gmra.mxu0 %v4348
      %v4428 = vpop.f32.mrf.mxu0
      %v4429 = vadd.f32 0.0, %v4428
      %v4430 = vpop.f32.mrf.mxu0
      %v4431 = vpop.f32.mrf.mxu0
      %v4432 = vadd.f32 0.0, %v4431
      %v4433 = vpop.f32.mrf.mxu0
      %4434 = vmatprep.mubr.bf16.mxu0 0
      %4435 = vmatmul.mubr.bf16.gmra.mxu0 %v4351
      %v4436 = vpop.f32.mrf.mxu0
      %v4437 = vadd.f32 0.0, %v4436
      %v4438 = vpop.f32.mrf.mxu0
      %v4439 = vpop.f32.mrf.mxu0
      %v4440 = vadd.f32 0.0, %v4439
      %v4441 = vpop.f32.mrf.mxu0
      %4442 = vmatprep.mubr.bf16.mxu0 0
      %4443 = vmatmul.mubr.bf16.gmra.mxu0 %v4354
      %v4444 = vpop.f32.mrf.mxu0
      %v4445 = vadd.f32 0.0, %v4444
      %v4446 = vpop.f32.mrf.mxu0
      %v4447 = vpop.f32.mrf.mxu0
      %v4448 = vadd.f32 0.0, %v4447
      %v4449 = vpop.f32.mrf.mxu0
      %4450 = vmatprep.mubr.bf16.mxu0 0
      %4451 = vmatmul.mubr.bf16.gmra.mxu0 %v4357
      %v4452 = vpop.f32.mrf.mxu0
      %v4453 = vadd.f32 0.0, %v4452
      %v4454 = vpop.f32.mrf.mxu0
      %v4455 = vpop.f32.mrf.mxu0
      %v4456 = vadd.f32 0.0, %v4455
      %v4457 = vpop.f32.mrf.mxu0
      %4458 = vdwg.mxu0
      %v4459 = vadd.f32 %v4251, %v4397
      %v4460 = vadd.f32 %v4254, %v4400
      %v4461 = vadd.f32 %v4259, %v4405
      %v4462 = vadd.f32 %v4262, %v4408
      %v4463 = vadd.f32 %v4267, %v4413
      %v4464 = vadd.f32 %v4270, %v4416
      %v4465 = vadd.f32 %v4275, %v4421
      %v4466 = vadd.f32 %v4278, %v4424
      %v4467 = vadd.f32 %v4283, %v4429
      %v4468 = vadd.f32 %v4286, %v4432
      %v4469 = vadd.f32 %v4291, %v4437
      %v4470 = vadd.f32 %v4294, %v4440
      %v4471 = vadd.f32 %v4299, %v4445
      %v4472 = vadd.f32 %v4302, %v4448
      %v4473 = vadd.f32 %v4307, %v4453
      %v4474 = vadd.f32 %v4310, %v4456
      %v4475 = vld [vmem:[%s219 + $0x8c] sm:$0xf]
      %v4476 = vld [vmem:[%s219 + $0x90] sm:$0xf]
      %v4477 = vld [vmem:[%s219 + $0x94] sm:$0xf]
      %v4478 = vld [vmem:[%s219 + $0x98] sm:$0xf]
      %v4479 = vld [vmem:[%s219 + $0x9c] sm:$0xf]
      %v4480 = vld [vmem:[%s219 + $0xa0] sm:$0xf]
      %v4481 = vld [vmem:[%s219 + $0xa4] sm:$0xf]
      %v4482 = vld [vmem:[%s219 + $0xa8] sm:$0xf]
      %v4483 = vld [vmem:[%s219 + $0xac] sm:$0xf]
      %v4484 = vld [vmem:[%s219 + $0xb0] sm:$0xf]
      %v4485 = vld [vmem:[%s219 + $0xb4] sm:$0xf]
      %v4486 = vld [vmem:[%s219 + $0xb8] sm:$0xf]
      %v4487 = vld [vmem:[%s219 + $0xbc] sm:$0xf]
      %v4488 = vld [vmem:[%s219 + $0xc0] sm:$0xf]
      %v4489 = vld [vmem:[%s219 + $0xc4] sm:$0xf]
      %v4490 = vld [vmem:[%s219 + $0xc8] sm:$0xf]
      %v4491 = vld [vmem:[%s1207] sm:$0x3]
      %v4508 = vunpack.c.l.b16 %v4475
      %v4509 = vunpack.c.l.b16 %v4476
      %v4510 = vunpack.c.l.b16 %v4477
      %v4511 = vunpack.c.l.b16 %v4478
      %v4512 = vunpack.c.l.b16 %v4479
      %v4513 = vunpack.c.l.b16 %v4480
      %v4514 = vunpack.c.l.b16 %v4481
      %v4515 = vunpack.c.l.b16 %v4482
      %v4516 = vunpack.c.l.b16 %v4483
      %v4517 = vunpack.c.l.b16 %v4484
      %v4518 = vunpack.c.l.b16 %v4485
      %v4519 = vunpack.c.l.b16 %v4486
      %v4520 = vunpack.c.l.b16 %v4487
      %v4521 = vunpack.c.l.b16 %v4488
      %v4522 = vunpack.c.l.b16 %v4489
      %v4523 = vunpack.c.l.b16 %v4490
      %v4524 = vpack.c.b16 %v4509, %v4508
      %v4525 = vpack.c.b16 %v4511, %v4510
      %v4526 = vpack.c.b16 %v4513, %v4512
      %v4527 = vpack.c.b16 %v4515, %v4514
      %v4528 = vpack.c.b16 %v4517, %v4516
      %v4529 = vpack.c.b16 %v4519, %v4518
      %v4530 = vpack.c.b16 %v4521, %v4520
      %v4531 = vpack.c.b16 %v4523, %v4522
      %v4533 = vsel %vm481, %v4524, 0
      %v4536 = vsel %vm481, %v4525, 0
      %v4539 = vsel %vm481, %v4526, 0
      %v4542 = vsel %vm481, %v4527, 0
      %v4545 = vsel %vm481, %v4528, 0
      %v4548 = vsel %vm481, %v4529, 0
      %v4551 = vsel %vm481, %v4530, 0
      %v4554 = vsel %vm481, %v4531, 0
      %v4557 = vsel %vm530, %v4491, 0
      %4559 = vmatprep.subr.bf16.mxu0 0
      %4560 = vmatpush1.bf16.msra.mxu0 0
      %4561 = vmatprep.subr.bf16.mxu0 0
      %4562 = vmatpush1.bf16.msra.mxu0 0
      %4563 = vmatprep.subr.bf16.mxu0 0
      %4564 = vmatpush1.bf16.msra.mxu0 0
      %4565 = vmatprep.subr.bf16.mxu0 0
      %4566 = vmatpush1.bf16.msra.mxu0 0
      %4567 = vmatprep.subr.bf16.mxu0 0
      %4568 = vmatpush1.bf16.msra.mxu0 0
      %4569 = vmatprep.subr.bf16.mxu0 0
      %4570 = vmatpush1.bf16.msra.mxu0 0
      %4571 = vmatprep.subr.bf16.mxu0 0
      %4572 = vmatpush1.bf16.msra.mxu0 0
      %4573 = vmatprep.subr.bf16.mxu0 0
      %4574 = vmatpush1.bf16.msra.mxu0 %v4557
      %4575 = vmatprep.subr.bf16.mxu0 0
      %4576 = vmatpush2.bf16.msra.mxu0 0
      %4577 = vmatprep.subr.bf16.mxu0 0
      %4578 = vmatpush2.bf16.msra.mxu0 0
      %4579 = vmatprep.subr.bf16.mxu0 0
      %4580 = vmatpush2.bf16.msra.mxu0 0
      %4581 = vmatprep.subr.bf16.mxu0 0
      %4582 = vmatpush2.bf16.msra.mxu0 0
      %4583 = vmatprep.subr.bf16.mxu0 0
      %4584 = vmatpush2.bf16.msra.mxu0 0
      %4585 = vmatprep.subr.bf16.mxu0 0
      %4586 = vmatpush2.bf16.msra.mxu0 0
      %4587 = vmatprep.subr.bf16.mxu0 0
      %4588 = vmatpush2.bf16.msra.mxu0 0
      %4589 = vmatprep.subr.bf16.mxu0 0
      %4590 = vmatpush2.bf16.msra.mxu0 0
      %4591 = vmatprep.mubr.bf16.mxu0 0
      %4592 = vmatmul.mubr.bf16.gmra.mxu0 %v4533
      %v4593 = vpop.f32.mrf.mxu0
      %v4594 = vadd.f32 0.0, %v4593
      %v4595 = vpop.f32.mrf.mxu0
      %v4596 = vpop.f32.mrf.mxu0
      %v4597 = vadd.f32 0.0, %v4596
      %v4598 = vpop.f32.mrf.mxu0
      %4599 = vmatprep.mubr.bf16.mxu0 0
      %4600 = vmatmul.mubr.bf16.gmra.mxu0 %v4536
      %v4601 = vpop.f32.mrf.mxu0
      %v4602 = vadd.f32 0.0, %v4601
      %v4603 = vpop.f32.mrf.mxu0
      %v4604 = vpop.f32.mrf.mxu0
      %v4605 = vadd.f32 0.0, %v4604
      %v4606 = vpop.f32.mrf.mxu0
      %4607 = vmatprep.mubr.bf16.mxu0 0
      %4608 = vmatmul.mubr.bf16.gmra.mxu0 %v4539
      %v4609 = vpop.f32.mrf.mxu0
      %v4610 = vadd.f32 0.0, %v4609
      %v4611 = vpop.f32.mrf.mxu0
      %v4612 = vpop.f32.mrf.mxu0
      %v4613 = vadd.f32 0.0, %v4612
      %v4614 = vpop.f32.mrf.mxu0
      %4615 = vmatprep.mubr.bf16.mxu0 0
      %4616 = vmatmul.mubr.bf16.gmra.mxu0 %v4542
      %v4617 = vpop.f32.mrf.mxu0
      %v4618 = vadd.f32 0.0, %v4617
      %v4619 = vpop.f32.mrf.mxu0
      %v4620 = vpop.f32.mrf.mxu0
      %v4621 = vadd.f32 0.0, %v4620
      %v4622 = vpop.f32.mrf.mxu0
      %4623 = vmatprep.mubr.bf16.mxu0 0
      %4624 = vmatmul.mubr.bf16.gmra.mxu0 %v4545
      %v4625 = vpop.f32.mrf.mxu0
      %v4626 = vadd.f32 0.0, %v4625
      %v4627 = vpop.f32.mrf.mxu0
      %v4628 = vpop.f32.mrf.mxu0
      %v4629 = vadd.f32 0.0, %v4628
      %v4630 = vpop.f32.mrf.mxu0
      %4631 = vmatprep.mubr.bf16.mxu0 0
      %4632 = vmatmul.mubr.bf16.gmra.mxu0 %v4548
      %v4633 = vpop.f32.mrf.mxu0
      %v4634 = vadd.f32 0.0, %v4633
      %v4635 = vpop.f32.mrf.mxu0
      %v4636 = vpop.f32.mrf.mxu0
      %v4637 = vadd.f32 0.0, %v4636
      %v4638 = vpop.f32.mrf.mxu0
      %4639 = vmatprep.mubr.bf16.mxu0 0
      %4640 = vmatmul.mubr.bf16.gmra.mxu0 %v4551
      %v4641 = vpop.f32.mrf.mxu0
      %v4642 = vadd.f32 0.0, %v4641
      %v4643 = vpop.f32.mrf.mxu0
      %v4644 = vpop.f32.mrf.mxu0
      %v4645 = vadd.f32 0.0, %v4644
      %v4646 = vpop.f32.mrf.mxu0
      %4647 = vmatprep.mubr.bf16.mxu0 0
      %4648 = vmatmul.mubr.bf16.gmra.mxu0 %v4554
      %v4649 = vpop.f32.mrf.mxu0
      %v4650 = vadd.f32 0.0, %v4649
      %v4651 = vpop.f32.mrf.mxu0
      %v4652 = vpop.f32.mrf.mxu0
      %v4653 = vadd.f32 0.0, %v4652
      %v4654 = vpop.f32.mrf.mxu0
      %4655 = vdwg.mxu0
      %v4656 = vadd.f32 %v4459, %v4594
      %v4657 = vadd.f32 %v4460, %v4597
      %v4658 = vadd.f32 %v4461, %v4602
      %v4659 = vadd.f32 %v4462, %v4605
      %v4660 = vadd.f32 %v4463, %v4610
      %v4661 = vadd.f32 %v4464, %v4613
      %v4662 = vadd.f32 %v4465, %v4618
      %v4663 = vadd.f32 %v4466, %v4621
      %v4664 = vadd.f32 %v4467, %v4626
      %v4665 = vadd.f32 %v4468, %v4629
      %v4666 = vadd.f32 %v4469, %v4634
      %v4667 = vadd.f32 %v4470, %v4637
      %v4668 = vadd.f32 %v4471, %v4642
      %v4669 = vadd.f32 %v4472, %v4645
      %v4670 = vadd.f32 %v4473, %v4650
      %v4671 = vadd.f32 %v4474, %v4653
      %v4672 = vld [vmem:[%s219 + $0x8c] sm:$0xf]
      %v4673 = vld [vmem:[%s219 + $0x90] sm:$0xf]
      %v4674 = vld [vmem:[%s219 + $0x94] sm:$0xf]
      %v4675 = vld [vmem:[%s219 + $0x98] sm:$0xf]
      %v4676 = vld [vmem:[%s219 + $0x9c] sm:$0xf]
      %v4677 = vld [vmem:[%s219 + $0xa0] sm:$0xf]
      %v4678 = vld [vmem:[%s219 + $0xa4] sm:$0xf]
      %v4679 = vld [vmem:[%s219 + $0xa8] sm:$0xf]
      %v4680 = vld [vmem:[%s219 + $0xac] sm:$0xf]
      %v4681 = vld [vmem:[%s219 + $0xb0] sm:$0xf]
      %v4682 = vld [vmem:[%s219 + $0xb4] sm:$0xf]
      %v4683 = vld [vmem:[%s219 + $0xb8] sm:$0xf]
      %v4684 = vld [vmem:[%s219 + $0xbc] sm:$0xf]
      %v4685 = vld [vmem:[%s219 + $0xc0] sm:$0xf]
      %v4686 = vld [vmem:[%s219 + $0xc4] sm:$0xf]
      %v4687 = vld [vmem:[%s219 + $0xc8] sm:$0xf]
      %v4688 = vld [vmem:[%s219 + $0xcc] sm:$0x1]
      %v4689 = vld [vmem:[%s1566] sm:$0x3]
      %v4707 = vunpack.c.l.b16 %v4672
      %v4708 = vunpack.c.l.b16 %v4673
      %v4709 = vunpack.c.l.b16 %v4674
      %v4710 = vunpack.c.l.b16 %v4675
      %v4711 = vunpack.c.l.b16 %v4676
      %v4712 = vunpack.c.l.b16 %v4677
      %v4713 = vunpack.c.l.b16 %v4678
      %v4714 = vunpack.c.l.b16 %v4679
      %v4715 = vunpack.c.l.b16 %v4680
      %v4716 = vunpack.c.l.b16 %v4681
      %v4717 = vunpack.c.l.b16 %v4682
      %v4718 = vunpack.c.l.b16 %v4683
      %v4719 = vunpack.c.l.b16 %v4684
      %v4720 = vunpack.c.l.b16 %v4685
      %v4721 = vunpack.c.l.b16 %v4686
      %v4722 = vunpack.c.l.b16 %v4687
      %v4723 = vunpack.c.l.b16 %v4688
      %v4724 = vpack.c.b16 %v4708, %v4707
      %v4725 = vpack.c.b16 %v4710, %v4709
      %v4726 = vpack.c.b16 %v4712, %v4711
      %v4727 = vpack.c.b16 %v4714, %v4713
      %v4728 = vpack.c.b16 %v4716, %v4715
      %v4729 = vpack.c.b16 %v4718, %v4717
      %v4730 = vpack.c.b16 %v4720, %v4719
      %v4731 = vpack.c.b16 %v4722, %v4721
      %v4732 = vpack.c.b16 %v4723, %v4723
      %v4734 = vshrl.u32 %v4724, 16
      %v4736 = vshll.u32 %v4724, 16
      %v4738 = vrot.slane %v4736, 1
      %v4739 = vor.u32 %v4734, %v4738
      %v4741 = vshll.u32 %v4725, 16
      %v4743 = vrot.slane %v4741, 1
      %v4744 = vsel %vm348, %v4739, %v4743
      %v4745 = vshrl.u32 %v4725, 16
      %v4747 = vor.u32 %v4745, %v4743
      %v4749 = vshll.u32 %v4726, 16
      %v4751 = vrot.slane %v4749, 1
      %v4752 = vsel %vm348, %v4747, %v4751
      %v4753 = vshrl.u32 %v4726, 16
      %v4755 = vor.u32 %v4753, %v4751
      %v4757 = vshll.u32 %v4727, 16
      %v4759 = vrot.slane %v4757, 1
      %v4760 = vsel %vm348, %v4755, %v4759
      %v4761 = vshrl.u32 %v4727, 16
      %v4763 = vor.u32 %v4761, %v4759
      %v4765 = vshll.u32 %v4728, 16
      %v4767 = vrot.slane %v4765, 1
      %v4768 = vsel %vm348, %v4763, %v4767
      %v4769 = vshrl.u32 %v4728, 16
      %v4771 = vor.u32 %v4769, %v4767
      %v4773 = vshll.u32 %v4729, 16
      %v4775 = vrot.slane %v4773, 1
      %v4776 = vsel %vm348, %v4771, %v4775
      %v4777 = vshrl.u32 %v4729, 16
      %v4779 = vor.u32 %v4777, %v4775
      %v4781 = vshll.u32 %v4730, 16
      %v4783 = vrot.slane %v4781, 1
      %v4784 = vsel %vm348, %v4779, %v4783
      %v4785 = vshrl.u32 %v4730, 16
      %v4787 = vor.u32 %v4785, %v4783
      %v4789 = vshll.u32 %v4731, 16
      %v4791 = vrot.slane %v4789, 1
      %v4792 = vsel %vm348, %v4787, %v4791
      %v4793 = vshrl.u32 %v4731, 16
      %v4795 = vor.u32 %v4793, %v4791
      %v4797 = vshll.u32 %v4732, 16
      %v4799 = vrot.slane %v4797, 1
      %v4800 = vsel %vm348, %v4795, %v4799
      %v4802 = vsel %vm481, %v4744, 0
      %v4805 = vsel %vm481, %v4752, 0
      %v4808 = vsel %vm481, %v4760, 0
      %v4811 = vsel %vm481, %v4768, 0
      %v4814 = vsel %vm481, %v4776, 0
      %v4817 = vsel %vm481, %v4784, 0
      %v4820 = vsel %vm481, %v4792, 0
      %v4823 = vsel %vm481, %v4800, 0
      %v4826 = vsel %vm530, %v4689, 0
      %4828 = vmatprep.subr.bf16.mxu0 0
      %4829 = vmatpush1.bf16.msra.mxu0 0
      %4830 = vmatprep.subr.bf16.mxu0 0
      %4831 = vmatpush1.bf16.msra.mxu0 0
      %4832 = vmatprep.subr.bf16.mxu0 0
      %4833 = vmatpush1.bf16.msra.mxu0 0
      %4834 = vmatprep.subr.bf16.mxu0 0
      %4835 = vmatpush1.bf16.msra.mxu0 0
      %4836 = vmatprep.subr.bf16.mxu0 0
      %4837 = vmatpush1.bf16.msra.mxu0 0
      %4838 = vmatprep.subr.bf16.mxu0 0
      %4839 = vmatpush1.bf16.msra.mxu0 0
      %4840 = vmatprep.subr.bf16.mxu0 0
      %4841 = vmatpush1.bf16.msra.mxu0 0
      %4842 = vmatprep.subr.bf16.mxu0 0
      %4843 = vmatpush1.bf16.msra.mxu0 %v4826
      %4844 = vmatprep.subr.bf16.mxu0 0
      %4845 = vmatpush2.bf16.msra.mxu0 0
      %4846 = vmatprep.subr.bf16.mxu0 0
      %4847 = vmatpush2.bf16.msra.mxu0 0
      %4848 = vmatprep.subr.bf16.mxu0 0
      %4849 = vmatpush2.bf16.msra.mxu0 0
      %4850 = vmatprep.subr.bf16.mxu0 0
      %4851 = vmatpush2.bf16.msra.mxu0 0
      %4852 = vmatprep.subr.bf16.mxu0 0
      %4853 = vmatpush2.bf16.msra.mxu0 0
      %4854 = vmatprep.subr.bf16.mxu0 0
      %4855 = vmatpush2.bf16.msra.mxu0 0
      %4856 = vmatprep.subr.bf16.mxu0 0
      %4857 = vmatpush2.bf16.msra.mxu0 0
      %4858 = vmatprep.subr.bf16.mxu0 0
      %4859 = vmatpush2.bf16.msra.mxu0 0
      %4860 = vmatprep.mubr.bf16.mxu0 0
      %4861 = vmatmul.mubr.bf16.gmra.mxu0 %v4802
      %v4862 = vpop.f32.mrf.mxu0
      %v4863 = vadd.f32 0.0, %v4862
      %v4864 = vpop.f32.mrf.mxu0
      %v4865 = vpop.f32.mrf.mxu0
      %v4866 = vadd.f32 0.0, %v4865
      %v4867 = vpop.f32.mrf.mxu0
      %4868 = vmatprep.mubr.bf16.mxu0 0
      %4869 = vmatmul.mubr.bf16.gmra.mxu0 %v4805
      %v4870 = vpop.f32.mrf.mxu0
      %v4871 = vadd.f32 0.0, %v4870
      %v4872 = vpop.f32.mrf.mxu0
      %v4873 = vpop.f32.mrf.mxu0
      %v4874 = vadd.f32 0.0, %v4873
      %v4875 = vpop.f32.mrf.mxu0
      %4876 = vmatprep.mubr.bf16.mxu0 0
      %4877 = vmatmul.mubr.bf16.gmra.mxu0 %v4808
      %v4878 = vpop.f32.mrf.mxu0
      %v4879 = vadd.f32 0.0, %v4878
      %v4880 = vpop.f32.mrf.mxu0
      %v4881 = vpop.f32.mrf.mxu0
      %v4882 = vadd.f32 0.0, %v4881
      %v4883 = vpop.f32.mrf.mxu0
      %4884 = vmatprep.mubr.bf16.mxu0 0
      %4885 = vmatmul.mubr.bf16.gmra.mxu0 %v4811
      %v4886 = vpop.f32.mrf.mxu0
      %v4887 = vadd.f32 0.0, %v4886
      %v4888 = vpop.f32.mrf.mxu0
      %v4889 = vpop.f32.mrf.mxu0
      %v4890 = vadd.f32 0.0, %v4889
      %v4891 = vpop.f32.mrf.mxu0
      %4892 = vmatprep.mubr.bf16.mxu0 0
      %4893 = vmatmul.mubr.bf16.gmra.mxu0 %v4814
      %v4894 = vpop.f32.mrf.mxu0
      %v4895 = vadd.f32 0.0, %v4894
      %v4896 = vpop.f32.mrf.mxu0
      %v4897 = vpop.f32.mrf.mxu0
      %v4898 = vadd.f32 0.0, %v4897
      %v4899 = vpop.f32.mrf.mxu0
      %4900 = vmatprep.mubr.bf16.mxu0 0
      %4901 = vmatmul.mubr.bf16.gmra.mxu0 %v4817
      %v4902 = vpop.f32.mrf.mxu0
      %v4903 = vadd.f32 0.0, %v4902
      %v4904 = vpop.f32.mrf.mxu0
      %v4905 = vpop.f32.mrf.mxu0
      %v4906 = vadd.f32 0.0, %v4905
      %v4907 = vpop.f32.mrf.mxu0
      %4908 = vmatprep.mubr.bf16.mxu0 0
      %4909 = vmatmul.mubr.bf16.gmra.mxu0 %v4820
      %v4910 = vpop.f32.mrf.mxu0
      %v4911 = vadd.f32 0.0, %v4910
      %v4912 = vpop.f32.mrf.mxu0
      %v4913 = vpop.f32.mrf.mxu0
      %v4914 = vadd.f32 0.0, %v4913
      %v4915 = vpop.f32.mrf.mxu0
      %4916 = vmatprep.mubr.bf16.mxu0 0
      %4917 = vmatmul.mubr.bf16.gmra.mxu0 %v4823
      %v4918 = vpop.f32.mrf.mxu0
      %v4919 = vadd.f32 0.0, %v4918
      %v4920 = vpop.f32.mrf.mxu0
      %v4921 = vpop.f32.mrf.mxu0
      %v4922 = vadd.f32 0.0, %v4921
      %v4923 = vpop.f32.mrf.mxu0
      %4924 = vdwg.mxu0
      %v4925 = vadd.f32 %v4656, %v4863
      %v4926 = vadd.f32 %v4657, %v4866
      %v4927 = vadd.f32 %v4658, %v4871
      %v4928 = vadd.f32 %v4659, %v4874
      %v4929 = vadd.f32 %v4660, %v4879
      %v4930 = vadd.f32 %v4661, %v4882
      %v4931 = vadd.f32 %v4662, %v4887
      %v4932 = vadd.f32 %v4663, %v4890
      %v4933 = vadd.f32 %v4664, %v4895
      %v4934 = vadd.f32 %v4665, %v4898
      %v4935 = vadd.f32 %v4666, %v4903
      %v4936 = vadd.f32 %v4667, %v4906
      %v4937 = vadd.f32 %v4668, %v4911
      %v4938 = vadd.f32 %v4669, %v4914
      %v4939 = vadd.f32 %v4670, %v4919
      %v4940 = vadd.f32 %v4671, %v4922
      %v4941 = vld [vmem:[%s219 + $0x8c] sm:$0xe]
      %v4942 = vld [vmem:[%s2028] sm:$0x3]
      %v4944 = vunpack.c.l.b16 %v4941
      %v4945 = vpack.c.b16 %v4708, %v4944
      %v4946 = vrot.slane %v4945, 1
      %v4947 = vrot.slane %v4725, 1
      %v4948 = vsel %vm897, %v4946, %v4947
      %v4949 = vrot.slane %v4726, 1
      %v4950 = vsel %vm897, %v4947, %v4949
      %v4951 = vrot.slane %v4727, 1
      %v4952 = vsel %vm897, %v4949, %v4951
      %v4953 = vrot.slane %v4728, 1
      %v4954 = vsel %vm897, %v4951, %v4953
      %v4955 = vrot.slane %v4729, 1
      %v4956 = vsel %vm897, %v4953, %v4955
      %v4957 = vrot.slane %v4730, 1
      %v4958 = vsel %vm897, %v4955, %v4957
      %v4959 = vrot.slane %v4731, 1
      %v4960 = vsel %vm897, %v4957, %v4959
      %v4961 = vrot.slane %v4732, 1
      %v4962 = vsel %vm897, %v4959, %v4961
      %v4964 = vsel %vm481, %v4948, 0
      %v4967 = vsel %vm481, %v4950, 0
      %v4970 = vsel %vm481, %v4952, 0
      %v4973 = vsel %vm481, %v4954, 0
      %v4976 = vsel %vm481, %v4956, 0
      %v4979 = vsel %vm481, %v4958, 0
      %v4982 = vsel %vm481, %v4960, 0
      %v4985 = vsel %vm481, %v4962, 0
      %v4988 = vsel %vm530, %v4942, 0
      %4990 = vmatprep.subr.bf16.mxu0 0
      %4991 = vmatpush1.bf16.msra.mxu0 0
      %4992 = vmatprep.subr.bf16.mxu0 0
      %4993 = vmatpush1.bf16.msra.mxu0 0
      %4994 = vmatprep.subr.bf16.mxu0 0
      %4995 = vmatpush1.bf16.msra.mxu0 0
      %4996 = vmatprep.subr.bf16.mxu0 0
      %4997 = vmatpush1.bf16.msra.mxu0 0
      %4998 = vmatprep.subr.bf16.mxu0 0
      %4999 = vmatpush1.bf16.msra.mxu0 0
      %5000 = vmatprep.subr.bf16.mxu0 0
      %5001 = vmatpush1.bf16.msra.mxu0 0
      %5002 = vmatprep.subr.bf16.mxu0 0
      %5003 = vmatpush1.bf16.msra.mxu0 0
      %5004 = vmatprep.subr.bf16.mxu0 0
      %5005 = vmatpush1.bf16.msra.mxu0 %v4988
      %5006 = vmatprep.subr.bf16.mxu0 0
      %5007 = vmatpush2.bf16.msra.mxu0 0
      %5008 = vmatprep.subr.bf16.mxu0 0
      %5009 = vmatpush2.bf16.msra.mxu0 0
      %5010 = vmatprep.subr.bf16.mxu0 0
      %5011 = vmatpush2.bf16.msra.mxu0 0
      %5012 = vmatprep.subr.bf16.mxu0 0
      %5013 = vmatpush2.bf16.msra.mxu0 0
      %5014 = vmatprep.subr.bf16.mxu0 0
      %5015 = vmatpush2.bf16.msra.mxu0 0
      %5016 = vmatprep.subr.bf16.mxu0 0
      %5017 = vmatpush2.bf16.msra.mxu0 0
      %5018 = vmatprep.subr.bf16.mxu0 0
      %5019 = vmatpush2.bf16.msra.mxu0 0
      %5020 = vmatprep.subr.bf16.mxu0 0
      %5021 = vmatpush2.bf16.msra.mxu0 0
      %5022 = vmatprep.mubr.bf16.mxu0 0
      %5023 = vmatmul.mubr.bf16.gmra.mxu0 %v4964
      %v5024 = vpop.f32.mrf.mxu0
      %v5025 = vadd.f32 0.0, %v5024
      %v5026 = vpop.f32.mrf.mxu0
      %v5027 = vpop.f32.mrf.mxu0
      %v5028 = vadd.f32 0.0, %v5027
      %v5029 = vpop.f32.mrf.mxu0
      %5030 = vmatprep.mubr.bf16.mxu0 0
      %5031 = vmatmul.mubr.bf16.gmra.mxu0 %v4967
      %v5032 = vpop.f32.mrf.mxu0
      %v5033 = vadd.f32 0.0, %v5032
      %v5034 = vpop.f32.mrf.mxu0
      %v5035 = vpop.f32.mrf.mxu0
      %v5036 = vadd.f32 0.0, %v5035
      %v5037 = vpop.f32.mrf.mxu0
      %5038 = vmatprep.mubr.bf16.mxu0 0
      %5039 = vmatmul.mubr.bf16.gmra.mxu0 %v4970
      %v5040 = vpop.f32.mrf.mxu0
      %v5041 = vadd.f32 0.0, %v5040
      %v5042 = vpop.f32.mrf.mxu0
      %v5043 = vpop.f32.mrf.mxu0
      %v5044 = vadd.f32 0.0, %v5043
      %v5045 = vpop.f32.mrf.mxu0
      %5046 = vmatprep.mubr.bf16.mxu0 0
      %5047 = vmatmul.mubr.bf16.gmra.mxu0 %v4973
      %v5048 = vpop.f32.mrf.mxu0
      %v5049 = vadd.f32 0.0, %v5048
      %v5050 = vpop.f32.mrf.mxu0
      %v5051 = vpop.f32.mrf.mxu0
      %v5052 = vadd.f32 0.0, %v5051
      %v5053 = vpop.f32.mrf.mxu0
      %5054 = vmatprep.mubr.bf16.mxu0 0
      %5055 = vmatmul.mubr.bf16.gmra.mxu0 %v4976
      %v5056 = vpop.f32.mrf.mxu0
      %v5057 = vadd.f32 0.0, %v5056
      %v5058 = vpop.f32.mrf.mxu0
      %v5059 = vpop.f32.mrf.mxu0
      %v5060 = vadd.f32 0.0, %v5059
      %v5061 = vpop.f32.mrf.mxu0
      %5062 = vmatprep.mubr.bf16.mxu0 0
      %5063 = vmatmul.mubr.bf16.gmra.mxu0 %v4979
      %v5064 = vpop.f32.mrf.mxu0
      %v5065 = vadd.f32 0.0, %v5064
      %v5066 = vpop.f32.mrf.mxu0
      %v5067 = vpop.f32.mrf.mxu0
      %v5068 = vadd.f32 0.0, %v5067
      %v5069 = vpop.f32.mrf.mxu0
      %5070 = vmatprep.mubr.bf16.mxu0 0
      %5071 = vmatmul.mubr.bf16.gmra.mxu0 %v4982
      %v5072 = vpop.f32.mrf.mxu0
      %v5073 = vadd.f32 0.0, %v5072
      %v5074 = vpop.f32.mrf.mxu0
      %v5075 = vpop.f32.mrf.mxu0
      %v5076 = vadd.f32 0.0, %v5075
      %v5077 = vpop.f32.mrf.mxu0
      %5078 = vmatprep.mubr.bf16.mxu0 0
      %5079 = vmatmul.mubr.bf16.gmra.mxu0 %v4985
      %v5080 = vpop.f32.mrf.mxu0
      %v5081 = vadd.f32 0.0, %v5080
      %v5082 = vpop.f32.mrf.mxu0
      %v5083 = vpop.f32.mrf.mxu0
      %v5084 = vadd.f32 0.0, %v5083
      %v5085 = vpop.f32.mrf.mxu0
      %5086 = vdwg.mxu0
      %v5087 = vadd.f32 %v4925, %v5025
      %v5088 = vadd.f32 %v4926, %v5028
      %v5089 = vadd.f32 %v4927, %v5033
      %v5090 = vadd.f32 %v4928, %v5036
      %v5091 = vadd.f32 %v4929, %v5041
      %v5092 = vadd.f32 %v4930, %v5044
      %v5093 = vadd.f32 %v4931, %v5049
      %v5094 = vadd.f32 %v4932, %v5052
      %v5095 = vadd.f32 %v4933, %v5057
      %v5096 = vadd.f32 %v4934, %v5060
      %v5097 = vadd.f32 %v4935, %v5065
      %v5098 = vadd.f32 %v4936, %v5068
      %v5099 = vadd.f32 %v4937, %v5073
      %v5100 = vadd.f32 %v4938, %v5076
      %v5101 = vadd.f32 %v4939, %v5081
      %v5102 = vadd.f32 %v4940, %v5084
      %v5103 = vld [vmem:[%s219 + $0x98] sm:$0xf]
      %v5104 = vld [vmem:[%s219 + $0x9c] sm:$0xf]
      %v5105 = vld [vmem:[%s219 + $0xa0] sm:$0xf]
      %v5106 = vld [vmem:[%s219 + $0xa4] sm:$0xf]
      %v5107 = vld [vmem:[%s219 + $0xa8] sm:$0xf]
      %v5108 = vld [vmem:[%s219 + $0xac] sm:$0xf]
      %v5109 = vld [vmem:[%s219 + $0xb0] sm:$0xf]
      %v5110 = vld [vmem:[%s219 + $0xb4] sm:$0xf]
      %v5111 = vld [vmem:[%s219 + $0xb8] sm:$0xf]
      %v5112 = vld [vmem:[%s219 + $0xbc] sm:$0xf]
      %v5113 = vld [vmem:[%s219 + $0xc0] sm:$0xf]
      %v5114 = vld [vmem:[%s219 + $0xc4] sm:$0xf]
      %v5115 = vld [vmem:[%s219 + $0xc8] sm:$0xf]
      %v5116 = vld [vmem:[%s219 + $0xcc] sm:$0xf]
      %v5117 = vld [vmem:[%s219 + $0xd0] sm:$0xf]
      %v5118 = vld [vmem:[%s219 + $0xd4] sm:$0xf]
      %v5119 = vld [vmem:[%s2342] sm:$0x3]
      %v5136 = vunpack.c.l.b16 %v5103
      %v5137 = vunpack.c.l.b16 %v5104
      %v5138 = vunpack.c.l.b16 %v5105
      %v5139 = vunpack.c.l.b16 %v5106
      %v5140 = vunpack.c.l.b16 %v5107
      %v5141 = vunpack.c.l.b16 %v5108
      %v5142 = vunpack.c.l.b16 %v5109
      %v5143 = vunpack.c.l.b16 %v5110
      %v5144 = vunpack.c.l.b16 %v5111
      %v5145 = vunpack.c.l.b16 %v5112
      %v5146 = vunpack.c.l.b16 %v5113
      %v5147 = vunpack.c.l.b16 %v5114
      %v5148 = vunpack.c.l.b16 %v5115
      %v5149 = vunpack.c.l.b16 %v5116
      %v5150 = vunpack.c.l.b16 %v5117
      %v5151 = vunpack.c.l.b16 %v5118
      %v5152 = vpack.c.b16 %v5137, %v5136
      %v5153 = vpack.c.b16 %v5139, %v5138
      %v5154 = vpack.c.b16 %v5141, %v5140
      %v5155 = vpack.c.b16 %v5143, %v5142
      %v5156 = vpack.c.b16 %v5145, %v5144
      %v5157 = vpack.c.b16 %v5147, %v5146
      %v5158 = vpack.c.b16 %v5149, %v5148
      %v5159 = vpack.c.b16 %v5151, %v5150
      %v5161 = vsel %vm481, %v5152, 0
      %v5164 = vsel %vm481, %v5153, 0
      %v5167 = vsel %vm481, %v5154, 0
      %v5170 = vsel %vm481, %v5155, 0
      %v5173 = vsel %vm481, %v5156, 0
      %v5176 = vsel %vm481, %v5157, 0
      %v5179 = vsel %vm481, %v5158, 0
      %v5182 = vsel %vm481, %v5159, 0
      %v5185 = vsel %vm530, %v5119, 0
      %5187 = vmatprep.subr.bf16.mxu0 0
      %5188 = vmatpush1.bf16.msra.mxu0 0
      %5189 = vmatprep.subr.bf16.mxu0 0
      %5190 = vmatpush1.bf16.msra.mxu0 0
      %5191 = vmatprep.subr.bf16.mxu0 0
      %5192 = vmatpush1.bf16.msra.mxu0 0
      %5193 = vmatprep.subr.bf16.mxu0 0
      %5194 = vmatpush1.bf16.msra.mxu0 0
      %5195 = vmatprep.subr.bf16.mxu0 0
      %5196 = vmatpush1.bf16.msra.mxu0 0
      %5197 = vmatprep.subr.bf16.mxu0 0
      %5198 = vmatpush1.bf16.msra.mxu0 0
      %5199 = vmatprep.subr.bf16.mxu0 0
      %5200 = vmatpush1.bf16.msra.mxu0 0
      %5201 = vmatprep.subr.bf16.mxu0 0
      %5202 = vmatpush1.bf16.msra.mxu0 %v5185
      %5203 = vmatprep.subr.bf16.mxu0 0
      %5204 = vmatpush2.bf16.msra.mxu0 0
      %5205 = vmatprep.subr.bf16.mxu0 0
      %5206 = vmatpush2.bf16.msra.mxu0 0
      %5207 = vmatprep.subr.bf16.mxu0 0
      %5208 = vmatpush2.bf16.msra.mxu0 0
      %5209 = vmatprep.subr.bf16.mxu0 0
      %5210 = vmatpush2.bf16.msra.mxu0 0
      %5211 = vmatprep.subr.bf16.mxu0 0
      %5212 = vmatpush2.bf16.msra.mxu0 0
      %5213 = vmatprep.subr.bf16.mxu0 0
      %5214 = vmatpush2.bf16.msra.mxu0 0
      %5215 = vmatprep.subr.bf16.mxu0 0
      %5216 = vmatpush2.bf16.msra.mxu0 0
      %5217 = vmatprep.subr.bf16.mxu0 0
      %5218 = vmatpush2.bf16.msra.mxu0 0
      %5219 = vmatprep.mubr.bf16.mxu0 0
      %5220 = vmatmul.mubr.bf16.gmra.mxu0 %v5161
      %v5221 = vpop.f32.mrf.mxu0
      %v5222 = vadd.f32 0.0, %v5221
      %v5223 = vpop.f32.mrf.mxu0
      %v5224 = vpop.f32.mrf.mxu0
      %v5225 = vadd.f32 0.0, %v5224
      %v5226 = vpop.f32.mrf.mxu0
      %5227 = vmatprep.mubr.bf16.mxu0 0
      %5228 = vmatmul.mubr.bf16.gmra.mxu0 %v5164
      %v5229 = vpop.f32.mrf.mxu0
      %v5230 = vadd.f32 0.0, %v5229
      %v5231 = vpop.f32.mrf.mxu0
      %v5232 = vpop.f32.mrf.mxu0
      %v5233 = vadd.f32 0.0, %v5232
      %v5234 = vpop.f32.mrf.mxu0
      %5235 = vmatprep.mubr.bf16.mxu0 0
      %5236 = vmatmul.mubr.bf16.gmra.mxu0 %v5167
      %v5237 = vpop.f32.mrf.mxu0
      %v5238 = vadd.f32 0.0, %v5237
      %v5239 = vpop.f32.mrf.mxu0
      %v5240 = vpop.f32.mrf.mxu0
      %v5241 = vadd.f32 0.0, %v5240
      %v5242 = vpop.f32.mrf.mxu0
      %5243 = vmatprep.mubr.bf16.mxu0 0
      %5244 = vmatmul.mubr.bf16.gmra.mxu0 %v5170
      %v5245 = vpop.f32.mrf.mxu0
      %v5246 = vadd.f32 0.0, %v5245
      %v5247 = vpop.f32.mrf.mxu0
      %v5248 = vpop.f32.mrf.mxu0
      %v5249 = vadd.f32 0.0, %v5248
      %v5250 = vpop.f32.mrf.mxu0
      %5251 = vmatprep.mubr.bf16.mxu0 0
      %5252 = vmatmul.mubr.bf16.gmra.mxu0 %v5173
      %v5253 = vpop.f32.mrf.mxu0
      %v5254 = vadd.f32 0.0, %v5253
      %v5255 = vpop.f32.mrf.mxu0
      %v5256 = vpop.f32.mrf.mxu0
      %v5257 = vadd.f32 0.0, %v5256
      %v5258 = vpop.f32.mrf.mxu0
      %5259 = vmatprep.mubr.bf16.mxu0 0
      %5260 = vmatmul.mubr.bf16.gmra.mxu0 %v5176
      %v5261 = vpop.f32.mrf.mxu0
      %v5262 = vadd.f32 0.0, %v5261
      %v5263 = vpop.f32.mrf.mxu0
      %v5264 = vpop.f32.mrf.mxu0
      %v5265 = vadd.f32 0.0, %v5264
      %v5266 = vpop.f32.mrf.mxu0
      %5267 = vmatprep.mubr.bf16.mxu0 0
      %5268 = vmatmul.mubr.bf16.gmra.mxu0 %v5179
      %v5269 = vpop.f32.mrf.mxu0
      %v5270 = vadd.f32 0.0, %v5269
      %v5271 = vpop.f32.mrf.mxu0
      %v5272 = vpop.f32.mrf.mxu0
      %v5273 = vadd.f32 0.0, %v5272
      %v5274 = vpop.f32.mrf.mxu0
      %5275 = vmatprep.mubr.bf16.mxu0 0
      %5276 = vmatmul.mubr.bf16.gmra.mxu0 %v5182
      %v5277 = vpop.f32.mrf.mxu0
      %v5278 = vadd.f32 0.0, %v5277
      %v5279 = vpop.f32.mrf.mxu0
      %v5280 = vpop.f32.mrf.mxu0
      %v5281 = vadd.f32 0.0, %v5280
      %v5282 = vpop.f32.mrf.mxu0
      %5283 = vdwg.mxu0
      %v5284 = vadd.f32 %v5087, %v5222
      %v5285 = vadd.f32 %v5088, %v5225
      %v5286 = vadd.f32 %v5089, %v5230
      %v5287 = vadd.f32 %v5090, %v5233
      %v5288 = vadd.f32 %v5091, %v5238
      %v5289 = vadd.f32 %v5092, %v5241
      %v5290 = vadd.f32 %v5093, %v5246
      %v5291 = vadd.f32 %v5094, %v5249
      %v5292 = vadd.f32 %v5095, %v5254
      %v5293 = vadd.f32 %v5096, %v5257
      %v5294 = vadd.f32 %v5097, %v5262
      %v5295 = vadd.f32 %v5098, %v5265
      %v5296 = vadd.f32 %v5099, %v5270
      %v5297 = vadd.f32 %v5100, %v5273
      %v5298 = vadd.f32 %v5101, %v5278
      %v5299 = vadd.f32 %v5102, %v5281
      %v5300 = vld [vmem:[%s219 + $0x98] sm:$0xf]
      %v5301 = vld [vmem:[%s219 + $0x9c] sm:$0xf]
      %v5302 = vld [vmem:[%s219 + $0xa0] sm:$0xf]
      %v5303 = vld [vmem:[%s219 + $0xa4] sm:$0xf]
      %v5304 = vld [vmem:[%s219 + $0xa8] sm:$0xf]
      %v5305 = vld [vmem:[%s219 + $0xac] sm:$0xf]
      %v5306 = vld [vmem:[%s219 + $0xb0] sm:$0xf]
      %v5307 = vld [vmem:[%s219 + $0xb4] sm:$0xf]
      %v5308 = vld [vmem:[%s219 + $0xb8] sm:$0xf]
      %v5309 = vld [vmem:[%s219 + $0xbc] sm:$0xf]
      %v5310 = vld [vmem:[%s219 + $0xc0] sm:$0xf]
      %v5311 = vld [vmem:[%s219 + $0xc4] sm:$0xf]
      %v5312 = vld [vmem:[%s219 + $0xc8] sm:$0xf]
      %v5313 = vld [vmem:[%s219 + $0xcc] sm:$0xf]
      %v5314 = vld [vmem:[%s219 + $0xd0] sm:$0xf]
      %v5315 = vld [vmem:[%s219 + $0xd4] sm:$0xf]
      %v5316 = vld [vmem:[%s219 + $0xd8] sm:$0x1]
      %v5317 = vld [vmem:[%s2701] sm:$0x3]
      %v5335 = vunpack.c.l.b16 %v5300
      %v5336 = vunpack.c.l.b16 %v5301
      %v5337 = vunpack.c.l.b16 %v5302
      %v5338 = vunpack.c.l.b16 %v5303
      %v5339 = vunpack.c.l.b16 %v5304
      %v5340 = vunpack.c.l.b16 %v5305
      %v5341 = vunpack.c.l.b16 %v5306
      %v5342 = vunpack.c.l.b16 %v5307
      %v5343 = vunpack.c.l.b16 %v5308
      %v5344 = vunpack.c.l.b16 %v5309
      %v5345 = vunpack.c.l.b16 %v5310
      %v5346 = vunpack.c.l.b16 %v5311
      %v5347 = vunpack.c.l.b16 %v5312
      %v5348 = vunpack.c.l.b16 %v5313
      %v5349 = vunpack.c.l.b16 %v5314
      %v5350 = vunpack.c.l.b16 %v5315
      %v5351 = vunpack.c.l.b16 %v5316
      %v5352 = vpack.c.b16 %v5336, %v5335
      %v5353 = vpack.c.b16 %v5338, %v5337
      %v5354 = vpack.c.b16 %v5340, %v5339
      %v5355 = vpack.c.b16 %v5342, %v5341
      %v5356 = vpack.c.b16 %v5344, %v5343
      %v5357 = vpack.c.b16 %v5346, %v5345
      %v5358 = vpack.c.b16 %v5348, %v5347
      %v5359 = vpack.c.b16 %v5350, %v5349
      %v5360 = vpack.c.b16 %v5351, %v5351
      %v5362 = vshrl.u32 %v5352, 16
      %v5364 = vshll.u32 %v5352, 16
      %v5366 = vrot.slane %v5364, 1
      %v5367 = vor.u32 %v5362, %v5366
      %v5369 = vshll.u32 %v5353, 16
      %v5371 = vrot.slane %v5369, 1
      %v5372 = vsel %vm348, %v5367, %v5371
      %v5373 = vshrl.u32 %v5353, 16
      %v5375 = vor.u32 %v5373, %v5371
      %v5377 = vshll.u32 %v5354, 16
      %v5379 = vrot.slane %v5377, 1
      %v5380 = vsel %vm348, %v5375, %v5379
      %v5381 = vshrl.u32 %v5354, 16
      %v5383 = vor.u32 %v5381, %v5379
      %v5385 = vshll.u32 %v5355, 16
      %v5387 = vrot.slane %v5385, 1
      %v5388 = vsel %vm348, %v5383, %v5387
      %v5389 = vshrl.u32 %v5355, 16
      %v5391 = vor.u32 %v5389, %v5387
      %v5393 = vshll.u32 %v5356, 16
      %v5395 = vrot.slane %v5393, 1
      %v5396 = vsel %vm348, %v5391, %v5395
      %v5397 = vshrl.u32 %v5356, 16
      %v5399 = vor.u32 %v5397, %v5395
      %v5401 = vshll.u32 %v5357, 16
      %v5403 = vrot.slane %v5401, 1
      %v5404 = vsel %vm348, %v5399, %v5403
      %v5405 = vshrl.u32 %v5357, 16
      %v5407 = vor.u32 %v5405, %v5403
      %v5409 = vshll.u32 %v5358, 16
      %v5411 = vrot.slane %v5409, 1
      %v5412 = vsel %vm348, %v5407, %v5411
      %v5413 = vshrl.u32 %v5358, 16
      %v5415 = vor.u32 %v5413, %v5411
      %v5417 = vshll.u32 %v5359, 16
      %v5419 = vrot.slane %v5417, 1
      %v5420 = vsel %vm348, %v5415, %v5419
      %v5421 = vshrl.u32 %v5359, 16
      %v5423 = vor.u32 %v5421, %v5419
      %v5425 = vshll.u32 %v5360, 16
      %v5427 = vrot.slane %v5425, 1
      %v5428 = vsel %vm348, %v5423, %v5427
      %v5430 = vsel %vm481, %v5372, 0
      %v5433 = vsel %vm481, %v5380, 0
      %v5436 = vsel %vm481, %v5388, 0
      %v5439 = vsel %vm481, %v5396, 0
      %v5442 = vsel %vm481, %v5404, 0
      %v5445 = vsel %vm481, %v5412, 0
      %v5448 = vsel %vm481, %v5420, 0
      %v5451 = vsel %vm481, %v5428, 0
      %v5454 = vsel %vm530, %v5317, 0
      %5456 = vmatprep.subr.bf16.mxu0 0
      %5457 = vmatpush1.bf16.msra.mxu0 0
      %5458 = vmatprep.subr.bf16.mxu0 0
      %5459 = vmatpush1.bf16.msra.mxu0 0
      %5460 = vmatprep.subr.bf16.mxu0 0
      %5461 = vmatpush1.bf16.msra.mxu0 0
      %5462 = vmatprep.subr.bf16.mxu0 0
      %5463 = vmatpush1.bf16.msra.mxu0 0
      %5464 = vmatprep.subr.bf16.mxu0 0
      %5465 = vmatpush1.bf16.msra.mxu0 0
      %5466 = vmatprep.subr.bf16.mxu0 0
      %5467 = vmatpush1.bf16.msra.mxu0 0
      %5468 = vmatprep.subr.bf16.mxu0 0
      %5469 = vmatpush1.bf16.msra.mxu0 0
      %5470 = vmatprep.subr.bf16.mxu0 0
      %5471 = vmatpush1.bf16.msra.mxu0 %v5454
      %5472 = vmatprep.subr.bf16.mxu0 0
      %5473 = vmatpush2.bf16.msra.mxu0 0
      %5474 = vmatprep.subr.bf16.mxu0 0
      %5475 = vmatpush2.bf16.msra.mxu0 0
      %5476 = vmatprep.subr.bf16.mxu0 0
      %5477 = vmatpush2.bf16.msra.mxu0 0
      %5478 = vmatprep.subr.bf16.mxu0 0
      %5479 = vmatpush2.bf16.msra.mxu0 0
      %5480 = vmatprep.subr.bf16.mxu0 0
      %5481 = vmatpush2.bf16.msra.mxu0 0
      %5482 = vmatprep.subr.bf16.mxu0 0
      %5483 = vmatpush2.bf16.msra.mxu0 0
      %5484 = vmatprep.subr.bf16.mxu0 0
      %5485 = vmatpush2.bf16.msra.mxu0 0
      %5486 = vmatprep.subr.bf16.mxu0 0
      %5487 = vmatpush2.bf16.msra.mxu0 0
      %5488 = vmatprep.mubr.bf16.mxu0 0
      %5489 = vmatmul.mubr.bf16.gmra.mxu0 %v5430
      %v5490 = vpop.f32.mrf.mxu0
      %v5491 = vadd.f32 0.0, %v5490
      %v5492 = vpop.f32.mrf.mxu0
      %v5493 = vpop.f32.mrf.mxu0
      %v5494 = vadd.f32 0.0, %v5493
      %v5495 = vpop.f32.mrf.mxu0
      %5496 = vmatprep.mubr.bf16.mxu0 0
      %5497 = vmatmul.mubr.bf16.gmra.mxu0 %v5433
      %v5498 = vpop.f32.mrf.mxu0
      %v5499 = vadd.f32 0.0, %v5498
      %v5500 = vpop.f32.mrf.mxu0
      %v5501 = vpop.f32.mrf.mxu0
      %v5502 = vadd.f32 0.0, %v5501
      %v5503 = vpop.f32.mrf.mxu0
      %5504 = vmatprep.mubr.bf16.mxu0 0
      %5505 = vmatmul.mubr.bf16.gmra.mxu0 %v5436
      %v5506 = vpop.f32.mrf.mxu0
      %v5507 = vadd.f32 0.0, %v5506
      %v5508 = vpop.f32.mrf.mxu0
      %v5509 = vpop.f32.mrf.mxu0
      %v5510 = vadd.f32 0.0, %v5509
      %v5511 = vpop.f32.mrf.mxu0
      %5512 = vmatprep.mubr.bf16.mxu0 0
      %5513 = vmatmul.mubr.bf16.gmra.mxu0 %v5439
      %v5514 = vpop.f32.mrf.mxu0
      %v5515 = vadd.f32 0.0, %v5514
      %v5516 = vpop.f32.mrf.mxu0
      %v5517 = vpop.f32.mrf.mxu0
      %v5518 = vadd.f32 0.0, %v5517
      %v5519 = vpop.f32.mrf.mxu0
      %5520 = vmatprep.mubr.bf16.mxu0 0
      %5521 = vmatmul.mubr.bf16.gmra.mxu0 %v5442
      %v5522 = vpop.f32.mrf.mxu0
      %v5523 = vadd.f32 0.0, %v5522
      %v5524 = vpop.f32.mrf.mxu0
      %v5525 = vpop.f32.mrf.mxu0
      %v5526 = vadd.f32 0.0, %v5525
      %v5527 = vpop.f32.mrf.mxu0
      %5528 = vmatprep.mubr.bf16.mxu0 0
      %5529 = vmatmul.mubr.bf16.gmra.mxu0 %v5445
      %v5530 = vpop.f32.mrf.mxu0
      %v5531 = vadd.f32 0.0, %v5530
      %v5532 = vpop.f32.mrf.mxu0
      %v5533 = vpop.f32.mrf.mxu0
      %v5534 = vadd.f32 0.0, %v5533
      %v5535 = vpop.f32.mrf.mxu0
      %5536 = vmatprep.mubr.bf16.mxu0 0
      %5537 = vmatmul.mubr.bf16.gmra.mxu0 %v5448
      %v5538 = vpop.f32.mrf.mxu0
      %v5539 = vadd.f32 0.0, %v5538
      %v5540 = vpop.f32.mrf.mxu0
      %v5541 = vpop.f32.mrf.mxu0
      %v5542 = vadd.f32 0.0, %v5541
      %v5543 = vpop.f32.mrf.mxu0
      %5544 = vmatprep.mubr.bf16.mxu0 0
      %5545 = vmatmul.mubr.bf16.gmra.mxu0 %v5451
      %v5546 = vpop.f32.mrf.mxu0
      %v5547 = vadd.f32 0.0, %v5546
      %v5548 = vpop.f32.mrf.mxu0
      %v5549 = vpop.f32.mrf.mxu0
      %v5550 = vadd.f32 0.0, %v5549
      %v5551 = vpop.f32.mrf.mxu0
      %5552 = vdwg.mxu0
      %v5553 = vadd.f32 %v5284, %v5491
      %v5554 = vadd.f32 %v5285, %v5494
      %v5555 = vadd.f32 %v5286, %v5499
      %v5556 = vadd.f32 %v5287, %v5502
      %v5557 = vadd.f32 %v5288, %v5507
      %v5558 = vadd.f32 %v5289, %v5510
      %v5559 = vadd.f32 %v5290, %v5515
      %v5560 = vadd.f32 %v5291, %v5518
      %v5561 = vadd.f32 %v5292, %v5523
      %v5562 = vadd.f32 %v5293, %v5526
      %v5563 = vadd.f32 %v5294, %v5531
      %v5564 = vadd.f32 %v5295, %v5534
      %v5565 = vadd.f32 %v5296, %v5539
      %v5566 = vadd.f32 %v5297, %v5542
      %v5567 = vadd.f32 %v5298, %v5547
      %v5568 = vadd.f32 %v5299, %v5550
      %v5569 = vld [vmem:[%s219 + $0x98] sm:$0xe]
      %v5570 = vld [vmem:[%s3163] sm:$0x3]
      %v5572 = vunpack.c.l.b16 %v5569
      %v5573 = vpack.c.b16 %v5336, %v5572
      %v5574 = vrot.slane %v5573, 1
      %v5575 = vrot.slane %v5353, 1
      %v5576 = vsel %vm897, %v5574, %v5575
      %v5577 = vrot.slane %v5354, 1
      %v5578 = vsel %vm897, %v5575, %v5577
      %v5579 = vrot.slane %v5355, 1
      %v5580 = vsel %vm897, %v5577, %v5579
      %v5581 = vrot.slane %v5356, 1
      %v5582 = vsel %vm897, %v5579, %v5581
      %v5583 = vrot.slane %v5357, 1
      %v5584 = vsel %vm897, %v5581, %v5583
      %v5585 = vrot.slane %v5358, 1
      %v5586 = vsel %vm897, %v5583, %v5585
      %v5587 = vrot.slane %v5359, 1
      %v5588 = vsel %vm897, %v5585, %v5587
      %v5589 = vrot.slane %v5360, 1
      %v5590 = vsel %vm897, %v5587, %v5589
      %v5592 = vsel %vm481, %v5576, 0
      %v5595 = vsel %vm481, %v5578, 0
      %v5598 = vsel %vm481, %v5580, 0
      %v5601 = vsel %vm481, %v5582, 0
      %v5604 = vsel %vm481, %v5584, 0
      %v5607 = vsel %vm481, %v5586, 0
      %v5610 = vsel %vm481, %v5588, 0
      %v5613 = vsel %vm481, %v5590, 0
      %v5616 = vsel %vm530, %v5570, 0
      %5618 = vmatprep.subr.bf16.mxu0 0
      %5619 = vmatpush1.bf16.msra.mxu0 0
      %5620 = vmatprep.subr.bf16.mxu0 0
      %5621 = vmatpush1.bf16.msra.mxu0 0
      %5622 = vmatprep.subr.bf16.mxu0 0
      %5623 = vmatpush1.bf16.msra.mxu0 0
      %5624 = vmatprep.subr.bf16.mxu0 0
      %5625 = vmatpush1.bf16.msra.mxu0 0
      %5626 = vmatprep.subr.bf16.mxu0 0
      %5627 = vmatpush1.bf16.msra.mxu0 0
      %5628 = vmatprep.subr.bf16.mxu0 0
      %5629 = vmatpush1.bf16.msra.mxu0 0
      %5630 = vmatprep.subr.bf16.mxu0 0
      %5631 = vmatpush1.bf16.msra.mxu0 0
      %5632 = vmatprep.subr.bf16.mxu0 0
      %5633 = vmatpush1.bf16.msra.mxu0 %v5616
      %5634 = vmatprep.subr.bf16.mxu0 0
      %5635 = vmatpush2.bf16.msra.mxu0 0
      %5636 = vmatprep.subr.bf16.mxu0 0
      %5637 = vmatpush2.bf16.msra.mxu0 0
      %5638 = vmatprep.subr.bf16.mxu0 0
      %5639 = vmatpush2.bf16.msra.mxu0 0
      %5640 = vmatprep.subr.bf16.mxu0 0
      %5641 = vmatpush2.bf16.msra.mxu0 0
      %5642 = vmatprep.subr.bf16.mxu0 0
      %5643 = vmatpush2.bf16.msra.mxu0 0
      %5644 = vmatprep.subr.bf16.mxu0 0
      %5645 = vmatpush2.bf16.msra.mxu0 0
      %5646 = vmatprep.subr.bf16.mxu0 0
      %5647 = vmatpush2.bf16.msra.mxu0 0
      %5648 = vmatprep.subr.bf16.mxu0 0
      %5649 = vmatpush2.bf16.msra.mxu0 0
      %5650 = vmatprep.mubr.bf16.mxu0 0
      %5651 = vmatmul.mubr.bf16.gmra.mxu0 %v5592
      %v5652 = vpop.f32.mrf.mxu0
      %v5653 = vadd.f32 0.0, %v5652
      %v5654 = vpop.f32.mrf.mxu0
      %v5655 = vpop.f32.mrf.mxu0
      %v5656 = vadd.f32 0.0, %v5655
      %v5657 = vpop.f32.mrf.mxu0
      %5658 = vmatprep.mubr.bf16.mxu0 0
      %5659 = vmatmul.mubr.bf16.gmra.mxu0 %v5595
      %v5660 = vpop.f32.mrf.mxu0
      %v5661 = vadd.f32 0.0, %v5660
      %v5662 = vpop.f32.mrf.mxu0
      %v5663 = vpop.f32.mrf.mxu0
      %v5664 = vadd.f32 0.0, %v5663
      %v5665 = vpop.f32.mrf.mxu0
      %5666 = vmatprep.mubr.bf16.mxu0 0
      %5667 = vmatmul.mubr.bf16.gmra.mxu0 %v5598
      %v5668 = vpop.f32.mrf.mxu0
      %v5669 = vadd.f32 0.0, %v5668
      %v5670 = vpop.f32.mrf.mxu0
      %v5671 = vpop.f32.mrf.mxu0
      %v5672 = vadd.f32 0.0, %v5671
      %v5673 = vpop.f32.mrf.mxu0
      %5674 = vmatprep.mubr.bf16.mxu0 0
      %5675 = vmatmul.mubr.bf16.gmra.mxu0 %v5601
      %v5676 = vpop.f32.mrf.mxu0
      %v5677 = vadd.f32 0.0, %v5676
      %v5678 = vpop.f32.mrf.mxu0
      %v5679 = vpop.f32.mrf.mxu0
      %v5680 = vadd.f32 0.0, %v5679
      %v5681 = vpop.f32.mrf.mxu0
      %5682 = vmatprep.mubr.bf16.mxu0 0
      %5683 = vmatmul.mubr.bf16.gmra.mxu0 %v5604
      %v5684 = vpop.f32.mrf.mxu0
      %v5685 = vadd.f32 0.0, %v5684
      %v5686 = vpop.f32.mrf.mxu0
      %v5687 = vpop.f32.mrf.mxu0
      %v5688 = vadd.f32 0.0, %v5687
      %v5689 = vpop.f32.mrf.mxu0
      %5690 = vmatprep.mubr.bf16.mxu0 0
      %5691 = vmatmul.mubr.bf16.gmra.mxu0 %v5607
      %v5692 = vpop.f32.mrf.mxu0
      %v5693 = vadd.f32 0.0, %v5692
      %v5694 = vpop.f32.mrf.mxu0
      %v5695 = vpop.f32.mrf.mxu0
      %v5696 = vadd.f32 0.0, %v5695
      %v5697 = vpop.f32.mrf.mxu0
      %5698 = vmatprep.mubr.bf16.mxu0 0
      %5699 = vmatmul.mubr.bf16.gmra.mxu0 %v5610
      %v5700 = vpop.f32.mrf.mxu0
      %v5701 = vadd.f32 0.0, %v5700
      %v5702 = vpop.f32.mrf.mxu0
      %v5703 = vpop.f32.mrf.mxu0
      %v5704 = vadd.f32 0.0, %v5703
      %v5705 = vpop.f32.mrf.mxu0
      %5706 = vmatprep.mubr.bf16.mxu0 0
      %5707 = vmatmul.mubr.bf16.gmra.mxu0 %v5613
      %v5708 = vpop.f32.mrf.mxu0
      %v5709 = vadd.f32 0.0, %v5708
      %v5710 = vpop.f32.mrf.mxu0
      %v5711 = vpop.f32.mrf.mxu0
      %v5712 = vadd.f32 0.0, %v5711
      %v5713 = vpop.f32.mrf.mxu0
      %5714 = vdwg.mxu0
      %v5715 = vadd.f32 %v5553, %v5653
      %v5716 = vadd.f32 %v5554, %v5656
      %v5717 = vadd.f32 %v5555, %v5661
      %v5718 = vadd.f32 %v5556, %v5664
      %v5719 = vadd.f32 %v5557, %v5669
      %v5720 = vadd.f32 %v5558, %v5672
      %v5721 = vadd.f32 %v5559, %v5677
      %v5722 = vadd.f32 %v5560, %v5680
      %v5723 = vadd.f32 %v5561, %v5685
      %v5724 = vadd.f32 %v5562, %v5688
      %v5725 = vadd.f32 %v5563, %v5693
      %v5726 = vadd.f32 %v5564, %v5696
      %v5727 = vadd.f32 %v5565, %v5701
      %v5728 = vadd.f32 %v5566, %v5704
      %v5729 = vadd.f32 %v5567, %v5709
      %v5730 = vadd.f32 %v5568, %v5712
      %v5731 = vadd.f32 %v5715, %v3449
      %v5732 = vadd.f32 %v5716, %v3449
      %v5733 = vadd.f32 %v5717, %v3449
      %v5734 = vadd.f32 %v5718, %v3449
      %v5735 = vadd.f32 %v5719, %v3449
      %v5736 = vadd.f32 %v5720, %v3449
      %v5737 = vadd.f32 %v5721, %v3449
      %v5738 = vadd.f32 %v5722, %v3449
      %v5739 = vadd.f32 %v5723, %v3449
      %v5740 = vadd.f32 %v5724, %v3449
      %v5741 = vadd.f32 %v5725, %v3449
      %v5742 = vadd.f32 %v5726, %v3449
      %v5743 = vadd.f32 %v5727, %v3449
      %v5744 = vadd.f32 %v5728, %v3449
      %v5745 = vadd.f32 %v5729, %v3449
      %v5746 = vadd.f32 %v5730, %v3449
      %vm5747 = vcmp.ge.f32.partialorder %v5731, 0.0
      %vm5748 = vcmp.ge.f32.partialorder %v5732, 0.0
      %vm5749 = vcmp.ge.f32.partialorder %v5733, 0.0
      %vm5750 = vcmp.ge.f32.partialorder %v5734, 0.0
      %vm5751 = vcmp.ge.f32.partialorder %v5735, 0.0
      %vm5752 = vcmp.ge.f32.partialorder %v5736, 0.0
      %vm5753 = vcmp.ge.f32.partialorder %v5737, 0.0
      %vm5754 = vcmp.ge.f32.partialorder %v5738, 0.0
      %vm5755 = vcmp.ge.f32.partialorder %v5739, 0.0
      %vm5756 = vcmp.ge.f32.partialorder %v5740, 0.0
      %vm5757 = vcmp.ge.f32.partialorder %v5741, 0.0
      %vm5758 = vcmp.ge.f32.partialorder %v5742, 0.0
      %vm5759 = vcmp.ge.f32.partialorder %v5743, 0.0
      %vm5760 = vcmp.ge.f32.partialorder %v5744, 0.0
      %vm5761 = vcmp.ge.f32.partialorder %v5745, 0.0
      %vm5762 = vcmp.ge.f32.partialorder %v5746, 0.0
      %v5763 = vmul.f32 %v5731, 0.01
      %v5764 = vmul.f32 %v5732, 0.01
      %v5765 = vmul.f32 %v5733, 0.01
      %v5766 = vmul.f32 %v5734, 0.01
      %v5767 = vmul.f32 %v5735, 0.01
      %v5768 = vmul.f32 %v5736, 0.01
      %v5769 = vmul.f32 %v5737, 0.01
      %v5770 = vmul.f32 %v5738, 0.01
      %v5771 = vmul.f32 %v5739, 0.01
      %v5772 = vmul.f32 %v5740, 0.01
      %v5773 = vmul.f32 %v5741, 0.01
      %v5774 = vmul.f32 %v5742, 0.01
      %v5775 = vmul.f32 %v5743, 0.01
      %v5776 = vmul.f32 %v5744, 0.01
      %v5777 = vmul.f32 %v5745, 0.01
      %v5778 = vmul.f32 %v5746, 0.01
      %v5779 = vsel %vm5747, %v5731, %v5763
      %v5780 = vsel %vm5748, %v5732, %v5764
      %v5781 = vsel %vm5749, %v5733, %v5765
      %v5782 = vsel %vm5750, %v5734, %v5766
      %v5783 = vsel %vm5751, %v5735, %v5767
      %v5784 = vsel %vm5752, %v5736, %v5768
      %v5785 = vsel %vm5753, %v5737, %v5769
      %v5786 = vsel %vm5754, %v5738, %v5770
      %v5787 = vsel %vm5755, %v5739, %v5771
      %v5788 = vsel %vm5756, %v5740, %v5772
      %v5789 = vsel %vm5757, %v5741, %v5773
      %v5790 = vsel %vm5758, %v5742, %v5774
      %v5791 = vsel %vm5759, %v5743, %v5775
      %v5792 = vsel %vm5760, %v5744, %v5776
      %v5793 = vsel %vm5761, %v5745, %v5777
      %v5794 = vsel %vm5762, %v5746, %v5778
      %v5795 = vpack.c.bf16 %v5780, %v5779
      %v5796 = vpack.c.bf16 %v5782, %v5781
      %v5797 = vpack.c.bf16 %v5784, %v5783
      %v5798 = vpack.c.bf16 %v5786, %v5785
      %v5799 = vpack.c.bf16 %v5788, %v5787
      %v5800 = vpack.c.bf16 %v5790, %v5789
      %v5801 = vpack.c.bf16 %v5792, %v5791
      %v5802 = vpack.c.bf16 %v5794, %v5793
      %v5804 = vsel %vm3601, %v5795, 0
      %v5807 = vsel %vm3601, %v5796, 0
      %v5810 = vsel %vm3601, %v5797, 0
      %v5813 = vsel %vm3601, %v5798, 0
      %v5816 = vsel %vm3601, %v5799, 0
      %v5819 = vsel %vm3601, %v5800, 0
      %v5822 = vsel %vm3601, %v5801, 0
      %v5825 = vsel %vm3601, %v5802, 0
      %5827 = vmatprep.subr.bf16.mxu0 0
      %5828 = vmatpush1.bf16.msra.mxu0 0
      %5829 = vmatprep.subr.bf16.mxu0 0
      %5830 = vmatpush1.bf16.msra.mxu0 0
      %5831 = vmatprep.subr.bf16.mxu0 0
      %5832 = vmatpush1.bf16.msra.mxu0 0
      %5833 = vmatprep.subr.bf16.mxu0 0
      %5834 = vmatpush1.bf16.msra.mxu0 0
      %5835 = vmatprep.subr.bf16.mxu0 0
      %5836 = vmatpush1.bf16.msra.mxu0 0
      %5837 = vmatprep.subr.bf16.mxu0 0
      %5838 = vmatpush1.bf16.msra.mxu0 0
      %5839 = vmatprep.subr.bf16.mxu0 0
      %5840 = vmatpush1.bf16.msra.mxu0 0
      %5841 = vmatprep.subr.bf16.mxu0 0
      %5842 = vmatpush1.bf16.msra.mxu0 %v3652
      %5843 = vmatprep.subr.bf16.mxu0 0
      %5844 = vmatpush2.bf16.msra.mxu0 0
      %5845 = vmatprep.subr.bf16.mxu0 0
      %5846 = vmatpush2.bf16.msra.mxu0 0
      %5847 = vmatprep.subr.bf16.mxu0 0
      %5848 = vmatpush2.bf16.msra.mxu0 0
      %5849 = vmatprep.subr.bf16.mxu0 0
      %5850 = vmatpush2.bf16.msra.mxu0 0
      %5851 = vmatprep.subr.bf16.mxu0 0
      %5852 = vmatpush2.bf16.msra.mxu0 0
      %5853 = vmatprep.subr.bf16.mxu0 0
      %5854 = vmatpush2.bf16.msra.mxu0 0
      %5855 = vmatprep.subr.bf16.mxu0 0
      %5856 = vmatpush2.bf16.msra.mxu0 0
      %5857 = vmatprep.subr.bf16.mxu0 0
      %5858 = vmatpush2.bf16.msra.mxu0 0
      %5859 = vmatprep.mubr.bf16.mxu0 0
      %5860 = vmatmul.mubr.bf16.gmra.mxu0 %v5804
      %v5861 = vpop.f32.mrf.mxu0
      %v5862 = vadd.f32 %v3599, %v5861
      %v5863 = vpop.f32.mrf.mxu0
      %v5864 = vpop.f32.mrf.mxu0
      %v5865 = vadd.f32 %v3599, %v5864
      %v5866 = vpop.f32.mrf.mxu0
      %5867 = vmatprep.mubr.bf16.mxu0 0
      %5868 = vmatmul.mubr.bf16.gmra.mxu0 %v5807
      %v5869 = vpop.f32.mrf.mxu0
      %v5870 = vadd.f32 %v3599, %v5869
      %v5871 = vpop.f32.mrf.mxu0
      %v5872 = vpop.f32.mrf.mxu0
      %v5873 = vadd.f32 %v3599, %v5872
      %v5874 = vpop.f32.mrf.mxu0
      %5875 = vmatprep.mubr.bf16.mxu0 0
      %5876 = vmatmul.mubr.bf16.gmra.mxu0 %v5810
      %v5877 = vpop.f32.mrf.mxu0
      %v5878 = vadd.f32 %v3599, %v5877
      %v5879 = vpop.f32.mrf.mxu0
      %v5880 = vpop.f32.mrf.mxu0
      %v5881 = vadd.f32 %v3599, %v5880
      %v5882 = vpop.f32.mrf.mxu0
      %5883 = vmatprep.mubr.bf16.mxu0 0
      %5884 = vmatmul.mubr.bf16.gmra.mxu0 %v5813
      %v5885 = vpop.f32.mrf.mxu0
      %v5886 = vadd.f32 %v3599, %v5885
      %v5887 = vpop.f32.mrf.mxu0
      %v5888 = vpop.f32.mrf.mxu0
      %v5889 = vadd.f32 %v3599, %v5888
      %v5890 = vpop.f32.mrf.mxu0
      %5891 = vmatprep.mubr.bf16.mxu0 0
      %5892 = vmatmul.mubr.bf16.gmra.mxu0 %v5816
      %v5893 = vpop.f32.mrf.mxu0
      %v5894 = vadd.f32 %v3599, %v5893
      %v5895 = vpop.f32.mrf.mxu0
      %v5896 = vpop.f32.mrf.mxu0
      %v5897 = vadd.f32 %v3599, %v5896
      %v5898 = vpop.f32.mrf.mxu0
      %5899 = vmatprep.mubr.bf16.mxu0 0
      %5900 = vmatmul.mubr.bf16.gmra.mxu0 %v5819
      %v5901 = vpop.f32.mrf.mxu0
      %v5902 = vadd.f32 %v3599, %v5901
      %v5903 = vpop.f32.mrf.mxu0
      %v5904 = vpop.f32.mrf.mxu0
      %v5905 = vadd.f32 %v3599, %v5904
      %v5906 = vpop.f32.mrf.mxu0
      %5907 = vmatprep.mubr.bf16.mxu0 0
      %5908 = vmatmul.mubr.bf16.gmra.mxu0 %v5822
      %v5909 = vpop.f32.mrf.mxu0
      %v5910 = vadd.f32 %v3599, %v5909
      %v5911 = vpop.f32.mrf.mxu0
      %v5912 = vpop.f32.mrf.mxu0
      %v5913 = vadd.f32 %v3599, %v5912
      %v5914 = vpop.f32.mrf.mxu0
      %5915 = vmatprep.mubr.bf16.mxu0 0
      %5916 = vmatmul.mubr.bf16.gmra.mxu0 %v5825
      %v5917 = vpop.f32.mrf.mxu0
      %v5918 = vadd.f32 %v3599, %v5917
      %v5919 = vpop.f32.mrf.mxu0
      %v5920 = vpop.f32.mrf.mxu0
      %v5921 = vadd.f32 %v3599, %v5920
      %v5922 = vpop.f32.mrf.mxu0
      %5923 = vdwg.mxu0
      %vm5924 = vcmp.ge.f32.partialorder %v5862, 0.0
      %vm5925 = vcmp.ge.f32.partialorder %v5865, 0.0
      %vm5926 = vcmp.ge.f32.partialorder %v5870, 0.0
      %vm5927 = vcmp.ge.f32.partialorder %v5873, 0.0
      %vm5928 = vcmp.ge.f32.partialorder %v5878, 0.0
      %vm5929 = vcmp.ge.f32.partialorder %v5881, 0.0
      %vm5930 = vcmp.ge.f32.partialorder %v5886, 0.0
      %vm5931 = vcmp.ge.f32.partialorder %v5889, 0.0
      %vm5932 = vcmp.ge.f32.partialorder %v5894, 0.0
      %vm5933 = vcmp.ge.f32.partialorder %v5897, 0.0
      %vm5934 = vcmp.ge.f32.partialorder %v5902, 0.0
      %vm5935 = vcmp.ge.f32.partialorder %v5905, 0.0
      %vm5936 = vcmp.ge.f32.partialorder %v5910, 0.0
      %vm5937 = vcmp.ge.f32.partialorder %v5913, 0.0
      %vm5938 = vcmp.ge.f32.partialorder %v5918, 0.0
      %vm5939 = vcmp.ge.f32.partialorder %v5921, 0.0
      %v5940 = vmul.f32 %v5862, 0.01
      %v5941 = vmul.f32 %v5865, 0.01
      %v5942 = vmul.f32 %v5870, 0.01
      %v5943 = vmul.f32 %v5873, 0.01
      %v5944 = vmul.f32 %v5878, 0.01
      %v5945 = vmul.f32 %v5881, 0.01
      %v5946 = vmul.f32 %v5886, 0.01
      %v5947 = vmul.f32 %v5889, 0.01
      %v5948 = vmul.f32 %v5894, 0.01
      %v5949 = vmul.f32 %v5897, 0.01
      %v5950 = vmul.f32 %v5902, 0.01
      %v5951 = vmul.f32 %v5905, 0.01
      %v5952 = vmul.f32 %v5910, 0.01
      %v5953 = vmul.f32 %v5913, 0.01
      %v5954 = vmul.f32 %v5918, 0.01
      %v5955 = vmul.f32 %v5921, 0.01
      %v5956 = vsel %vm5924, %v5862, %v5940
      %v5957 = vsel %vm5925, %v5865, %v5941
      %v5958 = vsel %vm5926, %v5870, %v5942
      %v5959 = vsel %vm5927, %v5873, %v5943
      %v5960 = vsel %vm5928, %v5878, %v5944
      %v5961 = vsel %vm5929, %v5881, %v5945
      %v5962 = vsel %vm5930, %v5886, %v5946
      %v5963 = vsel %vm5931, %v5889, %v5947
      %v5964 = vsel %vm5932, %v5894, %v5948
      %v5965 = vsel %vm5933, %v5897, %v5949
      %v5966 = vsel %vm5934, %v5902, %v5950
      %v5967 = vsel %vm5935, %v5905, %v5951
      %v5968 = vsel %vm5936, %v5910, %v5952
      %v5969 = vsel %vm5937, %v5913, %v5953
      %v5970 = vsel %vm5938, %v5918, %v5954
      %v5971 = vsel %vm5939, %v5921, %v5955
      %5972 = vst.msk [vmem:[%s224 + $0x100] sm:$0xff] %vm3601, %v5956
      %5973 = vst.msk [vmem:[%s224 + $0x108] sm:$0xff] %vm3601, %v5957
      %5974 = vst.msk [vmem:[%s224 + $0x110] sm:$0xff] %vm3601, %v5958
      %5975 = vst.msk [vmem:[%s224 + $0x118] sm:$0xff] %vm3601, %v5959
      %5976 = vst.msk [vmem:[%s224 + $0x120] sm:$0xff] %vm3601, %v5960
      %5977 = vst.msk [vmem:[%s224 + $0x128] sm:$0xff] %vm3601, %v5961
      %5978 = vst.msk [vmem:[%s224 + $0x130] sm:$0xff] %vm3601, %v5962
      %5979 = vst.msk [vmem:[%s224 + $0x138] sm:$0xff] %vm3601, %v5963
      %5980 = vst.msk [vmem:[%s224 + $0x140] sm:$0xff] %vm3601, %v5964
      %5981 = vst.msk [vmem:[%s224 + $0x148] sm:$0xff] %vm3601, %v5965
      %5982 = vst.msk [vmem:[%s224 + $0x150] sm:$0xff] %vm3601, %v5966
      %5983 = vst.msk [vmem:[%s224 + $0x158] sm:$0xff] %vm3601, %v5967
      %5984 = vst.msk [vmem:[%s224 + $0x160] sm:$0xff] %vm3601, %v5968
      %5985 = vst.msk [vmem:[%s224 + $0x168] sm:$0xff] %vm3601, %v5969
      %5986 = vst.msk [vmem:[%s224 + $0x170] sm:$0xff] %vm3601, %v5970
      %5987 = vst.msk [vmem:[%s224 + $0x178] sm:$0xff] %vm3601, %v5971
      %p5988 = scmp.lt.s32.totalorder %s16, 7
      %s5989 = scalar_select %p5988, %s16, 7
      %s5990 = smul.addr %s5989, 48
      %s5991 = smul.addr %s5990, 8
      %s5992 = scalar_lea.vmem %s5, %s5991
      // Predicated region
      $region41: #{scaleup_forward.3} parent=39 // pred_check
        %p5993 = pneg %p144
      $region42: #{scaleup_forward.3} parent=39 // pred_check_branch
        %5995 = sbr.rel (%p5993) target = $region44
      $region43: #{scaleup_forward.3} parent=39 // pred_region
        _
      $region44: #{scaleup_forward.3} parent=39 // pred_fallthru
        _
    $region40: #{scaleup_forward.3} parent=5 // pred_fallthru
      _
    %p5996 = scmp.le.s32.totalorder 2, %s11
    // Predicated region
    $region45: #{scaleup_forward.3} parent=5 // pred_check
      %p5997 = pneg %p5996
    $region46: #{scaleup_forward.3} parent=5 // pred_check_branch
      %5999 = sbr.rel (%p5997) target = $region48
    $region47: #{scaleup_forward.3} parent=5 // pred_region
      %s6000 = ssub.s32 %s11, 2
      // Predicated region
      $region49: #{scaleup_forward.3} parent=47 // pred_check
        %p6001 = pneg %p150
      $region50: #{scaleup_forward.3} parent=47 // pred_check_branch
        %6003 = sbr.rel (%p6001) target = $region52
      $region51: #{scaleup_forward.3} parent=47 // pred_region
        %p6004 = scmp.lt.s32.totalorder %s17, 7
        %s6005 = scalar_select %p6004, %s17, 7
        %s6006 = smul.addr %s6005, 48
        %s6007 = smul.addr %s6006, 8
        %s6008 = scalar_lea.vmem %s5, %s6007
      $region52: #{scaleup_forward.3} parent=47 // pred_fallthru
        _
    $region48: #{scaleup_forward.3} parent=5 // pred_fallthru
      _
  $region6: #{scaleup_forward.3} parent=0 // loop_footer
    %s15 = sadd.s32 1, %s11
  $region7: #{scaleup_forward.3} parent=0 // loop_footer_branch
    %10 = sbr.rel target = $region3
  $region8: #{scaleup_forward.3} parent=0 // loop_exit
    _

</llo_original>
